<compile_context>
chip_gen: v7x
topology: tpu7x:2x2x1
jax: 0.10.0
libtpu: 0.0.40
codegen_flags: <defaults>
</compile_context>

<pallas_src>
import functools

import jax
import jax.numpy as jnp
from jax.experimental import pallas as pl
from jax.experimental.pallas import tpu as pltpu

EPS = 1e-5


# ----------------------------- tile selection ------------------------------ #

def _pick_tile(dim, prefs):
    """Largest preferred tile that evenly divides `dim`, else the full dim."""
    for p in prefs:
        if p <= dim and dim % p == 0:
            return p
    return dim


_TM_PREFS = (1024, 512, 384, 256, 128, 64, 32, 16, 8)
_TN_PREFS = (256, 128)
_TK_PREFS = (512, 384, 256, 128)


# ----------------------------- Pallas kernels ------------------------------ #

def _conv_bn_act_kernel(x_ref, w_ref, sb_ref, o_ref, acc_ref, *, relu):
    """One (tm, tn) output tile: accumulate over K grid axis, fused BN (+ReLU)."""
    k = pl.program_id(2)

    @pl.when(k == 0)
    def _init():
        acc_ref[...] = jnp.zeros_like(acc_ref)

    acc_ref[...] += jnp.dot(x_ref[...], w_ref[...],
                            preferred_element_type=jnp.float32)

    @pl.when(k == pl.num_programs(2) - 1)
    def _finalize():
        y = acc_ref[...] * sb_ref[0:1, :] + sb_ref[1:2, :]   # f32 epilogue
        if relu:
            y = jnp.maximum(y, 0.0)
        o_ref[...] = y.astype(o_ref.dtype)


def _conv_bn_add_relu_kernel(x_ref, w_ref, sb_ref, res_ref, o_ref, acc_ref):
    """Same as above plus residual add before the ReLU (BasicBlock second conv)."""
    k = pl.program_id(2)

    @pl.when(k == 0)
    def _init():
        acc_ref[...] = jnp.zeros_like(acc_ref)

    acc_ref[...] += jnp.dot(x_ref[...], w_ref[...],
                            preferred_element_type=jnp.float32)

    @pl.when(k == pl.num_programs(2) - 1)
    def _finalize():
        y = acc_ref[...] * sb_ref[0:1, :] + sb_ref[1:2, :] + res_ref[...]
        o_ref[...] = jnp.maximum(y, 0.0).astype(o_ref.dtype)


def _maxpool_kernel(x_ref, o_ref):
    # x_ref: (9, tm, C) stacked shifted windows -> elementwise max over window axis.
    o_ref[...] = jnp.max(x_ref[...], axis=0)


def _avgpool_fc_kernel(x_ref, w_ref, b_ref, o_ref):
    # x_ref: (N, H*W, C) -> global average pool -> (N, C) @ (C, classes) + bias
    pooled = jnp.mean(x_ref[...], axis=1)
    o_ref[...] = jnp.dot(pooled, w_ref[...],
                         preferred_element_type=jnp.float32) + b_ref[...]


# ------------------------------- glue (JAX) -------------------------------- #

def _extract_patches(x, kh, kw, stride, pad):
    """x: NHWC -> (N*Ho*Wo, kh*kw*C) with (kh, kw, C)-major patch ordering."""
    N, H, W, C = x.shape
    Ho = (H + 2 * pad - kh) // stride + 1
    Wo = (W + 2 * pad - kw) // stride + 1

    if kh == 1 and kw == 1 and pad == 0:
        # 1x1 conv: pure (strided) subsampling, no window expansion.
        patches = x[:, ::stride, ::stride, :]
        return patches.reshape(N * Ho * Wo, C), (N, Ho, Wo)

    if pad == 0 and kh == stride and kw == stride and H % kh == 0 and W % kw == 0:
        # non-overlapping windows (stem conv k=2, s=2): a reshape, no gather.
        p = x.reshape(N, Ho, kh, Wo, kw, C).transpose(0, 1, 3, 2, 4, 5)
        return p.reshape(N * Ho * Wo, kh * kw * C), (N, Ho, Wo)

    if pad > 0:
        x = jnp.pad(x, ((0, 0), (pad, pad), (pad, pad), (0, 0)))
    cols = []
    for i in range(kh):
        for j in range(kw):
            cols.append(x[:, i:i + stride * (Ho - 1) + 1:stride,
                           j:j + stride * (Wo - 1) + 1:stride, :])
    patches = jnp.concatenate(cols, axis=-1)              # (N, Ho, Wo, kh*kw*C)
    return patches.reshape(N * Ho * Wo, kh * kw * C), (N, Ho, Wo)


def conv_bn(x, w, bn, *, stride, pad, relu=True, residual=None):
    """Conv2d(bias=False) + BatchNorm(eval) [+ residual] [+ ReLU] via tiled Pallas matmul.

    x: (N, H, W, Cin) f32;  w: (kh, kw, Cin, Cout);  bn: (gamma, beta, mean, var).
    MXU operands are bf16; accumulation and epilogue are f32.
    """
    kh, kw, cin, cout = w.shape
    cols, (N, Ho, Wo) = _extract_patches(x.astype(jnp.bfloat16), kh, kw, stride, pad)
    M, K = cols.shape
    wm = w.reshape(K, cout).astype(jnp.bfloat16)

    gamma, beta, mean, var = bn
    inv = gamma * jax.lax.rsqrt(var + EPS)
    scale = inv.astype(jnp.float32)
    bias = (beta - mean * inv).astype(jnp.float32)
    sb = jnp.stack([scale, bias], axis=0)                 # (2, cout) f32

    tm = _pick_tile(M, _TM_PREFS)
    tn = _pick_tile(cout, _TN_PREFS)
    tk = _pick_tile(K, _TK_PREFS)
    grid = (M // tm, cout // tn, K // tk)

    in_specs = [
        pl.BlockSpec((tm, tk), lambda i, j, k: (i, k)),    # activation patches
        pl.BlockSpec((tk, tn), lambda i, j, k: (k, j)),    # weights
        pl.BlockSpec((2, tn), lambda i, j, k: (0, j)),     # BN scale/bias (K-resident)
    ]
    args = [cols, wm, sb]

    bytes_accessed = (M * K + K * cout) * 2 + M * cout * 4 + 2 * cout * 4
    if residual is not None:
        res = residual.reshape(M, cout).astype(jnp.float32)
        in_specs.append(pl.BlockSpec((tm, tn), lambda i, j, k: (i, j)))
        args.append(res)
        bytes_accessed += M * cout * 4
        kernel = _conv_bn_add_relu_kernel
    else:
        kernel = functools.partial(_conv_bn_act_kernel, relu=relu)

    y = pl.pallas_call(
        kernel,
        out_shape=jax.ShapeDtypeStruct((M, cout), jnp.float32),
        grid_spec=pltpu.PrefetchScalarGridSpec(
            num_scalar_prefetch=0,
            grid=grid,
            in_specs=in_specs,
            out_specs=pl.BlockSpec((tm, tn), lambda i, j, k: (i, j)),
            scratch_shapes=[pltpu.VMEM((tm, tn), jnp.float32)]),
        compiler_params=pltpu.CompilerParams(
            dimension_semantics=("parallel", "parallel", "arbitrary"),
            vmem_limit_bytes=64 * 1024 * 1024),
        cost_estimate=pl.CostEstimate(
            flops=2 * M * cout * K,
            transcendentals=0,
            bytes_accessed=int(bytes_accessed)),
    )(*args)
    return y.reshape(N, Ho, Wo, cout)


def maxpool_3x3_s2_p1(x):
    """MaxPool2d(kernel_size=3, stride=2, padding=1) on NHWC, tiled Pallas reduction."""
    N, H, W, C = x.shape
    xp = jnp.pad(x, ((0, 0), (1, 1), (1, 1), (0, 0)), constant_values=-jnp.inf)
    Ho = (H + 2 - 3) // 2 + 1
    Wo = (W + 2 - 3) // 2 + 1
    cols = []
    for i in range(3):
        for j in range(3):
            cols.append(xp[:, i:i + 2 * (Ho - 1) + 1:2,
                            j:j + 2 * (Wo - 1) + 1:2, :])
    M = N * Ho * Wo
    stacked = jnp.stack(cols, axis=0).reshape(9, M, C)
    tm = _pick_tile(M, (1024, 512, 256, 128, 64, 32, 16, 8))
    out = pl.pallas_call(
        _maxpool_kernel,
        out_shape=jax.ShapeDtypeStruct((M, C), jnp.float32),
        grid_spec=pltpu.PrefetchScalarGridSpec(
            num_scalar_prefetch=0,
            grid=(M // tm,),
            in_specs=[pl.BlockSpec((9, tm, C), lambda i: (0, i, 0))],
            out_specs=pl.BlockSpec((tm, C), lambda i: (i, 0))),
        compiler_params=pltpu.CompilerParams(
            dimension_semantics=("parallel",)),
    )(stacked)
    return out.reshape(N, Ho, Wo, C)


# --------------------------- parameter construction ------------------------ #

def _conv_init(key, kh, kw, cin, cout):
    # kaiming_normal_(mode='fan_out', nonlinearity='relu'): std = sqrt(2 / (kh*kw*cout))
    std = (2.0 / (kh * kw * cout)) ** 0.5
    return jax.random.normal(key, (kh, kw, cin, cout), jnp.float32) * std


def _bn_init(key, c):
    k1, k2, k3, k4 = jax.random.split(key, 4)
    gamma = 1.0 + 0.1 * jax.random.normal(k1, (c,), jnp.float32)
    beta = 0.1 * jax.random.normal(k2, (c,), jnp.float32)
    mean = 0.1 * jax.random.normal(k3, (c,), jnp.float32)
    var = 1.0 + 0.5 * jax.random.uniform(k4, (c,), jnp.float32)
    return (gamma, beta, mean, var)


def init_resnet_params(key, blocks_num, num_classes=1000, feature_channel=3):
    """Arrays only — no Python ints in the pytree (strides are derived statically)."""
    expansion = 1  # BasicBlock
    keys = iter(jax.random.split(key, 256))
    params = {}
    in_ch = 64
    params["conv1"] = _conv_init(next(keys), 2, 2, feature_channel, in_ch)
    params["bn1"] = _bn_init(next(keys), in_ch)

    layers = []
    for li, (channel, nblk) in enumerate(zip([64, 128, 256, 512], blocks_num)):
        stride = 1 if li == 0 else 2
        blocks = []
        for bi in range(nblk):
            s = stride if bi == 0 else 1
            blk = {"conv1": _conv_init(next(keys), 3, 3, in_ch, channel),
                   "bn1": _bn_init(next(keys), channel),
                   "conv2": _conv_init(next(keys), 3, 3, channel, channel),
                   "bn2": _bn_init(next(keys), channel),
                   "downsample": None}
            if s != 1 or in_ch != channel * expansion:
                blk["downsample"] = {
                    "w": _conv_init(next(keys), 1, 1, in_ch, channel * expansion),
                    "bn": _bn_init(next(keys), channel * expansion)}
            in_ch = channel * expansion
            blocks.append(blk)
        layers.append(blocks)
    params["layers"] = layers

    # nn.Linear default init: U(-1/sqrt(fan_in), 1/sqrt(fan_in))
    fan_in = 512 * expansion
    bound = 1.0 / (fan_in ** 0.5)
    params["fc_w"] = jax.random.uniform(next(keys), (fan_in, num_classes),
                                        jnp.float32, -bound, bound)
    params["fc_b"] = jax.random.uniform(next(keys), (num_classes,),
                                        jnp.float32, -bound, bound)
    return params


# ------------------------------ forward pass ------------------------------- #

def basic_block(x, p, stride):
    """BasicBlock: conv-bn-relu, conv-bn, (+downsampled) identity add, relu."""
    if p["downsample"] is not None:
        identity = conv_bn(x, p["downsample"]["w"], p["downsample"]["bn"],
                           stride=stride, pad=0, relu=False)
    else:
        identity = x
    out = conv_bn(x, p["conv1"], p["bn1"], stride=stride, pad=1, relu=True)
    out = conv_bn(out, p["conv2"], p["bn2"], stride=1, pad=1, relu=False,
                  residual=identity)
    return out


def resnet_forward(params, x_nchw):
    x = jnp.transpose(x_nchw, (0, 2, 3, 1)).astype(jnp.float32)  # NCHW -> NHWC
    # stem: conv(k=2, s=2, p=0) + BN + ReLU  (as in the reference module)
    x = conv_bn(x, params["conv1"], params["bn1"], stride=2, pad=0, relu=True)
    x = maxpool_3x3_s2_p1(x)
    for li, layer in enumerate(params["layers"]):
        layer_stride = 1 if li == 0 else 2
        for bi, blk in enumerate(layer):
            stride = layer_stride if bi == 0 else 1     # static Python int
            x = basic_block(x, blk, stride)
    N, H, W, C = x.shape
    feat = x.reshape(N, H * W, C)
    num_classes = params["fc_w"].shape[1]
    # tiny tail (M=N, K=C): single-block kernel is latency-bound anyway
    logits = pl.pallas_call(
        _avgpool_fc_kernel,
        out_shape=jax.ShapeDtypeStruct((N, num_classes), jnp.float32))(
        feat, params["fc_w"], params["fc_b"].reshape(1, num_classes))
    return logits


# ---------------------------------- main ----------------------------------- #

if __name__ == "__main__":
    key = jax.random.PRNGKey(0)
    k_param, k_input = jax.random.split(key)

    blocks_num = [1, 1, 1, 1]      # small BasicBlock ResNet
    num_classes = 10
    feature_channel = 3

    params = init_resnet_params(k_param, blocks_num,
                                num_classes=num_classes,
                                feature_channel=feature_channel)

    # small input: batch=2, channels=3, spatial=32 (NCHW, like PyTorch)
    x = jax.random.normal(k_input, (2, feature_channel, 32, 32), jnp.float32)

    fwd = jax.jit(resnet_forward)
    out = fwd(params, x)
    jax.block_until_ready(out)
    assert out.shape == (2, num_classes)
    print("KERNEL_OK")
</pallas_src>

<mosaic_0001>
module attributes {stable_mosaic.version = 11 : i64} {
  func.func @_conv_bn_act_kernel(%arg0: i32, %arg1: i32, %arg2: i32, %arg3: memref<512x12xbf16, #tpu.memory_space<vmem>>, %arg4: memref<12x64xbf16, #tpu.memory_space<vmem>>, %arg5: memref<2x64xf32, #tpu.memory_space<vmem>>, %arg6: memref<512x64xf32, #tpu.memory_space<vmem>>, %arg7: memref<512x64xf32, #tpu.memory_space<vmem>>) attributes {dimension_semantics = [#tpu.dimension_semantics<parallel>, #tpu.dimension_semantics<parallel>, #tpu.dimension_semantics<arbitrary>], iteration_bounds = array<i64: 1, 1, 1>, scalar_prefetch = 0 : i64, scratch_operands = 1 : i64, tpu.core_type = #tpu.core_type<tc>, window_params = [{transform_indices = @transform_0, window_bounds = array<i64: 512, 12>}, {transform_indices = @transform_1, window_bounds = array<i64: 12, 64>}, {transform_indices = @transform_2, window_bounds = array<i64: 2, 64>}, {transform_indices = @transform_3, window_bounds = array<i64: 512, 64>}]} {
    %c0_i32 = arith.constant 0 : i32
    %0 = arith.cmpi eq, %arg2, %c0_i32 : i32
    %1 = arith.extui %0 : i1 to i32
    %c0_i32_0 = arith.constant 0 : i32
    %2 = arith.cmpi ne, %1, %c0_i32_0 : i32
    scf.if %2 {
      %cst_10 = arith.constant 0.000000e+00 : f32
      %12 = vector.broadcast %cst_10 : f32 to vector<512x64xf32>
      %c0_11 = arith.constant 0 : index
      %c0_12 = arith.constant 0 : index
      %13 = vector.load %arg7[%c0_11, %c0_12] : memref<512x64xf32, #tpu.memory_space<vmem>>, vector<512x64xf32>
      tpu.vector_store %arg7[%c0_11, %c0_12], %12 {strides = array<i32>} : memref<512x64xf32, #tpu.memory_space<vmem>>, vector<512x64xf32>,
    } else {
    }
    %c0 = arith.constant 0 : index
    %c0_1 = arith.constant 0 : index
    %3 = vector.load %arg7[%c0, %c0_1] : memref<512x64xf32, #tpu.memory_space<vmem>>, vector<512x64xf32>
    %c0_2 = arith.constant 0 : index
    %c0_3 = arith.constant 0 : index
    %4 = vector.load %arg3[%c0_2, %c0_3] : memref<512x12xbf16, #tpu.memory_space<vmem>>, vector<512x12xbf16>
    %c0_4 = arith.constant 0 : index
    %c0_5 = arith.constant 0 : index
    %5 = vector.load %arg4[%c0_4, %c0_5] : memref<12x64xbf16, #tpu.memory_space<vmem>>, vector<12x64xbf16>
    %cst = arith.constant dense<0.000000e+00> : vector<512x64xf32>
    %6 = tpu.matmul %4, %5, %cst {dimension_numbers = #tpu.dot_dimension_numbers<[1], [0], [0], [1], [0, 0, 1, 1], [], []>} : vector<512x12xbf16>, vector<12x64xbf16>, vector<512x64xf32> -> vector<512x64xf32>
    %7 = arith.addf %3, %6 : vector<512x64xf32>
    %c0_6 = arith.constant 0 : index
    %c0_7 = arith.constant 0 : index
    %8 = vector.load %arg7[%c0_6, %c0_7] : memref<512x64xf32, #tpu.memory_space<vmem>>, vector<512x64xf32>
    tpu.vector_store %arg7[%c0_6, %c0_7], %7 {strides = array<i32>} : memref<512x64xf32, #tpu.memory_space<vmem>>, vector<512x64xf32>,
    %c0_i32_8 = arith.constant 0 : i32
    %9 = arith.cmpi eq, %arg2, %c0_i32_8 : i32
    %10 = arith.extui %9 : i1 to i32
    %c0_i32_9 = arith.constant 0 : i32
    %11 = arith.cmpi ne, %10, %c0_i32_9 : i32
    scf.if %11 {
      %c0_10 = arith.constant 0 : index
      %c0_11 = arith.constant 0 : index
      %12 = vector.load %arg7[%c0_10, %c0_11] : memref<512x64xf32, #tpu.memory_space<vmem>>, vector<512x64xf32>
      %c0_12 = arith.constant 0 : index
      %c0_13 = arith.constant 0 : index
      %13 = vector.load %arg5[%c0_12, %c0_13] : memref<2x64xf32, #tpu.memory_space<vmem>>, vector<1x64xf32>
      %14 = vector.broadcast %13 : vector<1x64xf32> to vector<512x64xf32>
      %15 = arith.mulf %12, %14 : vector<512x64xf32>
      %c1 = arith.constant 1 : index
      %c0_14 = arith.constant 0 : index
      %16 = vector.load %arg5[%c1, %c0_14] : memref<2x64xf32, #tpu.memory_space<vmem>>, vector<1x64xf32>
      %17 = vector.broadcast %16 : vector<1x64xf32> to vector<512x64xf32>
      %18 = arith.addf %15, %17 : vector<512x64xf32>
      %cst_15 = arith.constant 0.000000e+00 : f32
      %19 = vector.broadcast %cst_15 : f32 to vector<512x64xf32>
      %20 = arith.maximumf %18, %19 : vector<512x64xf32>
      %c0_16 = arith.constant 0 : index
      %c0_17 = arith.constant 0 : index
      %21 = vector.load %arg6[%c0_16, %c0_17] : memref<512x64xf32, #tpu.memory_space<vmem>>, vector<512x64xf32>
      tpu.vector_store %arg6[%c0_16, %c0_17], %20 {strides = array<i32>} : memref<512x64xf32, #tpu.memory_space<vmem>>, vector<512x64xf32>,
    } else {
    }
    return
  }
  func.func @transform_0(%arg0: i32, %arg1: i32, %arg2: i32) -> (i32, i32) {
    %c0_i32 = arith.constant 0 : i32
    return %arg0, %arg2 : i32, i32
  }
  func.func @transform_1(%arg0: i32, %arg1: i32, %arg2: i32) -> (i32, i32) {
    %c0_i32 = arith.constant 0 : i32
    return %arg2, %arg1 : i32, i32
  }
  func.func @transform_2(%arg0: i32, %arg1: i32, %arg2: i32) -> (i32, i32) {
    %c0_i32 = arith.constant 0 : i32
    %c0_i32_0 = arith.constant 0 : i32
    return %c0_i32, %arg1 : i32, i32
  }
  func.func @transform_3(%arg0: i32, %arg1: i32, %arg2: i32) -> (i32, i32) {
    %c0_i32 = arith.constant 0 : i32
    return %arg0, %arg1 : i32, i32
  }
}

module attributes {stable_mosaic.version = 11 : i64} {
  func.func @_maxpool_kernel(%arg0: i32, %arg1: memref<9x128x64xf32, #tpu.memory_space<vmem>>, %arg2: memref<128x64xf32, #tpu.memory_space<vmem>>) attributes {dimension_semantics = [#tpu.dimension_semantics<parallel>], iteration_bounds = array<i64: 1>, scalar_prefetch = 0 : i64, scratch_operands = 0 : i64, tpu.core_type = #tpu.core_type<tc>, window_params = [{transform_indices = @transform_0, window_bounds = array<i64: 9, 128, 64>}, {transform_indices = @transform_1, window_bounds = array<i64: 128, 64>}]} {
    %c0 = arith.constant 0 : index
    %c0_0 = arith.constant 0 : index
    %c0_1 = arith.constant 0 : index
    %0 = vector.load %arg1[%c0, %c0_0, %c0_1] : memref<9x128x64xf32, #tpu.memory_space<vmem>>, vector<9x128x64xf32>
    %cst = arith.constant dense<0xFF800000> : vector<128x64xf32>
    %1 = vector.multi_reduction <maximumf>, %0, %cst [0] : vector<9x128x64xf32> to vector<128x64xf32>
    %c0_2 = arith.constant 0 : index
    %c0_3 = arith.constant 0 : index
    %2 = vector.load %arg2[%c0_2, %c0_3] : memref<128x64xf32, #tpu.memory_space<vmem>>, vector<128x64xf32>
    tpu.vector_store %arg2[%c0_2, %c0_3], %1 {strides = array<i32>} : memref<128x64xf32, #tpu.memory_space<vmem>>, vector<128x64xf32>,
    return
  }
  func.func @transform_0(%arg0: i32) -> (i32, i32, i32) {
    %c0_i32 = arith.constant 0 : i32
    %c0_i32_0 = arith.constant 0 : i32
    %c0_i32_1 = arith.constant 0 : i32
    return %c0_i32, %arg0, %c0_i32_0 : i32, i32, i32
  }
  func.func @transform_1(%arg0: i32) -> (i32, i32) {
    %c0_i32 = arith.constant 0 : i32
    %c0_i32_0 = arith.constant 0 : i32
    return %arg0, %c0_i32 : i32, i32
  }
}

module attributes {stable_mosaic.version = 11 : i64} {
  func.func @_conv_bn_act_kernel(%arg0: i32, %arg1: i32, %arg2: i32, %arg3: memref<128x576xbf16, #tpu.memory_space<vmem>>, %arg4: memref<576x64xbf16, #tpu.memory_space<vmem>>, %arg5: memref<2x64xf32, #tpu.memory_space<vmem>>, %arg6: memref<128x64xf32, #tpu.memory_space<vmem>>, %arg7: memref<128x64xf32, #tpu.memory_space<vmem>>) attributes {dimension_semantics = [#tpu.dimension_semantics<parallel>, #tpu.dimension_semantics<parallel>, #tpu.dimension_semantics<arbitrary>], iteration_bounds = array<i64: 1, 1, 1>, scalar_prefetch = 0 : i64, scratch_operands = 1 : i64, tpu.core_type = #tpu.core_type<tc>, window_params = [{transform_indices = @transform_0, window_bounds = array<i64: 128, 576>}, {transform_indices = @transform_1, window_bounds = array<i64: 576, 64>}, {transform_indices = @transform_2, window_bounds = array<i64: 2, 64>}, {transform_indices = @transform_3, window_bounds = array<i64: 128, 64>}]} {
    %c0_i32 = arith.constant 0 : i32
    %0 = arith.cmpi eq, %arg2, %c0_i32 : i32
    %1 = arith.extui %0 : i1 to i32
    %c0_i32_0 = arith.constant 0 : i32
    %2 = arith.cmpi ne, %1, %c0_i32_0 : i32
    scf.if %2 {
      %cst_10 = arith.constant 0.000000e+00 : f32
      %12 = vector.broadcast %cst_10 : f32 to vector<128x64xf32>
      %c0_11 = arith.constant 0 : index
      %c0_12 = arith.constant 0 : index
      %13 = vector.load %arg7[%c0_11, %c0_12] : memref<128x64xf32, #tpu.memory_space<vmem>>, vector<128x64xf32>
      tpu.vector_store %arg7[%c0_11, %c0_12], %12 {strides = array<i32>} : memref<128x64xf32, #tpu.memory_space<vmem>>, vector<128x64xf32>,
    } else {
    }
    %c0 = arith.constant 0 : index
    %c0_1 = arith.constant 0 : index
    %3 = vector.load %arg7[%c0, %c0_1] : memref<128x64xf32, #tpu.memory_space<vmem>>, vector<128x64xf32>
    %c0_2 = arith.constant 0 : index
    %c0_3 = arith.constant 0 : index
    %4 = vector.load %arg3[%c0_2, %c0_3] : memref<128x576xbf16, #tpu.memory_space<vmem>>, vector<128x576xbf16>
    %c0_4 = arith.constant 0 : index
    %c0_5 = arith.constant 0 : index
    %5 = vector.load %arg4[%c0_4, %c0_5] : memref<576x64xbf16, #tpu.memory_space<vmem>>, vector<576x64xbf16>
    %cst = arith.constant dense<0.000000e+00> : vector<128x64xf32>
    %6 = tpu.matmul %4, %5, %cst {dimension_numbers = #tpu.dot_dimension_numbers<[1], [0], [0], [1], [0, 0, 1, 1], [], []>} : vector<128x576xbf16>, vector<576x64xbf16>, vector<128x64xf32> -> vector<128x64xf32>
    %7 = arith.addf %3, %6 : vector<128x64xf32>
    %c0_6 = arith.constant 0 : index
    %c0_7 = arith.constant 0 : index
    %8 = vector.load %arg7[%c0_6, %c0_7] : memref<128x64xf32, #tpu.memory_space<vmem>>, vector<128x64xf32>
    tpu.vector_store %arg7[%c0_6, %c0_7], %7 {strides = array<i32>} : memref<128x64xf32, #tpu.memory_space<vmem>>, vector<128x64xf32>,
    %c0_i32_8 = arith.constant 0 : i32
    %9 = arith.cmpi eq, %arg2, %c0_i32_8 : i32
    %10 = arith.extui %9 : i1 to i32
    %c0_i32_9 = arith.constant 0 : i32
    %11 = arith.cmpi ne, %10, %c0_i32_9 : i32
    scf.if %11 {
      %c0_10 = arith.constant 0 : index
      %c0_11 = arith.constant 0 : index
      %12 = vector.load %arg7[%c0_10, %c0_11] : memref<128x64xf32, #tpu.memory_space<vmem>>, vector<128x64xf32>
      %c0_12 = arith.constant 0 : index
      %c0_13 = arith.constant 0 : index
      %13 = vector.load %arg5[%c0_12, %c0_13] : memref<2x64xf32, #tpu.memory_space<vmem>>, vector<1x64xf32>
      %14 = vector.broadcast %13 : vector<1x64xf32> to vector<128x64xf32>
      %15 = arith.mulf %12, %14 : vector<128x64xf32>
      %c1 = arith.constant 1 : index
      %c0_14 = arith.constant 0 : index
      %16 = vector.load %arg5[%c1, %c0_14] : memref<2x64xf32, #tpu.memory_space<vmem>>, vector<1x64xf32>
      %17 = vector.broadcast %16 : vector<1x64xf32> to vector<128x64xf32>
      %18 = arith.addf %15, %17 : vector<128x64xf32>
      %cst_15 = arith.constant 0.000000e+00 : f32
      %19 = vector.broadcast %cst_15 : f32 to vector<128x64xf32>
      %20 = arith.maximumf %18, %19 : vector<128x64xf32>
      %c0_16 = arith.constant 0 : index
      %c0_17 = arith.constant 0 : index
      %21 = vector.load %arg6[%c0_16, %c0_17] : memref<128x64xf32, #tpu.memory_space<vmem>>, vector<128x64xf32>
      tpu.vector_store %arg6[%c0_16, %c0_17], %20 {strides = array<i32>} : memref<128x64xf32, #tpu.memory_space<vmem>>, vector<128x64xf32>,
    } else {
    }
    return
  }
  func.func @transform_0(%arg0: i32, %arg1: i32, %arg2: i32) -> (i32, i32) {
    %c0_i32 = arith.constant 0 : i32
    return %arg0, %arg2 : i32, i32
  }
  func.func @transform_1(%arg0: i32, %arg1: i32, %arg2: i32) -> (i32, i32) {
    %c0_i32 = arith.constant 0 : i32
    return %arg2, %arg1 : i32, i32
  }
  func.func @transform_2(%arg0: i32, %arg1: i32, %arg2: i32) -> (i32, i32) {
    %c0_i32 = arith.constant 0 : i32
    %c0_i32_0 = arith.constant 0 : i32
    return %c0_i32, %arg1 : i32, i32
  }
  func.func @transform_3(%arg0: i32, %arg1: i32, %arg2: i32) -> (i32, i32) {
    %c0_i32 = arith.constant 0 : i32
    return %arg0, %arg1 : i32, i32
  }
}

module attributes {stable_mosaic.version = 11 : i64} {
  func.func @_conv_bn_add_relu_kernel(%arg0: i32, %arg1: i32, %arg2: i32, %arg3: memref<128x576xbf16, #tpu.memory_space<vmem>>, %arg4: memref<576x64xbf16, #tpu.memory_space<vmem>>, %arg5: memref<2x64xf32, #tpu.memory_space<vmem>>, %arg6: memref<128x64xf32, #tpu.memory_space<vmem>>, %arg7: memref<128x64xf32, #tpu.memory_space<vmem>>, %arg8: memref<128x64xf32, #tpu.memory_space<vmem>>) attributes {dimension_semantics = [#tpu.dimension_semantics<parallel>, #tpu.dimension_semantics<parallel>, #tpu.dimension_semantics<arbitrary>], iteration_bounds = array<i64: 1, 1, 1>, scalar_prefetch = 0 : i64, scratch_operands = 1 : i64, tpu.core_type = #tpu.core_type<tc>, window_params = [{transform_indices = @transform_0, window_bounds = array<i64: 128, 576>}, {transform_indices = @transform_1, window_bounds = array<i64: 576, 64>}, {transform_indices = @transform_2, window_bounds = array<i64: 2, 64>}, {transform_indices = @transform_3, window_bounds = array<i64: 128, 64>}, {transform_indices = @transform_4, window_bounds = array<i64: 128, 64>}]} {
    %c0_i32 = arith.constant 0 : i32
    %0 = arith.cmpi eq, %arg2, %c0_i32 : i32
    %1 = arith.extui %0 : i1 to i32
    %c0_i32_0 = arith.constant 0 : i32
    %2 = arith.cmpi ne, %1, %c0_i32_0 : i32
    scf.if %2 {
      %cst_10 = arith.constant 0.000000e+00 : f32
      %12 = vector.broadcast %cst_10 : f32 to vector<128x64xf32>
      %c0_11 = arith.constant 0 : index
      %c0_12 = arith.constant 0 : index
      %13 = vector.load %arg8[%c0_11, %c0_12] : memref<128x64xf32, #tpu.memory_space<vmem>>, vector<128x64xf32>
      tpu.vector_store %arg8[%c0_11, %c0_12], %12 {strides = array<i32>} : memref<128x64xf32, #tpu.memory_space<vmem>>, vector<128x64xf32>,
    } else {
    }
    %c0 = arith.constant 0 : index
    %c0_1 = arith.constant 0 : index
    %3 = vector.load %arg8[%c0, %c0_1] : memref<128x64xf32, #tpu.memory_space<vmem>>, vector<128x64xf32>
    %c0_2 = arith.constant 0 : index
    %c0_3 = arith.constant 0 : index
    %4 = vector.load %arg3[%c0_2, %c0_3] : memref<128x576xbf16, #tpu.memory_space<vmem>>, vector<128x576xbf16>
    %c0_4 = arith.constant 0 : index
    %c0_5 = arith.constant 0 : index
    %5 = vector.load %arg4[%c0_4, %c0_5] : memref<576x64xbf16, #tpu.memory_space<vmem>>, vector<576x64xbf16>
    %cst = arith.constant dense<0.000000e+00> : vector<128x64xf32>
    %6 = tpu.matmul %4, %5, %cst {dimension_numbers = #tpu.dot_dimension_numbers<[1], [0], [0], [1], [0, 0, 1, 1], [], []>} : vector<128x576xbf16>, vector<576x64xbf16>, vector<128x64xf32> -> vector<128x64xf32>
    %7 = arith.addf %3, %6 : vector<128x64xf32>
    %c0_6 = arith.constant 0 : index
    %c0_7 = arith.constant 0 : index
    %8 = vector.load %arg8[%c0_6, %c0_7] : memref<128x64xf32, #tpu.memory_space<vmem>>, vector<128x64xf32>
    tpu.vector_store %arg8[%c0_6, %c0_7], %7 {strides = array<i32>} : memref<128x64xf32, #tpu.memory_space<vmem>>, vector<128x64xf32>,
    %c0_i32_8 = arith.constant 0 : i32
    %9 = arith.cmpi eq, %arg2, %c0_i32_8 : i32
    %10 = arith.extui %9 : i1 to i32
    %c0_i32_9 = arith.constant 0 : i32
    %11 = arith.cmpi ne, %10, %c0_i32_9 : i32
    scf.if %11 {
      %c0_10 = arith.constant 0 : index
      %c0_11 = arith.constant 0 : index
      %12 = vector.load %arg8[%c0_10, %c0_11] : memref<128x64xf32, #tpu.memory_space<vmem>>, vector<128x64xf32>
      %c0_12 = arith.constant 0 : index
      %c0_13 = arith.constant 0 : index
      %13 = vector.load %arg5[%c0_12, %c0_13] : memref<2x64xf32, #tpu.memory_space<vmem>>, vector<1x64xf32>
      %14 = vector.broadcast %13 : vector<1x64xf32> to vector<128x64xf32>
      %15 = arith.mulf %12, %14 : vector<128x64xf32>
      %c1 = arith.constant 1 : index
      %c0_14 = arith.constant 0 : index
      %16 = vector.load %arg5[%c1, %c0_14] : memref<2x64xf32, #tpu.memory_space<vmem>>, vector<1x64xf32>
      %17 = vector.broadcast %16 : vector<1x64xf32> to vector<128x64xf32>
      %18 = arith.addf %15, %17 : vector<128x64xf32>
      %c0_15 = arith.constant 0 : index
      %c0_16 = arith.constant 0 : index
      %19 = vector.load %arg6[%c0_15, %c0_16] : memref<128x64xf32, #tpu.memory_space<vmem>>, vector<128x64xf32>
      %20 = arith.addf %18, %19 : vector<128x64xf32>
      %cst_17 = arith.constant 0.000000e+00 : f32
      %21 = vector.broadcast %cst_17 : f32 to vector<128x64xf32>
      %22 = arith.maximumf %20, %21 : vector<128x64xf32>
      %c0_18 = arith.constant 0 : index
      %c0_19 = arith.constant 0 : index
      %23 = vector.load %arg7[%c0_18, %c0_19] : memref<128x64xf32, #tpu.memory_space<vmem>>, vector<128x64xf32>
      tpu.vector_store %arg7[%c0_18, %c0_19], %22 {strides = array<i32>} : memref<128x64xf32, #tpu.memory_space<vmem>>, vector<128x64xf32>,
    } else {
    }
    return
  }
  func.func @transform_0(%arg0: i32, %arg1: i32, %arg2: i32) -> (i32, i32) {
    %c0_i32 = arith.constant 0 : i32
    return %arg0, %arg2 : i32, i32
  }
  func.func @transform_1(%arg0: i32, %arg1: i32, %arg2: i32) -> (i32, i32) {
    %c0_i32 = arith.constant 0 : i32
    return %arg2, %arg1 : i32, i32
  }
  func.func @transform_2(%arg0: i32, %arg1: i32, %arg2: i32) -> (i32, i32) {
    %c0_i32 = arith.constant 0 : i32
    %c0_i32_0 = arith.constant 0 : i32
    return %c0_i32, %arg1 : i32, i32
  }
  func.func @transform_3(%arg0: i32, %arg1: i32, %arg2: i32) -> (i32, i32) {
    %c0_i32 = arith.constant 0 : i32
    return %arg0, %arg1 : i32, i32
  }
  func.func @transform_4(%arg0: i32, %arg1: i32, %arg2: i32) -> (i32, i32) {
    %c0_i32 = arith.constant 0 : i32
    return %arg0, %arg1 : i32, i32
  }
}

module attributes {stable_mosaic.version = 11 : i64} {
  func.func @_conv_bn_act_kernel(%arg0: i32, %arg1: i32, %arg2: i32, %arg3: memref<32x576xbf16, #tpu.memory_space<vmem>>, %arg4: memref<576x128xbf16, #tpu.memory_space<vmem>>, %arg5: memref<2x128xf32, #tpu.memory_space<vmem>>, %arg6: memref<32x128xf32, #tpu.memory_space<vmem>>, %arg7: memref<32x128xf32, #tpu.memory_space<vmem>>) attributes {dimension_semantics = [#tpu.dimension_semantics<parallel>, #tpu.dimension_semantics<parallel>, #tpu.dimension_semantics<arbitrary>], iteration_bounds = array<i64: 1, 1, 1>, scalar_prefetch = 0 : i64, scratch_operands = 1 : i64, tpu.core_type = #tpu.core_type<tc>, window_params = [{transform_indices = @transform_0, window_bounds = array<i64: 32, 576>}, {transform_indices = @transform_1, window_bounds = array<i64: 576, 128>}, {transform_indices = @transform_2, window_bounds = array<i64: 2, 128>}, {transform_indices = @transform_3, window_bounds = array<i64: 32, 128>}]} {
    %c0_i32 = arith.constant 0 : i32
    %0 = arith.cmpi eq, %arg2, %c0_i32 : i32
    %1 = arith.extui %0 : i1 to i32
    %c0_i32_0 = arith.constant 0 : i32
    %2 = arith.cmpi ne, %1, %c0_i32_0 : i32
    scf.if %2 {
      %cst_10 = arith.constant 0.000000e+00 : f32
      %12 = vector.broadcast %cst_10 : f32 to vector<32x128xf32>
      %c0_11 = arith.constant 0 : index
      %c0_12 = arith.constant 0 : index
      %13 = vector.load %arg7[%c0_11, %c0_12] : memref<32x128xf32, #tpu.memory_space<vmem>>, vector<32x128xf32>
      tpu.vector_store %arg7[%c0_11, %c0_12], %12 {strides = array<i32>} : memref<32x128xf32, #tpu.memory_space<vmem>>, vector<32x128xf32>,
    } else {
    }
    %c0 = arith.constant 0 : index
    %c0_1 = arith.constant 0 : index
    %3 = vector.load %arg7[%c0, %c0_1] : memref<32x128xf32, #tpu.memory_space<vmem>>, vector<32x128xf32>
    %c0_2 = arith.constant 0 : index
    %c0_3 = arith.constant 0 : index
    %4 = vector.load %arg3[%c0_2, %c0_3] : memref<32x576xbf16, #tpu.memory_space<vmem>>, vector<32x576xbf16>
    %c0_4 = arith.constant 0 : index
    %c0_5 = arith.constant 0 : index
    %5 = vector.load %arg4[%c0_4, %c0_5] : memref<576x128xbf16, #tpu.memory_space<vmem>>, vector<576x128xbf16>
    %cst = arith.constant dense<0.000000e+00> : vector<32x128xf32>
    %6 = tpu.matmul %4, %5, %cst {dimension_numbers = #tpu.dot_dimension_numbers<[1], [0], [0], [1], [0, 0, 1, 1], [], []>} : vector<32x576xbf16>, vector<576x128xbf16>, vector<32x128xf32> -> vector<32x128xf32>
    %7 = arith.addf %3, %6 : vector<32x128xf32>
    %c0_6 = arith.constant 0 : index
    %c0_7 = arith.constant 0 : index
    %8 = vector.load %arg7[%c0_6, %c0_7] : memref<32x128xf32, #tpu.memory_space<vmem>>, vector<32x128xf32>
    tpu.vector_store %arg7[%c0_6, %c0_7], %7 {strides = array<i32>} : memref<32x128xf32, #tpu.memory_space<vmem>>, vector<32x128xf32>,
    %c0_i32_8 = arith.constant 0 : i32
    %9 = arith.cmpi eq, %arg2, %c0_i32_8 : i32
    %10 = arith.extui %9 : i1 to i32
    %c0_i32_9 = arith.constant 0 : i32
    %11 = arith.cmpi ne, %10, %c0_i32_9 : i32
    scf.if %11 {
      %c0_10 = arith.constant 0 : index
      %c0_11 = arith.constant 0 : index
      %12 = vector.load %arg7[%c0_10, %c0_11] : memref<32x128xf32, #tpu.memory_space<vmem>>, vector<32x128xf32>
      %c0_12 = arith.constant 0 : index
      %c0_13 = arith.constant 0 : index
      %13 = vector.load %arg5[%c0_12, %c0_13] : memref<2x128xf32, #tpu.memory_space<vmem>>, vector<1x128xf32>
      %14 = vector.broadcast %13 : vector<1x128xf32> to vector<32x128xf32>
      %15 = arith.mulf %12, %14 : vector<32x128xf32>
      %c1 = arith.constant 1 : index
      %c0_14 = arith.constant 0 : index
      %16 = vector.load %arg5[%c1, %c0_14] : memref<2x128xf32, #tpu.memory_space<vmem>>, vector<1x128xf32>
      %17 = vector.broadcast %16 : vector<1x128xf32> to vector<32x128xf32>
      %18 = arith.addf %15, %17 : vector<32x128xf32>
      %cst_15 = arith.constant 0.000000e+00 : f32
      %19 = vector.broadcast %cst_15 : f32 to vector<32x128xf32>
      %20 = arith.maximumf %18, %19 : vector<32x128xf32>
      %c0_16 = arith.constant 0 : index
      %c0_17 = arith.constant 0 : index
      %21 = vector.load %arg6[%c0_16, %c0_17] : memref<32x128xf32, #tpu.memory_space<vmem>>, vector<32x128xf32>
      tpu.vector_store %arg6[%c0_16, %c0_17], %20 {strides = array<i32>} : memref<32x128xf32, #tpu.memory_space<vmem>>, vector<32x128xf32>,
    } else {
    }
    return
  }
  func.func @transform_0(%arg0: i32, %arg1: i32, %arg2: i32) -> (i32, i32) {
    %c0_i32 = arith.constant 0 : i32
    return %arg0, %arg2 : i32, i32
  }
  func.func @transform_1(%arg0: i32, %arg1: i32, %arg2: i32) -> (i32, i32) {
    %c0_i32 = arith.constant 0 : i32
    return %arg2, %arg1 : i32, i32
  }
  func.func @transform_2(%arg0: i32, %arg1: i32, %arg2: i32) -> (i32, i32) {
    %c0_i32 = arith.constant 0 : i32
    %c0_i32_0 = arith.constant 0 : i32
    return %c0_i32, %arg1 : i32, i32
  }
  func.func @transform_3(%arg0: i32, %arg1: i32, %arg2: i32) -> (i32, i32) {
    %c0_i32 = arith.constant 0 : i32
    return %arg0, %arg1 : i32, i32
  }
}

module attributes {stable_mosaic.version = 11 : i64} {
  func.func @_conv_bn_act_kernel(%arg0: i32, %arg1: i32, %arg2: i32, %arg3: memref<32x64xbf16, #tpu.memory_space<vmem>>, %arg4: memref<64x128xbf16, #tpu.memory_space<vmem>>, %arg5: memref<2x128xf32, #tpu.memory_space<vmem>>, %arg6: memref<32x128xf32, #tpu.memory_space<vmem>>, %arg7: memref<32x128xf32, #tpu.memory_space<vmem>>) attributes {dimension_semantics = [#tpu.dimension_semantics<parallel>, #tpu.dimension_semantics<parallel>, #tpu.dimension_semantics<arbitrary>], iteration_bounds = array<i64: 1, 1, 1>, scalar_prefetch = 0 : i64, scratch_operands = 1 : i64, tpu.core_type = #tpu.core_type<tc>, window_params = [{transform_indices = @transform_0, window_bounds = array<i64: 32, 64>}, {transform_indices = @transform_1, window_bounds = array<i64: 64, 128>}, {transform_indices = @transform_2, window_bounds = array<i64: 2, 128>}, {transform_indices = @transform_3, window_bounds = array<i64: 32, 128>}]} {
    %c0_i32 = arith.constant 0 : i32
    %0 = arith.cmpi eq, %arg2, %c0_i32 : i32
    %1 = arith.extui %0 : i1 to i32
    %c0_i32_0 = arith.constant 0 : i32
    %2 = arith.cmpi ne, %1, %c0_i32_0 : i32
    scf.if %2 {
      %cst_10 = arith.constant 0.000000e+00 : f32
      %12 = vector.broadcast %cst_10 : f32 to vector<32x128xf32>
      %c0_11 = arith.constant 0 : index
      %c0_12 = arith.constant 0 : index
      %13 = vector.load %arg7[%c0_11, %c0_12] : memref<32x128xf32, #tpu.memory_space<vmem>>, vector<32x128xf32>
      tpu.vector_store %arg7[%c0_11, %c0_12], %12 {strides = array<i32>} : memref<32x128xf32, #tpu.memory_space<vmem>>, vector<32x128xf32>,
    } else {
    }
    %c0 = arith.constant 0 : index
    %c0_1 = arith.constant 0 : index
    %3 = vector.load %arg7[%c0, %c0_1] : memref<32x128xf32, #tpu.memory_space<vmem>>, vector<32x128xf32>
    %c0_2 = arith.constant 0 : index
    %c0_3 = arith.constant 0 : index
    %4 = vector.load %arg3[%c0_2, %c0_3] : memref<32x64xbf16, #tpu.memory_space<vmem>>, vector<32x64xbf16>
    %c0_4 = arith.constant 0 : index
    %c0_5 = arith.constant 0 : index
    %5 = vector.load %arg4[%c0_4, %c0_5] : memref<64x128xbf16, #tpu.memory_space<vmem>>, vector<64x128xbf16>
    %cst = arith.constant dense<0.000000e+00> : vector<32x128xf32>
    %6 = tpu.matmul %4, %5, %cst {dimension_numbers = #tpu.dot_dimension_numbers<[1], [0], [0], [1], [0, 0, 1, 1], [], []>} : vector<32x64xbf16>, vector<64x128xbf16>, vector<32x128xf32> -> vector<32x128xf32>
    %7 = arith.addf %3, %6 : vector<32x128xf32>
    %c0_6 = arith.constant 0 : index
    %c0_7 = arith.constant 0 : index
    %8 = vector.load %arg7[%c0_6, %c0_7] : memref<32x128xf32, #tpu.memory_space<vmem>>, vector<32x128xf32>
    tpu.vector_store %arg7[%c0_6, %c0_7], %7 {strides = array<i32>} : memref<32x128xf32, #tpu.memory_space<vmem>>, vector<32x128xf32>,
    %c0_i32_8 = arith.constant 0 : i32
    %9 = arith.cmpi eq, %arg2, %c0_i32_8 : i32
    %10 = arith.extui %9 : i1 to i32
    %c0_i32_9 = arith.constant 0 : i32
    %11 = arith.cmpi ne, %10, %c0_i32_9 : i32
    scf.if %11 {
      %c0_10 = arith.constant 0 : index
      %c0_11 = arith.constant 0 : index
      %12 = vector.load %arg7[%c0_10, %c0_11] : memref<32x128xf32, #tpu.memory_space<vmem>>, vector<32x128xf32>
      %c0_12 = arith.constant 0 : index
      %c0_13 = arith.constant 0 : index
      %13 = vector.load %arg5[%c0_12, %c0_13] : memref<2x128xf32, #tpu.memory_space<vmem>>, vector<1x128xf32>
      %14 = vector.broadcast %13 : vector<1x128xf32> to vector<32x128xf32>
      %15 = arith.mulf %12, %14 : vector<32x128xf32>
      %c1 = arith.constant 1 : index
      %c0_14 = arith.constant 0 : index
      %16 = vector.load %arg5[%c1, %c0_14] : memref<2x128xf32, #tpu.memory_space<vmem>>, vector<1x128xf32>
      %17 = vector.broadcast %16 : vector<1x128xf32> to vector<32x128xf32>
      %18 = arith.addf %15, %17 : vector<32x128xf32>
      %c0_15 = arith.constant 0 : index
      %c0_16 = arith.constant 0 : index
      %19 = vector.load %arg6[%c0_15, %c0_16] : memref<32x128xf32, #tpu.memory_space<vmem>>, vector<32x128xf32>
      tpu.vector_store %arg6[%c0_15, %c0_16], %18 {strides = array<i32>} : memref<32x128xf32, #tpu.memory_space<vmem>>, vector<32x128xf32>,
    } else {
    }
    return
  }
  func.func @transform_0(%arg0: i32, %arg1: i32, %arg2: i32) -> (i32, i32) {
    %c0_i32 = arith.constant 0 : i32
    return %arg0, %arg2 : i32, i32
  }
  func.func @transform_1(%arg0: i32, %arg1: i32, %arg2: i32) -> (i32, i32) {
    %c0_i32 = arith.constant 0 : i32
    return %arg2, %arg1 : i32, i32
  }
  func.func @transform_2(%arg0: i32, %arg1: i32, %arg2: i32) -> (i32, i32) {
    %c0_i32 = arith.constant 0 : i32
    %c0_i32_0 = arith.constant 0 : i32
    return %c0_i32, %arg1 : i32, i32
  }
  func.func @transform_3(%arg0: i32, %arg1: i32, %arg2: i32) -> (i32, i32) {
    %c0_i32 = arith.constant 0 : i32
    return %arg0, %arg1 : i32, i32
  }
}

module attributes {stable_mosaic.version = 11 : i64} {
  func.func @_conv_bn_add_relu_kernel(%arg0: i32, %arg1: i32, %arg2: i32, %arg3: memref<32x384xbf16, #tpu.memory_space<vmem>>, %arg4: memref<384x128xbf16, #tpu.memory_space<vmem>>, %arg5: memref<2x128xf32, #tpu.memory_space<vmem>>, %arg6: memref<32x128xf32, #tpu.memory_space<vmem>>, %arg7: memref<32x128xf32, #tpu.memory_space<vmem>>, %arg8: memref<32x128xf32, #tpu.memory_space<vmem>>) attributes {dimension_semantics = [#tpu.dimension_semantics<parallel>, #tpu.dimension_semantics<parallel>, #tpu.dimension_semantics<arbitrary>], iteration_bounds = array<i64: 1, 1, 3>, scalar_prefetch = 0 : i64, scratch_operands = 1 : i64, tpu.core_type = #tpu.core_type<tc>, window_params = [{transform_indices = @transform_0, window_bounds = array<i64: 32, 384>}, {transform_indices = @transform_1, window_bounds = array<i64: 384, 128>}, {transform_indices = @transform_2, window_bounds = array<i64: 2, 128>}, {transform_indices = @transform_3, window_bounds = array<i64: 32, 128>}, {transform_indices = @transform_4, window_bounds = array<i64: 32, 128>}]} {
    %c0_i32 = arith.constant 0 : i32
    %0 = arith.cmpi eq, %arg2, %c0_i32 : i32
    %1 = arith.extui %0 : i1 to i32
    %c0_i32_0 = arith.constant 0 : i32
    %2 = arith.cmpi ne, %1, %c0_i32_0 : i32
    scf.if %2 {
      %cst_9 = arith.constant 0.000000e+00 : f32
      %12 = vector.broadcast %cst_9 : f32 to vector<32x128xf32>
      %c0_10 = arith.constant 0 : index
      %c0_11 = arith.constant 0 : index
      %13 = vector.load %arg8[%c0_10, %c0_11] : memref<32x128xf32, #tpu.memory_space<vmem>>, vector<32x128xf32>
      tpu.vector_store %arg8[%c0_10, %c0_11], %12 {strides = array<i32>} : memref<32x128xf32, #tpu.memory_space<vmem>>, vector<32x128xf32>,
    } else {
    }
    %c0 = arith.constant 0 : index
    %c0_1 = arith.constant 0 : index
    %3 = vector.load %arg8[%c0, %c0_1] : memref<32x128xf32, #tpu.memory_space<vmem>>, vector<32x128xf32>
    %c0_2 = arith.constant 0 : index
    %c0_3 = arith.constant 0 : index
    %4 = vector.load %arg3[%c0_2, %c0_3] : memref<32x384xbf16, #tpu.memory_space<vmem>>, vector<32x384xbf16>
    %c0_4 = arith.constant 0 : index
    %c0_5 = arith.constant 0 : index
    %5 = vector.load %arg4[%c0_4, %c0_5] : memref<384x128xbf16, #tpu.memory_space<vmem>>, vector<384x128xbf16>
    %cst = arith.constant dense<0.000000e+00> : vector<32x128xf32>
    %6 = tpu.matmul %4, %5, %cst {dimension_numbers = #tpu.dot_dimension_numbers<[1], [0], [0], [1], [0, 0, 1, 1], [], []>} : vector<32x384xbf16>, vector<384x128xbf16>, vector<32x128xf32> -> vector<32x128xf32>
    %7 = arith.addf %3, %6 : vector<32x128xf32>
    %c0_6 = arith.constant 0 : index
    %c0_7 = arith.constant 0 : index
    %8 = vector.load %arg8[%c0_6, %c0_7] : memref<32x128xf32, #tpu.memory_space<vmem>>, vector<32x128xf32>
    tpu.vector_store %arg8[%c0_6, %c0_7], %7 {strides = array<i32>} : memref<32x128xf32, #tpu.memory_space<vmem>>, vector<32x128xf32>,
    %c2_i32 = arith.constant 2 : i32
    %9 = arith.cmpi eq, %arg2, %c2_i32 : i32
    %10 = arith.extui %9 : i1 to i32
    %c0_i32_8 = arith.constant 0 : i32
    %11 = arith.cmpi ne, %10, %c0_i32_8 : i32
    scf.if %11 {
      %c0_9 = arith.constant 0 : index
      %c0_10 = arith.constant 0 : index
      %12 = vector.load %arg8[%c0_9, %c0_10] : memref<32x128xf32, #tpu.memory_space<vmem>>, vector<32x128xf32>
      %c0_11 = arith.constant 0 : index
      %c0_12 = arith.constant 0 : index
      %13 = vector.load %arg5[%c0_11, %c0_12] : memref<2x128xf32, #tpu.memory_space<vmem>>, vector<1x128xf32>
      %14 = vector.broadcast %13 : vector<1x128xf32> to vector<32x128xf32>
      %15 = arith.mulf %12, %14 : vector<32x128xf32>
      %c1 = arith.constant 1 : index
      %c0_13 = arith.constant 0 : index
      %16 = vector.load %arg5[%c1, %c0_13] : memref<2x128xf32, #tpu.memory_space<vmem>>, vector<1x128xf32>
      %17 = vector.broadcast %16 : vector<1x128xf32> to vector<32x128xf32>
      %18 = arith.addf %15, %17 : vector<32x128xf32>
      %c0_14 = arith.constant 0 : index
      %c0_15 = arith.constant 0 : index
      %19 = vector.load %arg6[%c0_14, %c0_15] : memref<32x128xf32, #tpu.memory_space<vmem>>, vector<32x128xf32>
      %20 = arith.addf %18, %19 : vector<32x128xf32>
      %cst_16 = arith.constant 0.000000e+00 : f32
      %21 = vector.broadcast %cst_16 : f32 to vector<32x128xf32>
      %22 = arith.maximumf %20, %21 : vector<32x128xf32>
      %c0_17 = arith.constant 0 : index
      %c0_18 = arith.constant 0 : index
      %23 = vector.load %arg7[%c0_17, %c0_18] : memref<32x128xf32, #tpu.memory_space<vmem>>, vector<32x128xf32>
      tpu.vector_store %arg7[%c0_17, %c0_18], %22 {strides = array<i32>} : memref<32x128xf32, #tpu.memory_space<vmem>>, vector<32x128xf32>,
    } else {
    }
    return
  }
  func.func @transform_0(%arg0: i32, %arg1: i32, %arg2: i32) -> (i32, i32) {
    %c0_i32 = arith.constant 0 : i32
    return %arg0, %arg2 : i32, i32
  }
  func.func @transform_1(%arg0: i32, %arg1: i32, %arg2: i32) -> (i32, i32) {
    %c0_i32 = arith.constant 0 : i32
    return %arg2, %arg1 : i32, i32
  }
  func.func @transform_2(%arg0: i32, %arg1: i32, %arg2: i32) -> (i32, i32) {
    %c0_i32 = arith.constant 0 : i32
    %c0_i32_0 = arith.constant 0 : i32
    return %c0_i32, %arg1 : i32, i32
  }
  func.func @transform_3(%arg0: i32, %arg1: i32, %arg2: i32) -> (i32, i32) {
    %c0_i32 = arith.constant 0 : i32
    return %arg0, %arg1 : i32, i32
  }
  func.func @transform_4(%arg0: i32, %arg1: i32, %arg2: i32) -> (i32, i32) {
    %c0_i32 = arith.constant 0 : i32
    return %arg0, %arg1 : i32, i32
  }
}

module attributes {stable_mosaic.version = 11 : i64} {
  func.func @_conv_bn_act_kernel(%arg0: i32, %arg1: i32, %arg2: i32, %arg3: memref<8x384xbf16, #tpu.memory_space<vmem>>, %arg4: memref<384x256xbf16, #tpu.memory_space<vmem>>, %arg5: memref<2x256xf32, #tpu.memory_space<vmem>>, %arg6: memref<8x256xf32, #tpu.memory_space<vmem>>, %arg7: memref<8x256xf32, #tpu.memory_space<vmem>>) attributes {dimension_semantics = [#tpu.dimension_semantics<parallel>, #tpu.dimension_semantics<parallel>, #tpu.dimension_semantics<arbitrary>], iteration_bounds = array<i64: 1, 1, 3>, scalar_prefetch = 0 : i64, scratch_operands = 1 : i64, tpu.core_type = #tpu.core_type<tc>, window_params = [{transform_indices = @transform_0, window_bounds = array<i64: 8, 384>}, {transform_indices = @transform_1, window_bounds = array<i64: 384, 256>}, {transform_indices = @transform_2, window_bounds = array<i64: 2, 256>}, {transform_indices = @transform_3, window_bounds = array<i64: 8, 256>}]} {
    %c0_i32 = arith.constant 0 : i32
    %0 = arith.cmpi eq, %arg2, %c0_i32 : i32
    %1 = arith.extui %0 : i1 to i32
    %c0_i32_0 = arith.constant 0 : i32
    %2 = arith.cmpi ne, %1, %c0_i32_0 : i32
    scf.if %2 {
      %cst_9 = arith.constant 0.000000e+00 : f32
      %12 = vector.broadcast %cst_9 : f32 to vector<8x256xf32>
      %c0_10 = arith.constant 0 : index
      %c0_11 = arith.constant 0 : index
      %13 = vector.load %arg7[%c0_10, %c0_11] : memref<8x256xf32, #tpu.memory_space<vmem>>, vector<8x256xf32>
      tpu.vector_store %arg7[%c0_10, %c0_11], %12 {strides = array<i32>} : memref<8x256xf32, #tpu.memory_space<vmem>>, vector<8x256xf32>,
    } else {
    }
    %c0 = arith.constant 0 : index
    %c0_1 = arith.constant 0 : index
    %3 = vector.load %arg7[%c0, %c0_1] : memref<8x256xf32, #tpu.memory_space<vmem>>, vector<8x256xf32>
    %c0_2 = arith.constant 0 : index
    %c0_3 = arith.constant 0 : index
    %4 = vector.load %arg3[%c0_2, %c0_3] : memref<8x384xbf16, #tpu.memory_space<vmem>>, vector<8x384xbf16>
    %c0_4 = arith.constant 0 : index
    %c0_5 = arith.constant 0 : index
    %5 = vector.load %arg4[%c0_4, %c0_5] : memref<384x256xbf16, #tpu.memory_space<vmem>>, vector<384x256xbf16>
    %cst = arith.constant dense<0.000000e+00> : vector<8x256xf32>
    %6 = tpu.matmul %4, %5, %cst {dimension_numbers = #tpu.dot_dimension_numbers<[1], [0], [0], [1], [0, 0, 1, 1], [], []>} : vector<8x384xbf16>, vector<384x256xbf16>, vector<8x256xf32> -> vector<8x256xf32>
    %7 = arith.addf %3, %6 : vector<8x256xf32>
    %c0_6 = arith.constant 0 : index
    %c0_7 = arith.constant 0 : index
    %8 = vector.load %arg7[%c0_6, %c0_7] : memref<8x256xf32, #tpu.memory_space<vmem>>, vector<8x256xf32>
    tpu.vector_store %arg7[%c0_6, %c0_7], %7 {strides = array<i32>} : memref<8x256xf32, #tpu.memory_space<vmem>>, vector<8x256xf32>,
    %c2_i32 = arith.constant 2 : i32
    %9 = arith.cmpi eq, %arg2, %c2_i32 : i32
    %10 = arith.extui %9 : i1 to i32
    %c0_i32_8 = arith.constant 0 : i32
    %11 = arith.cmpi ne, %10, %c0_i32_8 : i32
    scf.if %11 {
      %c0_9 = arith.constant 0 : index
      %c0_10 = arith.constant 0 : index
      %12 = vector.load %arg7[%c0_9, %c0_10] : memref<8x256xf32, #tpu.memory_space<vmem>>, vector<8x256xf32>
      %c0_11 = arith.constant 0 : index
      %c0_12 = arith.constant 0 : index
      %13 = vector.load %arg5[%c0_11, %c0_12] : memref<2x256xf32, #tpu.memory_space<vmem>>, vector<1x256xf32>
      %14 = vector.broadcast %13 : vector<1x256xf32> to vector<8x256xf32>
      %15 = arith.mulf %12, %14 : vector<8x256xf32>
      %c1 = arith.constant 1 : index
      %c0_13 = arith.constant 0 : index
      %16 = vector.load %arg5[%c1, %c0_13] : memref<2x256xf32, #tpu.memory_space<vmem>>, vector<1x256xf32>
      %17 = vector.broadcast %16 : vector<1x256xf32> to vector<8x256xf32>
      %18 = arith.addf %15, %17 : vector<8x256xf32>
      %cst_14 = arith.constant 0.000000e+00 : f32
      %19 = vector.broadcast %cst_14 : f32 to vector<8x256xf32>
      %20 = arith.maximumf %18, %19 : vector<8x256xf32>
      %c0_15 = arith.constant 0 : index
      %c0_16 = arith.constant 0 : index
      %21 = vector.load %arg6[%c0_15, %c0_16] : memref<8x256xf32, #tpu.memory_space<vmem>>, vector<8x256xf32>
      tpu.vector_store %arg6[%c0_15, %c0_16], %20 {strides = array<i32>} : memref<8x256xf32, #tpu.memory_space<vmem>>, vector<8x256xf32>,
    } else {
    }
    return
  }
  func.func @transform_0(%arg0: i32, %arg1: i32, %arg2: i32) -> (i32, i32) {
    %c0_i32 = arith.constant 0 : i32
    return %arg0, %arg2 : i32, i32
  }
  func.func @transform_1(%arg0: i32, %arg1: i32, %arg2: i32) -> (i32, i32) {
    %c0_i32 = arith.constant 0 : i32
    return %arg2, %arg1 : i32, i32
  }
  func.func @transform_2(%arg0: i32, %arg1: i32, %arg2: i32) -> (i32, i32) {
    %c0_i32 = arith.constant 0 : i32
    %c0_i32_0 = arith.constant 0 : i32
    return %c0_i32, %arg1 : i32, i32
  }
  func.func @transform_3(%arg0: i32, %arg1: i32, %arg2: i32) -> (i32, i32) {
    %c0_i32 = arith.constant 0 : i32
    return %arg0, %arg1 : i32, i32
  }
}

module attributes {stable_mosaic.version = 11 : i64} {
  func.func @_conv_bn_act_kernel(%arg0: i32, %arg1: i32, %arg2: i32, %arg3: memref<8x128xbf16, #tpu.memory_space<vmem>>, %arg4: memref<128x256xbf16, #tpu.memory_space<vmem>>, %arg5: memref<2x256xf32, #tpu.memory_space<vmem>>, %arg6: memref<8x256xf32, #tpu.memory_space<vmem>>, %arg7: memref<8x256xf32, #tpu.memory_space<vmem>>) attributes {dimension_semantics = [#tpu.dimension_semantics<parallel>, #tpu.dimension_semantics<parallel>, #tpu.dimension_semantics<arbitrary>], iteration_bounds = array<i64: 1, 1, 1>, scalar_prefetch = 0 : i64, scratch_operands = 1 : i64, tpu.core_type = #tpu.core_type<tc>, window_params = [{transform_indices = @transform_0, window_bounds = array<i64: 8, 128>}, {transform_indices = @transform_1, window_bounds = array<i64: 128, 256>}, {transform_indices = @transform_2, window_bounds = array<i64: 2, 256>}, {transform_indices = @transform_3, window_bounds = array<i64: 8, 256>}]} {
    %c0_i32 = arith.constant 0 : i32
    %0 = arith.cmpi eq, %arg2, %c0_i32 : i32
    %1 = arith.extui %0 : i1 to i32
    %c0_i32_0 = arith.constant 0 : i32
    %2 = arith.cmpi ne, %1, %c0_i32_0 : i32
    scf.if %2 {
      %cst_10 = arith.constant 0.000000e+00 : f32
      %12 = vector.broadcast %cst_10 : f32 to vector<8x256xf32>
      %c0_11 = arith.constant 0 : index
      %c0_12 = arith.constant 0 : index
      %13 = vector.load %arg7[%c0_11, %c0_12] : memref<8x256xf32, #tpu.memory_space<vmem>>, vector<8x256xf32>
      tpu.vector_store %arg7[%c0_11, %c0_12], %12 {strides = array<i32>} : memref<8x256xf32, #tpu.memory_space<vmem>>, vector<8x256xf32>,
    } else {
    }
    %c0 = arith.constant 0 : index
    %c0_1 = arith.constant 0 : index
    %3 = vector.load %arg7[%c0, %c0_1] : memref<8x256xf32, #tpu.memory_space<vmem>>, vector<8x256xf32>
    %c0_2 = arith.constant 0 : index
    %c0_3 = arith.constant 0 : index
    %4 = vector.load %arg3[%c0_2, %c0_3] : memref<8x128xbf16, #tpu.memory_space<vmem>>, vector<8x128xbf16>
    %c0_4 = arith.constant 0 : index
    %c0_5 = arith.constant 0 : index
    %5 = vector.load %arg4[%c0_4, %c0_5] : memref<128x256xbf16, #tpu.memory_space<vmem>>, vector<128x256xbf16>
    %cst = arith.constant dense<0.000000e+00> : vector<8x256xf32>
    %6 = tpu.matmul %4, %5, %cst {dimension_numbers = #tpu.dot_dimension_numbers<[1], [0], [0], [1], [0, 0, 1, 1], [], []>} : vector<8x128xbf16>, vector<128x256xbf16>, vector<8x256xf32> -> vector<8x256xf32>
    %7 = arith.addf %3, %6 : vector<8x256xf32>
    %c0_6 = arith.constant 0 : index
    %c0_7 = arith.constant 0 : index
    %8 = vector.load %arg7[%c0_6, %c0_7] : memref<8x256xf32, #tpu.memory_space<vmem>>, vector<8x256xf32>
    tpu.vector_store %arg7[%c0_6, %c0_7], %7 {strides = array<i32>} : memref<8x256xf32, #tpu.memory_space<vmem>>, vector<8x256xf32>,
    %c0_i32_8 = arith.constant 0 : i32
    %9 = arith.cmpi eq, %arg2, %c0_i32_8 : i32
    %10 = arith.extui %9 : i1 to i32
    %c0_i32_9 = arith.constant 0 : i32
    %11 = arith.cmpi ne, %10, %c0_i32_9 : i32
    scf.if %11 {
      %c0_10 = arith.constant 0 : index
      %c0_11 = arith.constant 0 : index
      %12 = vector.load %arg7[%c0_10, %c0_11] : memref<8x256xf32, #tpu.memory_space<vmem>>, vector<8x256xf32>
      %c0_12 = arith.constant 0 : index
      %c0_13 = arith.constant 0 : index
      %13 = vector.load %arg5[%c0_12, %c0_13] : memref<2x256xf32, #tpu.memory_space<vmem>>, vector<1x256xf32>
      %14 = vector.broadcast %13 : vector<1x256xf32> to vector<8x256xf32>
      %15 = arith.mulf %12, %14 : vector<8x256xf32>
      %c1 = arith.constant 1 : index
      %c0_14 = arith.constant 0 : index
      %16 = vector.load %arg5[%c1, %c0_14] : memref<2x256xf32, #tpu.memory_space<vmem>>, vector<1x256xf32>
      %17 = vector.broadcast %16 : vector<1x256xf32> to vector<8x256xf32>
      %18 = arith.addf %15, %17 : vector<8x256xf32>
      %c0_15 = arith.constant 0 : index
      %c0_16 = arith.constant 0 : index
      %19 = vector.load %arg6[%c0_15, %c0_16] : memref<8x256xf32, #tpu.memory_space<vmem>>, vector<8x256xf32>
      tpu.vector_store %arg6[%c0_15, %c0_16], %18 {strides = array<i32>} : memref<8x256xf32, #tpu.memory_space<vmem>>, vector<8x256xf32>,
    } else {
    }
    return
  }
  func.func @transform_0(%arg0: i32, %arg1: i32, %arg2: i32) -> (i32, i32) {
    %c0_i32 = arith.constant 0 : i32
    return %arg0, %arg2 : i32, i32
  }
  func.func @transform_1(%arg0: i32, %arg1: i32, %arg2: i32) -> (i32, i32) {
    %c0_i32 = arith.constant 0 : i32
    return %arg2, %arg1 : i32, i32
  }
  func.func @transform_2(%arg0: i32, %arg1: i32, %arg2: i32) -> (i32, i32) {
    %c0_i32 = arith.constant 0 : i32
    %c0_i32_0 = arith.constant 0 : i32
    return %c0_i32, %arg1 : i32, i32
  }
  func.func @transform_3(%arg0: i32, %arg1: i32, %arg2: i32) -> (i32, i32) {
    %c0_i32 = arith.constant 0 : i32
    return %arg0, %arg1 : i32, i32
  }
}

module attributes {stable_mosaic.version = 11 : i64} {
  func.func @_conv_bn_add_relu_kernel(%arg0: i32, %arg1: i32, %arg2: i32, %arg3: memref<8x384xbf16, #tpu.memory_space<vmem>>, %arg4: memref<384x256xbf16, #tpu.memory_space<vmem>>, %arg5: memref<2x256xf32, #tpu.memory_space<vmem>>, %arg6: memref<8x256xf32, #tpu.memory_space<vmem>>, %arg7: memref<8x256xf32, #tpu.memory_space<vmem>>, %arg8: memref<8x256xf32, #tpu.memory_space<vmem>>) attributes {dimension_semantics = [#tpu.dimension_semantics<parallel>, #tpu.dimension_semantics<parallel>, #tpu.dimension_semantics<arbitrary>], iteration_bounds = array<i64: 1, 1, 6>, scalar_prefetch = 0 : i64, scratch_operands = 1 : i64, tpu.core_type = #tpu.core_type<tc>, window_params = [{transform_indices = @transform_0, window_bounds = array<i64: 8, 384>}, {transform_indices = @transform_1, window_bounds = array<i64: 384, 256>}, {transform_indices = @transform_2, window_bounds = array<i64: 2, 256>}, {transform_indices = @transform_3, window_bounds = array<i64: 8, 256>}, {transform_indices = @transform_4, window_bounds = array<i64: 8, 256>}]} {
    %c0_i32 = arith.constant 0 : i32
    %0 = arith.cmpi eq, %arg2, %c0_i32 : i32
    %1 = arith.extui %0 : i1 to i32
    %c0_i32_0 = arith.constant 0 : i32
    %2 = arith.cmpi ne, %1, %c0_i32_0 : i32
    scf.if %2 {
      %cst_9 = arith.constant 0.000000e+00 : f32
      %12 = vector.broadcast %cst_9 : f32 to vector<8x256xf32>
      %c0_10 = arith.constant 0 : index
      %c0_11 = arith.constant 0 : index
      %13 = vector.load %arg8[%c0_10, %c0_11] : memref<8x256xf32, #tpu.memory_space<vmem>>, vector<8x256xf32>
      tpu.vector_store %arg8[%c0_10, %c0_11], %12 {strides = array<i32>} : memref<8x256xf32, #tpu.memory_space<vmem>>, vector<8x256xf32>,
    } else {
    }
    %c0 = arith.constant 0 : index
    %c0_1 = arith.constant 0 : index
    %3 = vector.load %arg8[%c0, %c0_1] : memref<8x256xf32, #tpu.memory_space<vmem>>, vector<8x256xf32>
    %c0_2 = arith.constant 0 : index
    %c0_3 = arith.constant 0 : index
    %4 = vector.load %arg3[%c0_2, %c0_3] : memref<8x384xbf16, #tpu.memory_space<vmem>>, vector<8x384xbf16>
    %c0_4 = arith.constant 0 : index
    %c0_5 = arith.constant 0 : index
    %5 = vector.load %arg4[%c0_4, %c0_5] : memref<384x256xbf16, #tpu.memory_space<vmem>>, vector<384x256xbf16>
    %cst = arith.constant dense<0.000000e+00> : vector<8x256xf32>
    %6 = tpu.matmul %4, %5, %cst {dimension_numbers = #tpu.dot_dimension_numbers<[1], [0], [0], [1], [0, 0, 1, 1], [], []>} : vector<8x384xbf16>, vector<384x256xbf16>, vector<8x256xf32> -> vector<8x256xf32>
    %7 = arith.addf %3, %6 : vector<8x256xf32>
    %c0_6 = arith.constant 0 : index
    %c0_7 = arith.constant 0 : index
    %8 = vector.load %arg8[%c0_6, %c0_7] : memref<8x256xf32, #tpu.memory_space<vmem>>, vector<8x256xf32>
    tpu.vector_store %arg8[%c0_6, %c0_7], %7 {strides = array<i32>} : memref<8x256xf32, #tpu.memory_space<vmem>>, vector<8x256xf32>,
    %c5_i32 = arith.constant 5 : i32
    %9 = arith.cmpi eq, %arg2, %c5_i32 : i32
    %10 = arith.extui %9 : i1 to i32
    %c0_i32_8 = arith.constant 0 : i32
    %11 = arith.cmpi ne, %10, %c0_i32_8 : i32
    scf.if %11 {
      %c0_9 = arith.constant 0 : index
      %c0_10 = arith.constant 0 : index
      %12 = vector.load %arg8[%c0_9, %c0_10] : memref<8x256xf32, #tpu.memory_space<vmem>>, vector<8x256xf32>
      %c0_11 = arith.constant 0 : index
      %c0_12 = arith.constant 0 : index
      %13 = vector.load %arg5[%c0_11, %c0_12] : memref<2x256xf32, #tpu.memory_space<vmem>>, vector<1x256xf32>
      %14 = vector.broadcast %13 : vector<1x256xf32> to vector<8x256xf32>
      %15 = arith.mulf %12, %14 : vector<8x256xf32>
      %c1 = arith.constant 1 : index
      %c0_13 = arith.constant 0 : index
      %16 = vector.load %arg5[%c1, %c0_13] : memref<2x256xf32, #tpu.memory_space<vmem>>, vector<1x256xf32>
      %17 = vector.broadcast %16 : vector<1x256xf32> to vector<8x256xf32>
      %18 = arith.addf %15, %17 : vector<8x256xf32>
      %c0_14 = arith.constant 0 : index
      %c0_15 = arith.constant 0 : index
      %19 = vector.load %arg6[%c0_14, %c0_15] : memref<8x256xf32, #tpu.memory_space<vmem>>, vector<8x256xf32>
      %20 = arith.addf %18, %19 : vector<8x256xf32>
      %cst_16 = arith.constant 0.000000e+00 : f32
      %21 = vector.broadcast %cst_16 : f32 to vector<8x256xf32>
      %22 = arith.maximumf %20, %21 : vector<8x256xf32>
      %c0_17 = arith.constant 0 : index
      %c0_18 = arith.constant 0 : index
      %23 = vector.load %arg7[%c0_17, %c0_18] : memref<8x256xf32, #tpu.memory_space<vmem>>, vector<8x256xf32>
      tpu.vector_store %arg7[%c0_17, %c0_18], %22 {strides = array<i32>} : memref<8x256xf32, #tpu.memory_space<vmem>>, vector<8x256xf32>,
    } else {
    }
    return
  }
  func.func @transform_0(%arg0: i32, %arg1: i32, %arg2: i32) -> (i32, i32) {
    %c0_i32 = arith.constant 0 : i32
    return %arg0, %arg2 : i32, i32
  }
  func.func @transform_1(%arg0: i32, %arg1: i32, %arg2: i32) -> (i32, i32) {
    %c0_i32 = arith.constant 0 : i32
    return %arg2, %arg1 : i32, i32
  }
  func.func @transform_2(%arg0: i32, %arg1: i32, %arg2: i32) -> (i32, i32) {
    %c0_i32 = arith.constant 0 : i32
    %c0_i32_0 = arith.constant 0 : i32
    return %c0_i32, %arg1 : i32, i32
  }
  func.func @transform_3(%arg0: i32, %arg1: i32, %arg2: i32) -> (i32, i32) {
    %c0_i32 = arith.constant 0 : i32
    return %arg0, %arg1 : i32, i32
  }
  func.func @transform_4(%arg0: i32, %arg1: i32, %arg2: i32) -> (i32, i32) {
    %c0_i32 = arith.constant 0 : i32
    return %arg0, %arg1 : i32, i32
  }
}

module attributes {stable_mosaic.version = 11 : i64} {
  func.func @_conv_bn_act_kernel(%arg0: i32, %arg1: i32, %arg2: i32, %arg3: memref<2x384xbf16, #tpu.memory_space<vmem>>, %arg4: memref<384x256xbf16, #tpu.memory_space<vmem>>, %arg5: memref<2x256xf32, #tpu.memory_space<vmem>>, %arg6: memref<2x256xf32, #tpu.memory_space<vmem>>, %arg7: memref<2x256xf32, #tpu.memory_space<vmem>>) attributes {dimension_semantics = [#tpu.dimension_semantics<parallel>, #tpu.dimension_semantics<parallel>, #tpu.dimension_semantics<arbitrary>], iteration_bounds = array<i64: 1, 2, 6>, scalar_prefetch = 0 : i64, scratch_operands = 1 : i64, tpu.core_type = #tpu.core_type<tc>, window_params = [{transform_indices = @transform_0, window_bounds = array<i64: 2, 384>}, {transform_indices = @transform_1, window_bounds = array<i64: 384, 256>}, {transform_indices = @transform_2, window_bounds = array<i64: 2, 256>}, {transform_indices = @transform_3, window_bounds = array<i64: 2, 256>}]} {
    %c0_i32 = arith.constant 0 : i32
    %0 = arith.cmpi eq, %arg2, %c0_i32 : i32
    %1 = arith.extui %0 : i1 to i32
    %c0_i32_0 = arith.constant 0 : i32
    %2 = arith.cmpi ne, %1, %c0_i32_0 : i32
    scf.if %2 {
      %cst_9 = arith.constant 0.000000e+00 : f32
      %12 = vector.broadcast %cst_9 : f32 to vector<2x256xf32>
      %c0_10 = arith.constant 0 : index
      %c0_11 = arith.constant 0 : index
      %13 = vector.load %arg7[%c0_10, %c0_11] : memref<2x256xf32, #tpu.memory_space<vmem>>, vector<2x256xf32>
      tpu.vector_store %arg7[%c0_10, %c0_11], %12 {strides = array<i32>} : memref<2x256xf32, #tpu.memory_space<vmem>>, vector<2x256xf32>,
    } else {
    }
    %c0 = arith.constant 0 : index
    %c0_1 = arith.constant 0 : index
    %3 = vector.load %arg7[%c0, %c0_1] : memref<2x256xf32, #tpu.memory_space<vmem>>, vector<2x256xf32>
    %c0_2 = arith.constant 0 : index
    %c0_3 = arith.constant 0 : index
    %4 = vector.load %arg3[%c0_2, %c0_3] : memref<2x384xbf16, #tpu.memory_space<vmem>>, vector<2x384xbf16>
    %c0_4 = arith.constant 0 : index
    %c0_5 = arith.constant 0 : index
    %5 = vector.load %arg4[%c0_4, %c0_5] : memref<384x256xbf16, #tpu.memory_space<vmem>>, vector<384x256xbf16>
    %cst = arith.constant dense<0.000000e+00> : vector<2x256xf32>
    %6 = tpu.matmul %4, %5, %cst {dimension_numbers = #tpu.dot_dimension_numbers<[1], [0], [0], [1], [0, 0, 1, 1], [], []>} : vector<2x384xbf16>, vector<384x256xbf16>, vector<2x256xf32> -> vector<2x256xf32>
    %7 = arith.addf %3, %6 : vector<2x256xf32>
    %c0_6 = arith.constant 0 : index
    %c0_7 = arith.constant 0 : index
    %8 = vector.load %arg7[%c0_6, %c0_7] : memref<2x256xf32, #tpu.memory_space<vmem>>, vector<2x256xf32>
    tpu.vector_store %arg7[%c0_6, %c0_7], %7 {strides = array<i32>} : memref<2x256xf32, #tpu.memory_space<vmem>>, vector<2x256xf32>,
    %c5_i32 = arith.constant 5 : i32
    %9 = arith.cmpi eq, %arg2, %c5_i32 : i32
    %10 = arith.extui %9 : i1 to i32
    %c0_i32_8 = arith.constant 0 : i32
    %11 = arith.cmpi ne, %10, %c0_i32_8 : i32
    scf.if %11 {
      %c0_9 = arith.constant 0 : index
      %c0_10 = arith.constant 0 : index
      %12 = vector.load %arg7[%c0_9, %c0_10] : memref<2x256xf32, #tpu.memory_space<vmem>>, vector<2x256xf32>
      %c0_11 = arith.constant 0 : index
      %c0_12 = arith.constant 0 : index
      %13 = vector.load %arg5[%c0_11, %c0_12] : memref<2x256xf32, #tpu.memory_space<vmem>>, vector<1x256xf32>
      %14 = vector.broadcast %13 : vector<1x256xf32> to vector<2x256xf32>
      %15 = arith.mulf %12, %14 : vector<2x256xf32>
      %c1 = arith.constant 1 : index
      %c0_13 = arith.constant 0 : index
      %16 = vector.load %arg5[%c1, %c0_13] : memref<2x256xf32, #tpu.memory_space<vmem>>, vector<1x256xf32>
      %17 = vector.broadcast %16 : vector<1x256xf32> to vector<2x256xf32>
      %18 = arith.addf %15, %17 : vector<2x256xf32>
      %cst_14 = arith.constant 0.000000e+00 : f32
      %19 = vector.broadcast %cst_14 : f32 to vector<2x256xf32>
      %20 = arith.maximumf %18, %19 : vector<2x256xf32>
      %c0_15 = arith.constant 0 : index
      %c0_16 = arith.constant 0 : index
      %21 = vector.load %arg6[%c0_15, %c0_16] : memref<2x256xf32, #tpu.memory_space<vmem>>, vector<2x256xf32>
      tpu.vector_store %arg6[%c0_15, %c0_16], %20 {strides = array<i32>} : memref<2x256xf32, #tpu.memory_space<vmem>>, vector<2x256xf32>,
    } else {
    }
    return
  }
  func.func @transform_0(%arg0: i32, %arg1: i32, %arg2: i32) -> (i32, i32) {
    %c0_i32 = arith.constant 0 : i32
    return %arg0, %arg2 : i32, i32
  }
  func.func @transform_1(%arg0: i32, %arg1: i32, %arg2: i32) -> (i32, i32) {
    %c0_i32 = arith.constant 0 : i32
    return %arg2, %arg1 : i32, i32
  }
  func.func @transform_2(%arg0: i32, %arg1: i32, %arg2: i32) -> (i32, i32) {
    %c0_i32 = arith.constant 0 : i32
    %c0_i32_0 = arith.constant 0 : i32
    return %c0_i32, %arg1 : i32, i32
  }
  func.func @transform_3(%arg0: i32, %arg1: i32, %arg2: i32) -> (i32, i32) {
    %c0_i32 = arith.constant 0 : i32
    return %arg0, %arg1 : i32, i32
  }
}

module attributes {stable_mosaic.version = 11 : i64} {
  func.func @_conv_bn_act_kernel(%arg0: i32, %arg1: i32, %arg2: i32, %arg3: memref<2x256xbf16, #tpu.memory_space<vmem>>, %arg4: memref<256x256xbf16, #tpu.memory_space<vmem>>, %arg5: memref<2x256xf32, #tpu.memory_space<vmem>>, %arg6: memref<2x256xf32, #tpu.memory_space<vmem>>, %arg7: memref<2x256xf32, #tpu.memory_space<vmem>>) attributes {dimension_semantics = [#tpu.dimension_semantics<parallel>, #tpu.dimension_semantics<parallel>, #tpu.dimension_semantics<arbitrary>], iteration_bounds = array<i64: 1, 2, 1>, scalar_prefetch = 0 : i64, scratch_operands = 1 : i64, tpu.core_type = #tpu.core_type<tc>, window_params = [{transform_indices = @transform_0, window_bounds = array<i64: 2, 256>}, {transform_indices = @transform_1, window_bounds = array<i64: 256, 256>}, {transform_indices = @transform_2, window_bounds = array<i64: 2, 256>}, {transform_indices = @transform_3, window_bounds = array<i64: 2, 256>}]} {
    %c0_i32 = arith.constant 0 : i32
    %0 = arith.cmpi eq, %arg2, %c0_i32 : i32
    %1 = arith.extui %0 : i1 to i32
    %c0_i32_0 = arith.constant 0 : i32
    %2 = arith.cmpi ne, %1, %c0_i32_0 : i32
    scf.if %2 {
      %cst_10 = arith.constant 0.000000e+00 : f32
      %12 = vector.broadcast %cst_10 : f32 to vector<2x256xf32>
      %c0_11 = arith.constant 0 : index
      %c0_12 = arith.constant 0 : index
      %13 = vector.load %arg7[%c0_11, %c0_12] : memref<2x256xf32, #tpu.memory_space<vmem>>, vector<2x256xf32>
      tpu.vector_store %arg7[%c0_11, %c0_12], %12 {strides = array<i32>} : memref<2x256xf32, #tpu.memory_space<vmem>>, vector<2x256xf32>,
    } else {
    }
    %c0 = arith.constant 0 : index
    %c0_1 = arith.constant 0 : index
    %3 = vector.load %arg7[%c0, %c0_1] : memref<2x256xf32, #tpu.memory_space<vmem>>, vector<2x256xf32>
    %c0_2 = arith.constant 0 : index
    %c0_3 = arith.constant 0 : index
    %4 = vector.load %arg3[%c0_2, %c0_3] : memref<2x256xbf16, #tpu.memory_space<vmem>>, vector<2x256xbf16>
    %c0_4 = arith.constant 0 : index
    %c0_5 = arith.constant 0 : index
    %5 = vector.load %arg4[%c0_4, %c0_5] : memref<256x256xbf16, #tpu.memory_space<vmem>>, vector<256x256xbf16>
    %cst = arith.constant dense<0.000000e+00> : vector<2x256xf32>
    %6 = tpu.matmul %4, %5, %cst {dimension_numbers = #tpu.dot_dimension_numbers<[1], [0], [0], [1], [0, 0, 1, 1], [], []>} : vector<2x256xbf16>, vector<256x256xbf16>, vector<2x256xf32> -> vector<2x256xf32>
    %7 = arith.addf %3, %6 : vector<2x256xf32>
    %c0_6 = arith.constant 0 : index
    %c0_7 = arith.constant 0 : index
    %8 = vector.load %arg7[%c0_6, %c0_7] : memref<2x256xf32, #tpu.memory_space<vmem>>, vector<2x256xf32>
    tpu.vector_store %arg7[%c0_6, %c0_7], %7 {strides = array<i32>} : memref<2x256xf32, #tpu.memory_space<vmem>>, vector<2x256xf32>,
    %c0_i32_8 = arith.constant 0 : i32
    %9 = arith.cmpi eq, %arg2, %c0_i32_8 : i32
    %10 = arith.extui %9 : i1 to i32
    %c0_i32_9 = arith.constant 0 : i32
    %11 = arith.cmpi ne, %10, %c0_i32_9 : i32
    scf.if %11 {
      %c0_10 = arith.constant 0 : index
      %c0_11 = arith.constant 0 : index
      %12 = vector.load %arg7[%c0_10, %c0_11] : memref<2x256xf32, #tpu.memory_space<vmem>>, vector<2x256xf32>
      %c0_12 = arith.constant 0 : index
      %c0_13 = arith.constant 0 : index
      %13 = vector.load %arg5[%c0_12, %c0_13] : memref<2x256xf32, #tpu.memory_space<vmem>>, vector<1x256xf32>
      %14 = vector.broadcast %13 : vector<1x256xf32> to vector<2x256xf32>
      %15 = arith.mulf %12, %14 : vector<2x256xf32>
      %c1 = arith.constant 1 : index
      %c0_14 = arith.constant 0 : index
      %16 = vector.load %arg5[%c1, %c0_14] : memref<2x256xf32, #tpu.memory_space<vmem>>, vector<1x256xf32>
      %17 = vector.broadcast %16 : vector<1x256xf32> to vector<2x256xf32>
      %18 = arith.addf %15, %17 : vector<2x256xf32>
      %c0_15 = arith.constant 0 : index
      %c0_16 = arith.constant 0 : index
      %19 = vector.load %arg6[%c0_15, %c0_16] : memref<2x256xf32, #tpu.memory_space<vmem>>, vector<2x256xf32>
      tpu.vector_store %arg6[%c0_15, %c0_16], %18 {strides = array<i32>} : memref<2x256xf32, #tpu.memory_space<vmem>>, vector<2x256xf32>,
    } else {
    }
    return
  }
  func.func @transform_0(%arg0: i32, %arg1: i32, %arg2: i32) -> (i32, i32) {
    %c0_i32 = arith.constant 0 : i32
    return %arg0, %arg2 : i32, i32
  }
  func.func @transform_1(%arg0: i32, %arg1: i32, %arg2: i32) -> (i32, i32) {
    %c0_i32 = arith.constant 0 : i32
    return %arg2, %arg1 : i32, i32
  }
  func.func @transform_2(%arg0: i32, %arg1: i32, %arg2: i32) -> (i32, i32) {
    %c0_i32 = arith.constant 0 : i32
    %c0_i32_0 = arith.constant 0 : i32
    return %c0_i32, %arg1 : i32, i32
  }
  func.func @transform_3(%arg0: i32, %arg1: i32, %arg2: i32) -> (i32, i32) {
    %c0_i32 = arith.constant 0 : i32
    return %arg0, %arg1 : i32, i32
  }
}

module attributes {stable_mosaic.version = 11 : i64} {
  func.func @_conv_bn_add_relu_kernel(%arg0: i32, %arg1: i32, %arg2: i32, %arg3: memref<2x512xbf16, #tpu.memory_space<vmem>>, %arg4: memref<512x256xbf16, #tpu.memory_space<vmem>>, %arg5: memref<2x256xf32, #tpu.memory_space<vmem>>, %arg6: memref<2x256xf32, #tpu.memory_space<vmem>>, %arg7: memref<2x256xf32, #tpu.memory_space<vmem>>, %arg8: memref<2x256xf32, #tpu.memory_space<vmem>>) attributes {dimension_semantics = [#tpu.dimension_semantics<parallel>, #tpu.dimension_semantics<parallel>, #tpu.dimension_semantics<arbitrary>], iteration_bounds = array<i64: 1, 2, 9>, scalar_prefetch = 0 : i64, scratch_operands = 1 : i64, tpu.core_type = #tpu.core_type<tc>, window_params = [{transform_indices = @transform_0, window_bounds = array<i64: 2, 512>}, {transform_indices = @transform_1, window_bounds = array<i64: 512, 256>}, {transform_indices = @transform_2, window_bounds = array<i64: 2, 256>}, {transform_indices = @transform_3, window_bounds = array<i64: 2, 256>}, {transform_indices = @transform_4, window_bounds = array<i64: 2, 256>}]} {
    %c0_i32 = arith.constant 0 : i32
    %0 = arith.cmpi eq, %arg2, %c0_i32 : i32
    %1 = arith.extui %0 : i1 to i32
    %c0_i32_0 = arith.constant 0 : i32
    %2 = arith.cmpi ne, %1, %c0_i32_0 : i32
    scf.if %2 {
      %cst_9 = arith.constant 0.000000e+00 : f32
      %12 = vector.broadcast %cst_9 : f32 to vector<2x256xf32>
      %c0_10 = arith.constant 0 : index
      %c0_11 = arith.constant 0 : index
      %13 = vector.load %arg8[%c0_10, %c0_11] : memref<2x256xf32, #tpu.memory_space<vmem>>, vector<2x256xf32>
      tpu.vector_store %arg8[%c0_10, %c0_11], %12 {strides = array<i32>} : memref<2x256xf32, #tpu.memory_space<vmem>>, vector<2x256xf32>,
    } else {
    }
    %c0 = arith.constant 0 : index
    %c0_1 = arith.constant 0 : index
    %3 = vector.load %arg8[%c0, %c0_1] : memref<2x256xf32, #tpu.memory_space<vmem>>, vector<2x256xf32>
    %c0_2 = arith.constant 0 : index
    %c0_3 = arith.constant 0 : index
    %4 = vector.load %arg3[%c0_2, %c0_3] : memref<2x512xbf16, #tpu.memory_space<vmem>>, vector<2x512xbf16>
    %c0_4 = arith.constant 0 : index
    %c0_5 = arith.constant 0 : index
    %5 = vector.load %arg4[%c0_4, %c0_5] : memref<512x256xbf16, #tpu.memory_space<vmem>>, vector<512x256xbf16>
    %cst = arith.constant dense<0.000000e+00> : vector<2x256xf32>
    %6 = tpu.matmul %4, %5, %cst {dimension_numbers = #tpu.dot_dimension_numbers<[1], [0], [0], [1], [0, 0, 1, 1], [], []>} : vector<2x512xbf16>, vector<512x256xbf16>, vector<2x256xf32> -> vector<2x256xf32>
    %7 = arith.addf %3, %6 : vector<2x256xf32>
    %c0_6 = arith.constant 0 : index
    %c0_7 = arith.constant 0 : index
    %8 = vector.load %arg8[%c0_6, %c0_7] : memref<2x256xf32, #tpu.memory_space<vmem>>, vector<2x256xf32>
    tpu.vector_store %arg8[%c0_6, %c0_7], %7 {strides = array<i32>} : memref<2x256xf32, #tpu.memory_space<vmem>>, vector<2x256xf32>,
    %c8_i32 = arith.constant 8 : i32
    %9 = arith.cmpi eq, %arg2, %c8_i32 : i32
    %10 = arith.extui %9 : i1 to i32
    %c0_i32_8 = arith.constant 0 : i32
    %11 = arith.cmpi ne, %10, %c0_i32_8 : i32
    scf.if %11 {
      %c0_9 = arith.constant 0 : index
      %c0_10 = arith.constant 0 : index
      %12 = vector.load %arg8[%c0_9, %c0_10] : memref<2x256xf32, #tpu.memory_space<vmem>>, vector<2x256xf32>
      %c0_11 = arith.constant 0 : index
      %c0_12 = arith.constant 0 : index
      %13 = vector.load %arg5[%c0_11, %c0_12] : memref<2x256xf32, #tpu.memory_space<vmem>>, vector<1x256xf32>
      %14 = vector.broadcast %13 : vector<1x256xf32> to vector<2x256xf32>
      %15 = arith.mulf %12, %14 : vector<2x256xf32>
      %c1 = arith.constant 1 : index
      %c0_13 = arith.constant 0 : index
      %16 = vector.load %arg5[%c1, %c0_13] : memref<2x256xf32, #tpu.memory_space<vmem>>, vector<1x256xf32>
      %17 = vector.broadcast %16 : vector<1x256xf32> to vector<2x256xf32>
      %18 = arith.addf %15, %17 : vector<2x256xf32>
      %c0_14 = arith.constant 0 : index
      %c0_15 = arith.constant 0 : index
      %19 = vector.load %arg6[%c0_14, %c0_15] : memref<2x256xf32, #tpu.memory_space<vmem>>, vector<2x256xf32>
      %20 = arith.addf %18, %19 : vector<2x256xf32>
      %cst_16 = arith.constant 0.000000e+00 : f32
      %21 = vector.broadcast %cst_16 : f32 to vector<2x256xf32>
      %22 = arith.maximumf %20, %21 : vector<2x256xf32>
      %c0_17 = arith.constant 0 : index
      %c0_18 = arith.constant 0 : index
      %23 = vector.load %arg7[%c0_17, %c0_18] : memref<2x256xf32, #tpu.memory_space<vmem>>, vector<2x256xf32>
      tpu.vector_store %arg7[%c0_17, %c0_18], %22 {strides = array<i32>} : memref<2x256xf32, #tpu.memory_space<vmem>>, vector<2x256xf32>,
    } else {
    }
    return
  }
  func.func @transform_0(%arg0: i32, %arg1: i32, %arg2: i32) -> (i32, i32) {
    %c0_i32 = arith.constant 0 : i32
    return %arg0, %arg2 : i32, i32
  }
  func.func @transform_1(%arg0: i32, %arg1: i32, %arg2: i32) -> (i32, i32) {
    %c0_i32 = arith.constant 0 : i32
    return %arg2, %arg1 : i32, i32
  }
  func.func @transform_2(%arg0: i32, %arg1: i32, %arg2: i32) -> (i32, i32) {
    %c0_i32 = arith.constant 0 : i32
    %c0_i32_0 = arith.constant 0 : i32
    return %c0_i32, %arg1 : i32, i32
  }
  func.func @transform_3(%arg0: i32, %arg1: i32, %arg2: i32) -> (i32, i32) {
    %c0_i32 = arith.constant 0 : i32
    return %arg0, %arg1 : i32, i32
  }
  func.func @transform_4(%arg0: i32, %arg1: i32, %arg2: i32) -> (i32, i32) {
    %c0_i32 = arith.constant 0 : i32
    return %arg0, %arg1 : i32, i32
  }
}

module attributes {stable_mosaic.version = 11 : i64} {
  func.func @_avgpool_fc_kernel(%arg0: memref<2x1x512xf32, #tpu.memory_space<vmem>>, %arg1: memref<512x10xf32, #tpu.memory_space<vmem>>, %arg2: memref<1x10xf32, #tpu.memory_space<vmem>>, %arg3: memref<2x10xf32, #tpu.memory_space<vmem>>) attributes {dimension_semantics = [], scalar_prefetch = 0 : i64, scratch_operands = 0 : i64, tpu.core_type = #tpu.core_type<tc>} {
    %c0 = arith.constant 0 : index
    %c0_0 = arith.constant 0 : index
    %c0_1 = arith.constant 0 : index
    %0 = vector.load %arg0[%c0, %c0_0, %c0_1] : memref<2x1x512xf32, #tpu.memory_space<vmem>>, vector<2x1x512xf32>
    %cst = arith.constant dense<0.000000e+00> : vector<2x512xf32>
    %1 = vector.multi_reduction <add>, %0, %cst [1] : vector<2x1x512xf32> to vector<2x512xf32>
    %cst_2 = arith.constant 1.000000e+00 : f32
    %2 = vector.broadcast %cst_2 : f32 to vector<2x512xf32>
    %3 = arith.divf %1, %2 : vector<2x512xf32>
    %c0_3 = arith.constant 0 : index
    %c0_4 = arith.constant 0 : index
    %4 = vector.load %arg1[%c0_3, %c0_4] : memref<512x10xf32, #tpu.memory_space<vmem>>, vector<512x10xf32>
    %cst_5 = arith.constant dense<0.000000e+00> : vector<2x10xf32>
    %5 = tpu.matmul %3, %4, %cst_5 {dimension_numbers = #tpu.dot_dimension_numbers<[1], [0], [0], [1], [0, 0, 1, 1], [], []>} : vector<2x512xf32>, vector<512x10xf32>, vector<2x10xf32> -> vector<2x10xf32>
    %c0_6 = arith.constant 0 : index
    %c0_7 = arith.constant 0 : index
    %6 = vector.load %arg2[%c0_6, %c0_7] : memref<1x10xf32, #tpu.memory_space<vmem>>, vector<1x10xf32>
    %7 = vector.broadcast %6 : vector<1x10xf32> to vector<2x10xf32>
    %8 = arith.addf %5, %7 : vector<2x10xf32>
    %c0_8 = arith.constant 0 : index
    %c0_9 = arith.constant 0 : index
    %9 = vector.load %arg3[%c0_8, %c0_9] : memref<2x10xf32, #tpu.memory_space<vmem>>, vector<2x10xf32>
    tpu.vector_store %arg3[%c0_8, %c0_9], %8 {strides = array<i32>} : memref<2x10xf32, #tpu.memory_space<vmem>>, vector<2x10xf32>,
    return
  }
}

</mosaic_0001>

<llo_original>
// kernel: resnet_forward.14
$region0: #{resnet_forward.14}
  #allocation0 [shape = 'u32[]', space=smem, size = 0x4, offset = 0x4, fixed_abs, tag = 'smem constant byte address 0x4 - core index']
  #allocation1 [shape = 'u32[144,128]{1,0:T(1,128)}', space=vmem, size = 0x12000, scoped, tag = 'internal scratch']
  #allocation2 [shape = 'f32[512,64]{1,0:T(8,128)}', space=vmem, size = 0x40000, scoped, tag = 'scratch operand']
  %s0 = inlined_call_operand.hbm [shape: bf16[512,12], index: 0, kind: input, shape index: {}]
  %s1 = inlined_call_operand.hbm [shape: bf16[12,64], index: 1, kind: input, shape index: {}]
  %s2 = inlined_call_operand.hbm [shape: f32[2,64], index: 2, kind: input, shape index: {}]
  %s3 = inlined_call_operand.hbm [shape: f32[512,64], index: 3, kind: output, shape index: {}]
  %s4 = sld [smem:[#allocation0]]
  $region42: #{resnet_forward.14} parent=0
    _
  %s6 = ssub.s32 1, %s4
  %s7 = scalar_select 0, %s6, %s4
  $region1: #{resnet_forward.14} parent=0
    #allocation3 [shape = 'u8[131072]{0}', space=vmem, size = 0x20000, scoped, tag = 'input window, operand 0, single buffered']
    #allocation4 [shape = 's32[1]{0}', space=sflag, size = 0x4, scoped, tag = 'scoped memory for resnet_forward.14']
    #allocation5 [shape = 's32[1]{0}', space=sflag, size = 0x4, scoped, tag = 'scoped memory for resnet_forward.14']
    #allocation6 [shape = 'u8[4096]{0}', space=vmem, size = 0x1000, scoped, tag = 'input window, operand 1, single buffered']
    #allocation7 [shape = 's32[1]{0}', space=sflag, size = 0x4, scoped, tag = 'scoped memory for resnet_forward.14']
    #allocation8 [shape = 'u8[1024]{0}', space=vmem, size = 0x400, scoped, tag = 'input window, operand 2, single buffered']
    #allocation9 [shape = 'u8[262144]{0}', space=vmem, size = 0x40000, scoped, tag = 'output window, operand 0, single buffered']
    %8 = vsyncpa [#allocation4], 0
    %9 = vsyncpa [#allocation7], 0
    %10 = vsyncpa [#allocation5], 0
    // Predicated region
    $region2: #{resnet_forward.14} parent=1 // pred_check
      _
    $region3: #{resnet_forward.14} parent=1 // pred_check_branch
      %12 = sbr.rel (0) target = $region5
    $region4: #{resnet_forward.14} parent=1 // pred_region
      %s14 = ssub.s32 4096, 4096
      %15 = vsyncadd [#allocation4], %s14
      %s16 = sshll.u32 [#allocation3], 4
      %s17 = int_to_ptr.vmem [resolvable:$true] %s16
      %22 = dma.hbm_to_vmem [thread:$0]  %s0, 4096, %s17, [#allocation4], 64, 64, 4
    $region5: #{resnet_forward.14} parent=1 // pred_fallthru
      _
    // Predicated region
    $region6: #{resnet_forward.14} parent=1 // pred_check
      _
    $region7: #{resnet_forward.14} parent=1 // pred_check_branch
      %24 = sbr.rel (0) target = $region9
    $region8: #{resnet_forward.14} parent=1 // pred_region
      %s26 = ssub.s32 128, 128
      %27 = vsyncadd [#allocation7], %s26
      %s28 = sshll.u32 [#allocation6], 4
      %s29 = int_to_ptr.vmem [resolvable:$true] %s28
      %34 = dma.hbm_to_vmem [thread:$0]  %s1, 128, %s29, [#allocation7], 64, 64, 4
    $region9: #{resnet_forward.14} parent=1 // pred_fallthru
      _
    // Predicated region
    $region10: #{resnet_forward.14} parent=1 // pred_check
      _
    $region11: #{resnet_forward.14} parent=1 // pred_check_branch
      %36 = sbr.rel (0) target = $region13
    $region12: #{resnet_forward.14} parent=1 // pred_region
      %s38 = ssub.s32 32, 32
      %39 = vsyncadd [#allocation7], %s38
      %s41 = sshll.u32 [#allocation8], 4
      %s42 = int_to_ptr.vmem [resolvable:$true] %s41
      %44 = dma.hbm_to_vmem [thread:$0]  %s2, 32, %s42, [#allocation7]
    $region13: #{resnet_forward.14} parent=1 // pred_fallthru
      _
    // Predicated region
    $region14: #{resnet_forward.14} parent=1 // pred_check
      _
    $region15: #{resnet_forward.14} parent=1 // pred_check_branch
      %46 = sbr.rel (0) target = $region17
    $region16: #{resnet_forward.14} parent=1 // pred_region
      %47 = dma.done [#allocation4], 4096
    $region17: #{resnet_forward.14} parent=1 // pred_fallthru
      _
    // Predicated region
    $region18: #{resnet_forward.14} parent=1 // pred_check
      _
    $region19: #{resnet_forward.14} parent=1 // pred_check_branch
      %49 = sbr.rel (0) target = $region21
    $region20: #{resnet_forward.14} parent=1 // pred_region
      %50 = dma.done [#allocation7], 128
    $region21: #{resnet_forward.14} parent=1 // pred_fallthru
      _
    // Predicated region
    $region22: #{resnet_forward.14} parent=1 // pred_check
      _
    $region23: #{resnet_forward.14} parent=1 // pred_check_branch
      %52 = sbr.rel (0) target = $region25
    $region24: #{resnet_forward.14} parent=1 // pred_region
      %53 = dma.done [#allocation7], 32
    $region25: #{resnet_forward.14} parent=1 // pred_fallthru
      _
    %p55 = scmp.eq.s32.totalorder 0, 0
    // Predicated region
    $region26: #{resnet_forward.14} parent=1 // pred_check
      %p56 = pneg %p55
    $region27: #{resnet_forward.14} parent=1 // pred_check_branch
      %58 = sbr.rel (%p56) target = $region29
    $region28: #{resnet_forward.14} parent=1 // pred_region
      %vm59 = vcmask 523264
      %60 = vst.msk [vmem:[#allocation2] sm:$0xff] %vm59, 0.0
      %61 = vst.msk [vmem:[#allocation2 + $0x8] sm:$0xff] %vm59, 0.0
      %62 = vst.msk [vmem:[#allocation2 + $0x10] sm:$0xff] %vm59, 0.0
      %63 = vst.msk [vmem:[#allocation2 + $0x18] sm:$0xff] %vm59, 0.0
      %64 = vst.msk [vmem:[#allocation2 + $0x20] sm:$0xff] %vm59, 0.0
      %65 = vst.msk [vmem:[#allocation2 + $0x28] sm:$0xff] %vm59, 0.0
      %66 = vst.msk [vmem:[#allocation2 + $0x30] sm:$0xff] %vm59, 0.0
      %67 = vst.msk [vmem:[#allocation2 + $0x38] sm:$0xff] %vm59, 0.0
      %68 = vst.msk [vmem:[#allocation2 + $0x40] sm:$0xff] %vm59, 0.0
      %69 = vst.msk [vmem:[#allocation2 + $0x48] sm:$0xff] %vm59, 0.0
      %70 = vst.msk [vmem:[#allocation2 + $0x50] sm:$0xff] %vm59, 0.0
      %71 = vst.msk [vmem:[#allocation2 + $0x58] sm:$0xff] %vm59, 0.0
      %72 = vst.msk [vmem:[#allocation2 + $0x60] sm:$0xff] %vm59, 0.0
      %73 = vst.msk [vmem:[#allocation2 + $0x68] sm:$0xff] %vm59, 0.0
      %74 = vst.msk [vmem:[#allocation2 + $0x70] sm:$0xff] %vm59, 0.0
      %75 = vst.msk [vmem:[#allocation2 + $0x78] sm:$0xff] %vm59, 0.0
      %76 = vst.msk [vmem:[#allocation2 + $0x80] sm:$0xff] %vm59, 0.0
      %77 = vst.msk [vmem:[#allocation2 + $0x88] sm:$0xff] %vm59, 0.0
      %78 = vst.msk [vmem:[#allocation2 + $0x90] sm:$0xff] %vm59, 0.0
      %79 = vst.msk [vmem:[#allocation2 + $0x98] sm:$0xff] %vm59, 0.0
      %80 = vst.msk [vmem:[#allocation2 + $0xa0] sm:$0xff] %vm59, 0.0
      %81 = vst.msk [vmem:[#allocation2 + $0xa8] sm:$0xff] %vm59, 0.0
      %82 = vst.msk [vmem:[#allocation2 + $0xb0] sm:$0xff] %vm59, 0.0
      %83 = vst.msk [vmem:[#allocation2 + $0xb8] sm:$0xff] %vm59, 0.0
      %84 = vst.msk [vmem:[#allocation2 + $0xc0] sm:$0xff] %vm59, 0.0
      %85 = vst.msk [vmem:[#allocation2 + $0xc8] sm:$0xff] %vm59, 0.0
      %86 = vst.msk [vmem:[#allocation2 + $0xd0] sm:$0xff] %vm59, 0.0
      %87 = vst.msk [vmem:[#allocation2 + $0xd8] sm:$0xff] %vm59, 0.0
      %88 = vst.msk [vmem:[#allocation2 + $0xe0] sm:$0xff] %vm59, 0.0
      %89 = vst.msk [vmem:[#allocation2 + $0xe8] sm:$0xff] %vm59, 0.0
      %90 = vst.msk [vmem:[#allocation2 + $0xf0] sm:$0xff] %vm59, 0.0
      %91 = vst.msk [vmem:[#allocation2 + $0xf8] sm:$0xff] %vm59, 0.0
      %92 = vst.msk [vmem:[#allocation2 + $0x100] sm:$0xff] %vm59, 0.0
      %93 = vst.msk [vmem:[#allocation2 + $0x108] sm:$0xff] %vm59, 0.0
      %94 = vst.msk [vmem:[#allocation2 + $0x110] sm:$0xff] %vm59, 0.0
      %95 = vst.msk [vmem:[#allocation2 + $0x118] sm:$0xff] %vm59, 0.0
      %96 = vst.msk [vmem:[#allocation2 + $0x120] sm:$0xff] %vm59, 0.0
      %97 = vst.msk [vmem:[#allocation2 + $0x128] sm:$0xff] %vm59, 0.0
      %98 = vst.msk [vmem:[#allocation2 + $0x130] sm:$0xff] %vm59, 0.0
      %99 = vst.msk [vmem:[#allocation2 + $0x138] sm:$0xff] %vm59, 0.0
      %100 = vst.msk [vmem:[#allocation2 + $0x140] sm:$0xff] %vm59, 0.0
      %101 = vst.msk [vmem:[#allocation2 + $0x148] sm:$0xff] %vm59, 0.0
      %102 = vst.msk [vmem:[#allocation2 + $0x150] sm:$0xff] %vm59, 0.0
      %103 = vst.msk [vmem:[#allocation2 + $0x158] sm:$0xff] %vm59, 0.0
      %104 = vst.msk [vmem:[#allocation2 + $0x160] sm:$0xff] %vm59, 0.0
      %105 = vst.msk [vmem:[#allocation2 + $0x168] sm:$0xff] %vm59, 0.0
      %106 = vst.msk [vmem:[#allocation2 + $0x170] sm:$0xff] %vm59, 0.0
      %107 = vst.msk [vmem:[#allocation2 + $0x178] sm:$0xff] %vm59, 0.0
      %108 = vst.msk [vmem:[#allocation2 + $0x180] sm:$0xff] %vm59, 0.0
      %109 = vst.msk [vmem:[#allocation2 + $0x188] sm:$0xff] %vm59, 0.0
      %110 = vst.msk [vmem:[#allocation2 + $0x190] sm:$0xff] %vm59, 0.0
      %111 = vst.msk [vmem:[#allocation2 + $0x198] sm:$0xff] %vm59, 0.0
      %112 = vst.msk [vmem:[#allocation2 + $0x1a0] sm:$0xff] %vm59, 0.0
      %113 = vst.msk [vmem:[#allocation2 + $0x1a8] sm:$0xff] %vm59, 0.0
      %114 = vst.msk [vmem:[#allocation2 + $0x1b0] sm:$0xff] %vm59, 0.0
      %115 = vst.msk [vmem:[#allocation2 + $0x1b8] sm:$0xff] %vm59, 0.0
      %116 = vst.msk [vmem:[#allocation2 + $0x1c0] sm:$0xff] %vm59, 0.0
      %117 = vst.msk [vmem:[#allocation2 + $0x1c8] sm:$0xff] %vm59, 0.0
      %118 = vst.msk [vmem:[#allocation2 + $0x1d0] sm:$0xff] %vm59, 0.0
      %119 = vst.msk [vmem:[#allocation2 + $0x1d8] sm:$0xff] %vm59, 0.0
      %120 = vst.msk [vmem:[#allocation2 + $0x1e0] sm:$0xff] %vm59, 0.0
      %121 = vst.msk [vmem:[#allocation2 + $0x1e8] sm:$0xff] %vm59, 0.0
      %122 = vst.msk [vmem:[#allocation2 + $0x1f0] sm:$0xff] %vm59, 0.0
      %123 = vst.msk [vmem:[#allocation2 + $0x1f8] sm:$0xff] %vm59, 0.0
    $region29: #{resnet_forward.14} parent=1 // pred_fallthru
      _
    %v124 = vld [vmem:[#allocation2] sm:$0xff]
    %v125 = vld [vmem:[#allocation2 + $0x8] sm:$0xff]
    %v126 = vld [vmem:[#allocation2 + $0x10] sm:$0xff]
    %v127 = vld [vmem:[#allocation2 + $0x18] sm:$0xff]
    %v128 = vld [vmem:[#allocation2 + $0x20] sm:$0xff]
    %v129 = vld [vmem:[#allocation2 + $0x28] sm:$0xff]
    %v130 = vld [vmem:[#allocation2 + $0x30] sm:$0xff]
    %v131 = vld [vmem:[#allocation2 + $0x38] sm:$0xff]
    %v132 = vld [vmem:[#allocation2 + $0x40] sm:$0xff]
    %v133 = vld [vmem:[#allocation2 + $0x48] sm:$0xff]
    %v134 = vld [vmem:[#allocation2 + $0x50] sm:$0xff]
    %v135 = vld [vmem:[#allocation2 + $0x58] sm:$0xff]
    %v136 = vld [vmem:[#allocation2 + $0x60] sm:$0xff]
    %v137 = vld [vmem:[#allocation2 + $0x68] sm:$0xff]
    %v138 = vld [vmem:[#allocation2 + $0x70] sm:$0xff]
    %v139 = vld [vmem:[#allocation2 + $0x78] sm:$0xff]
    %v140 = vld [vmem:[#allocation2 + $0x80] sm:$0xff]
    %v141 = vld [vmem:[#allocation2 + $0x88] sm:$0xff]
    %v142 = vld [vmem:[#allocation2 + $0x90] sm:$0xff]
    %v143 = vld [vmem:[#allocation2 + $0x98] sm:$0xff]
    %v144 = vld [vmem:[#allocation2 + $0xa0] sm:$0xff]
    %v145 = vld [vmem:[#allocation2 + $0xa8] sm:$0xff]
    %v146 = vld [vmem:[#allocation2 + $0xb0] sm:$0xff]
    %v147 = vld [vmem:[#allocation2 + $0xb8] sm:$0xff]
    %v148 = vld [vmem:[#allocation2 + $0xc0] sm:$0xff]
    %v149 = vld [vmem:[#allocation2 + $0xc8] sm:$0xff]
    %v150 = vld [vmem:[#allocation2 + $0xd0] sm:$0xff]
    %v151 = vld [vmem:[#allocation2 + $0xd8] sm:$0xff]
    %v152 = vld [vmem:[#allocation2 + $0xe0] sm:$0xff]
    %v153 = vld [vmem:[#allocation2 + $0xe8] sm:$0xff]
    %v154 = vld [vmem:[#allocation2 + $0xf0] sm:$0xff]
    %v155 = vld [vmem:[#allocation2 + $0xf8] sm:$0xff]
    %v156 = vld [vmem:[#allocation2 + $0x100] sm:$0xff]
    %v157 = vld [vmem:[#allocation2 + $0x108] sm:$0xff]
    %v158 = vld [vmem:[#allocation2 + $0x110] sm:$0xff]
    %v159 = vld [vmem:[#allocation2 + $0x118] sm:$0xff]
    %v160 = vld [vmem:[#allocation2 + $0x120] sm:$0xff]
    %v161 = vld [vmem:[#allocation2 + $0x128] sm:$0xff]
    %v162 = vld [vmem:[#allocation2 + $0x130] sm:$0xff]
    %v163 = vld [vmem:[#allocation2 + $0x138] sm:$0xff]
    %v164 = vld [vmem:[#allocation2 + $0x140] sm:$0xff]
    %v165 = vld [vmem:[#allocation2 + $0x148] sm:$0xff]
    %v166 = vld [vmem:[#allocation2 + $0x150] sm:$0xff]
    %v167 = vld [vmem:[#allocation2 + $0x158] sm:$0xff]
    %v168 = vld [vmem:[#allocation2 + $0x160] sm:$0xff]
    %v169 = vld [vmem:[#allocation2 + $0x168] sm:$0xff]
    %v170 = vld [vmem:[#allocation2 + $0x170] sm:$0xff]
    %v171 = vld [vmem:[#allocation2 + $0x178] sm:$0xff]
    %v172 = vld [vmem:[#allocation2 + $0x180] sm:$0xff]
    %v173 = vld [vmem:[#allocation2 + $0x188] sm:$0xff]
    %v174 = vld [vmem:[#allocation2 + $0x190] sm:$0xff]
    %v175 = vld [vmem:[#allocation2 + $0x198] sm:$0xff]
    %v176 = vld [vmem:[#allocation2 + $0x1a0] sm:$0xff]
    %v177 = vld [vmem:[#allocation2 + $0x1a8] sm:$0xff]
    %v178 = vld [vmem:[#allocation2 + $0x1b0] sm:$0xff]
    %v179 = vld [vmem:[#allocation2 + $0x1b8] sm:$0xff]
    %v180 = vld [vmem:[#allocation2 + $0x1c0] sm:$0xff]
    %v181 = vld [vmem:[#allocation2 + $0x1c8] sm:$0xff]
    %v182 = vld [vmem:[#allocation2 + $0x1d0] sm:$0xff]
    %v183 = vld [vmem:[#allocation2 + $0x1d8] sm:$0xff]
    %v184 = vld [vmem:[#allocation2 + $0x1e0] sm:$0xff]
    %v185 = vld [vmem:[#allocation2 + $0x1e8] sm:$0xff]
    %v186 = vld [vmem:[#allocation2 + $0x1f0] sm:$0xff]
    %v187 = vld [vmem:[#allocation2 + $0x1f8] sm:$0xff]
    %v188 = vld [vmem:[#allocation3] sm:$0xf]
    %v189 = vld [vmem:[#allocation3 + $0x4] sm:$0xf]
    %v190 = vld [vmem:[#allocation3 + $0x8] sm:$0xf]
    %v191 = vld [vmem:[#allocation3 + $0xc] sm:$0xf]
    %v192 = vld [vmem:[#allocation3 + $0x10] sm:$0xf]
    %v193 = vld [vmem:[#allocation3 + $0x14] sm:$0xf]
    %v194 = vld [vmem:[#allocation3 + $0x18] sm:$0xf]
    %v195 = vld [vmem:[#allocation3 + $0x1c] sm:$0xf]
    %v196 = vld [vmem:[#allocation3 + $0x20] sm:$0xf]
    %v197 = vld [vmem:[#allocation3 + $0x24] sm:$0xf]
    %v198 = vld [vmem:[#allocation3 + $0x28] sm:$0xf]
    %v199 = vld [vmem:[#allocation3 + $0x2c] sm:$0xf]
    %v200 = vld [vmem:[#allocation3 + $0x30] sm:$0xf]
    %v201 = vld [vmem:[#allocation3 + $0x34] sm:$0xf]
    %v202 = vld [vmem:[#allocation3 + $0x38] sm:$0xf]
    %v203 = vld [vmem:[#allocation3 + $0x3c] sm:$0xf]
    %v204 = vld [vmem:[#allocation3 + $0x40] sm:$0xf]
    %v205 = vld [vmem:[#allocation3 + $0x44] sm:$0xf]
    %v206 = vld [vmem:[#allocation3 + $0x48] sm:$0xf]
    %v207 = vld [vmem:[#allocation3 + $0x4c] sm:$0xf]
    %v208 = vld [vmem:[#allocation3 + $0x50] sm:$0xf]
    %v209 = vld [vmem:[#allocation3 + $0x54] sm:$0xf]
    %v210 = vld [vmem:[#allocation3 + $0x58] sm:$0xf]
    %v211 = vld [vmem:[#allocation3 + $0x5c] sm:$0xf]
    %v212 = vld [vmem:[#allocation3 + $0x60] sm:$0xf]
    %v213 = vld [vmem:[#allocation3 + $0x64] sm:$0xf]
    %v214 = vld [vmem:[#allocation3 + $0x68] sm:$0xf]
    %v215 = vld [vmem:[#allocation3 + $0x6c] sm:$0xf]
    %v216 = vld [vmem:[#allocation3 + $0x70] sm:$0xf]
    %v217 = vld [vmem:[#allocation3 + $0x74] sm:$0xf]
    %v218 = vld [vmem:[#allocation3 + $0x78] sm:$0xf]
    %v219 = vld [vmem:[#allocation3 + $0x7c] sm:$0xf]
    %v220 = vld [vmem:[#allocation3 + $0x80] sm:$0xf]
    %v221 = vld [vmem:[#allocation3 + $0x84] sm:$0xf]
    %v222 = vld [vmem:[#allocation3 + $0x88] sm:$0xf]
    %v223 = vld [vmem:[#allocation3 + $0x8c] sm:$0xf]
    %v224 = vld [vmem:[#allocation3 + $0x90] sm:$0xf]
    %v225 = vld [vmem:[#allocation3 + $0x94] sm:$0xf]
    %v226 = vld [vmem:[#allocation3 + $0x98] sm:$0xf]
    %v227 = vld [vmem:[#allocation3 + $0x9c] sm:$0xf]
    %v228 = vld [vmem:[#allocation3 + $0xa0] sm:$0xf]
    %v229 = vld [vmem:[#allocation3 + $0xa4] sm:$0xf]
    %v230 = vld [vmem:[#allocation3 + $0xa8] sm:$0xf]
    %v231 = vld [vmem:[#allocation3 + $0xac] sm:$0xf]
    %v232 = vld [vmem:[#allocation3 + $0xb0] sm:$0xf]
    %v233 = vld [vmem:[#allocation3 + $0xb4] sm:$0xf]
    %v234 = vld [vmem:[#allocation3 + $0xb8] sm:$0xf]
    %v235 = vld [vmem:[#allocation3 + $0xbc] sm:$0xf]
    %v236 = vld [vmem:[#allocation3 + $0xc0] sm:$0xf]
    %v237 = vld [vmem:[#allocation3 + $0xc4] sm:$0xf]
    %v238 = vld [vmem:[#allocation3 + $0xc8] sm:$0xf]
    %v239 = vld [vmem:[#allocation3 + $0xcc] sm:$0xf]
    %v240 = vld [vmem:[#allocation3 + $0xd0] sm:$0xf]
    %v241 = vld [vmem:[#allocation3 + $0xd4] sm:$0xf]
    %v242 = vld [vmem:[#allocation3 + $0xd8] sm:$0xf]
    %v243 = vld [vmem:[#allocation3 + $0xdc] sm:$0xf]
    %v244 = vld [vmem:[#allocation3 + $0xe0] sm:$0xf]
    %v245 = vld [vmem:[#allocation3 + $0xe4] sm:$0xf]
    %v246 = vld [vmem:[#allocation3 + $0xe8] sm:$0xf]
    %v247 = vld [vmem:[#allocation3 + $0xec] sm:$0xf]
    %v248 = vld [vmem:[#allocation3 + $0xf0] sm:$0xf]
    %v249 = vld [vmem:[#allocation3 + $0xf4] sm:$0xf]
    %v250 = vld [vmem:[#allocation3 + $0xf8] sm:$0xf]
    %v251 = vld [vmem:[#allocation3 + $0xfc] sm:$0xf]
    %v252 = vld [vmem:[#allocation6] sm:$0xf]
    %v253 = vld [vmem:[#allocation6 + $0x4] sm:$0x3]
    %v318 = vunpack.c.l.b16 %v188
    %v319 = vunpack.c.l.b16 %v189
    %v320 = vunpack.c.l.b16 %v190
    %v321 = vunpack.c.l.b16 %v191
    %v322 = vunpack.c.l.b16 %v192
    %v323 = vunpack.c.l.b16 %v193
    %v324 = vunpack.c.l.b16 %v194
    %v325 = vunpack.c.l.b16 %v195
    %v326 = vunpack.c.l.b16 %v196
    %v327 = vunpack.c.l.b16 %v197
    %v328 = vunpack.c.l.b16 %v198
    %v329 = vunpack.c.l.b16 %v199
    %v330 = vunpack.c.l.b16 %v200
    %v331 = vunpack.c.l.b16 %v201
    %v332 = vunpack.c.l.b16 %v202
    %v333 = vunpack.c.l.b16 %v203
    %v334 = vunpack.c.l.b16 %v204
    %v335 = vunpack.c.l.b16 %v205
    %v336 = vunpack.c.l.b16 %v206
    %v337 = vunpack.c.l.b16 %v207
    %v338 = vunpack.c.l.b16 %v208
    %v339 = vunpack.c.l.b16 %v209
    %v340 = vunpack.c.l.b16 %v210
    %v341 = vunpack.c.l.b16 %v211
    %v342 = vunpack.c.l.b16 %v212
    %v343 = vunpack.c.l.b16 %v213
    %v344 = vunpack.c.l.b16 %v214
    %v345 = vunpack.c.l.b16 %v215
    %v346 = vunpack.c.l.b16 %v216
    %v347 = vunpack.c.l.b16 %v217
    %v348 = vunpack.c.l.b16 %v218
    %v349 = vunpack.c.l.b16 %v219
    %v350 = vunpack.c.l.b16 %v220
    %v351 = vunpack.c.l.b16 %v221
    %v352 = vunpack.c.l.b16 %v222
    %v353 = vunpack.c.l.b16 %v223
    %v354 = vunpack.c.l.b16 %v224
    %v355 = vunpack.c.l.b16 %v225
    %v356 = vunpack.c.l.b16 %v226
    %v357 = vunpack.c.l.b16 %v227
    %v358 = vunpack.c.l.b16 %v228
    %v359 = vunpack.c.l.b16 %v229
    %v360 = vunpack.c.l.b16 %v230
    %v361 = vunpack.c.l.b16 %v231
    %v362 = vunpack.c.l.b16 %v232
    %v363 = vunpack.c.l.b16 %v233
    %v364 = vunpack.c.l.b16 %v234
    %v365 = vunpack.c.l.b16 %v235
    %v366 = vunpack.c.l.b16 %v236
    %v367 = vunpack.c.l.b16 %v237
    %v368 = vunpack.c.l.b16 %v238
    %v369 = vunpack.c.l.b16 %v239
    %v370 = vunpack.c.l.b16 %v240
    %v371 = vunpack.c.l.b16 %v241
    %v372 = vunpack.c.l.b16 %v242
    %v373 = vunpack.c.l.b16 %v243
    %v374 = vunpack.c.l.b16 %v244
    %v375 = vunpack.c.l.b16 %v245
    %v376 = vunpack.c.l.b16 %v246
    %v377 = vunpack.c.l.b16 %v247
    %v378 = vunpack.c.l.b16 %v248
    %v379 = vunpack.c.l.b16 %v249
    %v380 = vunpack.c.l.b16 %v250
    %v381 = vunpack.c.l.b16 %v251
    %v382 = vpack.c.b16 %v319, %v318
    %v383 = vpack.c.b16 %v321, %v320
    %v384 = vpack.c.b16 %v323, %v322
    %v385 = vpack.c.b16 %v325, %v324
    %v386 = vpack.c.b16 %v327, %v326
    %v387 = vpack.c.b16 %v329, %v328
    %v388 = vpack.c.b16 %v331, %v330
    %v389 = vpack.c.b16 %v333, %v332
    %v390 = vpack.c.b16 %v335, %v334
    %v391 = vpack.c.b16 %v337, %v336
    %v392 = vpack.c.b16 %v339, %v338
    %v393 = vpack.c.b16 %v341, %v340
    %v394 = vpack.c.b16 %v343, %v342
    %v395 = vpack.c.b16 %v345, %v344
    %v396 = vpack.c.b16 %v347, %v346
    %v397 = vpack.c.b16 %v349, %v348
    %v398 = vpack.c.b16 %v351, %v350
    %v399 = vpack.c.b16 %v353, %v352
    %v400 = vpack.c.b16 %v355, %v354
    %v401 = vpack.c.b16 %v357, %v356
    %v402 = vpack.c.b16 %v359, %v358
    %v403 = vpack.c.b16 %v361, %v360
    %v404 = vpack.c.b16 %v363, %v362
    %v405 = vpack.c.b16 %v365, %v364
    %v406 = vpack.c.b16 %v367, %v366
    %v407 = vpack.c.b16 %v369, %v368
    %v408 = vpack.c.b16 %v371, %v370
    %v409 = vpack.c.b16 %v373, %v372
    %v410 = vpack.c.b16 %v375, %v374
    %v411 = vpack.c.b16 %v377, %v376
    %v412 = vpack.c.b16 %v379, %v378
    %v413 = vpack.c.b16 %v381, %v380
    %v416 = vunpack.c.l.b16 %v252
    %v417 = vunpack.c.l.b16 %v253
    %v418 = vpack.c.b16 %v417, %v416
    %vm419 = vcmask 97280
    %v421 = vsel %vm419, %v382, 0
    %v424 = vsel %vm419, %v383, 0
    %v427 = vsel %vm419, %v384, 0
    %v430 = vsel %vm419, %v385, 0
    %v433 = vsel %vm419, %v386, 0
    %v436 = vsel %vm419, %v387, 0
    %v439 = vsel %vm419, %v388, 0
    %v442 = vsel %vm419, %v389, 0
    %v445 = vsel %vm419, %v390, 0
    %v448 = vsel %vm419, %v391, 0
    %v451 = vsel %vm419, %v392, 0
    %v454 = vsel %vm419, %v393, 0
    %v457 = vsel %vm419, %v394, 0
    %v460 = vsel %vm419, %v395, 0
    %v463 = vsel %vm419, %v396, 0
    %v466 = vsel %vm419, %v397, 0
    %v469 = vsel %vm419, %v398, 0
    %v472 = vsel %vm419, %v399, 0
    %v475 = vsel %vm419, %v400, 0
    %v478 = vsel %vm419, %v401, 0
    %v481 = vsel %vm419, %v402, 0
    %v484 = vsel %vm419, %v403, 0
    %v487 = vsel %vm419, %v404, 0
    %v490 = vsel %vm419, %v405, 0
    %v493 = vsel %vm419, %v406, 0
    %v496 = vsel %vm419, %v407, 0
    %v499 = vsel %vm419, %v408, 0
    %v502 = vsel %vm419, %v409, 0
    %v505 = vsel %vm419, %v410, 0
    %v508 = vsel %vm419, %v411, 0
    %v511 = vsel %vm419, %v412, 0
    %v514 = vsel %vm419, %v413, 0
    %vm516 = vcmask 1045504
    %v518 = vsel %vm516, %v418, 0
    %520 = vmatprep.subr.bf16.mxu0 0
    %521 = vmatpush1.bf16.msra.mxu0 %v518
    %522 = vmatprep.subr.bf16.mxu0 0
    %523 = vmatpush1.bf16.msra.mxu0 0
    %524 = vmatprep.subr.bf16.mxu0 0
    %525 = vmatpush1.bf16.msra.mxu0 0
    %526 = vmatprep.subr.bf16.mxu0 0
    %527 = vmatpush1.bf16.msra.mxu0 0
    %528 = vmatprep.subr.bf16.mxu0 0
    %529 = vmatpush1.bf16.msra.mxu0 0
    %530 = vmatprep.subr.bf16.mxu0 0
    %531 = vmatpush1.bf16.msra.mxu0 0
    %532 = vmatprep.subr.bf16.mxu0 0
    %533 = vmatpush1.bf16.msra.mxu0 0
    %534 = vmatprep.subr.bf16.mxu0 0
    %535 = vmatpush1.bf16.msra.mxu0 0
    %536 = vmatprep.subr.bf16.mxu0 0
    %537 = vmatpush1.bf16.msra.mxu0 0
    %538 = vmatprep.subr.bf16.mxu0 0
    %539 = vmatpush1.bf16.msra.mxu0 0
    %540 = vmatprep.subr.bf16.mxu0 0
    %541 = vmatpush1.bf16.msra.mxu0 0
    %542 = vmatprep.subr.bf16.mxu0 0
    %543 = vmatpush1.bf16.msra.mxu0 0
    %544 = vmatprep.subr.bf16.mxu0 0
    %545 = vmatpush1.bf16.msra.mxu0 0
    %546 = vmatprep.subr.bf16.mxu0 0
    %547 = vmatpush1.bf16.msra.mxu0 0
    %548 = vmatprep.subr.bf16.mxu0 0
    %549 = vmatpush1.bf16.msra.mxu0 0
    %550 = vmatprep.subr.bf16.mxu0 0
    %551 = vmatpush1.bf16.msra.mxu0 0
    %552 = vmatprep.mubr.bf16.mxu0 0
    %553 = vmatmul.mubr.bf16.gmra.mrb[0].mxu0 %v421
    %v554 = vpop.f32.mrb[0].mxu0
    %v555 = vadd.f32 0.0, %v554
    %v556 = vpop.f32.mrb[0].mxu0
    %v557 = vpop.f32.mrb[0].mxu0
    %v558 = vadd.f32 0.0, %v557
    %v559 = vpop.f32.mrb[0].mxu0
    %560 = vmatprep.mubr.bf16.mxu0 0
    %561 = vmatmul.mubr.bf16.gmra.mrb[0].mxu0 %v424
    %v562 = vpop.f32.mrb[0].mxu0
    %v563 = vadd.f32 0.0, %v562
    %v564 = vpop.f32.mrb[0].mxu0
    %v565 = vpop.f32.mrb[0].mxu0
    %v566 = vadd.f32 0.0, %v565
    %v567 = vpop.f32.mrb[0].mxu0
    %568 = vmatprep.mubr.bf16.mxu0 0
    %569 = vmatmul.mubr.bf16.gmra.mrb[0].mxu0 %v427
    %v570 = vpop.f32.mrb[0].mxu0
    %v571 = vadd.f32 0.0, %v570
    %v572 = vpop.f32.mrb[0].mxu0
    %v573 = vpop.f32.mrb[0].mxu0
    %v574 = vadd.f32 0.0, %v573
    %v575 = vpop.f32.mrb[0].mxu0
    %576 = vmatprep.mubr.bf16.mxu0 0
    %577 = vmatmul.mubr.bf16.gmra.mrb[0].mxu0 %v430
    %v578 = vpop.f32.mrb[0].mxu0
    %v579 = vadd.f32 0.0, %v578
    %v580 = vpop.f32.mrb[0].mxu0
    %v581 = vpop.f32.mrb[0].mxu0
    %v582 = vadd.f32 0.0, %v581
    %v583 = vpop.f32.mrb[0].mxu0
    %584 = vmatprep.mubr.bf16.mxu0 0
    %585 = vmatmul.mubr.bf16.gmra.mrb[0].mxu0 %v433
    %v586 = vpop.f32.mrb[0].mxu0
    %v587 = vadd.f32 0.0, %v586
    %v588 = vpop.f32.mrb[0].mxu0
    %v589 = vpop.f32.mrb[0].mxu0
    %v590 = vadd.f32 0.0, %v589
    %v591 = vpop.f32.mrb[0].mxu0
    %592 = vmatprep.mubr.bf16.mxu0 0
    %593 = vmatmul.mubr.bf16.gmra.mrb[0].mxu0 %v436
    %v594 = vpop.f32.mrb[0].mxu0
    %v595 = vadd.f32 0.0, %v594
    %v596 = vpop.f32.mrb[0].mxu0
    %v597 = vpop.f32.mrb[0].mxu0
    %v598 = vadd.f32 0.0, %v597
    %v599 = vpop.f32.mrb[0].mxu0
    %600 = vmatprep.mubr.bf16.mxu0 0
    %601 = vmatmul.mubr.bf16.gmra.mrb[0].mxu0 %v439
    %v602 = vpop.f32.mrb[0].mxu0
    %v603 = vadd.f32 0.0, %v602
    %v604 = vpop.f32.mrb[0].mxu0
    %v605 = vpop.f32.mrb[0].mxu0
    %v606 = vadd.f32 0.0, %v605
    %v607 = vpop.f32.mrb[0].mxu0
    %608 = vmatprep.mubr.bf16.mxu0 0
    %609 = vmatmul.mubr.bf16.gmra.mrb[0].mxu0 %v442
    %v610 = vpop.f32.mrb[0].mxu0
    %v611 = vadd.f32 0.0, %v610
    %v612 = vpop.f32.mrb[0].mxu0
    %v613 = vpop.f32.mrb[0].mxu0
    %v614 = vadd.f32 0.0, %v613
    %v615 = vpop.f32.mrb[0].mxu0
    %616 = vmatprep.mubr.bf16.mxu0 0
    %617 = vmatmul.mubr.bf16.gmra.mrb[0].mxu0 %v445
    %v618 = vpop.f32.mrb[0].mxu0
    %v619 = vadd.f32 0.0, %v618
    %v620 = vpop.f32.mrb[0].mxu0
    %v621 = vpop.f32.mrb[0].mxu0
    %v622 = vadd.f32 0.0, %v621
    %v623 = vpop.f32.mrb[0].mxu0
    %624 = vmatprep.mubr.bf16.mxu0 0
    %625 = vmatmul.mubr.bf16.gmra.mrb[0].mxu0 %v448
    %v626 = vpop.f32.mrb[0].mxu0
    %v627 = vadd.f32 0.0, %v626
    %v628 = vpop.f32.mrb[0].mxu0
    %v629 = vpop.f32.mrb[0].mxu0
    %v630 = vadd.f32 0.0, %v629
    %v631 = vpop.f32.mrb[0].mxu0
    %632 = vmatprep.mubr.bf16.mxu0 0
    %633 = vmatmul.mubr.bf16.gmra.mrb[0].mxu0 %v451
    %v634 = vpop.f32.mrb[0].mxu0
    %v635 = vadd.f32 0.0, %v634
    %v636 = vpop.f32.mrb[0].mxu0
    %v637 = vpop.f32.mrb[0].mxu0
    %v638 = vadd.f32 0.0, %v637
    %v639 = vpop.f32.mrb[0].mxu0
    %640 = vmatprep.mubr.bf16.mxu0 0
    %641 = vmatmul.mubr.bf16.gmra.mrb[0].mxu0 %v454
    %v642 = vpop.f32.mrb[0].mxu0
    %v643 = vadd.f32 0.0, %v642
    %v644 = vpop.f32.mrb[0].mxu0
    %v645 = vpop.f32.mrb[0].mxu0
    %v646 = vadd.f32 0.0, %v645
    %v647 = vpop.f32.mrb[0].mxu0
    %648 = vmatprep.mubr.bf16.mxu0 0
    %649 = vmatmul.mubr.bf16.gmra.mrb[0].mxu0 %v457
    %v650 = vpop.f32.mrb[0].mxu0
    %v651 = vadd.f32 0.0, %v650
    %v652 = vpop.f32.mrb[0].mxu0
    %v653 = vpop.f32.mrb[0].mxu0
    %v654 = vadd.f32 0.0, %v653
    %v655 = vpop.f32.mrb[0].mxu0
    %656 = vmatprep.mubr.bf16.mxu0 0
    %657 = vmatmul.mubr.bf16.gmra.mrb[0].mxu0 %v460
    %v658 = vpop.f32.mrb[0].mxu0
    %v659 = vadd.f32 0.0, %v658
    %v660 = vpop.f32.mrb[0].mxu0
    %v661 = vpop.f32.mrb[0].mxu0
    %v662 = vadd.f32 0.0, %v661
    %v663 = vpop.f32.mrb[0].mxu0
    %664 = vmatprep.mubr.bf16.mxu0 0
    %665 = vmatmul.mubr.bf16.gmra.mrb[0].mxu0 %v463
    %v666 = vpop.f32.mrb[0].mxu0
    %v667 = vadd.f32 0.0, %v666
    %v668 = vpop.f32.mrb[0].mxu0
    %v669 = vpop.f32.mrb[0].mxu0
    %v670 = vadd.f32 0.0, %v669
    %v671 = vpop.f32.mrb[0].mxu0
    %672 = vmatprep.mubr.bf16.mxu0 0
    %673 = vmatmul.mubr.bf16.gmra.mrb[0].mxu0 %v466
    %v674 = vpop.f32.mrb[0].mxu0
    %v675 = vadd.f32 0.0, %v674
    %v676 = vpop.f32.mrb[0].mxu0
    %v677 = vpop.f32.mrb[0].mxu0
    %v678 = vadd.f32 0.0, %v677
    %v679 = vpop.f32.mrb[0].mxu0
    %680 = vmatprep.mubr.bf16.mxu0 0
    %681 = vmatmul.mubr.bf16.gmra.mrb[0].mxu0 %v469
    %v682 = vpop.f32.mrb[0].mxu0
    %v683 = vadd.f32 0.0, %v682
    %v684 = vpop.f32.mrb[0].mxu0
    %v685 = vpop.f32.mrb[0].mxu0
    %v686 = vadd.f32 0.0, %v685
    %v687 = vpop.f32.mrb[0].mxu0
    %688 = vmatprep.mubr.bf16.mxu0 0
    %689 = vmatmul.mubr.bf16.gmra.mrb[0].mxu0 %v472
    %v690 = vpop.f32.mrb[0].mxu0
    %v691 = vadd.f32 0.0, %v690
    %v692 = vpop.f32.mrb[0].mxu0
    %v693 = vpop.f32.mrb[0].mxu0
    %v694 = vadd.f32 0.0, %v693
    %v695 = vpop.f32.mrb[0].mxu0
    %696 = vmatprep.mubr.bf16.mxu0 0
    %697 = vmatmul.mubr.bf16.gmra.mrb[0].mxu0 %v475
    %v698 = vpop.f32.mrb[0].mxu0
    %v699 = vadd.f32 0.0, %v698
    %v700 = vpop.f32.mrb[0].mxu0
    %v701 = vpop.f32.mrb[0].mxu0
    %v702 = vadd.f32 0.0, %v701
    %v703 = vpop.f32.mrb[0].mxu0
    %704 = vmatprep.mubr.bf16.mxu0 0
    %705 = vmatmul.mubr.bf16.gmra.mrb[0].mxu0 %v478
    %v706 = vpop.f32.mrb[0].mxu0
    %v707 = vadd.f32 0.0, %v706
    %v708 = vpop.f32.mrb[0].mxu0
    %v709 = vpop.f32.mrb[0].mxu0
    %v710 = vadd.f32 0.0, %v709
    %v711 = vpop.f32.mrb[0].mxu0
    %712 = vmatprep.mubr.bf16.mxu0 0
    %713 = vmatmul.mubr.bf16.gmra.mrb[0].mxu0 %v481
    %v714 = vpop.f32.mrb[0].mxu0
    %v715 = vadd.f32 0.0, %v714
    %v716 = vpop.f32.mrb[0].mxu0
    %v717 = vpop.f32.mrb[0].mxu0
    %v718 = vadd.f32 0.0, %v717
    %v719 = vpop.f32.mrb[0].mxu0
    %720 = vmatprep.mubr.bf16.mxu0 0
    %721 = vmatmul.mubr.bf16.gmra.mrb[0].mxu0 %v484
    %v722 = vpop.f32.mrb[0].mxu0
    %v723 = vadd.f32 0.0, %v722
    %v724 = vpop.f32.mrb[0].mxu0
    %v725 = vpop.f32.mrb[0].mxu0
    %v726 = vadd.f32 0.0, %v725
    %v727 = vpop.f32.mrb[0].mxu0
    %728 = vmatprep.mubr.bf16.mxu0 0
    %729 = vmatmul.mubr.bf16.gmra.mrb[0].mxu0 %v487
    %v730 = vpop.f32.mrb[0].mxu0
    %v731 = vadd.f32 0.0, %v730
    %v732 = vpop.f32.mrb[0].mxu0
    %v733 = vpop.f32.mrb[0].mxu0
    %v734 = vadd.f32 0.0, %v733
    %v735 = vpop.f32.mrb[0].mxu0
    %736 = vmatprep.mubr.bf16.mxu0 0
    %737 = vmatmul.mubr.bf16.gmra.mrb[0].mxu0 %v490
    %v738 = vpop.f32.mrb[0].mxu0
    %v739 = vadd.f32 0.0, %v738
    %v740 = vpop.f32.mrb[0].mxu0
    %v741 = vpop.f32.mrb[0].mxu0
    %v742 = vadd.f32 0.0, %v741
    %v743 = vpop.f32.mrb[0].mxu0
    %744 = vmatprep.mubr.bf16.mxu0 0
    %745 = vmatmul.mubr.bf16.gmra.mrb[0].mxu0 %v493
    %v746 = vpop.f32.mrb[0].mxu0
    %v747 = vadd.f32 0.0, %v746
    %v748 = vpop.f32.mrb[0].mxu0
    %v749 = vpop.f32.mrb[0].mxu0
    %v750 = vadd.f32 0.0, %v749
    %v751 = vpop.f32.mrb[0].mxu0
    %752 = vmatprep.mubr.bf16.mxu0 0
    %753 = vmatmul.mubr.bf16.gmra.mrb[0].mxu0 %v496
    %v754 = vpop.f32.mrb[0].mxu0
    %v755 = vadd.f32 0.0, %v754
    %v756 = vpop.f32.mrb[0].mxu0
    %v757 = vpop.f32.mrb[0].mxu0
    %v758 = vadd.f32 0.0, %v757
    %v759 = vpop.f32.mrb[0].mxu0
    %760 = vmatprep.mubr.bf16.mxu0 0
    %761 = vmatmul.mubr.bf16.gmra.mrb[0].mxu0 %v499
    %v762 = vpop.f32.mrb[0].mxu0
    %v763 = vadd.f32 0.0, %v762
    %v764 = vpop.f32.mrb[0].mxu0
    %v765 = vpop.f32.mrb[0].mxu0
    %v766 = vadd.f32 0.0, %v765
    %v767 = vpop.f32.mrb[0].mxu0
    %768 = vmatprep.mubr.bf16.mxu0 0
    %769 = vmatmul.mubr.bf16.gmra.mrb[0].mxu0 %v502
    %v770 = vpop.f32.mrb[0].mxu0
    %v771 = vadd.f32 0.0, %v770
    %v772 = vpop.f32.mrb[0].mxu0
    %v773 = vpop.f32.mrb[0].mxu0
    %v774 = vadd.f32 0.0, %v773
    %v775 = vpop.f32.mrb[0].mxu0
    %776 = vmatprep.mubr.bf16.mxu0 0
    %777 = vmatmul.mubr.bf16.gmra.mrb[0].mxu0 %v505
    %v778 = vpop.f32.mrb[0].mxu0
    %v779 = vadd.f32 0.0, %v778
    %v780 = vpop.f32.mrb[0].mxu0
    %v781 = vpop.f32.mrb[0].mxu0
    %v782 = vadd.f32 0.0, %v781
    %v783 = vpop.f32.mrb[0].mxu0
    %784 = vmatprep.mubr.bf16.mxu0 0
    %785 = vmatmul.mubr.bf16.gmra.mrb[0].mxu0 %v508
    %v786 = vpop.f32.mrb[0].mxu0
    %v787 = vadd.f32 0.0, %v786
    %v788 = vpop.f32.mrb[0].mxu0
    %v789 = vpop.f32.mrb[0].mxu0
    %v790 = vadd.f32 0.0, %v789
    %v791 = vpop.f32.mrb[0].mxu0
    %792 = vmatprep.mubr.bf16.mxu0 0
    %793 = vmatmul.mubr.bf16.gmra.mrb[0].mxu0 %v511
    %v794 = vpop.f32.mrb[0].mxu0
    %v795 = vadd.f32 0.0, %v794
    %v796 = vpop.f32.mrb[0].mxu0
    %v797 = vpop.f32.mrb[0].mxu0
    %v798 = vadd.f32 0.0, %v797
    %v799 = vpop.f32.mrb[0].mxu0
    %800 = vmatprep.mubr.bf16.mxu0 0
    %801 = vmatmul.mubr.bf16.gmra.mrb[0].mxu0 %v514
    %v802 = vpop.f32.mrb[0].mxu0
    %v803 = vadd.f32 0.0, %v802
    %v804 = vpop.f32.mrb[0].mxu0
    %v805 = vpop.f32.mrb[0].mxu0
    %v806 = vadd.f32 0.0, %v805
    %v807 = vpop.f32.mrb[0].mxu0
    %808 = vdwg.mxu0
    %v809 = vadd.f32 %v124, %v555
    %v810 = vadd.f32 %v125, %v558
    %v811 = vadd.f32 %v126, %v563
    %v812 = vadd.f32 %v127, %v566
    %v813 = vadd.f32 %v128, %v571
    %v814 = vadd.f32 %v129, %v574
    %v815 = vadd.f32 %v130, %v579
    %v816 = vadd.f32 %v131, %v582
    %v817 = vadd.f32 %v132, %v587
    %v818 = vadd.f32 %v133, %v590
    %v819 = vadd.f32 %v134, %v595
    %v820 = vadd.f32 %v135, %v598
    %v821 = vadd.f32 %v136, %v603
    %v822 = vadd.f32 %v137, %v606
    %v823 = vadd.f32 %v138, %v611
    %v824 = vadd.f32 %v139, %v614
    %v825 = vadd.f32 %v140, %v619
    %v826 = vadd.f32 %v141, %v622
    %v827 = vadd.f32 %v142, %v627
    %v828 = vadd.f32 %v143, %v630
    %v829 = vadd.f32 %v144, %v635
    %v830 = vadd.f32 %v145, %v638
    %v831 = vadd.f32 %v146, %v643
    %v832 = vadd.f32 %v147, %v646
    %v833 = vadd.f32 %v148, %v651
    %v834 = vadd.f32 %v149, %v654
    %v835 = vadd.f32 %v150, %v659
    %v836 = vadd.f32 %v151, %v662
    %v837 = vadd.f32 %v152, %v667
    %v838 = vadd.f32 %v153, %v670
    %v839 = vadd.f32 %v154, %v675
    %v840 = vadd.f32 %v155, %v678
    %v841 = vadd.f32 %v156, %v683
    %v842 = vadd.f32 %v157, %v686
    %v843 = vadd.f32 %v158, %v691
    %v844 = vadd.f32 %v159, %v694
    %v845 = vadd.f32 %v160, %v699
    %v846 = vadd.f32 %v161, %v702
    %v847 = vadd.f32 %v162, %v707
    %v848 = vadd.f32 %v163, %v710
    %v849 = vadd.f32 %v164, %v715
    %v850 = vadd.f32 %v165, %v718
    %v851 = vadd.f32 %v166, %v723
    %v852 = vadd.f32 %v167, %v726
    %v853 = vadd.f32 %v168, %v731
    %v854 = vadd.f32 %v169, %v734
    %v855 = vadd.f32 %v170, %v739
    %v856 = vadd.f32 %v171, %v742
    %v857 = vadd.f32 %v172, %v747
    %v858 = vadd.f32 %v173, %v750
    %v859 = vadd.f32 %v174, %v755
    %v860 = vadd.f32 %v175, %v758
    %v861 = vadd.f32 %v176, %v763
    %v862 = vadd.f32 %v177, %v766
    %v863 = vadd.f32 %v178, %v771
    %v864 = vadd.f32 %v179, %v774
    %v865 = vadd.f32 %v180, %v779
    %v866 = vadd.f32 %v181, %v782
    %v867 = vadd.f32 %v182, %v787
    %v868 = vadd.f32 %v183, %v790
    %v869 = vadd.f32 %v184, %v795
    %v870 = vadd.f32 %v185, %v798
    %v871 = vadd.f32 %v186, %v803
    %v872 = vadd.f32 %v187, %v806
    %vm873 = vcmask 523264
    %874 = vst.msk [vmem:[#allocation2] sm:$0xff] %vm873, %v809
    %875 = vst.msk [vmem:[#allocation2 + $0x8] sm:$0xff] %vm873, %v810
    %876 = vst.msk [vmem:[#allocation2 + $0x10] sm:$0xff] %vm873, %v811
    %877 = vst.msk [vmem:[#allocation2 + $0x18] sm:$0xff] %vm873, %v812
    %878 = vst.msk [vmem:[#allocation2 + $0x20] sm:$0xff] %vm873, %v813
    %879 = vst.msk [vmem:[#allocation2 + $0x28] sm:$0xff] %vm873, %v814
    %880 = vst.msk [vmem:[#allocation2 + $0x30] sm:$0xff] %vm873, %v815
    %881 = vst.msk [vmem:[#allocation2 + $0x38] sm:$0xff] %vm873, %v816
    %882 = vst.msk [vmem:[#allocation2 + $0x40] sm:$0xff] %vm873, %v817
    %883 = vst.msk [vmem:[#allocation2 + $0x48] sm:$0xff] %vm873, %v818
    %884 = vst.msk [vmem:[#allocation2 + $0x50] sm:$0xff] %vm873, %v819
    %885 = vst.msk [vmem:[#allocation2 + $0x58] sm:$0xff] %vm873, %v820
    %886 = vst.msk [vmem:[#allocation2 + $0x60] sm:$0xff] %vm873, %v821
    %887 = vst.msk [vmem:[#allocation2 + $0x68] sm:$0xff] %vm873, %v822
    %888 = vst.msk [vmem:[#allocation2 + $0x70] sm:$0xff] %vm873, %v823
    %889 = vst.msk [vmem:[#allocation2 + $0x78] sm:$0xff] %vm873, %v824
    %890 = vst.msk [vmem:[#allocation2 + $0x80] sm:$0xff] %vm873, %v825
    %891 = vst.msk [vmem:[#allocation2 + $0x88] sm:$0xff] %vm873, %v826
    %892 = vst.msk [vmem:[#allocation2 + $0x90] sm:$0xff] %vm873, %v827
    %893 = vst.msk [vmem:[#allocation2 + $0x98] sm:$0xff] %vm873, %v828
    %894 = vst.msk [vmem:[#allocation2 + $0xa0] sm:$0xff] %vm873, %v829
    %895 = vst.msk [vmem:[#allocation2 + $0xa8] sm:$0xff] %vm873, %v830
    %896 = vst.msk [vmem:[#allocation2 + $0xb0] sm:$0xff] %vm873, %v831
    %897 = vst.msk [vmem:[#allocation2 + $0xb8] sm:$0xff] %vm873, %v832
    %898 = vst.msk [vmem:[#allocation2 + $0xc0] sm:$0xff] %vm873, %v833
    %899 = vst.msk [vmem:[#allocation2 + $0xc8] sm:$0xff] %vm873, %v834
    %900 = vst.msk [vmem:[#allocation2 + $0xd0] sm:$0xff] %vm873, %v835
    %901 = vst.msk [vmem:[#allocation2 + $0xd8] sm:$0xff] %vm873, %v836
    %902 = vst.msk [vmem:[#allocation2 + $0xe0] sm:$0xff] %vm873, %v837
    %903 = vst.msk [vmem:[#allocation2 + $0xe8] sm:$0xff] %vm873, %v838
    %904 = vst.msk [vmem:[#allocation2 + $0xf0] sm:$0xff] %vm873, %v839
    %905 = vst.msk [vmem:[#allocation2 + $0xf8] sm:$0xff] %vm873, %v840
    %906 = vst.msk [vmem:[#allocation2 + $0x100] sm:$0xff] %vm873, %v841
    %907 = vst.msk [vmem:[#allocation2 + $0x108] sm:$0xff] %vm873, %v842
    %908 = vst.msk [vmem:[#allocation2 + $0x110] sm:$0xff] %vm873, %v843
    %909 = vst.msk [vmem:[#allocation2 + $0x118] sm:$0xff] %vm873, %v844
    %910 = vst.msk [vmem:[#allocation2 + $0x120] sm:$0xff] %vm873, %v845
    %911 = vst.msk [vmem:[#allocation2 + $0x128] sm:$0xff] %vm873, %v846
    %912 = vst.msk [vmem:[#allocation2 + $0x130] sm:$0xff] %vm873, %v847
    %913 = vst.msk [vmem:[#allocation2 + $0x138] sm:$0xff] %vm873, %v848
    %914 = vst.msk [vmem:[#allocation2 + $0x140] sm:$0xff] %vm873, %v849
    %915 = vst.msk [vmem:[#allocation2 + $0x148] sm:$0xff] %vm873, %v850
    %916 = vst.msk [vmem:[#allocation2 + $0x150] sm:$0xff] %vm873, %v851
    %917 = vst.msk [vmem:[#allocation2 + $0x158] sm:$0xff] %vm873, %v852
    %918 = vst.msk [vmem:[#allocation2 + $0x160] sm:$0xff] %vm873, %v853
    %919 = vst.msk [vmem:[#allocation2 + $0x168] sm:$0xff] %vm873, %v854
    %920 = vst.msk [vmem:[#allocation2 + $0x170] sm:$0xff] %vm873, %v855
    %921 = vst.msk [vmem:[#allocation2 + $0x178] sm:$0xff] %vm873, %v856
    %922 = vst.msk [vmem:[#allocation2 + $0x180] sm:$0xff] %vm873, %v857
    %923 = vst.msk [vmem:[#allocation2 + $0x188] sm:$0xff] %vm873, %v858
    %924 = vst.msk [vmem:[#allocation2 + $0x190] sm:$0xff] %vm873, %v859
    %925 = vst.msk [vmem:[#allocation2 + $0x198] sm:$0xff] %vm873, %v860
    %926 = vst.msk [vmem:[#allocation2 + $0x1a0] sm:$0xff] %vm873, %v861
    %927 = vst.msk [vmem:[#allocation2 + $0x1a8] sm:$0xff] %vm873, %v862
    %928 = vst.msk [vmem:[#allocation2 + $0x1b0] sm:$0xff] %vm873, %v863
    %929 = vst.msk [vmem:[#allocation2 + $0x1b8] sm:$0xff] %vm873, %v864
    %930 = vst.msk [vmem:[#allocation2 + $0x1c0] sm:$0xff] %vm873, %v865
    %931 = vst.msk [vmem:[#allocation2 + $0x1c8] sm:$0xff] %vm873, %v866
    %932 = vst.msk [vmem:[#allocation2 + $0x1d0] sm:$0xff] %vm873, %v867
    %933 = vst.msk [vmem:[#allocation2 + $0x1d8] sm:$0xff] %vm873, %v868
    %934 = vst.msk [vmem:[#allocation2 + $0x1e0] sm:$0xff] %vm873, %v869
    %935 = vst.msk [vmem:[#allocation2 + $0x1e8] sm:$0xff] %vm873, %v870
    %936 = vst.msk [vmem:[#allocation2 + $0x1f0] sm:$0xff] %vm873, %v871
    %937 = vst.msk [vmem:[#allocation2 + $0x1f8] sm:$0xff] %vm873, %v872
    // Predicated region
    $region30: #{resnet_forward.14} parent=1 // pred_check
      %p938 = pneg %p55
    $region31: #{resnet_forward.14} parent=1 // pred_check_branch
      %940 = sbr.rel (%p938) target = $region33
    $region32: #{resnet_forward.14} parent=1 // pred_region
      %v941 = vld [vmem:[#allocation2] sm:$0xff]
      %v942 = vld [vmem:[#allocation2 + $0x8] sm:$0xff]
      %v943 = vld [vmem:[#allocation2 + $0x10] sm:$0xff]
      %v944 = vld [vmem:[#allocation2 + $0x18] sm:$0xff]
      %v945 = vld [vmem:[#allocation2 + $0x20] sm:$0xff]
      %v946 = vld [vmem:[#allocation2 + $0x28] sm:$0xff]
      %v947 = vld [vmem:[#allocation2 + $0x30] sm:$0xff]
      %v948 = vld [vmem:[#allocation2 + $0x38] sm:$0xff]
      %v949 = vld [vmem:[#allocation2 + $0x40] sm:$0xff]
      %v950 = vld [vmem:[#allocation2 + $0x48] sm:$0xff]
      %v951 = vld [vmem:[#allocation2 + $0x50] sm:$0xff]
      %v952 = vld [vmem:[#allocation2 + $0x58] sm:$0xff]
      %v953 = vld [vmem:[#allocation2 + $0x60] sm:$0xff]
      %v954 = vld [vmem:[#allocation2 + $0x68] sm:$0xff]
      %v955 = vld [vmem:[#allocation2 + $0x70] sm:$0xff]
      %v956 = vld [vmem:[#allocation2 + $0x78] sm:$0xff]
      %v957 = vld [vmem:[#allocation2 + $0x80] sm:$0xff]
      %v958 = vld [vmem:[#allocation2 + $0x88] sm:$0xff]
      %v959 = vld [vmem:[#allocation2 + $0x90] sm:$0xff]
      %v960 = vld [vmem:[#allocation2 + $0x98] sm:$0xff]
      %v961 = vld [vmem:[#allocation2 + $0xa0] sm:$0xff]
      %v962 = vld [vmem:[#allocation2 + $0xa8] sm:$0xff]
      %v963 = vld [vmem:[#allocation2 + $0xb0] sm:$0xff]
      %v964 = vld [vmem:[#allocation2 + $0xb8] sm:$0xff]
      %v965 = vld [vmem:[#allocation2 + $0xc0] sm:$0xff]
      %v966 = vld [vmem:[#allocation2 + $0xc8] sm:$0xff]
      %v967 = vld [vmem:[#allocation2 + $0xd0] sm:$0xff]
      %v968 = vld [vmem:[#allocation2 + $0xd8] sm:$0xff]
      %v969 = vld [vmem:[#allocation2 + $0xe0] sm:$0xff]
      %v970 = vld [vmem:[#allocation2 + $0xe8] sm:$0xff]
      %v971 = vld [vmem:[#allocation2 + $0xf0] sm:$0xff]
      %v972 = vld [vmem:[#allocation2 + $0xf8] sm:$0xff]
      %v973 = vld [vmem:[#allocation2 + $0x100] sm:$0xff]
      %v974 = vld [vmem:[#allocation2 + $0x108] sm:$0xff]
      %v975 = vld [vmem:[#allocation2 + $0x110] sm:$0xff]
      %v976 = vld [vmem:[#allocation2 + $0x118] sm:$0xff]
      %v977 = vld [vmem:[#allocation2 + $0x120] sm:$0xff]
      %v978 = vld [vmem:[#allocation2 + $0x128] sm:$0xff]
      %v979 = vld [vmem:[#allocation2 + $0x130] sm:$0xff]
      %v980 = vld [vmem:[#allocation2 + $0x138] sm:$0xff]
      %v981 = vld [vmem:[#allocation2 + $0x140] sm:$0xff]
      %v982 = vld [vmem:[#allocation2 + $0x148] sm:$0xff]
      %v983 = vld [vmem:[#allocation2 + $0x150] sm:$0xff]
      %v984 = vld [vmem:[#allocation2 + $0x158] sm:$0xff]
      %v985 = vld [vmem:[#allocation2 + $0x160] sm:$0xff]
      %v986 = vld [vmem:[#allocation2 + $0x168] sm:$0xff]
      %v987 = vld [vmem:[#allocation2 + $0x170] sm:$0xff]
      %v988 = vld [vmem:[#allocation2 + $0x178] sm:$0xff]
      %v989 = vld [vmem:[#allocation2 + $0x180] sm:$0xff]
      %v990 = vld [vmem:[#allocation2 + $0x188] sm:$0xff]
      %v991 = vld [vmem:[#allocation2 + $0x190] sm:$0xff]
      %v992 = vld [vmem:[#allocation2 + $0x198] sm:$0xff]
      %v993 = vld [vmem:[#allocation2 + $0x1a0] sm:$0xff]
      %v994 = vld [vmem:[#allocation2 + $0x1a8] sm:$0xff]
      %v995 = vld [vmem:[#allocation2 + $0x1b0] sm:$0xff]
      %v996 = vld [vmem:[#allocation2 + $0x1b8] sm:$0xff]
      %v997 = vld [vmem:[#allocation2 + $0x1c0] sm:$0xff]
      %v998 = vld [vmem:[#allocation2 + $0x1c8] sm:$0xff]
      %v999 = vld [vmem:[#allocation2 + $0x1d0] sm:$0xff]
      %v1000 = vld [vmem:[#allocation2 + $0x1d8] sm:$0xff]
      %v1001 = vld [vmem:[#allocation2 + $0x1e0] sm:$0xff]
      %v1002 = vld [vmem:[#allocation2 + $0x1e8] sm:$0xff]
      %v1003 = vld [vmem:[#allocation2 + $0x1f0] sm:$0xff]
      %v1004 = vld [vmem:[#allocation2 + $0x1f8] sm:$0xff]
      %v1005 = vld [vmem:[#allocation8] sm:$0x1]
      %v1006 = vlaneseq
      %v1007 = vshrl.u32 %v1006, 7
      %v1008 = vsub.s32 0, %v1007
      %v1009 = vrot.slane %v1005, %v1008
      %v1010 = vmul.f32 %v941, %v1009
      %v1011 = vmul.f32 %v942, %v1009
      %v1012 = vmul.f32 %v943, %v1009
      %v1013 = vmul.f32 %v944, %v1009
      %v1014 = vmul.f32 %v945, %v1009
      %v1015 = vmul.f32 %v946, %v1009
      %v1016 = vmul.f32 %v947, %v1009
      %v1017 = vmul.f32 %v948, %v1009
      %v1018 = vmul.f32 %v949, %v1009
      %v1019 = vmul.f32 %v950, %v1009
      %v1020 = vmul.f32 %v951, %v1009
      %v1021 = vmul.f32 %v952, %v1009
      %v1022 = vmul.f32 %v953, %v1009
      %v1023 = vmul.f32 %v954, %v1009
      %v1024 = vmul.f32 %v955, %v1009
      %v1025 = vmul.f32 %v956, %v1009
      %v1026 = vmul.f32 %v957, %v1009
      %v1027 = vmul.f32 %v958, %v1009
      %v1028 = vmul.f32 %v959, %v1009
      %v1029 = vmul.f32 %v960, %v1009
      %v1030 = vmul.f32 %v961, %v1009
      %v1031 = vmul.f32 %v962, %v1009
      %v1032 = vmul.f32 %v963, %v1009
      %v1033 = vmul.f32 %v964, %v1009
      %v1034 = vmul.f32 %v965, %v1009
      %v1035 = vmul.f32 %v966, %v1009
      %v1036 = vmul.f32 %v967, %v1009
      %v1037 = vmul.f32 %v968, %v1009
      %v1038 = vmul.f32 %v969, %v1009
      %v1039 = vmul.f32 %v970, %v1009
      %v1040 = vmul.f32 %v971, %v1009
      %v1041 = vmul.f32 %v972, %v1009
      %v1042 = vmul.f32 %v973, %v1009
      %v1043 = vmul.f32 %v974, %v1009
      %v1044 = vmul.f32 %v975, %v1009
      %v1045 = vmul.f32 %v976, %v1009
      %v1046 = vmul.f32 %v977, %v1009
      %v1047 = vmul.f32 %v978, %v1009
      %v1048 = vmul.f32 %v979, %v1009
      %v1049 = vmul.f32 %v980, %v1009
      %v1050 = vmul.f32 %v981, %v1009
      %v1051 = vmul.f32 %v982, %v1009
      %v1052 = vmul.f32 %v983, %v1009
      %v1053 = vmul.f32 %v984, %v1009
      %v1054 = vmul.f32 %v985, %v1009
      %v1055 = vmul.f32 %v986, %v1009
      %v1056 = vmul.f32 %v987, %v1009
      %v1057 = vmul.f32 %v988, %v1009
      %v1058 = vmul.f32 %v989, %v1009
      %v1059 = vmul.f32 %v990, %v1009
      %v1060 = vmul.f32 %v991, %v1009
      %v1061 = vmul.f32 %v992, %v1009
      %v1062 = vmul.f32 %v993, %v1009
      %v1063 = vmul.f32 %v994, %v1009
      %v1064 = vmul.f32 %v995, %v1009
      %v1065 = vmul.f32 %v996, %v1009
      %v1066 = vmul.f32 %v997, %v1009
      %v1067 = vmul.f32 %v998, %v1009
      %v1068 = vmul.f32 %v999, %v1009
      %v1069 = vmul.f32 %v1000, %v1009
      %v1070 = vmul.f32 %v1001, %v1009
      %v1071 = vmul.f32 %v1002, %v1009
      %v1072 = vmul.f32 %v1003, %v1009
      %v1073 = vmul.f32 %v1004, %v1009
      %v1074 = vld [vmem:[#allocation8 + $0x1] sm:$0x1]
      %v1075 = vlaneseq
      %v1076 = vshrl.u32 %v1075, 7
      %v1077 = vsub.s32 0, %v1076
      %v1078 = vrot.slane %v1074, %v1077
      %v1079 = vadd.f32 %v1010, %v1078
      %v1080 = vadd.f32 %v1011, %v1078
      %v1081 = vadd.f32 %v1012, %v1078
      %v1082 = vadd.f32 %v1013, %v1078
      %v1083 = vadd.f32 %v1014, %v1078
      %v1084 = vadd.f32 %v1015, %v1078
      %v1085 = vadd.f32 %v1016, %v1078
      %v1086 = vadd.f32 %v1017, %v1078
      %v1087 = vadd.f32 %v1018, %v1078
      %v1088 = vadd.f32 %v1019, %v1078
      %v1089 = vadd.f32 %v1020, %v1078
      %v1090 = vadd.f32 %v1021, %v1078
      %v1091 = vadd.f32 %v1022, %v1078
      %v1092 = vadd.f32 %v1023, %v1078
      %v1093 = vadd.f32 %v1024, %v1078
      %v1094 = vadd.f32 %v1025, %v1078
      %v1095 = vadd.f32 %v1026, %v1078
      %v1096 = vadd.f32 %v1027, %v1078
      %v1097 = vadd.f32 %v1028, %v1078
      %v1098 = vadd.f32 %v1029, %v1078
      %v1099 = vadd.f32 %v1030, %v1078
      %v1100 = vadd.f32 %v1031, %v1078
      %v1101 = vadd.f32 %v1032, %v1078
      %v1102 = vadd.f32 %v1033, %v1078
      %v1103 = vadd.f32 %v1034, %v1078
      %v1104 = vadd.f32 %v1035, %v1078
      %v1105 = vadd.f32 %v1036, %v1078
      %v1106 = vadd.f32 %v1037, %v1078
      %v1107 = vadd.f32 %v1038, %v1078
      %v1108 = vadd.f32 %v1039, %v1078
      %v1109 = vadd.f32 %v1040, %v1078
      %v1110 = vadd.f32 %v1041, %v1078
      %v1111 = vadd.f32 %v1042, %v1078
      %v1112 = vadd.f32 %v1043, %v1078
      %v1113 = vadd.f32 %v1044, %v1078
      %v1114 = vadd.f32 %v1045, %v1078
      %v1115 = vadd.f32 %v1046, %v1078
      %v1116 = vadd.f32 %v1047, %v1078
      %v1117 = vadd.f32 %v1048, %v1078
      %v1118 = vadd.f32 %v1049, %v1078
      %v1119 = vadd.f32 %v1050, %v1078
      %v1120 = vadd.f32 %v1051, %v1078
      %v1121 = vadd.f32 %v1052, %v1078
      %v1122 = vadd.f32 %v1053, %v1078
      %v1123 = vadd.f32 %v1054, %v1078
      %v1124 = vadd.f32 %v1055, %v1078
      %v1125 = vadd.f32 %v1056, %v1078
      %v1126 = vadd.f32 %v1057, %v1078
      %v1127 = vadd.f32 %v1058, %v1078
      %v1128 = vadd.f32 %v1059, %v1078
      %v1129 = vadd.f32 %v1060, %v1078
      %v1130 = vadd.f32 %v1061, %v1078
      %v1131 = vadd.f32 %v1062, %v1078
      %v1132 = vadd.f32 %v1063, %v1078
      %v1133 = vadd.f32 %v1064, %v1078
      %v1134 = vadd.f32 %v1065, %v1078
      %v1135 = vadd.f32 %v1066, %v1078
      %v1136 = vadd.f32 %v1067, %v1078
      %v1137 = vadd.f32 %v1068, %v1078
      %v1138 = vadd.f32 %v1069, %v1078
      %v1139 = vadd.f32 %v1070, %v1078
      %v1140 = vadd.f32 %v1071, %v1078
      %v1141 = vadd.f32 %v1072, %v1078
      %v1142 = vadd.f32 %v1073, %v1078
      %v1143 = vmax.f32 %v1079, 0.0
      %v1144 = vmax.f32 %v1080, 0.0
      %v1145 = vmax.f32 %v1081, 0.0
      %v1146 = vmax.f32 %v1082, 0.0
      %v1147 = vmax.f32 %v1083, 0.0
      %v1148 = vmax.f32 %v1084, 0.0
      %v1149 = vmax.f32 %v1085, 0.0
      %v1150 = vmax.f32 %v1086, 0.0
      %v1151 = vmax.f32 %v1087, 0.0
      %v1152 = vmax.f32 %v1088, 0.0
      %v1153 = vmax.f32 %v1089, 0.0
      %v1154 = vmax.f32 %v1090, 0.0
      %v1155 = vmax.f32 %v1091, 0.0
      %v1156 = vmax.f32 %v1092, 0.0
      %v1157 = vmax.f32 %v1093, 0.0
      %v1158 = vmax.f32 %v1094, 0.0
      %v1159 = vmax.f32 %v1095, 0.0
      %v1160 = vmax.f32 %v1096, 0.0
      %v1161 = vmax.f32 %v1097, 0.0
      %v1162 = vmax.f32 %v1098, 0.0
      %v1163 = vmax.f32 %v1099, 0.0
      %v1164 = vmax.f32 %v1100, 0.0
      %v1165 = vmax.f32 %v1101, 0.0
      %v1166 = vmax.f32 %v1102, 0.0
      %v1167 = vmax.f32 %v1103, 0.0
      %v1168 = vmax.f32 %v1104, 0.0
      %v1169 = vmax.f32 %v1105, 0.0
      %v1170 = vmax.f32 %v1106, 0.0
      %v1171 = vmax.f32 %v1107, 0.0
      %v1172 = vmax.f32 %v1108, 0.0
      %v1173 = vmax.f32 %v1109, 0.0
      %v1174 = vmax.f32 %v1110, 0.0
      %v1175 = vmax.f32 %v1111, 0.0
      %v1176 = vmax.f32 %v1112, 0.0
      %v1177 = vmax.f32 %v1113, 0.0
      %v1178 = vmax.f32 %v1114, 0.0
      %v1179 = vmax.f32 %v1115, 0.0
      %v1180 = vmax.f32 %v1116, 0.0
      %v1181 = vmax.f32 %v1117, 0.0
      %v1182 = vmax.f32 %v1118, 0.0
      %v1183 = vmax.f32 %v1119, 0.0
      %v1184 = vmax.f32 %v1120, 0.0
      %v1185 = vmax.f32 %v1121, 0.0
      %v1186 = vmax.f32 %v1122, 0.0
      %v1187 = vmax.f32 %v1123, 0.0
      %v1188 = vmax.f32 %v1124, 0.0
      %v1189 = vmax.f32 %v1125, 0.0
      %v1190 = vmax.f32 %v1126, 0.0
      %v1191 = vmax.f32 %v1127, 0.0
      %v1192 = vmax.f32 %v1128, 0.0
      %v1193 = vmax.f32 %v1129, 0.0
      %v1194 = vmax.f32 %v1130, 0.0
      %v1195 = vmax.f32 %v1131, 0.0
      %v1196 = vmax.f32 %v1132, 0.0
      %v1197 = vmax.f32 %v1133, 0.0
      %v1198 = vmax.f32 %v1134, 0.0
      %v1199 = vmax.f32 %v1135, 0.0
      %v1200 = vmax.f32 %v1136, 0.0
      %v1201 = vmax.f32 %v1137, 0.0
      %v1202 = vmax.f32 %v1138, 0.0
      %v1203 = vmax.f32 %v1139, 0.0
      %v1204 = vmax.f32 %v1140, 0.0
      %v1205 = vmax.f32 %v1141, 0.0
      %v1206 = vmax.f32 %v1142, 0.0
      %1207 = vst.msk [vmem:[#allocation9] sm:$0xff] %vm873, %v1143
      %1208 = vst.msk [vmem:[#allocation9 + $0x8] sm:$0xff] %vm873, %v1144
      %1209 = vst.msk [vmem:[#allocation9 + $0x10] sm:$0xff] %vm873, %v1145
      %1210 = vst.msk [vmem:[#allocation9 + $0x18] sm:$0xff] %vm873, %v1146
      %1211 = vst.msk [vmem:[#allocation9 + $0x20] sm:$0xff] %vm873, %v1147
      %1212 = vst.msk [vmem:[#allocation9 + $0x28] sm:$0xff] %vm873, %v1148
      %1213 = vst.msk [vmem:[#allocation9 + $0x30] sm:$0xff] %vm873, %v1149
      %1214 = vst.msk [vmem:[#allocation9 + $0x38] sm:$0xff] %vm873, %v1150
      %1215 = vst.msk [vmem:[#allocation9 + $0x40] sm:$0xff] %vm873, %v1151
      %1216 = vst.msk [vmem:[#allocation9 + $0x48] sm:$0xff] %vm873, %v1152
      %1217 = vst.msk [vmem:[#allocation9 + $0x50] sm:$0xff] %vm873, %v1153
      %1218 = vst.msk [vmem:[#allocation9 + $0x58] sm:$0xff] %vm873, %v1154
      %1219 = vst.msk [vmem:[#allocation9 + $0x60] sm:$0xff] %vm873, %v1155
      %1220 = vst.msk [vmem:[#allocation9 + $0x68] sm:$0xff] %vm873, %v1156
      %1221 = vst.msk [vmem:[#allocation9 + $0x70] sm:$0xff] %vm873, %v1157
      %1222 = vst.msk [vmem:[#allocation9 + $0x78] sm:$0xff] %vm873, %v1158
      %1223 = vst.msk [vmem:[#allocation9 + $0x80] sm:$0xff] %vm873, %v1159
      %1224 = vst.msk [vmem:[#allocation9 + $0x88] sm:$0xff] %vm873, %v1160
      %1225 = vst.msk [vmem:[#allocation9 + $0x90] sm:$0xff] %vm873, %v1161
      %1226 = vst.msk [vmem:[#allocation9 + $0x98] sm:$0xff] %vm873, %v1162
      %1227 = vst.msk [vmem:[#allocation9 + $0xa0] sm:$0xff] %vm873, %v1163
      %1228 = vst.msk [vmem:[#allocation9 + $0xa8] sm:$0xff] %vm873, %v1164
      %1229 = vst.msk [vmem:[#allocation9 + $0xb0] sm:$0xff] %vm873, %v1165
      %1230 = vst.msk [vmem:[#allocation9 + $0xb8] sm:$0xff] %vm873, %v1166
      %1231 = vst.msk [vmem:[#allocation9 + $0xc0] sm:$0xff] %vm873, %v1167
      %1232 = vst.msk [vmem:[#allocation9 + $0xc8] sm:$0xff] %vm873, %v1168
      %1233 = vst.msk [vmem:[#allocation9 + $0xd0] sm:$0xff] %vm873, %v1169
      %1234 = vst.msk [vmem:[#allocation9 + $0xd8] sm:$0xff] %vm873, %v1170
      %1235 = vst.msk [vmem:[#allocation9 + $0xe0] sm:$0xff] %vm873, %v1171
      %1236 = vst.msk [vmem:[#allocation9 + $0xe8] sm:$0xff] %vm873, %v1172
      %1237 = vst.msk [vmem:[#allocation9 + $0xf0] sm:$0xff] %vm873, %v1173
      %1238 = vst.msk [vmem:[#allocation9 + $0xf8] sm:$0xff] %vm873, %v1174
      %1239 = vst.msk [vmem:[#allocation9 + $0x100] sm:$0xff] %vm873, %v1175
      %1240 = vst.msk [vmem:[#allocation9 + $0x108] sm:$0xff] %vm873, %v1176
      %1241 = vst.msk [vmem:[#allocation9 + $0x110] sm:$0xff] %vm873, %v1177
      %1242 = vst.msk [vmem:[#allocation9 + $0x118] sm:$0xff] %vm873, %v1178
      %1243 = vst.msk [vmem:[#allocation9 + $0x120] sm:$0xff] %vm873, %v1179
      %1244 = vst.msk [vmem:[#allocation9 + $0x128] sm:$0xff] %vm873, %v1180
      %1245 = vst.msk [vmem:[#allocation9 + $0x130] sm:$0xff] %vm873, %v1181
      %1246 = vst.msk [vmem:[#allocation9 + $0x138] sm:$0xff] %vm873, %v1182
      %1247 = vst.msk [vmem:[#allocation9 + $0x140] sm:$0xff] %vm873, %v1183
      %1248 = vst.msk [vmem:[#allocation9 + $0x148] sm:$0xff] %vm873, %v1184
      %1249 = vst.msk [vmem:[#allocation9 + $0x150] sm:$0xff] %vm873, %v1185
      %1250 = vst.msk [vmem:[#allocation9 + $0x158] sm:$0xff] %vm873, %v1186
      %1251 = vst.msk [vmem:[#allocation9 + $0x160] sm:$0xff] %vm873, %v1187
      %1252 = vst.msk [vmem:[#allocation9 + $0x168] sm:$0xff] %vm873, %v1188
      %1253 = vst.msk [vmem:[#allocation9 + $0x170] sm:$0xff] %vm873, %v1189
      %1254 = vst.msk [vmem:[#allocation9 + $0x178] sm:$0xff] %vm873, %v1190
      %1255 = vst.msk [vmem:[#allocation9 + $0x180] sm:$0xff] %vm873, %v1191
      %1256 = vst.msk [vmem:[#allocation9 + $0x188] sm:$0xff] %vm873, %v1192
      %1257 = vst.msk [vmem:[#allocation9 + $0x190] sm:$0xff] %vm873, %v1193
      %1258 = vst.msk [vmem:[#allocation9 + $0x198] sm:$0xff] %vm873, %v1194
      %1259 = vst.msk [vmem:[#allocation9 + $0x1a0] sm:$0xff] %vm873, %v1195
      %1260 = vst.msk [vmem:[#allocation9 + $0x1a8] sm:$0xff] %vm873, %v1196
      %1261 = vst.msk [vmem:[#allocation9 + $0x1b0] sm:$0xff] %vm873, %v1197
      %1262 = vst.msk [vmem:[#allocation9 + $0x1b8] sm:$0xff] %vm873, %v1198
      %1263 = vst.msk [vmem:[#allocation9 + $0x1c0] sm:$0xff] %vm873, %v1199
      %1264 = vst.msk [vmem:[#allocation9 + $0x1c8] sm:$0xff] %vm873, %v1200
      %1265 = vst.msk [vmem:[#allocation9 + $0x1d0] sm:$0xff] %vm873, %v1201
      %1266 = vst.msk [vmem:[#allocation9 + $0x1d8] sm:$0xff] %vm873, %v1202
      %1267 = vst.msk [vmem:[#allocation9 + $0x1e0] sm:$0xff] %vm873, %v1203
      %1268 = vst.msk [vmem:[#allocation9 + $0x1e8] sm:$0xff] %vm873, %v1204
      %1269 = vst.msk [vmem:[#allocation9 + $0x1f0] sm:$0xff] %vm873, %v1205
      %1270 = vst.msk [vmem:[#allocation9 + $0x1f8] sm:$0xff] %vm873, %v1206
    $region33: #{resnet_forward.14} parent=1 // pred_fallthru
      _
    // Predicated region
    $region34: #{resnet_forward.14} parent=1 // pred_check
      _
    $region35: #{resnet_forward.14} parent=1 // pred_check_branch
      %1272 = sbr.rel (0) target = $region37
    $region36: #{resnet_forward.14} parent=1 // pred_region
      %s1274 = ssub.s32 8192, 8192
      %1275 = vsyncadd [#allocation5], %s1274
      %s1276 = sshll.u32 [#allocation9], 4
      %s1277 = int_to_ptr.vmem [resolvable:$true] %s1276
      %1282 = dma.vmem_to_hbm [thread:$0]  %s1277, 8192, %s3, [#allocation5], 128, 128, 8
    $region37: #{resnet_forward.14} parent=1 // pred_fallthru
      _
    // Predicated region
    $region38: #{resnet_forward.14} parent=1 // pred_check
      _
    $region39: #{resnet_forward.14} parent=1 // pred_check_branch
      %1284 = sbr.rel (0) target = $region41
    $region40: #{resnet_forward.14} parent=1 // pred_region
      %1285 = dma.done [#allocation5], 8192
    $region41: #{resnet_forward.14} parent=1 // pred_fallthru
      _
    %1286 = vsyncpa [#allocation4], 1
    %1287 = vsyncpa [#allocation7], 1
    %1288 = vsyncpa [#allocation5], 1

// kernel: resnet_forward.15
$region0: #{resnet_forward.15}
  #allocation0 [shape = 'u32[]', space=smem, size = 0x4, offset = 0x4, fixed_abs, tag = 'smem constant byte address 0x4 - core index']
  #allocation1 [shape = 'u32[144,128]{1,0:T(1,128)}', space=vmem, size = 0x12000, scoped, tag = 'internal scratch']
  %s0 = inlined_call_operand.vmem [shape: f32[9,128,64], index: 0, kind: input, shape index: {}]
  %s1 = inlined_call_operand.vmem [shape: f32[128,64], index: 1, kind: output, shape index: {}]
  %s2 = sld [smem:[#allocation0]]
  $region14: #{resnet_forward.15} parent=0
    _
  %s4 = ssub.s32 1, %s2
  %s5 = scalar_select 0, %s4, %s2
  // Predicated region
  $region2: #{resnet_forward.15} parent=0 // pred_check
    _
  $region3: #{resnet_forward.15} parent=0 // pred_check_branch
    %7 = sbr.rel (0) target = $region5
  $region4: #{resnet_forward.15} parent=0 // pred_region
    _
  $region5: #{resnet_forward.15} parent=0 // pred_fallthru
    _
  %v8 = vld [vmem:[%s0] sm:$0xff]
  %v9 = vld [vmem:[%s0 + $0x8] sm:$0xff]
  %v10 = vld [vmem:[%s0 + $0x10] sm:$0xff]
  %v11 = vld [vmem:[%s0 + $0x18] sm:$0xff]
  %v12 = vld [vmem:[%s0 + $0x20] sm:$0xff]
  %v13 = vld [vmem:[%s0 + $0x28] sm:$0xff]
  %v14 = vld [vmem:[%s0 + $0x30] sm:$0xff]
  %v15 = vld [vmem:[%s0 + $0x38] sm:$0xff]
  %v16 = vld [vmem:[%s0 + $0x40] sm:$0xff]
  %v17 = vld [vmem:[%s0 + $0x48] sm:$0xff]
  %v18 = vld [vmem:[%s0 + $0x50] sm:$0xff]
  %v19 = vld [vmem:[%s0 + $0x58] sm:$0xff]
  %v20 = vld [vmem:[%s0 + $0x60] sm:$0xff]
  %v21 = vld [vmem:[%s0 + $0x68] sm:$0xff]
  %v22 = vld [vmem:[%s0 + $0x70] sm:$0xff]
  %v23 = vld [vmem:[%s0 + $0x78] sm:$0xff]
  %v24 = vld [vmem:[%s0 + $0x80] sm:$0xff]
  %v25 = vld [vmem:[%s0 + $0x88] sm:$0xff]
  %v26 = vld [vmem:[%s0 + $0x90] sm:$0xff]
  %v27 = vld [vmem:[%s0 + $0x98] sm:$0xff]
  %v28 = vld [vmem:[%s0 + $0xa0] sm:$0xff]
  %v29 = vld [vmem:[%s0 + $0xa8] sm:$0xff]
  %v30 = vld [vmem:[%s0 + $0xb0] sm:$0xff]
  %v31 = vld [vmem:[%s0 + $0xb8] sm:$0xff]
  %v32 = vld [vmem:[%s0 + $0xc0] sm:$0xff]
  %v33 = vld [vmem:[%s0 + $0xc8] sm:$0xff]
  %v34 = vld [vmem:[%s0 + $0xd0] sm:$0xff]
  %v35 = vld [vmem:[%s0 + $0xd8] sm:$0xff]
  %v36 = vld [vmem:[%s0 + $0xe0] sm:$0xff]
  %v37 = vld [vmem:[%s0 + $0xe8] sm:$0xff]
  %v38 = vld [vmem:[%s0 + $0xf0] sm:$0xff]
  %v39 = vld [vmem:[%s0 + $0xf8] sm:$0xff]
  %v40 = vld [vmem:[%s0 + $0x100] sm:$0xff]
  %v41 = vld [vmem:[%s0 + $0x108] sm:$0xff]
  %v42 = vld [vmem:[%s0 + $0x110] sm:$0xff]
  %v43 = vld [vmem:[%s0 + $0x118] sm:$0xff]
  %v44 = vld [vmem:[%s0 + $0x120] sm:$0xff]
  %v45 = vld [vmem:[%s0 + $0x128] sm:$0xff]
  %v46 = vld [vmem:[%s0 + $0x130] sm:$0xff]
  %v47 = vld [vmem:[%s0 + $0x138] sm:$0xff]
  %v48 = vld [vmem:[%s0 + $0x140] sm:$0xff]
  %v49 = vld [vmem:[%s0 + $0x148] sm:$0xff]
  %v50 = vld [vmem:[%s0 + $0x150] sm:$0xff]
  %v51 = vld [vmem:[%s0 + $0x158] sm:$0xff]
  %v52 = vld [vmem:[%s0 + $0x160] sm:$0xff]
  %v53 = vld [vmem:[%s0 + $0x168] sm:$0xff]
  %v54 = vld [vmem:[%s0 + $0x170] sm:$0xff]
  %v55 = vld [vmem:[%s0 + $0x178] sm:$0xff]
  %v56 = vld [vmem:[%s0 + $0x180] sm:$0xff]
  %v57 = vld [vmem:[%s0 + $0x188] sm:$0xff]
  %v58 = vld [vmem:[%s0 + $0x190] sm:$0xff]
  %v59 = vld [vmem:[%s0 + $0x198] sm:$0xff]
  %v60 = vld [vmem:[%s0 + $0x1a0] sm:$0xff]
  %v61 = vld [vmem:[%s0 + $0x1a8] sm:$0xff]
  %v62 = vld [vmem:[%s0 + $0x1b0] sm:$0xff]
  %v63 = vld [vmem:[%s0 + $0x1b8] sm:$0xff]
  %v64 = vld [vmem:[%s0 + $0x1c0] sm:$0xff]
  %v65 = vld [vmem:[%s0 + $0x1c8] sm:$0xff]
  %v66 = vld [vmem:[%s0 + $0x1d0] sm:$0xff]
  %v67 = vld [vmem:[%s0 + $0x1d8] sm:$0xff]
  %v68 = vld [vmem:[%s0 + $0x1e0] sm:$0xff]
  %v69 = vld [vmem:[%s0 + $0x1e8] sm:$0xff]
  %v70 = vld [vmem:[%s0 + $0x1f0] sm:$0xff]
  %v71 = vld [vmem:[%s0 + $0x1f8] sm:$0xff]
  %v72 = vld [vmem:[%s0 + $0x200] sm:$0xff]
  %v73 = vld [vmem:[%s0 + $0x208] sm:$0xff]
  %v74 = vld [vmem:[%s0 + $0x210] sm:$0xff]
  %v75 = vld [vmem:[%s0 + $0x218] sm:$0xff]
  %v76 = vld [vmem:[%s0 + $0x220] sm:$0xff]
  %v77 = vld [vmem:[%s0 + $0x228] sm:$0xff]
  %v78 = vld [vmem:[%s0 + $0x230] sm:$0xff]
  %v79 = vld [vmem:[%s0 + $0x238] sm:$0xff]
  %v80 = vld [vmem:[%s0 + $0x240] sm:$0xff]
  %v81 = vld [vmem:[%s0 + $0x248] sm:$0xff]
  %v82 = vld [vmem:[%s0 + $0x250] sm:$0xff]
  %v83 = vld [vmem:[%s0 + $0x258] sm:$0xff]
  %v84 = vld [vmem:[%s0 + $0x260] sm:$0xff]
  %v85 = vld [vmem:[%s0 + $0x268] sm:$0xff]
  %v86 = vld [vmem:[%s0 + $0x270] sm:$0xff]
  %v87 = vld [vmem:[%s0 + $0x278] sm:$0xff]
  %v88 = vld [vmem:[%s0 + $0x280] sm:$0xff]
  %v89 = vld [vmem:[%s0 + $0x288] sm:$0xff]
  %v90 = vld [vmem:[%s0 + $0x290] sm:$0xff]
  %v91 = vld [vmem:[%s0 + $0x298] sm:$0xff]
  %v92 = vld [vmem:[%s0 + $0x2a0] sm:$0xff]
  %v93 = vld [vmem:[%s0 + $0x2a8] sm:$0xff]
  %v94 = vld [vmem:[%s0 + $0x2b0] sm:$0xff]
  %v95 = vld [vmem:[%s0 + $0x2b8] sm:$0xff]
  %v96 = vld [vmem:[%s0 + $0x2c0] sm:$0xff]
  %v97 = vld [vmem:[%s0 + $0x2c8] sm:$0xff]
  %v98 = vld [vmem:[%s0 + $0x2d0] sm:$0xff]
  %v99 = vld [vmem:[%s0 + $0x2d8] sm:$0xff]
  %v100 = vld [vmem:[%s0 + $0x2e0] sm:$0xff]
  %v101 = vld [vmem:[%s0 + $0x2e8] sm:$0xff]
  %v102 = vld [vmem:[%s0 + $0x2f0] sm:$0xff]
  %v103 = vld [vmem:[%s0 + $0x2f8] sm:$0xff]
  %v104 = vld [vmem:[%s0 + $0x300] sm:$0xff]
  %v105 = vld [vmem:[%s0 + $0x308] sm:$0xff]
  %v106 = vld [vmem:[%s0 + $0x310] sm:$0xff]
  %v107 = vld [vmem:[%s0 + $0x318] sm:$0xff]
  %v108 = vld [vmem:[%s0 + $0x320] sm:$0xff]
  %v109 = vld [vmem:[%s0 + $0x328] sm:$0xff]
  %v110 = vld [vmem:[%s0 + $0x330] sm:$0xff]
  %v111 = vld [vmem:[%s0 + $0x338] sm:$0xff]
  %v112 = vld [vmem:[%s0 + $0x340] sm:$0xff]
  %v113 = vld [vmem:[%s0 + $0x348] sm:$0xff]
  %v114 = vld [vmem:[%s0 + $0x350] sm:$0xff]
  %v115 = vld [vmem:[%s0 + $0x358] sm:$0xff]
  %v116 = vld [vmem:[%s0 + $0x360] sm:$0xff]
  %v117 = vld [vmem:[%s0 + $0x368] sm:$0xff]
  %v118 = vld [vmem:[%s0 + $0x370] sm:$0xff]
  %v119 = vld [vmem:[%s0 + $0x378] sm:$0xff]
  %v120 = vld [vmem:[%s0 + $0x380] sm:$0xff]
  %v121 = vld [vmem:[%s0 + $0x388] sm:$0xff]
  %v122 = vld [vmem:[%s0 + $0x390] sm:$0xff]
  %v123 = vld [vmem:[%s0 + $0x398] sm:$0xff]
  %v124 = vld [vmem:[%s0 + $0x3a0] sm:$0xff]
  %v125 = vld [vmem:[%s0 + $0x3a8] sm:$0xff]
  %v126 = vld [vmem:[%s0 + $0x3b0] sm:$0xff]
  %v127 = vld [vmem:[%s0 + $0x3b8] sm:$0xff]
  %v128 = vld [vmem:[%s0 + $0x3c0] sm:$0xff]
  %v129 = vld [vmem:[%s0 + $0x3c8] sm:$0xff]
  %v130 = vld [vmem:[%s0 + $0x3d0] sm:$0xff]
  %v131 = vld [vmem:[%s0 + $0x3d8] sm:$0xff]
  %v132 = vld [vmem:[%s0 + $0x3e0] sm:$0xff]
  %v133 = vld [vmem:[%s0 + $0x3e8] sm:$0xff]
  %v134 = vld [vmem:[%s0 + $0x3f0] sm:$0xff]
  %v135 = vld [vmem:[%s0 + $0x3f8] sm:$0xff]
  %v136 = vld [vmem:[%s0 + $0x400] sm:$0xff]
  %v137 = vld [vmem:[%s0 + $0x408] sm:$0xff]
  %v138 = vld [vmem:[%s0 + $0x410] sm:$0xff]
  %v139 = vld [vmem:[%s0 + $0x418] sm:$0xff]
  %v140 = vld [vmem:[%s0 + $0x420] sm:$0xff]
  %v141 = vld [vmem:[%s0 + $0x428] sm:$0xff]
  %v142 = vld [vmem:[%s0 + $0x430] sm:$0xff]
  %v143 = vld [vmem:[%s0 + $0x438] sm:$0xff]
  %v144 = vld [vmem:[%s0 + $0x440] sm:$0xff]
  %v145 = vld [vmem:[%s0 + $0x448] sm:$0xff]
  %v146 = vld [vmem:[%s0 + $0x450] sm:$0xff]
  %v147 = vld [vmem:[%s0 + $0x458] sm:$0xff]
  %v148 = vld [vmem:[%s0 + $0x460] sm:$0xff]
  %v149 = vld [vmem:[%s0 + $0x468] sm:$0xff]
  %v150 = vld [vmem:[%s0 + $0x470] sm:$0xff]
  %v151 = vld [vmem:[%s0 + $0x478] sm:$0xff]
  %vm152 = vcmask 523264
  %v153 = vsel %vm152, %v8, -inf
  %v154 = vsel %vm152, %v24, -inf
  %v155 = vmax.f32 %v153, %v154
  %v156 = vsel %vm152, %v40, -inf
  %v157 = vmax.f32 %v155, %v156
  %v158 = vsel %vm152, %v56, -inf
  %v159 = vmax.f32 %v157, %v158
  %v160 = vsel %vm152, %v72, -inf
  %v161 = vmax.f32 %v159, %v160
  %v162 = vsel %vm152, %v88, -inf
  %v163 = vmax.f32 %v161, %v162
  %v164 = vsel %vm152, %v104, -inf
  %v165 = vmax.f32 %v163, %v164
  %v166 = vsel %vm152, %v120, -inf
  %v167 = vmax.f32 %v165, %v166
  %v168 = vsel %vm152, %v136, -inf
  %v169 = vmax.f32 %v167, %v168
  %v170 = vsel %vm152, %v9, -inf
  %v171 = vsel %vm152, %v25, -inf
  %v172 = vmax.f32 %v170, %v171
  %v173 = vsel %vm152, %v41, -inf
  %v174 = vmax.f32 %v172, %v173
  %v175 = vsel %vm152, %v57, -inf
  %v176 = vmax.f32 %v174, %v175
  %v177 = vsel %vm152, %v73, -inf
  %v178 = vmax.f32 %v176, %v177
  %v179 = vsel %vm152, %v89, -inf
  %v180 = vmax.f32 %v178, %v179
  %v181 = vsel %vm152, %v105, -inf
  %v182 = vmax.f32 %v180, %v181
  %v183 = vsel %vm152, %v121, -inf
  %v184 = vmax.f32 %v182, %v183
  %v185 = vsel %vm152, %v137, -inf
  %v186 = vmax.f32 %v184, %v185
  %v187 = vsel %vm152, %v10, -inf
  %v188 = vsel %vm152, %v26, -inf
  %v189 = vmax.f32 %v187, %v188
  %v190 = vsel %vm152, %v42, -inf
  %v191 = vmax.f32 %v189, %v190
  %v192 = vsel %vm152, %v58, -inf
  %v193 = vmax.f32 %v191, %v192
  %v194 = vsel %vm152, %v74, -inf
  %v195 = vmax.f32 %v193, %v194
  %v196 = vsel %vm152, %v90, -inf
  %v197 = vmax.f32 %v195, %v196
  %v198 = vsel %vm152, %v106, -inf
  %v199 = vmax.f32 %v197, %v198
  %v200 = vsel %vm152, %v122, -inf
  %v201 = vmax.f32 %v199, %v200
  %v202 = vsel %vm152, %v138, -inf
  %v203 = vmax.f32 %v201, %v202
  %v204 = vsel %vm152, %v11, -inf
  %v205 = vsel %vm152, %v27, -inf
  %v206 = vmax.f32 %v204, %v205
  %v207 = vsel %vm152, %v43, -inf
  %v208 = vmax.f32 %v206, %v207
  %v209 = vsel %vm152, %v59, -inf
  %v210 = vmax.f32 %v208, %v209
  %v211 = vsel %vm152, %v75, -inf
  %v212 = vmax.f32 %v210, %v211
  %v213 = vsel %vm152, %v91, -inf
  %v214 = vmax.f32 %v212, %v213
  %v215 = vsel %vm152, %v107, -inf
  %v216 = vmax.f32 %v214, %v215
  %v217 = vsel %vm152, %v123, -inf
  %v218 = vmax.f32 %v216, %v217
  %v219 = vsel %vm152, %v139, -inf
  %v220 = vmax.f32 %v218, %v219
  %v221 = vsel %vm152, %v12, -inf
  %v222 = vsel %vm152, %v28, -inf
  %v223 = vmax.f32 %v221, %v222
  %v224 = vsel %vm152, %v44, -inf
  %v225 = vmax.f32 %v223, %v224
  %v226 = vsel %vm152, %v60, -inf
  %v227 = vmax.f32 %v225, %v226
  %v228 = vsel %vm152, %v76, -inf
  %v229 = vmax.f32 %v227, %v228
  %v230 = vsel %vm152, %v92, -inf
  %v231 = vmax.f32 %v229, %v230
  %v232 = vsel %vm152, %v108, -inf
  %v233 = vmax.f32 %v231, %v232
  %v234 = vsel %vm152, %v124, -inf
  %v235 = vmax.f32 %v233, %v234
  %v236 = vsel %vm152, %v140, -inf
  %v237 = vmax.f32 %v235, %v236
  %v238 = vsel %vm152, %v13, -inf
  %v239 = vsel %vm152, %v29, -inf
  %v240 = vmax.f32 %v238, %v239
  %v241 = vsel %vm152, %v45, -inf
  %v242 = vmax.f32 %v240, %v241
  %v243 = vsel %vm152, %v61, -inf
  %v244 = vmax.f32 %v242, %v243
  %v245 = vsel %vm152, %v77, -inf
  %v246 = vmax.f32 %v244, %v245
  %v247 = vsel %vm152, %v93, -inf
  %v248 = vmax.f32 %v246, %v247
  %v249 = vsel %vm152, %v109, -inf
  %v250 = vmax.f32 %v248, %v249
  %v251 = vsel %vm152, %v125, -inf
  %v252 = vmax.f32 %v250, %v251
  %v253 = vsel %vm152, %v141, -inf
  %v254 = vmax.f32 %v252, %v253
  %v255 = vsel %vm152, %v14, -inf
  %v256 = vsel %vm152, %v30, -inf
  %v257 = vmax.f32 %v255, %v256
  %v258 = vsel %vm152, %v46, -inf
  %v259 = vmax.f32 %v257, %v258
  %v260 = vsel %vm152, %v62, -inf
  %v261 = vmax.f32 %v259, %v260
  %v262 = vsel %vm152, %v78, -inf
  %v263 = vmax.f32 %v261, %v262
  %v264 = vsel %vm152, %v94, -inf
  %v265 = vmax.f32 %v263, %v264
  %v266 = vsel %vm152, %v110, -inf
  %v267 = vmax.f32 %v265, %v266
  %v268 = vsel %vm152, %v126, -inf
  %v269 = vmax.f32 %v267, %v268
  %v270 = vsel %vm152, %v142, -inf
  %v271 = vmax.f32 %v269, %v270
  %v272 = vsel %vm152, %v15, -inf
  %v273 = vsel %vm152, %v31, -inf
  %v274 = vmax.f32 %v272, %v273
  %v275 = vsel %vm152, %v47, -inf
  %v276 = vmax.f32 %v274, %v275
  %v277 = vsel %vm152, %v63, -inf
  %v278 = vmax.f32 %v276, %v277
  %v279 = vsel %vm152, %v79, -inf
  %v280 = vmax.f32 %v278, %v279
  %v281 = vsel %vm152, %v95, -inf
  %v282 = vmax.f32 %v280, %v281
  %v283 = vsel %vm152, %v111, -inf
  %v284 = vmax.f32 %v282, %v283
  %v285 = vsel %vm152, %v127, -inf
  %v286 = vmax.f32 %v284, %v285
  %v287 = vsel %vm152, %v143, -inf
  %v288 = vmax.f32 %v286, %v287
  %v289 = vsel %vm152, %v16, -inf
  %v290 = vsel %vm152, %v32, -inf
  %v291 = vmax.f32 %v289, %v290
  %v292 = vsel %vm152, %v48, -inf
  %v293 = vmax.f32 %v291, %v292
  %v294 = vsel %vm152, %v64, -inf
  %v295 = vmax.f32 %v293, %v294
  %v296 = vsel %vm152, %v80, -inf
  %v297 = vmax.f32 %v295, %v296
  %v298 = vsel %vm152, %v96, -inf
  %v299 = vmax.f32 %v297, %v298
  %v300 = vsel %vm152, %v112, -inf
  %v301 = vmax.f32 %v299, %v300
  %v302 = vsel %vm152, %v128, -inf
  %v303 = vmax.f32 %v301, %v302
  %v304 = vsel %vm152, %v144, -inf
  %v305 = vmax.f32 %v303, %v304
  %v306 = vsel %vm152, %v17, -inf
  %v307 = vsel %vm152, %v33, -inf
  %v308 = vmax.f32 %v306, %v307
  %v309 = vsel %vm152, %v49, -inf
  %v310 = vmax.f32 %v308, %v309
  %v311 = vsel %vm152, %v65, -inf
  %v312 = vmax.f32 %v310, %v311
  %v313 = vsel %vm152, %v81, -inf
  %v314 = vmax.f32 %v312, %v313
  %v315 = vsel %vm152, %v97, -inf
  %v316 = vmax.f32 %v314, %v315
  %v317 = vsel %vm152, %v113, -inf
  %v318 = vmax.f32 %v316, %v317
  %v319 = vsel %vm152, %v129, -inf
  %v320 = vmax.f32 %v318, %v319
  %v321 = vsel %vm152, %v145, -inf
  %v322 = vmax.f32 %v320, %v321
  %v323 = vsel %vm152, %v18, -inf
  %v324 = vsel %vm152, %v34, -inf
  %v325 = vmax.f32 %v323, %v324
  %v326 = vsel %vm152, %v50, -inf
  %v327 = vmax.f32 %v325, %v326
  %v328 = vsel %vm152, %v66, -inf
  %v329 = vmax.f32 %v327, %v328
  %v330 = vsel %vm152, %v82, -inf
  %v331 = vmax.f32 %v329, %v330
  %v332 = vsel %vm152, %v98, -inf
  %v333 = vmax.f32 %v331, %v332
  %v334 = vsel %vm152, %v114, -inf
  %v335 = vmax.f32 %v333, %v334
  %v336 = vsel %vm152, %v130, -inf
  %v337 = vmax.f32 %v335, %v336
  %v338 = vsel %vm152, %v146, -inf
  %v339 = vmax.f32 %v337, %v338
  %v340 = vsel %vm152, %v19, -inf
  %v341 = vsel %vm152, %v35, -inf
  %v342 = vmax.f32 %v340, %v341
  %v343 = vsel %vm152, %v51, -inf
  %v344 = vmax.f32 %v342, %v343
  %v345 = vsel %vm152, %v67, -inf
  %v346 = vmax.f32 %v344, %v345
  %v347 = vsel %vm152, %v83, -inf
  %v348 = vmax.f32 %v346, %v347
  %v349 = vsel %vm152, %v99, -inf
  %v350 = vmax.f32 %v348, %v349
  %v351 = vsel %vm152, %v115, -inf
  %v352 = vmax.f32 %v350, %v351
  %v353 = vsel %vm152, %v131, -inf
  %v354 = vmax.f32 %v352, %v353
  %v355 = vsel %vm152, %v147, -inf
  %v356 = vmax.f32 %v354, %v355
  %v357 = vsel %vm152, %v20, -inf
  %v358 = vsel %vm152, %v36, -inf
  %v359 = vmax.f32 %v357, %v358
  %v360 = vsel %vm152, %v52, -inf
  %v361 = vmax.f32 %v359, %v360
  %v362 = vsel %vm152, %v68, -inf
  %v363 = vmax.f32 %v361, %v362
  %v364 = vsel %vm152, %v84, -inf
  %v365 = vmax.f32 %v363, %v364
  %v366 = vsel %vm152, %v100, -inf
  %v367 = vmax.f32 %v365, %v366
  %v368 = vsel %vm152, %v116, -inf
  %v369 = vmax.f32 %v367, %v368
  %v370 = vsel %vm152, %v132, -inf
  %v371 = vmax.f32 %v369, %v370
  %v372 = vsel %vm152, %v148, -inf
  %v373 = vmax.f32 %v371, %v372
  %v374 = vsel %vm152, %v21, -inf
  %v375 = vsel %vm152, %v37, -inf
  %v376 = vmax.f32 %v374, %v375
  %v377 = vsel %vm152, %v53, -inf
  %v378 = vmax.f32 %v376, %v377
  %v379 = vsel %vm152, %v69, -inf
  %v380 = vmax.f32 %v378, %v379
  %v381 = vsel %vm152, %v85, -inf
  %v382 = vmax.f32 %v380, %v381
  %v383 = vsel %vm152, %v101, -inf
  %v384 = vmax.f32 %v382, %v383
  %v385 = vsel %vm152, %v117, -inf
  %v386 = vmax.f32 %v384, %v385
  %v387 = vsel %vm152, %v133, -inf
  %v388 = vmax.f32 %v386, %v387
  %v389 = vsel %vm152, %v149, -inf
  %v390 = vmax.f32 %v388, %v389
  %v391 = vsel %vm152, %v22, -inf
  %v392 = vsel %vm152, %v38, -inf
  %v393 = vmax.f32 %v391, %v392
  %v394 = vsel %vm152, %v54, -inf
  %v395 = vmax.f32 %v393, %v394
  %v396 = vsel %vm152, %v70, -inf
  %v397 = vmax.f32 %v395, %v396
  %v398 = vsel %vm152, %v86, -inf
  %v399 = vmax.f32 %v397, %v398
  %v400 = vsel %vm152, %v102, -inf
  %v401 = vmax.f32 %v399, %v400
  %v402 = vsel %vm152, %v118, -inf
  %v403 = vmax.f32 %v401, %v402
  %v404 = vsel %vm152, %v134, -inf
  %v405 = vmax.f32 %v403, %v404
  %v406 = vsel %vm152, %v150, -inf
  %v407 = vmax.f32 %v405, %v406
  %v408 = vsel %vm152, %v23, -inf
  %v409 = vsel %vm152, %v39, -inf
  %v410 = vmax.f32 %v408, %v409
  %v411 = vsel %vm152, %v55, -inf
  %v412 = vmax.f32 %v410, %v411
  %v413 = vsel %vm152, %v71, -inf
  %v414 = vmax.f32 %v412, %v413
  %v415 = vsel %vm152, %v87, -inf
  %v416 = vmax.f32 %v414, %v415
  %v417 = vsel %vm152, %v103, -inf
  %v418 = vmax.f32 %v416, %v417
  %v419 = vsel %vm152, %v119, -inf
  %v420 = vmax.f32 %v418, %v419
  %v421 = vsel %vm152, %v135, -inf
  %v422 = vmax.f32 %v420, %v421
  %v423 = vsel %vm152, %v151, -inf
  %v424 = vmax.f32 %v422, %v423
  %425 = vst.msk [vmem:[%s1] sm:$0xff] %vm152, %v169
  %426 = vst.msk [vmem:[%s1 + $0x8] sm:$0xff] %vm152, %v186
  %427 = vst.msk [vmem:[%s1 + $0x10] sm:$0xff] %vm152, %v203
  %428 = vst.msk [vmem:[%s1 + $0x18] sm:$0xff] %vm152, %v220
  %429 = vst.msk [vmem:[%s1 + $0x20] sm:$0xff] %vm152, %v237
  %430 = vst.msk [vmem:[%s1 + $0x28] sm:$0xff] %vm152, %v254
  %431 = vst.msk [vmem:[%s1 + $0x30] sm:$0xff] %vm152, %v271
  %432 = vst.msk [vmem:[%s1 + $0x38] sm:$0xff] %vm152, %v288
  %433 = vst.msk [vmem:[%s1 + $0x40] sm:$0xff] %vm152, %v305
  %434 = vst.msk [vmem:[%s1 + $0x48] sm:$0xff] %vm152, %v322
  %435 = vst.msk [vmem:[%s1 + $0x50] sm:$0xff] %vm152, %v339
  %436 = vst.msk [vmem:[%s1 + $0x58] sm:$0xff] %vm152, %v356
  %437 = vst.msk [vmem:[%s1 + $0x60] sm:$0xff] %vm152, %v373
  %438 = vst.msk [vmem:[%s1 + $0x68] sm:$0xff] %vm152, %v390
  %439 = vst.msk [vmem:[%s1 + $0x70] sm:$0xff] %vm152, %v407
  %440 = vst.msk [vmem:[%s1 + $0x78] sm:$0xff] %vm152, %v424
  // Predicated region
  $region6: #{resnet_forward.15} parent=0 // pred_check
    _
  $region7: #{resnet_forward.15} parent=0 // pred_check_branch
    %442 = sbr.rel (0) target = $region9
  $region8: #{resnet_forward.15} parent=0 // pred_region
    _
  $region9: #{resnet_forward.15} parent=0 // pred_fallthru
    _
  // Predicated region
  $region10: #{resnet_forward.15} parent=0 // pred_check
    _
  $region11: #{resnet_forward.15} parent=0 // pred_check_branch
    %444 = sbr.rel (0) target = $region13
  $region12: #{resnet_forward.15} parent=0 // pred_region
    _
  $region13: #{resnet_forward.15} parent=0 // pred_fallthru
    _

// kernel: resnet_forward.16
$region0: #{resnet_forward.16}
  #allocation0 [shape = 'u32[]', space=smem, size = 0x4, offset = 0x4, fixed_abs, tag = 'smem constant byte address 0x4 - core index']
  #allocation1 [shape = 'u32[144,128]{1,0:T(1,128)}', space=vmem, size = 0x12000, scoped, tag = 'internal scratch']
  #allocation2 [shape = 'f32[128,64]{1,0:T(8,128)}', space=vmem, size = 0x10000, scoped, tag = 'scratch operand']
  %s0 = inlined_call_operand.hbm [shape: bf16[128,576], index: 0, kind: input, shape index: {}]
  %s1 = inlined_call_operand.hbm [shape: bf16[576,64], index: 1, kind: input, shape index: {}]
  %s2 = inlined_call_operand.hbm [shape: f32[2,64], index: 2, kind: input, shape index: {}]
  %s3 = inlined_call_operand.hbm [shape: f32[128,64], index: 3, kind: output, shape index: {}]
  %s4 = sld [smem:[#allocation0]]
  $region42: #{resnet_forward.16} parent=0
    _
  %s6 = ssub.s32 1, %s4
  %s7 = scalar_select 0, %s6, %s4
  $region1: #{resnet_forward.16} parent=0
    #allocation3 [shape = 'u8[163840]{0}', space=vmem, size = 0x28000, scoped, tag = 'input window, operand 0, single buffered']
    #allocation4 [shape = 's32[1]{0}', space=sflag, size = 0x4, scoped, tag = 'scoped memory for resnet_forward.16']
    #allocation5 [shape = 's32[1]{0}', space=sflag, size = 0x4, scoped, tag = 'scoped memory for resnet_forward.16']
    #allocation6 [shape = 'u8[147456]{0}', space=vmem, size = 0x24000, scoped, tag = 'input window, operand 1, single buffered']
    #allocation7 [shape = 's32[1]{0}', space=sflag, size = 0x4, scoped, tag = 'scoped memory for resnet_forward.16']
    #allocation8 [shape = 'u8[1024]{0}', space=vmem, size = 0x400, scoped, tag = 'input window, operand 2, single buffered']
    #allocation9 [shape = 'u8[65536]{0}', space=vmem, size = 0x10000, scoped, tag = 'output window, operand 0, single buffered']
    %8 = vsyncpa [#allocation4], 0
    %9 = vsyncpa [#allocation7], 0
    %10 = vsyncpa [#allocation5], 0
    // Predicated region
    $region2: #{resnet_forward.16} parent=1 // pred_check
      _
    $region3: #{resnet_forward.16} parent=1 // pred_check_branch
      %12 = sbr.rel (0) target = $region5
    $region4: #{resnet_forward.16} parent=1 // pred_region
      %s14 = ssub.s32 5120, 5120
      %15 = vsyncadd [#allocation4], %s14
      %s16 = sshll.u32 [#allocation3], 4
      %s17 = int_to_ptr.vmem [resolvable:$true] %s16
      %22 = dma.hbm_to_vmem [thread:$0]  %s0, 5120, %s17, [#allocation4], 320, 320, 20
    $region5: #{resnet_forward.16} parent=1 // pred_fallthru
      _
    // Predicated region
    $region6: #{resnet_forward.16} parent=1 // pred_check
      _
    $region7: #{resnet_forward.16} parent=1 // pred_check_branch
      %24 = sbr.rel (0) target = $region9
    $region8: #{resnet_forward.16} parent=1 // pred_region
      %s26 = ssub.s32 4608, 4608
      %27 = vsyncadd [#allocation7], %s26
      %s28 = sshll.u32 [#allocation6], 4
      %s29 = int_to_ptr.vmem [resolvable:$true] %s28
      %34 = dma.hbm_to_vmem [thread:$0]  %s1, 4608, %s29, [#allocation7], 64, 64, 4
    $region9: #{resnet_forward.16} parent=1 // pred_fallthru
      _
    // Predicated region
    $region10: #{resnet_forward.16} parent=1 // pred_check
      _
    $region11: #{resnet_forward.16} parent=1 // pred_check_branch
      %36 = sbr.rel (0) target = $region13
    $region12: #{resnet_forward.16} parent=1 // pred_region
      %s38 = ssub.s32 32, 32
      %39 = vsyncadd [#allocation7], %s38
      %s41 = sshll.u32 [#allocation8], 4
      %s42 = int_to_ptr.vmem [resolvable:$true] %s41
      %44 = dma.hbm_to_vmem [thread:$0]  %s2, 32, %s42, [#allocation7]
    $region13: #{resnet_forward.16} parent=1 // pred_fallthru
      _
    // Predicated region
    $region14: #{resnet_forward.16} parent=1 // pred_check
      _
    $region15: #{resnet_forward.16} parent=1 // pred_check_branch
      %46 = sbr.rel (0) target = $region17
    $region16: #{resnet_forward.16} parent=1 // pred_region
      %47 = dma.done [#allocation4], 5120
    $region17: #{resnet_forward.16} parent=1 // pred_fallthru
      _
    // Predicated region
    $region18: #{resnet_forward.16} parent=1 // pred_check
      _
    $region19: #{resnet_forward.16} parent=1 // pred_check_branch
      %49 = sbr.rel (0) target = $region21
    $region20: #{resnet_forward.16} parent=1 // pred_region
      %50 = dma.done [#allocation7], 4608
    $region21: #{resnet_forward.16} parent=1 // pred_fallthru
      _
    // Predicated region
    $region22: #{resnet_forward.16} parent=1 // pred_check
      _
    $region23: #{resnet_forward.16} parent=1 // pred_check_branch
      %52 = sbr.rel (0) target = $region25
    $region24: #{resnet_forward.16} parent=1 // pred_region
      %53 = dma.done [#allocation7], 32
    $region25: #{resnet_forward.16} parent=1 // pred_fallthru
      _
    %p55 = scmp.eq.s32.totalorder 0, 0
    // Predicated region
    $region26: #{resnet_forward.16} parent=1 // pred_check
      %p56 = pneg %p55
    $region27: #{resnet_forward.16} parent=1 // pred_check_branch
      %58 = sbr.rel (%p56) target = $region29
    $region28: #{resnet_forward.16} parent=1 // pred_region
      %vm59 = vcmask 523264
      %60 = vst.msk [vmem:[#allocation2] sm:$0xff] %vm59, 0.0
      %61 = vst.msk [vmem:[#allocation2 + $0x8] sm:$0xff] %vm59, 0.0
      %62 = vst.msk [vmem:[#allocation2 + $0x10] sm:$0xff] %vm59, 0.0
      %63 = vst.msk [vmem:[#allocation2 + $0x18] sm:$0xff] %vm59, 0.0
      %64 = vst.msk [vmem:[#allocation2 + $0x20] sm:$0xff] %vm59, 0.0
      %65 = vst.msk [vmem:[#allocation2 + $0x28] sm:$0xff] %vm59, 0.0
      %66 = vst.msk [vmem:[#allocation2 + $0x30] sm:$0xff] %vm59, 0.0
      %67 = vst.msk [vmem:[#allocation2 + $0x38] sm:$0xff] %vm59, 0.0
      %68 = vst.msk [vmem:[#allocation2 + $0x40] sm:$0xff] %vm59, 0.0
      %69 = vst.msk [vmem:[#allocation2 + $0x48] sm:$0xff] %vm59, 0.0
      %70 = vst.msk [vmem:[#allocation2 + $0x50] sm:$0xff] %vm59, 0.0
      %71 = vst.msk [vmem:[#allocation2 + $0x58] sm:$0xff] %vm59, 0.0
      %72 = vst.msk [vmem:[#allocation2 + $0x60] sm:$0xff] %vm59, 0.0
      %73 = vst.msk [vmem:[#allocation2 + $0x68] sm:$0xff] %vm59, 0.0
      %74 = vst.msk [vmem:[#allocation2 + $0x70] sm:$0xff] %vm59, 0.0
      %75 = vst.msk [vmem:[#allocation2 + $0x78] sm:$0xff] %vm59, 0.0
    $region29: #{resnet_forward.16} parent=1 // pred_fallthru
      _
    %v76 = vld [vmem:[#allocation2] sm:$0xff]
    %v77 = vld [vmem:[#allocation2 + $0x8] sm:$0xff]
    %v78 = vld [vmem:[#allocation2 + $0x10] sm:$0xff]
    %v79 = vld [vmem:[#allocation2 + $0x18] sm:$0xff]
    %v80 = vld [vmem:[#allocation2 + $0x20] sm:$0xff]
    %v81 = vld [vmem:[#allocation2 + $0x28] sm:$0xff]
    %v82 = vld [vmem:[#allocation2 + $0x30] sm:$0xff]
    %v83 = vld [vmem:[#allocation2 + $0x38] sm:$0xff]
    %v84 = vld [vmem:[#allocation2 + $0x40] sm:$0xff]
    %v85 = vld [vmem:[#allocation2 + $0x48] sm:$0xff]
    %v86 = vld [vmem:[#allocation2 + $0x50] sm:$0xff]
    %v87 = vld [vmem:[#allocation2 + $0x58] sm:$0xff]
    %v88 = vld [vmem:[#allocation2 + $0x60] sm:$0xff]
    %v89 = vld [vmem:[#allocation2 + $0x68] sm:$0xff]
    %v90 = vld [vmem:[#allocation2 + $0x70] sm:$0xff]
    %v91 = vld [vmem:[#allocation2 + $0x78] sm:$0xff]
    %v92 = vld [vmem:[#allocation3] sm:$0xff]
    %v93 = vld [vmem:[#allocation3 + $0x8] sm:$0xff]
    %v94 = vld [vmem:[#allocation3 + $0x10] sm:$0xf]
    %v95 = vld [vmem:[#allocation3 + $0x14] sm:$0xff]
    %v96 = vld [vmem:[#allocation3 + $0x1c] sm:$0xff]
    %v97 = vld [vmem:[#allocation3 + $0x24] sm:$0xf]
    %v98 = vld [vmem:[#allocation3 + $0x28] sm:$0xff]
    %v99 = vld [vmem:[#allocation3 + $0x30] sm:$0xff]
    %v100 = vld [vmem:[#allocation3 + $0x38] sm:$0xf]
    %v101 = vld [vmem:[#allocation3 + $0x3c] sm:$0xff]
    %v102 = vld [vmem:[#allocation3 + $0x44] sm:$0xff]
    %v103 = vld [vmem:[#allocation3 + $0x4c] sm:$0xf]
    %v104 = vld [vmem:[#allocation3 + $0x50] sm:$0xff]
    %v105 = vld [vmem:[#allocation3 + $0x58] sm:$0xff]
    %v106 = vld [vmem:[#allocation3 + $0x60] sm:$0xf]
    %v107 = vld [vmem:[#allocation3 + $0x64] sm:$0xff]
    %v108 = vld [vmem:[#allocation3 + $0x6c] sm:$0xff]
    %v109 = vld [vmem:[#allocation3 + $0x74] sm:$0xf]
    %v110 = vld [vmem:[#allocation3 + $0x78] sm:$0xff]
    %v111 = vld [vmem:[#allocation3 + $0x80] sm:$0xff]
    %v112 = vld [vmem:[#allocation3 + $0x88] sm:$0xf]
    %v113 = vld [vmem:[#allocation3 + $0x8c] sm:$0xff]
    %v114 = vld [vmem:[#allocation3 + $0x94] sm:$0xff]
    %v115 = vld [vmem:[#allocation3 + $0x9c] sm:$0xf]
    %v116 = vld [vmem:[#allocation3 + $0xa0] sm:$0xff]
    %v117 = vld [vmem:[#allocation3 + $0xa8] sm:$0xff]
    %v118 = vld [vmem:[#allocation3 + $0xb0] sm:$0xf]
    %v119 = vld [vmem:[#allocation3 + $0xb4] sm:$0xff]
    %v120 = vld [vmem:[#allocation3 + $0xbc] sm:$0xff]
    %v121 = vld [vmem:[#allocation3 + $0xc4] sm:$0xf]
    %v122 = vld [vmem:[#allocation3 + $0xc8] sm:$0xff]
    %v123 = vld [vmem:[#allocation3 + $0xd0] sm:$0xff]
    %v124 = vld [vmem:[#allocation3 + $0xd8] sm:$0xf]
    %v125 = vld [vmem:[#allocation3 + $0xdc] sm:$0xff]
    %v126 = vld [vmem:[#allocation3 + $0xe4] sm:$0xff]
    %v127 = vld [vmem:[#allocation3 + $0xec] sm:$0xf]
    %v128 = vld [vmem:[#allocation3 + $0xf0] sm:$0xff]
    %v129 = vld [vmem:[#allocation3 + $0xf8] sm:$0xff]
    %v130 = vld [vmem:[#allocation3 + $0x100] sm:$0xf]
    %v131 = vld [vmem:[#allocation3 + $0x104] sm:$0xff]
    %v132 = vld [vmem:[#allocation3 + $0x10c] sm:$0xff]
    %v133 = vld [vmem:[#allocation3 + $0x114] sm:$0xf]
    %v134 = vld [vmem:[#allocation3 + $0x118] sm:$0xff]
    %v135 = vld [vmem:[#allocation3 + $0x120] sm:$0xff]
    %v136 = vld [vmem:[#allocation3 + $0x128] sm:$0xf]
    %v137 = vld [vmem:[#allocation3 + $0x12c] sm:$0xff]
    %v138 = vld [vmem:[#allocation3 + $0x134] sm:$0xff]
    %v139 = vld [vmem:[#allocation3 + $0x13c] sm:$0xf]
    %v140 = vld [vmem:[#allocation6] sm:$0xf]
    %v141 = vld [vmem:[#allocation6 + $0x4] sm:$0xf]
    %v142 = vld [vmem:[#allocation6 + $0x8] sm:$0xf]
    %v143 = vld [vmem:[#allocation6 + $0xc] sm:$0xf]
    %v144 = vld [vmem:[#allocation6 + $0x10] sm:$0xf]
    %v145 = vld [vmem:[#allocation6 + $0x14] sm:$0xf]
    %v146 = vld [vmem:[#allocation6 + $0x18] sm:$0xf]
    %v147 = vld [vmem:[#allocation6 + $0x1c] sm:$0xf]
    %v148 = vld [vmem:[#allocation6 + $0x20] sm:$0xf]
    %v149 = vld [vmem:[#allocation6 + $0x24] sm:$0xf]
    %v150 = vld [vmem:[#allocation6 + $0x28] sm:$0xf]
    %v151 = vld [vmem:[#allocation6 + $0x2c] sm:$0xf]
    %v152 = vld [vmem:[#allocation6 + $0x30] sm:$0xf]
    %v153 = vld [vmem:[#allocation6 + $0x34] sm:$0xf]
    %v154 = vld [vmem:[#allocation6 + $0x38] sm:$0xf]
    %v155 = vld [vmem:[#allocation6 + $0x3c] sm:$0xf]
    %v156 = vld [vmem:[#allocation6 + $0x40] sm:$0xf]
    %v157 = vld [vmem:[#allocation6 + $0x44] sm:$0xf]
    %v158 = vld [vmem:[#allocation6 + $0x48] sm:$0xf]
    %v159 = vld [vmem:[#allocation6 + $0x4c] sm:$0xf]
    %v160 = vld [vmem:[#allocation6 + $0x50] sm:$0xf]
    %v161 = vld [vmem:[#allocation6 + $0x54] sm:$0xf]
    %v162 = vld [vmem:[#allocation6 + $0x58] sm:$0xf]
    %v163 = vld [vmem:[#allocation6 + $0x5c] sm:$0xf]
    %v164 = vld [vmem:[#allocation6 + $0x60] sm:$0xf]
    %v165 = vld [vmem:[#allocation6 + $0x64] sm:$0xf]
    %v166 = vld [vmem:[#allocation6 + $0x68] sm:$0xf]
    %v167 = vld [vmem:[#allocation6 + $0x6c] sm:$0xf]
    %v168 = vld [vmem:[#allocation6 + $0x70] sm:$0xf]
    %v169 = vld [vmem:[#allocation6 + $0x74] sm:$0xf]
    %v170 = vld [vmem:[#allocation6 + $0x78] sm:$0xf]
    %v171 = vld [vmem:[#allocation6 + $0x7c] sm:$0xf]
    %v172 = vld [vmem:[#allocation6 + $0x80] sm:$0xf]
    %v173 = vld [vmem:[#allocation6 + $0x84] sm:$0xf]
    %v174 = vld [vmem:[#allocation6 + $0x88] sm:$0xf]
    %v175 = vld [vmem:[#allocation6 + $0x8c] sm:$0xf]
    %v176 = vld [vmem:[#allocation6 + $0x90] sm:$0xf]
    %v177 = vld [vmem:[#allocation6 + $0x94] sm:$0xf]
    %v178 = vld [vmem:[#allocation6 + $0x98] sm:$0xf]
    %v179 = vld [vmem:[#allocation6 + $0x9c] sm:$0xf]
    %v180 = vld [vmem:[#allocation6 + $0xa0] sm:$0xf]
    %v181 = vld [vmem:[#allocation6 + $0xa4] sm:$0xf]
    %v182 = vld [vmem:[#allocation6 + $0xa8] sm:$0xf]
    %v183 = vld [vmem:[#allocation6 + $0xac] sm:$0xf]
    %v184 = vld [vmem:[#allocation6 + $0xb0] sm:$0xf]
    %v185 = vld [vmem:[#allocation6 + $0xb4] sm:$0xf]
    %v186 = vld [vmem:[#allocation6 + $0xb8] sm:$0xf]
    %v187 = vld [vmem:[#allocation6 + $0xbc] sm:$0xf]
    %v188 = vld [vmem:[#allocation6 + $0xc0] sm:$0xf]
    %v189 = vld [vmem:[#allocation6 + $0xc4] sm:$0xf]
    %v190 = vld [vmem:[#allocation6 + $0xc8] sm:$0xf]
    %v191 = vld [vmem:[#allocation6 + $0xcc] sm:$0xf]
    %v192 = vld [vmem:[#allocation6 + $0xd0] sm:$0xf]
    %v193 = vld [vmem:[#allocation6 + $0xd4] sm:$0xf]
    %v194 = vld [vmem:[#allocation6 + $0xd8] sm:$0xf]
    %v195 = vld [vmem:[#allocation6 + $0xdc] sm:$0xf]
    %v196 = vld [vmem:[#allocation6 + $0xe0] sm:$0xf]
    %v197 = vld [vmem:[#allocation6 + $0xe4] sm:$0xf]
    %v198 = vld [vmem:[#allocation6 + $0xe8] sm:$0xf]
    %v199 = vld [vmem:[#allocation6 + $0xec] sm:$0xf]
    %v200 = vld [vmem:[#allocation6 + $0xf0] sm:$0xf]
    %v201 = vld [vmem:[#allocation6 + $0xf4] sm:$0xf]
    %v202 = vld [vmem:[#allocation6 + $0xf8] sm:$0xf]
    %v203 = vld [vmem:[#allocation6 + $0xfc] sm:$0xf]
    %v204 = vld [vmem:[#allocation6 + $0x100] sm:$0xf]
    %v205 = vld [vmem:[#allocation6 + $0x104] sm:$0xf]
    %v206 = vld [vmem:[#allocation6 + $0x108] sm:$0xf]
    %v207 = vld [vmem:[#allocation6 + $0x10c] sm:$0xf]
    %v208 = vld [vmem:[#allocation6 + $0x110] sm:$0xf]
    %v209 = vld [vmem:[#allocation6 + $0x114] sm:$0xf]
    %v210 = vld [vmem:[#allocation6 + $0x118] sm:$0xf]
    %v211 = vld [vmem:[#allocation6 + $0x11c] sm:$0xf]
    %v260 = vunpack.c.l.b16 %v92
    %v261 = vunpack.c.h.b16 %v92
    %v262 = vunpack.c.l.b16 %v93
    %v263 = vunpack.c.h.b16 %v93
    %v264 = vunpack.c.l.b16 %v94
    %v265 = vunpack.c.l.b16 %v95
    %v266 = vunpack.c.h.b16 %v95
    %v267 = vunpack.c.l.b16 %v96
    %v268 = vunpack.c.h.b16 %v96
    %v269 = vunpack.c.l.b16 %v97
    %v270 = vunpack.c.l.b16 %v98
    %v271 = vunpack.c.h.b16 %v98
    %v272 = vunpack.c.l.b16 %v99
    %v273 = vunpack.c.h.b16 %v99
    %v274 = vunpack.c.l.b16 %v100
    %v275 = vunpack.c.l.b16 %v101
    %v276 = vunpack.c.h.b16 %v101
    %v277 = vunpack.c.l.b16 %v102
    %v278 = vunpack.c.h.b16 %v102
    %v279 = vunpack.c.l.b16 %v103
    %v280 = vunpack.c.l.b16 %v104
    %v281 = vunpack.c.h.b16 %v104
    %v282 = vunpack.c.l.b16 %v105
    %v283 = vunpack.c.h.b16 %v105
    %v284 = vunpack.c.l.b16 %v106
    %v285 = vunpack.c.l.b16 %v107
    %v286 = vunpack.c.h.b16 %v107
    %v287 = vunpack.c.l.b16 %v108
    %v288 = vunpack.c.h.b16 %v108
    %v289 = vunpack.c.l.b16 %v109
    %v290 = vunpack.c.l.b16 %v110
    %v291 = vunpack.c.h.b16 %v110
    %v292 = vunpack.c.l.b16 %v111
    %v293 = vunpack.c.h.b16 %v111
    %v294 = vunpack.c.l.b16 %v112
    %v295 = vunpack.c.l.b16 %v113
    %v296 = vunpack.c.h.b16 %v113
    %v297 = vunpack.c.l.b16 %v114
    %v298 = vunpack.c.h.b16 %v114
    %v299 = vunpack.c.l.b16 %v115
    %v300 = vunpack.c.l.b16 %v116
    %v301 = vunpack.c.h.b16 %v116
    %v302 = vunpack.c.l.b16 %v117
    %v303 = vunpack.c.h.b16 %v117
    %v304 = vunpack.c.l.b16 %v118
    %v305 = vunpack.c.l.b16 %v119
    %v306 = vunpack.c.h.b16 %v119
    %v307 = vunpack.c.l.b16 %v120
    %v308 = vunpack.c.h.b16 %v120
    %v309 = vunpack.c.l.b16 %v121
    %v310 = vunpack.c.l.b16 %v122
    %v311 = vunpack.c.h.b16 %v122
    %v312 = vunpack.c.l.b16 %v123
    %v313 = vunpack.c.h.b16 %v123
    %v314 = vunpack.c.l.b16 %v124
    %v315 = vunpack.c.l.b16 %v125
    %v316 = vunpack.c.h.b16 %v125
    %v317 = vunpack.c.l.b16 %v126
    %v318 = vunpack.c.h.b16 %v126
    %v319 = vunpack.c.l.b16 %v127
    %v320 = vunpack.c.l.b16 %v128
    %v321 = vunpack.c.h.b16 %v128
    %v322 = vunpack.c.l.b16 %v129
    %v323 = vunpack.c.h.b16 %v129
    %v324 = vunpack.c.l.b16 %v130
    %v325 = vunpack.c.l.b16 %v131
    %v326 = vunpack.c.h.b16 %v131
    %v327 = vunpack.c.l.b16 %v132
    %v328 = vunpack.c.h.b16 %v132
    %v329 = vunpack.c.l.b16 %v133
    %v330 = vunpack.c.l.b16 %v134
    %v331 = vunpack.c.h.b16 %v134
    %v332 = vunpack.c.l.b16 %v135
    %v333 = vunpack.c.h.b16 %v135
    %v334 = vunpack.c.l.b16 %v136
    %v335 = vunpack.c.l.b16 %v137
    %v336 = vunpack.c.h.b16 %v137
    %v337 = vunpack.c.l.b16 %v138
    %v338 = vunpack.c.h.b16 %v138
    %v339 = vunpack.c.l.b16 %v139
    %v340 = vpack.c.b16 %v265, %v260
    %v341 = vpack.c.b16 %v266, %v261
    %v342 = vpack.c.b16 %v267, %v262
    %v343 = vpack.c.b16 %v268, %v263
    %v344 = vpack.c.b16 %v269, %v264
    %v345 = vpack.c.b16 %v275, %v270
    %v346 = vpack.c.b16 %v276, %v271
    %v347 = vpack.c.b16 %v277, %v272
    %v348 = vpack.c.b16 %v278, %v273
    %v349 = vpack.c.b16 %v279, %v274
    %v350 = vpack.c.b16 %v285, %v280
    %v351 = vpack.c.b16 %v286, %v281
    %v352 = vpack.c.b16 %v287, %v282
    %v353 = vpack.c.b16 %v288, %v283
    %v354 = vpack.c.b16 %v289, %v284
    %v355 = vpack.c.b16 %v295, %v290
    %v356 = vpack.c.b16 %v296, %v291
    %v357 = vpack.c.b16 %v297, %v292
    %v358 = vpack.c.b16 %v298, %v293
    %v359 = vpack.c.b16 %v299, %v294
    %v360 = vpack.c.b16 %v305, %v300
    %v361 = vpack.c.b16 %v306, %v301
    %v362 = vpack.c.b16 %v307, %v302
    %v363 = vpack.c.b16 %v308, %v303
    %v364 = vpack.c.b16 %v309, %v304
    %v365 = vpack.c.b16 %v315, %v310
    %v366 = vpack.c.b16 %v316, %v311
    %v367 = vpack.c.b16 %v317, %v312
    %v368 = vpack.c.b16 %v318, %v313
    %v369 = vpack.c.b16 %v319, %v314
    %v370 = vpack.c.b16 %v325, %v320
    %v371 = vpack.c.b16 %v326, %v321
    %v372 = vpack.c.b16 %v327, %v322
    %v373 = vpack.c.b16 %v328, %v323
    %v374 = vpack.c.b16 %v329, %v324
    %v375 = vpack.c.b16 %v335, %v330
    %v376 = vpack.c.b16 %v336, %v331
    %v377 = vpack.c.b16 %v337, %v332
    %v378 = vpack.c.b16 %v338, %v333
    %v379 = vpack.c.b16 %v339, %v334
    %v484 = vunpack.c.l.b16 %v140
    %v485 = vunpack.c.l.b16 %v141
    %v486 = vunpack.c.l.b16 %v142
    %v487 = vunpack.c.l.b16 %v143
    %v488 = vunpack.c.l.b16 %v144
    %v489 = vunpack.c.l.b16 %v145
    %v490 = vunpack.c.l.b16 %v146
    %v491 = vunpack.c.l.b16 %v147
    %v492 = vunpack.c.l.b16 %v148
    %v493 = vunpack.c.l.b16 %v149
    %v494 = vunpack.c.l.b16 %v150
    %v495 = vunpack.c.l.b16 %v151
    %v496 = vunpack.c.l.b16 %v152
    %v497 = vunpack.c.l.b16 %v153
    %v498 = vunpack.c.l.b16 %v154
    %v499 = vunpack.c.l.b16 %v155
    %v500 = vunpack.c.l.b16 %v156
    %v501 = vunpack.c.l.b16 %v157
    %v502 = vunpack.c.l.b16 %v158
    %v503 = vunpack.c.l.b16 %v159
    %v504 = vunpack.c.l.b16 %v160
    %v505 = vunpack.c.l.b16 %v161
    %v506 = vunpack.c.l.b16 %v162
    %v507 = vunpack.c.l.b16 %v163
    %v508 = vunpack.c.l.b16 %v164
    %v509 = vunpack.c.l.b16 %v165
    %v510 = vunpack.c.l.b16 %v166
    %v511 = vunpack.c.l.b16 %v167
    %v512 = vunpack.c.l.b16 %v168
    %v513 = vunpack.c.l.b16 %v169
    %v514 = vunpack.c.l.b16 %v170
    %v515 = vunpack.c.l.b16 %v171
    %v516 = vunpack.c.l.b16 %v172
    %v517 = vunpack.c.l.b16 %v173
    %v518 = vunpack.c.l.b16 %v174
    %v519 = vunpack.c.l.b16 %v175
    %v520 = vunpack.c.l.b16 %v176
    %v521 = vunpack.c.l.b16 %v177
    %v522 = vunpack.c.l.b16 %v178
    %v523 = vunpack.c.l.b16 %v179
    %v524 = vunpack.c.l.b16 %v180
    %v525 = vunpack.c.l.b16 %v181
    %v526 = vunpack.c.l.b16 %v182
    %v527 = vunpack.c.l.b16 %v183
    %v528 = vunpack.c.l.b16 %v184
    %v529 = vunpack.c.l.b16 %v185
    %v530 = vunpack.c.l.b16 %v186
    %v531 = vunpack.c.l.b16 %v187
    %v532 = vunpack.c.l.b16 %v188
    %v533 = vunpack.c.l.b16 %v189
    %v534 = vunpack.c.l.b16 %v190
    %v535 = vunpack.c.l.b16 %v191
    %v536 = vunpack.c.l.b16 %v192
    %v537 = vunpack.c.l.b16 %v193
    %v538 = vunpack.c.l.b16 %v194
    %v539 = vunpack.c.l.b16 %v195
    %v540 = vunpack.c.l.b16 %v196
    %v541 = vunpack.c.l.b16 %v197
    %v542 = vunpack.c.l.b16 %v198
    %v543 = vunpack.c.l.b16 %v199
    %v544 = vunpack.c.l.b16 %v200
    %v545 = vunpack.c.l.b16 %v201
    %v546 = vunpack.c.l.b16 %v202
    %v547 = vunpack.c.l.b16 %v203
    %v548 = vunpack.c.l.b16 %v204
    %v549 = vunpack.c.l.b16 %v205
    %v550 = vunpack.c.l.b16 %v206
    %v551 = vunpack.c.l.b16 %v207
    %v552 = vunpack.c.l.b16 %v208
    %v553 = vunpack.c.l.b16 %v209
    %v554 = vunpack.c.l.b16 %v210
    %v555 = vunpack.c.l.b16 %v211
    %v556 = vpack.c.b16 %v485, %v484
    %v557 = vpack.c.b16 %v487, %v486
    %v558 = vpack.c.b16 %v489, %v488
    %v559 = vpack.c.b16 %v491, %v490
    %v560 = vpack.c.b16 %v493, %v492
    %v561 = vpack.c.b16 %v495, %v494
    %v562 = vpack.c.b16 %v497, %v496
    %v563 = vpack.c.b16 %v499, %v498
    %v564 = vpack.c.b16 %v501, %v500
    %v565 = vpack.c.b16 %v503, %v502
    %v566 = vpack.c.b16 %v505, %v504
    %v567 = vpack.c.b16 %v507, %v506
    %v568 = vpack.c.b16 %v509, %v508
    %v569 = vpack.c.b16 %v511, %v510
    %v570 = vpack.c.b16 %v513, %v512
    %v571 = vpack.c.b16 %v515, %v514
    %v572 = vpack.c.b16 %v517, %v516
    %v573 = vpack.c.b16 %v519, %v518
    %v574 = vpack.c.b16 %v521, %v520
    %v575 = vpack.c.b16 %v523, %v522
    %v576 = vpack.c.b16 %v525, %v524
    %v577 = vpack.c.b16 %v527, %v526
    %v578 = vpack.c.b16 %v529, %v528
    %v579 = vpack.c.b16 %v531, %v530
    %v580 = vpack.c.b16 %v533, %v532
    %v581 = vpack.c.b16 %v535, %v534
    %v582 = vpack.c.b16 %v537, %v536
    %v583 = vpack.c.b16 %v539, %v538
    %v584 = vpack.c.b16 %v541, %v540
    %v585 = vpack.c.b16 %v543, %v542
    %v586 = vpack.c.b16 %v545, %v544
    %v587 = vpack.c.b16 %v547, %v546
    %v588 = vpack.c.b16 %v549, %v548
    %v589 = vpack.c.b16 %v551, %v550
    %v590 = vpack.c.b16 %v553, %v552
    %v591 = vpack.c.b16 %v555, %v554
    %vm628 = vcmask 523264
    %v630 = vsel %vm628, %v344, 0
    %v633 = vsel %vm628, %v349, 0
    %v636 = vsel %vm628, %v354, 0
    %v639 = vsel %vm628, %v359, 0
    %v642 = vsel %vm628, %v364, 0
    %v645 = vsel %vm628, %v369, 0
    %v648 = vsel %vm628, %v374, 0
    %v651 = vsel %vm628, %v379, 0
    %653 = vmatprep.subr.bf16.mxu0 0
    %654 = vmatpush1.bf16.msra.mxu0 %v556
    %655 = vmatprep.subr.bf16.mxu0 0
    %656 = vmatpush1.bf16.msra.mxu0 %v557
    %657 = vmatprep.subr.bf16.mxu0 0
    %658 = vmatpush1.bf16.msra.mxu0 %v558
    %659 = vmatprep.subr.bf16.mxu0 0
    %660 = vmatpush1.bf16.msra.mxu0 %v559
    %661 = vmatprep.subr.bf16.mxu0 0
    %662 = vmatpush1.bf16.msra.mxu0 %v560
    %663 = vmatprep.subr.bf16.mxu0 0
    %664 = vmatpush1.bf16.msra.mxu0 %v561
    %665 = vmatprep.subr.bf16.mxu0 0
    %666 = vmatpush1.bf16.msra.mxu0 %v562
    %667 = vmatprep.subr.bf16.mxu0 0
    %668 = vmatpush1.bf16.msra.mxu0 %v563
    %669 = vmatprep.subr.bf16.mxu0 0
    %670 = vmatpush1.bf16.msra.mxu0 %v564
    %671 = vmatprep.subr.bf16.mxu0 0
    %672 = vmatpush1.bf16.msra.mxu0 %v565
    %673 = vmatprep.subr.bf16.mxu0 0
    %674 = vmatpush1.bf16.msra.mxu0 %v566
    %675 = vmatprep.subr.bf16.mxu0 0
    %676 = vmatpush1.bf16.msra.mxu0 %v567
    %677 = vmatprep.subr.bf16.mxu0 0
    %678 = vmatpush1.bf16.msra.mxu0 %v568
    %679 = vmatprep.subr.bf16.mxu0 0
    %680 = vmatpush1.bf16.msra.mxu0 %v569
    %681 = vmatprep.subr.bf16.mxu0 0
    %682 = vmatpush1.bf16.msra.mxu0 %v570
    %683 = vmatprep.subr.bf16.mxu0 0
    %684 = vmatpush1.bf16.msra.mxu0 %v571
    %685 = vmatprep.mubr.bf16.mxu0 %v341
    %686 = vmatmul.mubr.bf16.gmra.mrb[0].mxu0 %v340
    %v687 = vpop.f32.mrb[0].mxu0
    %v688 = vadd.f32 0.0, %v687
    %v689 = vpop.f32.mrb[0].mxu0
    %v690 = vpop.f32.mrb[0].mxu0
    %v691 = vadd.f32 0.0, %v690
    %v692 = vpop.f32.mrb[0].mxu0
    %693 = vmatprep.mubr.bf16.mxu0 %v346
    %694 = vmatmul.mubr.bf16.gmra.mrb[0].mxu0 %v345
    %v695 = vpop.f32.mrb[0].mxu0
    %v696 = vadd.f32 0.0, %v695
    %v697 = vpop.f32.mrb[0].mxu0
    %v698 = vpop.f32.mrb[0].mxu0
    %v699 = vadd.f32 0.0, %v698
    %v700 = vpop.f32.mrb[0].mxu0
    %701 = vmatprep.mubr.bf16.mxu0 %v351
    %702 = vmatmul.mubr.bf16.gmra.mrb[0].mxu0 %v350
    %v703 = vpop.f32.mrb[0].mxu0
    %v704 = vadd.f32 0.0, %v703
    %v705 = vpop.f32.mrb[0].mxu0
    %v706 = vpop.f32.mrb[0].mxu0
    %v707 = vadd.f32 0.0, %v706
    %v708 = vpop.f32.mrb[0].mxu0
    %709 = vmatprep.mubr.bf16.mxu0 %v356
    %710 = vmatmul.mubr.bf16.gmra.mrb[0].mxu0 %v355
    %v711 = vpop.f32.mrb[0].mxu0
    %v712 = vadd.f32 0.0, %v711
    %v713 = vpop.f32.mrb[0].mxu0
    %v714 = vpop.f32.mrb[0].mxu0
    %v715 = vadd.f32 0.0, %v714
    %v716 = vpop.f32.mrb[0].mxu0
    %717 = vmatprep.mubr.bf16.mxu0 %v361
    %718 = vmatmul.mubr.bf16.gmra.mrb[0].mxu0 %v360
    %v719 = vpop.f32.mrb[0].mxu0
    %v720 = vadd.f32 0.0, %v719
    %v721 = vpop.f32.mrb[0].mxu0
    %v722 = vpop.f32.mrb[0].mxu0
    %v723 = vadd.f32 0.0, %v722
    %v724 = vpop.f32.mrb[0].mxu0
    %725 = vmatprep.mubr.bf16.mxu0 %v366
    %726 = vmatmul.mubr.bf16.gmra.mrb[0].mxu0 %v365
    %v727 = vpop.f32.mrb[0].mxu0
    %v728 = vadd.f32 0.0, %v727
    %v729 = vpop.f32.mrb[0].mxu0
    %v730 = vpop.f32.mrb[0].mxu0
    %v731 = vadd.f32 0.0, %v730
    %v732 = vpop.f32.mrb[0].mxu0
    %733 = vmatprep.mubr.bf16.mxu0 %v371
    %734 = vmatmul.mubr.bf16.gmra.mrb[0].mxu0 %v370
    %v735 = vpop.f32.mrb[0].mxu0
    %v736 = vadd.f32 0.0, %v735
    %v737 = vpop.f32.mrb[0].mxu0
    %v738 = vpop.f32.mrb[0].mxu0
    %v739 = vadd.f32 0.0, %v738
    %v740 = vpop.f32.mrb[0].mxu0
    %741 = vmatprep.mubr.bf16.mxu0 %v376
    %742 = vmatmul.mubr.bf16.gmra.mrb[0].mxu0 %v375
    %v743 = vpop.f32.mrb[0].mxu0
    %v744 = vadd.f32 0.0, %v743
    %v745 = vpop.f32.mrb[0].mxu0
    %v746 = vpop.f32.mrb[0].mxu0
    %v747 = vadd.f32 0.0, %v746
    %v748 = vpop.f32.mrb[0].mxu0
    %749 = vdwg.mxu0
    %750 = vmatprep.subr.bf16.mxu0 0
    %751 = vmatpush1.bf16.msra.mxu0 %v572
    %752 = vmatprep.subr.bf16.mxu0 0
    %753 = vmatpush1.bf16.msra.mxu0 %v573
    %754 = vmatprep.subr.bf16.mxu0 0
    %755 = vmatpush1.bf16.msra.mxu0 %v574
    %756 = vmatprep.subr.bf16.mxu0 0
    %757 = vmatpush1.bf16.msra.mxu0 %v575
    %758 = vmatprep.subr.bf16.mxu0 0
    %759 = vmatpush1.bf16.msra.mxu0 %v576
    %760 = vmatprep.subr.bf16.mxu0 0
    %761 = vmatpush1.bf16.msra.mxu0 %v577
    %762 = vmatprep.subr.bf16.mxu0 0
    %763 = vmatpush1.bf16.msra.mxu0 %v578
    %764 = vmatprep.subr.bf16.mxu0 0
    %765 = vmatpush1.bf16.msra.mxu0 %v579
    %766 = vmatprep.subr.bf16.mxu0 0
    %767 = vmatpush1.bf16.msra.mxu0 %v580
    %768 = vmatprep.subr.bf16.mxu0 0
    %769 = vmatpush1.bf16.msra.mxu0 %v581
    %770 = vmatprep.subr.bf16.mxu0 0
    %771 = vmatpush1.bf16.msra.mxu0 %v582
    %772 = vmatprep.subr.bf16.mxu0 0
    %773 = vmatpush1.bf16.msra.mxu0 %v583
    %774 = vmatprep.subr.bf16.mxu0 0
    %775 = vmatpush1.bf16.msra.mxu0 %v584
    %776 = vmatprep.subr.bf16.mxu0 0
    %777 = vmatpush1.bf16.msra.mxu0 %v585
    %778 = vmatprep.subr.bf16.mxu0 0
    %779 = vmatpush1.bf16.msra.mxu0 %v586
    %780 = vmatprep.subr.bf16.mxu0 0
    %781 = vmatpush1.bf16.msra.mxu0 %v587
    %782 = vmatprep.mubr.bf16.mxu0 %v343
    %783 = vmatmul.mubr.bf16.gmra.mrb[0].mxu0 %v342
    %v784 = vpop.f32.mrb[0].mxu0
    %v785 = vadd.f32 %v688, %v784
    %v786 = vpop.f32.mrb[0].mxu0
    %v787 = vpop.f32.mrb[0].mxu0
    %v788 = vadd.f32 %v691, %v787
    %v789 = vpop.f32.mrb[0].mxu0
    %790 = vmatprep.mubr.bf16.mxu0 %v348
    %791 = vmatmul.mubr.bf16.gmra.mrb[0].mxu0 %v347
    %v792 = vpop.f32.mrb[0].mxu0
    %v793 = vadd.f32 %v696, %v792
    %v794 = vpop.f32.mrb[0].mxu0
    %v795 = vpop.f32.mrb[0].mxu0
    %v796 = vadd.f32 %v699, %v795
    %v797 = vpop.f32.mrb[0].mxu0
    %798 = vmatprep.mubr.bf16.mxu0 %v353
    %799 = vmatmul.mubr.bf16.gmra.mrb[0].mxu0 %v352
    %v800 = vpop.f32.mrb[0].mxu0
    %v801 = vadd.f32 %v704, %v800
    %v802 = vpop.f32.mrb[0].mxu0
    %v803 = vpop.f32.mrb[0].mxu0
    %v804 = vadd.f32 %v707, %v803
    %v805 = vpop.f32.mrb[0].mxu0
    %806 = vmatprep.mubr.bf16.mxu0 %v358
    %807 = vmatmul.mubr.bf16.gmra.mrb[0].mxu0 %v357
    %v808 = vpop.f32.mrb[0].mxu0
    %v809 = vadd.f32 %v712, %v808
    %v810 = vpop.f32.mrb[0].mxu0
    %v811 = vpop.f32.mrb[0].mxu0
    %v812 = vadd.f32 %v715, %v811
    %v813 = vpop.f32.mrb[0].mxu0
    %814 = vmatprep.mubr.bf16.mxu0 %v363
    %815 = vmatmul.mubr.bf16.gmra.mrb[0].mxu0 %v362
    %v816 = vpop.f32.mrb[0].mxu0
    %v817 = vadd.f32 %v720, %v816
    %v818 = vpop.f32.mrb[0].mxu0
    %v819 = vpop.f32.mrb[0].mxu0
    %v820 = vadd.f32 %v723, %v819
    %v821 = vpop.f32.mrb[0].mxu0
    %822 = vmatprep.mubr.bf16.mxu0 %v368
    %823 = vmatmul.mubr.bf16.gmra.mrb[0].mxu0 %v367
    %v824 = vpop.f32.mrb[0].mxu0
    %v825 = vadd.f32 %v728, %v824
    %v826 = vpop.f32.mrb[0].mxu0
    %v827 = vpop.f32.mrb[0].mxu0
    %v828 = vadd.f32 %v731, %v827
    %v829 = vpop.f32.mrb[0].mxu0
    %830 = vmatprep.mubr.bf16.mxu0 %v373
    %831 = vmatmul.mubr.bf16.gmra.mrb[0].mxu0 %v372
    %v832 = vpop.f32.mrb[0].mxu0
    %v833 = vadd.f32 %v736, %v832
    %v834 = vpop.f32.mrb[0].mxu0
    %v835 = vpop.f32.mrb[0].mxu0
    %v836 = vadd.f32 %v739, %v835
    %v837 = vpop.f32.mrb[0].mxu0
    %838 = vmatprep.mubr.bf16.mxu0 %v378
    %839 = vmatmul.mubr.bf16.gmra.mrb[0].mxu0 %v377
    %v840 = vpop.f32.mrb[0].mxu0
    %v841 = vadd.f32 %v744, %v840
    %v842 = vpop.f32.mrb[0].mxu0
    %v843 = vpop.f32.mrb[0].mxu0
    %v844 = vadd.f32 %v747, %v843
    %v845 = vpop.f32.mrb[0].mxu0
    %846 = vdwg.mxu0
    %847 = vmatprep.subr.bf16.mxu0 0
    %848 = vmatpush1.bf16.msra.mxu0 %v588
    %849 = vmatprep.subr.bf16.mxu0 0
    %850 = vmatpush1.bf16.msra.mxu0 %v589
    %851 = vmatprep.subr.bf16.mxu0 0
    %852 = vmatpush1.bf16.msra.mxu0 %v590
    %853 = vmatprep.subr.bf16.mxu0 0
    %854 = vmatpush1.bf16.msra.mxu0 %v591
    %855 = vmatprep.subr.bf16.mxu0 0
    %856 = vmatpush1.bf16.msra.mxu0 0
    %857 = vmatprep.subr.bf16.mxu0 0
    %858 = vmatpush1.bf16.msra.mxu0 0
    %859 = vmatprep.subr.bf16.mxu0 0
    %860 = vmatpush1.bf16.msra.mxu0 0
    %861 = vmatprep.subr.bf16.mxu0 0
    %862 = vmatpush1.bf16.msra.mxu0 0
    %863 = vmatprep.subr.bf16.mxu0 0
    %864 = vmatpush1.bf16.msra.mxu0 0
    %865 = vmatprep.subr.bf16.mxu0 0
    %866 = vmatpush1.bf16.msra.mxu0 0
    %867 = vmatprep.subr.bf16.mxu0 0
    %868 = vmatpush1.bf16.msra.mxu0 0
    %869 = vmatprep.subr.bf16.mxu0 0
    %870 = vmatpush1.bf16.msra.mxu0 0
    %871 = vmatprep.subr.bf16.mxu0 0
    %872 = vmatpush1.bf16.msra.mxu0 0
    %873 = vmatprep.subr.bf16.mxu0 0
    %874 = vmatpush1.bf16.msra.mxu0 0
    %875 = vmatprep.subr.bf16.mxu0 0
    %876 = vmatpush1.bf16.msra.mxu0 0
    %877 = vmatprep.subr.bf16.mxu0 0
    %878 = vmatpush1.bf16.msra.mxu0 0
    %879 = vmatprep.mubr.bf16.mxu0 0
    %880 = vmatmul.mubr.bf16.gmra.mrb[0].mxu0 %v630
    %v881 = vpop.f32.mrb[0].mxu0
    %v882 = vadd.f32 %v785, %v881
    %v883 = vpop.f32.mrb[0].mxu0
    %v884 = vpop.f32.mrb[0].mxu0
    %v885 = vadd.f32 %v788, %v884
    %v886 = vpop.f32.mrb[0].mxu0
    %887 = vmatprep.mubr.bf16.mxu0 0
    %888 = vmatmul.mubr.bf16.gmra.mrb[0].mxu0 %v633
    %v889 = vpop.f32.mrb[0].mxu0
    %v890 = vadd.f32 %v793, %v889
    %v891 = vpop.f32.mrb[0].mxu0
    %v892 = vpop.f32.mrb[0].mxu0
    %v893 = vadd.f32 %v796, %v892
    %v894 = vpop.f32.mrb[0].mxu0
    %895 = vmatprep.mubr.bf16.mxu0 0
    %896 = vmatmul.mubr.bf16.gmra.mrb[0].mxu0 %v636
    %v897 = vpop.f32.mrb[0].mxu0
    %v898 = vadd.f32 %v801, %v897
    %v899 = vpop.f32.mrb[0].mxu0
    %v900 = vpop.f32.mrb[0].mxu0
    %v901 = vadd.f32 %v804, %v900
    %v902 = vpop.f32.mrb[0].mxu0
    %903 = vmatprep.mubr.bf16.mxu0 0
    %904 = vmatmul.mubr.bf16.gmra.mrb[0].mxu0 %v639
    %v905 = vpop.f32.mrb[0].mxu0
    %v906 = vadd.f32 %v809, %v905
    %v907 = vpop.f32.mrb[0].mxu0
    %v908 = vpop.f32.mrb[0].mxu0
    %v909 = vadd.f32 %v812, %v908
    %v910 = vpop.f32.mrb[0].mxu0
    %911 = vmatprep.mubr.bf16.mxu0 0
    %912 = vmatmul.mubr.bf16.gmra.mrb[0].mxu0 %v642
    %v913 = vpop.f32.mrb[0].mxu0
    %v914 = vadd.f32 %v817, %v913
    %v915 = vpop.f32.mrb[0].mxu0
    %v916 = vpop.f32.mrb[0].mxu0
    %v917 = vadd.f32 %v820, %v916
    %v918 = vpop.f32.mrb[0].mxu0
    %919 = vmatprep.mubr.bf16.mxu0 0
    %920 = vmatmul.mubr.bf16.gmra.mrb[0].mxu0 %v645
    %v921 = vpop.f32.mrb[0].mxu0
    %v922 = vadd.f32 %v825, %v921
    %v923 = vpop.f32.mrb[0].mxu0
    %v924 = vpop.f32.mrb[0].mxu0
    %v925 = vadd.f32 %v828, %v924
    %v926 = vpop.f32.mrb[0].mxu0
    %927 = vmatprep.mubr.bf16.mxu0 0
    %928 = vmatmul.mubr.bf16.gmra.mrb[0].mxu0 %v648
    %v929 = vpop.f32.mrb[0].mxu0
    %v930 = vadd.f32 %v833, %v929
    %v931 = vpop.f32.mrb[0].mxu0
    %v932 = vpop.f32.mrb[0].mxu0
    %v933 = vadd.f32 %v836, %v932
    %v934 = vpop.f32.mrb[0].mxu0
    %935 = vmatprep.mubr.bf16.mxu0 0
    %936 = vmatmul.mubr.bf16.gmra.mrb[0].mxu0 %v651
    %v937 = vpop.f32.mrb[0].mxu0
    %v938 = vadd.f32 %v841, %v937
    %v939 = vpop.f32.mrb[0].mxu0
    %v940 = vpop.f32.mrb[0].mxu0
    %v941 = vadd.f32 %v844, %v940
    %v942 = vpop.f32.mrb[0].mxu0
    %943 = vdwg.mxu0
    %v944 = vadd.f32 %v76, %v882
    %v945 = vadd.f32 %v77, %v885
    %v946 = vadd.f32 %v78, %v890
    %v947 = vadd.f32 %v79, %v893
    %v948 = vadd.f32 %v80, %v898
    %v949 = vadd.f32 %v81, %v901
    %v950 = vadd.f32 %v82, %v906
    %v951 = vadd.f32 %v83, %v909
    %v952 = vadd.f32 %v84, %v914
    %v953 = vadd.f32 %v85, %v917
    %v954 = vadd.f32 %v86, %v922
    %v955 = vadd.f32 %v87, %v925
    %v956 = vadd.f32 %v88, %v930
    %v957 = vadd.f32 %v89, %v933
    %v958 = vadd.f32 %v90, %v938
    %v959 = vadd.f32 %v91, %v941
    %960 = vst.msk [vmem:[#allocation2] sm:$0xff] %vm628, %v944
    %961 = vst.msk [vmem:[#allocation2 + $0x8] sm:$0xff] %vm628, %v945
    %962 = vst.msk [vmem:[#allocation2 + $0x10] sm:$0xff] %vm628, %v946
    %963 = vst.msk [vmem:[#allocation2 + $0x18] sm:$0xff] %vm628, %v947
    %964 = vst.msk [vmem:[#allocation2 + $0x20] sm:$0xff] %vm628, %v948
    %965 = vst.msk [vmem:[#allocation2 + $0x28] sm:$0xff] %vm628, %v949
    %966 = vst.msk [vmem:[#allocation2 + $0x30] sm:$0xff] %vm628, %v950
    %967 = vst.msk [vmem:[#allocation2 + $0x38] sm:$0xff] %vm628, %v951
    %968 = vst.msk [vmem:[#allocation2 + $0x40] sm:$0xff] %vm628, %v952
    %969 = vst.msk [vmem:[#allocation2 + $0x48] sm:$0xff] %vm628, %v953
    %970 = vst.msk [vmem:[#allocation2 + $0x50] sm:$0xff] %vm628, %v954
    %971 = vst.msk [vmem:[#allocation2 + $0x58] sm:$0xff] %vm628, %v955
    %972 = vst.msk [vmem:[#allocation2 + $0x60] sm:$0xff] %vm628, %v956
    %973 = vst.msk [vmem:[#allocation2 + $0x68] sm:$0xff] %vm628, %v957
    %974 = vst.msk [vmem:[#allocation2 + $0x70] sm:$0xff] %vm628, %v958
    %975 = vst.msk [vmem:[#allocation2 + $0x78] sm:$0xff] %vm628, %v959
    // Predicated region
    $region30: #{resnet_forward.16} parent=1 // pred_check
      %p976 = pneg %p55
    $region31: #{resnet_forward.16} parent=1 // pred_check_branch
      %978 = sbr.rel (%p976) target = $region33
    $region32: #{resnet_forward.16} parent=1 // pred_region
      %v979 = vld [vmem:[#allocation2] sm:$0xff]
      %v980 = vld [vmem:[#allocation2 + $0x8] sm:$0xff]
      %v981 = vld [vmem:[#allocation2 + $0x10] sm:$0xff]
      %v982 = vld [vmem:[#allocation2 + $0x18] sm:$0xff]
      %v983 = vld [vmem:[#allocation2 + $0x20] sm:$0xff]
      %v984 = vld [vmem:[#allocation2 + $0x28] sm:$0xff]
      %v985 = vld [vmem:[#allocation2 + $0x30] sm:$0xff]
      %v986 = vld [vmem:[#allocation2 + $0x38] sm:$0xff]
      %v987 = vld [vmem:[#allocation2 + $0x40] sm:$0xff]
      %v988 = vld [vmem:[#allocation2 + $0x48] sm:$0xff]
      %v989 = vld [vmem:[#allocation2 + $0x50] sm:$0xff]
      %v990 = vld [vmem:[#allocation2 + $0x58] sm:$0xff]
      %v991 = vld [vmem:[#allocation2 + $0x60] sm:$0xff]
      %v992 = vld [vmem:[#allocation2 + $0x68] sm:$0xff]
      %v993 = vld [vmem:[#allocation2 + $0x70] sm:$0xff]
      %v994 = vld [vmem:[#allocation2 + $0x78] sm:$0xff]
      %v995 = vld [vmem:[#allocation8] sm:$0x1]
      %v996 = vlaneseq
      %v997 = vshrl.u32 %v996, 7
      %v998 = vsub.s32 0, %v997
      %v999 = vrot.slane %v995, %v998
      %v1000 = vmul.f32 %v979, %v999
      %v1001 = vmul.f32 %v980, %v999
      %v1002 = vmul.f32 %v981, %v999
      %v1003 = vmul.f32 %v982, %v999
      %v1004 = vmul.f32 %v983, %v999
      %v1005 = vmul.f32 %v984, %v999
      %v1006 = vmul.f32 %v985, %v999
      %v1007 = vmul.f32 %v986, %v999
      %v1008 = vmul.f32 %v987, %v999
      %v1009 = vmul.f32 %v988, %v999
      %v1010 = vmul.f32 %v989, %v999
      %v1011 = vmul.f32 %v990, %v999
      %v1012 = vmul.f32 %v991, %v999
      %v1013 = vmul.f32 %v992, %v999
      %v1014 = vmul.f32 %v993, %v999
      %v1015 = vmul.f32 %v994, %v999
      %v1016 = vld [vmem:[#allocation8 + $0x1] sm:$0x1]
      %v1017 = vlaneseq
      %v1018 = vshrl.u32 %v1017, 7
      %v1019 = vsub.s32 0, %v1018
      %v1020 = vrot.slane %v1016, %v1019
      %v1021 = vadd.f32 %v1000, %v1020
      %v1022 = vadd.f32 %v1001, %v1020
      %v1023 = vadd.f32 %v1002, %v1020
      %v1024 = vadd.f32 %v1003, %v1020
      %v1025 = vadd.f32 %v1004, %v1020
      %v1026 = vadd.f32 %v1005, %v1020
      %v1027 = vadd.f32 %v1006, %v1020
      %v1028 = vadd.f32 %v1007, %v1020
      %v1029 = vadd.f32 %v1008, %v1020
      %v1030 = vadd.f32 %v1009, %v1020
      %v1031 = vadd.f32 %v1010, %v1020
      %v1032 = vadd.f32 %v1011, %v1020
      %v1033 = vadd.f32 %v1012, %v1020
      %v1034 = vadd.f32 %v1013, %v1020
      %v1035 = vadd.f32 %v1014, %v1020
      %v1036 = vadd.f32 %v1015, %v1020
      %v1037 = vmax.f32 %v1021, 0.0
      %v1038 = vmax.f32 %v1022, 0.0
      %v1039 = vmax.f32 %v1023, 0.0
      %v1040 = vmax.f32 %v1024, 0.0
      %v1041 = vmax.f32 %v1025, 0.0
      %v1042 = vmax.f32 %v1026, 0.0
      %v1043 = vmax.f32 %v1027, 0.0
      %v1044 = vmax.f32 %v1028, 0.0
      %v1045 = vmax.f32 %v1029, 0.0
      %v1046 = vmax.f32 %v1030, 0.0
      %v1047 = vmax.f32 %v1031, 0.0
      %v1048 = vmax.f32 %v1032, 0.0
      %v1049 = vmax.f32 %v1033, 0.0
      %v1050 = vmax.f32 %v1034, 0.0
      %v1051 = vmax.f32 %v1035, 0.0
      %v1052 = vmax.f32 %v1036, 0.0
      %1053 = vst.msk [vmem:[#allocation9] sm:$0xff] %vm628, %v1037
      %1054 = vst.msk [vmem:[#allocation9 + $0x8] sm:$0xff] %vm628, %v1038
      %1055 = vst.msk [vmem:[#allocation9 + $0x10] sm:$0xff] %vm628, %v1039
      %1056 = vst.msk [vmem:[#allocation9 + $0x18] sm:$0xff] %vm628, %v1040
      %1057 = vst.msk [vmem:[#allocation9 + $0x20] sm:$0xff] %vm628, %v1041
      %1058 = vst.msk [vmem:[#allocation9 + $0x28] sm:$0xff] %vm628, %v1042
      %1059 = vst.msk [vmem:[#allocation9 + $0x30] sm:$0xff] %vm628, %v1043
      %1060 = vst.msk [vmem:[#allocation9 + $0x38] sm:$0xff] %vm628, %v1044
      %1061 = vst.msk [vmem:[#allocation9 + $0x40] sm:$0xff] %vm628, %v1045
      %1062 = vst.msk [vmem:[#allocation9 + $0x48] sm:$0xff] %vm628, %v1046
      %1063 = vst.msk [vmem:[#allocation9 + $0x50] sm:$0xff] %vm628, %v1047
      %1064 = vst.msk [vmem:[#allocation9 + $0x58] sm:$0xff] %vm628, %v1048
      %1065 = vst.msk [vmem:[#allocation9 + $0x60] sm:$0xff] %vm628, %v1049
      %1066 = vst.msk [vmem:[#allocation9 + $0x68] sm:$0xff] %vm628, %v1050
      %1067 = vst.msk [vmem:[#allocation9 + $0x70] sm:$0xff] %vm628, %v1051
      %1068 = vst.msk [vmem:[#allocation9 + $0x78] sm:$0xff] %vm628, %v1052
    $region33: #{resnet_forward.16} parent=1 // pred_fallthru
      _
    // Predicated region
    $region34: #{resnet_forward.16} parent=1 // pred_check
      _
    $region35: #{resnet_forward.16} parent=1 // pred_check_branch
      %1070 = sbr.rel (0) target = $region37
    $region36: #{resnet_forward.16} parent=1 // pred_region
      %s1072 = ssub.s32 2048, 2048
      %1073 = vsyncadd [#allocation5], %s1072
      %s1074 = sshll.u32 [#allocation9], 4
      %s1075 = int_to_ptr.vmem [resolvable:$true] %s1074
      %1080 = dma.vmem_to_hbm [thread:$0]  %s1075, 2048, %s3, [#allocation5], 128, 128, 8
    $region37: #{resnet_forward.16} parent=1 // pred_fallthru
      _
    // Predicated region
    $region38: #{resnet_forward.16} parent=1 // pred_check
      _
    $region39: #{resnet_forward.16} parent=1 // pred_check_branch
      %1082 = sbr.rel (0) target = $region41
    $region40: #{resnet_forward.16} parent=1 // pred_region
      %1083 = dma.done [#allocation5], 2048
    $region41: #{resnet_forward.16} parent=1 // pred_fallthru
      _
    %1084 = vsyncpa [#allocation4], 1
    %1085 = vsyncpa [#allocation7], 1
    %1086 = vsyncpa [#allocation5], 1

// kernel: resnet_forward.17
$region0: #{resnet_forward.17}
  #allocation0 [shape = 'u32[]', space=smem, size = 0x4, offset = 0x4, fixed_abs, tag = 'smem constant byte address 0x4 - core index']
  #allocation1 [shape = 'u32[144,128]{1,0:T(1,128)}', space=vmem, size = 0x12000, scoped, tag = 'internal scratch']
  #allocation2 [shape = 'f32[128,64]{1,0:T(8,128)}', space=vmem, size = 0x10000, scoped, tag = 'scratch operand']
  %s0 = inlined_call_operand.hbm [shape: bf16[128,576], index: 0, kind: input, shape index: {}]
  %s1 = inlined_call_operand.hbm [shape: bf16[576,64], index: 1, kind: input, shape index: {}]
  %s2 = inlined_call_operand.hbm [shape: f32[2,64], index: 2, kind: input, shape index: {}]
  %s3 = inlined_call_operand.hbm [shape: f32[128,64], index: 3, kind: input, shape index: {}]
  %s4 = inlined_call_operand.hbm [shape: f32[128,64], index: 4, kind: output, shape index: {}]
  %s5 = sld [smem:[#allocation0]]
  $region50: #{resnet_forward.17} parent=0
    _
  %s7 = ssub.s32 1, %s5
  %s8 = scalar_select 0, %s7, %s5
  $region1: #{resnet_forward.17} parent=0
    #allocation3 [shape = 'u8[163840]{0}', space=vmem, size = 0x28000, scoped, tag = 'input window, operand 0, single buffered']
    #allocation4 [shape = 's32[1]{0}', space=sflag, size = 0x4, scoped, tag = 'scoped memory for resnet_forward.17']
    #allocation5 [shape = 's32[1]{0}', space=sflag, size = 0x4, scoped, tag = 'scoped memory for resnet_forward.17']
    #allocation6 [shape = 'u8[147456]{0}', space=vmem, size = 0x24000, scoped, tag = 'input window, operand 1, single buffered']
    #allocation7 [shape = 's32[1]{0}', space=sflag, size = 0x4, scoped, tag = 'scoped memory for resnet_forward.17']
    #allocation8 [shape = 'u8[1024]{0}', space=vmem, size = 0x400, scoped, tag = 'input window, operand 2, single buffered']
    #allocation9 [shape = 'u8[65536]{0}', space=vmem, size = 0x10000, scoped, tag = 'input window, operand 3, single buffered']
    #allocation10 [shape = 's32[1]{0}', space=sflag, size = 0x4, scoped, tag = 'scoped memory for resnet_forward.17']
    #allocation11 [shape = 'u8[65536]{0}', space=vmem, size = 0x10000, scoped, tag = 'output window, operand 0, single buffered']
    %9 = vsyncpa [#allocation4], 0
    %10 = vsyncpa [#allocation7], 0
    %11 = vsyncpa [#allocation10], 0
    %12 = vsyncpa [#allocation5], 0
    // Predicated region
    $region2: #{resnet_forward.17} parent=1 // pred_check
      _
    $region3: #{resnet_forward.17} parent=1 // pred_check_branch
      %14 = sbr.rel (0) target = $region5
    $region4: #{resnet_forward.17} parent=1 // pred_region
      %s16 = ssub.s32 5120, 5120
      %17 = vsyncadd [#allocation4], %s16
      %s18 = sshll.u32 [#allocation3], 4
      %s19 = int_to_ptr.vmem [resolvable:$true] %s18
      %24 = dma.hbm_to_vmem [thread:$0]  %s0, 5120, %s19, [#allocation4], 320, 320, 20
    $region5: #{resnet_forward.17} parent=1 // pred_fallthru
      _
    // Predicated region
    $region6: #{resnet_forward.17} parent=1 // pred_check
      _
    $region7: #{resnet_forward.17} parent=1 // pred_check_branch
      %26 = sbr.rel (0) target = $region9
    $region8: #{resnet_forward.17} parent=1 // pred_region
      %s28 = ssub.s32 4608, 4608
      %29 = vsyncadd [#allocation7], %s28
      %s30 = sshll.u32 [#allocation6], 4
      %s31 = int_to_ptr.vmem [resolvable:$true] %s30
      %36 = dma.hbm_to_vmem [thread:$0]  %s1, 4608, %s31, [#allocation7], 64, 64, 4
    $region9: #{resnet_forward.17} parent=1 // pred_fallthru
      _
    // Predicated region
    $region10: #{resnet_forward.17} parent=1 // pred_check
      _
    $region11: #{resnet_forward.17} parent=1 // pred_check_branch
      %38 = sbr.rel (0) target = $region13
    $region12: #{resnet_forward.17} parent=1 // pred_region
      %s40 = ssub.s32 32, 32
      %41 = vsyncadd [#allocation7], %s40
      %s43 = sshll.u32 [#allocation8], 4
      %s44 = int_to_ptr.vmem [resolvable:$true] %s43
      %46 = dma.hbm_to_vmem [thread:$0]  %s2, 32, %s44, [#allocation7]
    $region13: #{resnet_forward.17} parent=1 // pred_fallthru
      _
    // Predicated region
    $region14: #{resnet_forward.17} parent=1 // pred_check
      _
    $region15: #{resnet_forward.17} parent=1 // pred_check_branch
      %48 = sbr.rel (0) target = $region17
    $region16: #{resnet_forward.17} parent=1 // pred_region
      %s50 = ssub.s32 2048, 2048
      %51 = vsyncadd [#allocation10], %s50
      %s52 = sshll.u32 [#allocation9], 4
      %s53 = int_to_ptr.vmem [resolvable:$true] %s52
      %58 = dma.hbm_to_vmem [thread:$0]  %s3, 2048, %s53, [#allocation10], 128, 128, 8
    $region17: #{resnet_forward.17} parent=1 // pred_fallthru
      _
    // Predicated region
    $region18: #{resnet_forward.17} parent=1 // pred_check
      _
    $region19: #{resnet_forward.17} parent=1 // pred_check_branch
      %60 = sbr.rel (0) target = $region21
    $region20: #{resnet_forward.17} parent=1 // pred_region
      %61 = dma.done [#allocation4], 5120
    $region21: #{resnet_forward.17} parent=1 // pred_fallthru
      _
    // Predicated region
    $region22: #{resnet_forward.17} parent=1 // pred_check
      _
    $region23: #{resnet_forward.17} parent=1 // pred_check_branch
      %63 = sbr.rel (0) target = $region25
    $region24: #{resnet_forward.17} parent=1 // pred_region
      %64 = dma.done [#allocation7], 4608
    $region25: #{resnet_forward.17} parent=1 // pred_fallthru
      _
    // Predicated region
    $region26: #{resnet_forward.17} parent=1 // pred_check
      _
    $region27: #{resnet_forward.17} parent=1 // pred_check_branch
      %66 = sbr.rel (0) target = $region29
    $region28: #{resnet_forward.17} parent=1 // pred_region
      %67 = dma.done [#allocation7], 32
    $region29: #{resnet_forward.17} parent=1 // pred_fallthru
      _
    // Predicated region
    $region30: #{resnet_forward.17} parent=1 // pred_check
      _
    $region31: #{resnet_forward.17} parent=1 // pred_check_branch
      %69 = sbr.rel (0) target = $region33
    $region32: #{resnet_forward.17} parent=1 // pred_region
      %70 = dma.done [#allocation10], 2048
    $region33: #{resnet_forward.17} parent=1 // pred_fallthru
      _
    %p72 = scmp.eq.s32.totalorder 0, 0
    // Predicated region
    $region34: #{resnet_forward.17} parent=1 // pred_check
      %p73 = pneg %p72
    $region35: #{resnet_forward.17} parent=1 // pred_check_branch
      %75 = sbr.rel (%p73) target = $region37
    $region36: #{resnet_forward.17} parent=1 // pred_region
      %vm76 = vcmask 523264
      %77 = vst.msk [vmem:[#allocation2] sm:$0xff] %vm76, 0.0
      %78 = vst.msk [vmem:[#allocation2 + $0x8] sm:$0xff] %vm76, 0.0
      %79 = vst.msk [vmem:[#allocation2 + $0x10] sm:$0xff] %vm76, 0.0
      %80 = vst.msk [vmem:[#allocation2 + $0x18] sm:$0xff] %vm76, 0.0
      %81 = vst.msk [vmem:[#allocation2 + $0x20] sm:$0xff] %vm76, 0.0
      %82 = vst.msk [vmem:[#allocation2 + $0x28] sm:$0xff] %vm76, 0.0
      %83 = vst.msk [vmem:[#allocation2 + $0x30] sm:$0xff] %vm76, 0.0
      %84 = vst.msk [vmem:[#allocation2 + $0x38] sm:$0xff] %vm76, 0.0
      %85 = vst.msk [vmem:[#allocation2 + $0x40] sm:$0xff] %vm76, 0.0
      %86 = vst.msk [vmem:[#allocation2 + $0x48] sm:$0xff] %vm76, 0.0
      %87 = vst.msk [vmem:[#allocation2 + $0x50] sm:$0xff] %vm76, 0.0
      %88 = vst.msk [vmem:[#allocation2 + $0x58] sm:$0xff] %vm76, 0.0
      %89 = vst.msk [vmem:[#allocation2 + $0x60] sm:$0xff] %vm76, 0.0
      %90 = vst.msk [vmem:[#allocation2 + $0x68] sm:$0xff] %vm76, 0.0
      %91 = vst.msk [vmem:[#allocation2 + $0x70] sm:$0xff] %vm76, 0.0
      %92 = vst.msk [vmem:[#allocation2 + $0x78] sm:$0xff] %vm76, 0.0
    $region37: #{resnet_forward.17} parent=1 // pred_fallthru
      _
    %v93 = vld [vmem:[#allocation2] sm:$0xff]
    %v94 = vld [vmem:[#allocation2 + $0x8] sm:$0xff]
    %v95 = vld [vmem:[#allocation2 + $0x10] sm:$0xff]
    %v96 = vld [vmem:[#allocation2 + $0x18] sm:$0xff]
    %v97 = vld [vmem:[#allocation2 + $0x20] sm:$0xff]
    %v98 = vld [vmem:[#allocation2 + $0x28] sm:$0xff]
    %v99 = vld [vmem:[#allocation2 + $0x30] sm:$0xff]
    %v100 = vld [vmem:[#allocation2 + $0x38] sm:$0xff]
    %v101 = vld [vmem:[#allocation2 + $0x40] sm:$0xff]
    %v102 = vld [vmem:[#allocation2 + $0x48] sm:$0xff]
    %v103 = vld [vmem:[#allocation2 + $0x50] sm:$0xff]
    %v104 = vld [vmem:[#allocation2 + $0x58] sm:$0xff]
    %v105 = vld [vmem:[#allocation2 + $0x60] sm:$0xff]
    %v106 = vld [vmem:[#allocation2 + $0x68] sm:$0xff]
    %v107 = vld [vmem:[#allocation2 + $0x70] sm:$0xff]
    %v108 = vld [vmem:[#allocation2 + $0x78] sm:$0xff]
    %v109 = vld [vmem:[#allocation3] sm:$0xff]
    %v110 = vld [vmem:[#allocation3 + $0x8] sm:$0xff]
    %v111 = vld [vmem:[#allocation3 + $0x10] sm:$0xf]
    %v112 = vld [vmem:[#allocation3 + $0x14] sm:$0xff]
    %v113 = vld [vmem:[#allocation3 + $0x1c] sm:$0xff]
    %v114 = vld [vmem:[#allocation3 + $0x24] sm:$0xf]
    %v115 = vld [vmem:[#allocation3 + $0x28] sm:$0xff]
    %v116 = vld [vmem:[#allocation3 + $0x30] sm:$0xff]
    %v117 = vld [vmem:[#allocation3 + $0x38] sm:$0xf]
    %v118 = vld [vmem:[#allocation3 + $0x3c] sm:$0xff]
    %v119 = vld [vmem:[#allocation3 + $0x44] sm:$0xff]
    %v120 = vld [vmem:[#allocation3 + $0x4c] sm:$0xf]
    %v121 = vld [vmem:[#allocation3 + $0x50] sm:$0xff]
    %v122 = vld [vmem:[#allocation3 + $0x58] sm:$0xff]
    %v123 = vld [vmem:[#allocation3 + $0x60] sm:$0xf]
    %v124 = vld [vmem:[#allocation3 + $0x64] sm:$0xff]
    %v125 = vld [vmem:[#allocation3 + $0x6c] sm:$0xff]
    %v126 = vld [vmem:[#allocation3 + $0x74] sm:$0xf]
    %v127 = vld [vmem:[#allocation3 + $0x78] sm:$0xff]
    %v128 = vld [vmem:[#allocation3 + $0x80] sm:$0xff]
    %v129 = vld [vmem:[#allocation3 + $0x88] sm:$0xf]
    %v130 = vld [vmem:[#allocation3 + $0x8c] sm:$0xff]
    %v131 = vld [vmem:[#allocation3 + $0x94] sm:$0xff]
    %v132 = vld [vmem:[#allocation3 + $0x9c] sm:$0xf]
    %v133 = vld [vmem:[#allocation3 + $0xa0] sm:$0xff]
    %v134 = vld [vmem:[#allocation3 + $0xa8] sm:$0xff]
    %v135 = vld [vmem:[#allocation3 + $0xb0] sm:$0xf]
    %v136 = vld [vmem:[#allocation3 + $0xb4] sm:$0xff]
    %v137 = vld [vmem:[#allocation3 + $0xbc] sm:$0xff]
    %v138 = vld [vmem:[#allocation3 + $0xc4] sm:$0xf]
    %v139 = vld [vmem:[#allocation3 + $0xc8] sm:$0xff]
    %v140 = vld [vmem:[#allocation3 + $0xd0] sm:$0xff]
    %v141 = vld [vmem:[#allocation3 + $0xd8] sm:$0xf]
    %v142 = vld [vmem:[#allocation3 + $0xdc] sm:$0xff]
    %v143 = vld [vmem:[#allocation3 + $0xe4] sm:$0xff]
    %v144 = vld [vmem:[#allocation3 + $0xec] sm:$0xf]
    %v145 = vld [vmem:[#allocation3 + $0xf0] sm:$0xff]
    %v146 = vld [vmem:[#allocation3 + $0xf8] sm:$0xff]
    %v147 = vld [vmem:[#allocation3 + $0x100] sm:$0xf]
    %v148 = vld [vmem:[#allocation3 + $0x104] sm:$0xff]
    %v149 = vld [vmem:[#allocation3 + $0x10c] sm:$0xff]
    %v150 = vld [vmem:[#allocation3 + $0x114] sm:$0xf]
    %v151 = vld [vmem:[#allocation3 + $0x118] sm:$0xff]
    %v152 = vld [vmem:[#allocation3 + $0x120] sm:$0xff]
    %v153 = vld [vmem:[#allocation3 + $0x128] sm:$0xf]
    %v154 = vld [vmem:[#allocation3 + $0x12c] sm:$0xff]
    %v155 = vld [vmem:[#allocation3 + $0x134] sm:$0xff]
    %v156 = vld [vmem:[#allocation3 + $0x13c] sm:$0xf]
    %v157 = vld [vmem:[#allocation6] sm:$0xf]
    %v158 = vld [vmem:[#allocation6 + $0x4] sm:$0xf]
    %v159 = vld [vmem:[#allocation6 + $0x8] sm:$0xf]
    %v160 = vld [vmem:[#allocation6 + $0xc] sm:$0xf]
    %v161 = vld [vmem:[#allocation6 + $0x10] sm:$0xf]
    %v162 = vld [vmem:[#allocation6 + $0x14] sm:$0xf]
    %v163 = vld [vmem:[#allocation6 + $0x18] sm:$0xf]
    %v164 = vld [vmem:[#allocation6 + $0x1c] sm:$0xf]
    %v165 = vld [vmem:[#allocation6 + $0x20] sm:$0xf]
    %v166 = vld [vmem:[#allocation6 + $0x24] sm:$0xf]
    %v167 = vld [vmem:[#allocation6 + $0x28] sm:$0xf]
    %v168 = vld [vmem:[#allocation6 + $0x2c] sm:$0xf]
    %v169 = vld [vmem:[#allocation6 + $0x30] sm:$0xf]
    %v170 = vld [vmem:[#allocation6 + $0x34] sm:$0xf]
    %v171 = vld [vmem:[#allocation6 + $0x38] sm:$0xf]
    %v172 = vld [vmem:[#allocation6 + $0x3c] sm:$0xf]
    %v173 = vld [vmem:[#allocation6 + $0x40] sm:$0xf]
    %v174 = vld [vmem:[#allocation6 + $0x44] sm:$0xf]
    %v175 = vld [vmem:[#allocation6 + $0x48] sm:$0xf]
    %v176 = vld [vmem:[#allocation6 + $0x4c] sm:$0xf]
    %v177 = vld [vmem:[#allocation6 + $0x50] sm:$0xf]
    %v178 = vld [vmem:[#allocation6 + $0x54] sm:$0xf]
    %v179 = vld [vmem:[#allocation6 + $0x58] sm:$0xf]
    %v180 = vld [vmem:[#allocation6 + $0x5c] sm:$0xf]
    %v181 = vld [vmem:[#allocation6 + $0x60] sm:$0xf]
    %v182 = vld [vmem:[#allocation6 + $0x64] sm:$0xf]
    %v183 = vld [vmem:[#allocation6 + $0x68] sm:$0xf]
    %v184 = vld [vmem:[#allocation6 + $0x6c] sm:$0xf]
    %v185 = vld [vmem:[#allocation6 + $0x70] sm:$0xf]
    %v186 = vld [vmem:[#allocation6 + $0x74] sm:$0xf]
    %v187 = vld [vmem:[#allocation6 + $0x78] sm:$0xf]
    %v188 = vld [vmem:[#allocation6 + $0x7c] sm:$0xf]
    %v189 = vld [vmem:[#allocation6 + $0x80] sm:$0xf]
    %v190 = vld [vmem:[#allocation6 + $0x84] sm:$0xf]
    %v191 = vld [vmem:[#allocation6 + $0x88] sm:$0xf]
    %v192 = vld [vmem:[#allocation6 + $0x8c] sm:$0xf]
    %v193 = vld [vmem:[#allocation6 + $0x90] sm:$0xf]
    %v194 = vld [vmem:[#allocation6 + $0x94] sm:$0xf]
    %v195 = vld [vmem:[#allocation6 + $0x98] sm:$0xf]
    %v196 = vld [vmem:[#allocation6 + $0x9c] sm:$0xf]
    %v197 = vld [vmem:[#allocation6 + $0xa0] sm:$0xf]
    %v198 = vld [vmem:[#allocation6 + $0xa4] sm:$0xf]
    %v199 = vld [vmem:[#allocation6 + $0xa8] sm:$0xf]
    %v200 = vld [vmem:[#allocation6 + $0xac] sm:$0xf]
    %v201 = vld [vmem:[#allocation6 + $0xb0] sm:$0xf]
    %v202 = vld [vmem:[#allocation6 + $0xb4] sm:$0xf]
    %v203 = vld [vmem:[#allocation6 + $0xb8] sm:$0xf]
    %v204 = vld [vmem:[#allocation6 + $0xbc] sm:$0xf]
    %v205 = vld [vmem:[#allocation6 + $0xc0] sm:$0xf]
    %v206 = vld [vmem:[#allocation6 + $0xc4] sm:$0xf]
    %v207 = vld [vmem:[#allocation6 + $0xc8] sm:$0xf]
    %v208 = vld [vmem:[#allocation6 + $0xcc] sm:$0xf]
    %v209 = vld [vmem:[#allocation6 + $0xd0] sm:$0xf]
    %v210 = vld [vmem:[#allocation6 + $0xd4] sm:$0xf]
    %v211 = vld [vmem:[#allocation6 + $0xd8] sm:$0xf]
    %v212 = vld [vmem:[#allocation6 + $0xdc] sm:$0xf]
    %v213 = vld [vmem:[#allocation6 + $0xe0] sm:$0xf]
    %v214 = vld [vmem:[#allocation6 + $0xe4] sm:$0xf]
    %v215 = vld [vmem:[#allocation6 + $0xe8] sm:$0xf]
    %v216 = vld [vmem:[#allocation6 + $0xec] sm:$0xf]
    %v217 = vld [vmem:[#allocation6 + $0xf0] sm:$0xf]
    %v218 = vld [vmem:[#allocation6 + $0xf4] sm:$0xf]
    %v219 = vld [vmem:[#allocation6 + $0xf8] sm:$0xf]
    %v220 = vld [vmem:[#allocation6 + $0xfc] sm:$0xf]
    %v221 = vld [vmem:[#allocation6 + $0x100] sm:$0xf]
    %v222 = vld [vmem:[#allocation6 + $0x104] sm:$0xf]
    %v223 = vld [vmem:[#allocation6 + $0x108] sm:$0xf]
    %v224 = vld [vmem:[#allocation6 + $0x10c] sm:$0xf]
    %v225 = vld [vmem:[#allocation6 + $0x110] sm:$0xf]
    %v226 = vld [vmem:[#allocation6 + $0x114] sm:$0xf]
    %v227 = vld [vmem:[#allocation6 + $0x118] sm:$0xf]
    %v228 = vld [vmem:[#allocation6 + $0x11c] sm:$0xf]
    %v277 = vunpack.c.l.b16 %v109
    %v278 = vunpack.c.h.b16 %v109
    %v279 = vunpack.c.l.b16 %v110
    %v280 = vunpack.c.h.b16 %v110
    %v281 = vunpack.c.l.b16 %v111
    %v282 = vunpack.c.l.b16 %v112
    %v283 = vunpack.c.h.b16 %v112
    %v284 = vunpack.c.l.b16 %v113
    %v285 = vunpack.c.h.b16 %v113
    %v286 = vunpack.c.l.b16 %v114
    %v287 = vunpack.c.l.b16 %v115
    %v288 = vunpack.c.h.b16 %v115
    %v289 = vunpack.c.l.b16 %v116
    %v290 = vunpack.c.h.b16 %v116
    %v291 = vunpack.c.l.b16 %v117
    %v292 = vunpack.c.l.b16 %v118
    %v293 = vunpack.c.h.b16 %v118
    %v294 = vunpack.c.l.b16 %v119
    %v295 = vunpack.c.h.b16 %v119
    %v296 = vunpack.c.l.b16 %v120
    %v297 = vunpack.c.l.b16 %v121
    %v298 = vunpack.c.h.b16 %v121
    %v299 = vunpack.c.l.b16 %v122
    %v300 = vunpack.c.h.b16 %v122
    %v301 = vunpack.c.l.b16 %v123
    %v302 = vunpack.c.l.b16 %v124
    %v303 = vunpack.c.h.b16 %v124
    %v304 = vunpack.c.l.b16 %v125
    %v305 = vunpack.c.h.b16 %v125
    %v306 = vunpack.c.l.b16 %v126
    %v307 = vunpack.c.l.b16 %v127
    %v308 = vunpack.c.h.b16 %v127
    %v309 = vunpack.c.l.b16 %v128
    %v310 = vunpack.c.h.b16 %v128
    %v311 = vunpack.c.l.b16 %v129
    %v312 = vunpack.c.l.b16 %v130
    %v313 = vunpack.c.h.b16 %v130
    %v314 = vunpack.c.l.b16 %v131
    %v315 = vunpack.c.h.b16 %v131
    %v316 = vunpack.c.l.b16 %v132
    %v317 = vunpack.c.l.b16 %v133
    %v318 = vunpack.c.h.b16 %v133
    %v319 = vunpack.c.l.b16 %v134
    %v320 = vunpack.c.h.b16 %v134
    %v321 = vunpack.c.l.b16 %v135
    %v322 = vunpack.c.l.b16 %v136
    %v323 = vunpack.c.h.b16 %v136
    %v324 = vunpack.c.l.b16 %v137
    %v325 = vunpack.c.h.b16 %v137
    %v326 = vunpack.c.l.b16 %v138
    %v327 = vunpack.c.l.b16 %v139
    %v328 = vunpack.c.h.b16 %v139
    %v329 = vunpack.c.l.b16 %v140
    %v330 = vunpack.c.h.b16 %v140
    %v331 = vunpack.c.l.b16 %v141
    %v332 = vunpack.c.l.b16 %v142
    %v333 = vunpack.c.h.b16 %v142
    %v334 = vunpack.c.l.b16 %v143
    %v335 = vunpack.c.h.b16 %v143
    %v336 = vunpack.c.l.b16 %v144
    %v337 = vunpack.c.l.b16 %v145
    %v338 = vunpack.c.h.b16 %v145
    %v339 = vunpack.c.l.b16 %v146
    %v340 = vunpack.c.h.b16 %v146
    %v341 = vunpack.c.l.b16 %v147
    %v342 = vunpack.c.l.b16 %v148
    %v343 = vunpack.c.h.b16 %v148
    %v344 = vunpack.c.l.b16 %v149
    %v345 = vunpack.c.h.b16 %v149
    %v346 = vunpack.c.l.b16 %v150
    %v347 = vunpack.c.l.b16 %v151
    %v348 = vunpack.c.h.b16 %v151
    %v349 = vunpack.c.l.b16 %v152
    %v350 = vunpack.c.h.b16 %v152
    %v351 = vunpack.c.l.b16 %v153
    %v352 = vunpack.c.l.b16 %v154
    %v353 = vunpack.c.h.b16 %v154
    %v354 = vunpack.c.l.b16 %v155
    %v355 = vunpack.c.h.b16 %v155
    %v356 = vunpack.c.l.b16 %v156
    %v357 = vpack.c.b16 %v282, %v277
    %v358 = vpack.c.b16 %v283, %v278
    %v359 = vpack.c.b16 %v284, %v279
    %v360 = vpack.c.b16 %v285, %v280
    %v361 = vpack.c.b16 %v286, %v281
    %v362 = vpack.c.b16 %v292, %v287
    %v363 = vpack.c.b16 %v293, %v288
    %v364 = vpack.c.b16 %v294, %v289
    %v365 = vpack.c.b16 %v295, %v290
    %v366 = vpack.c.b16 %v296, %v291
    %v367 = vpack.c.b16 %v302, %v297
    %v368 = vpack.c.b16 %v303, %v298
    %v369 = vpack.c.b16 %v304, %v299
    %v370 = vpack.c.b16 %v305, %v300
    %v371 = vpack.c.b16 %v306, %v301
    %v372 = vpack.c.b16 %v312, %v307
    %v373 = vpack.c.b16 %v313, %v308
    %v374 = vpack.c.b16 %v314, %v309
    %v375 = vpack.c.b16 %v315, %v310
    %v376 = vpack.c.b16 %v316, %v311
    %v377 = vpack.c.b16 %v322, %v317
    %v378 = vpack.c.b16 %v323, %v318
    %v379 = vpack.c.b16 %v324, %v319
    %v380 = vpack.c.b16 %v325, %v320
    %v381 = vpack.c.b16 %v326, %v321
    %v382 = vpack.c.b16 %v332, %v327
    %v383 = vpack.c.b16 %v333, %v328
    %v384 = vpack.c.b16 %v334, %v329
    %v385 = vpack.c.b16 %v335, %v330
    %v386 = vpack.c.b16 %v336, %v331
    %v387 = vpack.c.b16 %v342, %v337
    %v388 = vpack.c.b16 %v343, %v338
    %v389 = vpack.c.b16 %v344, %v339
    %v390 = vpack.c.b16 %v345, %v340
    %v391 = vpack.c.b16 %v346, %v341
    %v392 = vpack.c.b16 %v352, %v347
    %v393 = vpack.c.b16 %v353, %v348
    %v394 = vpack.c.b16 %v354, %v349
    %v395 = vpack.c.b16 %v355, %v350
    %v396 = vpack.c.b16 %v356, %v351
    %v501 = vunpack.c.l.b16 %v157
    %v502 = vunpack.c.l.b16 %v158
    %v503 = vunpack.c.l.b16 %v159
    %v504 = vunpack.c.l.b16 %v160
    %v505 = vunpack.c.l.b16 %v161
    %v506 = vunpack.c.l.b16 %v162
    %v507 = vunpack.c.l.b16 %v163
    %v508 = vunpack.c.l.b16 %v164
    %v509 = vunpack.c.l.b16 %v165
    %v510 = vunpack.c.l.b16 %v166
    %v511 = vunpack.c.l.b16 %v167
    %v512 = vunpack.c.l.b16 %v168
    %v513 = vunpack.c.l.b16 %v169
    %v514 = vunpack.c.l.b16 %v170
    %v515 = vunpack.c.l.b16 %v171
    %v516 = vunpack.c.l.b16 %v172
    %v517 = vunpack.c.l.b16 %v173
    %v518 = vunpack.c.l.b16 %v174
    %v519 = vunpack.c.l.b16 %v175
    %v520 = vunpack.c.l.b16 %v176
    %v521 = vunpack.c.l.b16 %v177
    %v522 = vunpack.c.l.b16 %v178
    %v523 = vunpack.c.l.b16 %v179
    %v524 = vunpack.c.l.b16 %v180
    %v525 = vunpack.c.l.b16 %v181
    %v526 = vunpack.c.l.b16 %v182
    %v527 = vunpack.c.l.b16 %v183
    %v528 = vunpack.c.l.b16 %v184
    %v529 = vunpack.c.l.b16 %v185
    %v530 = vunpack.c.l.b16 %v186
    %v531 = vunpack.c.l.b16 %v187
    %v532 = vunpack.c.l.b16 %v188
    %v533 = vunpack.c.l.b16 %v189
    %v534 = vunpack.c.l.b16 %v190
    %v535 = vunpack.c.l.b16 %v191
    %v536 = vunpack.c.l.b16 %v192
    %v537 = vunpack.c.l.b16 %v193
    %v538 = vunpack.c.l.b16 %v194
    %v539 = vunpack.c.l.b16 %v195
    %v540 = vunpack.c.l.b16 %v196
    %v541 = vunpack.c.l.b16 %v197
    %v542 = vunpack.c.l.b16 %v198
    %v543 = vunpack.c.l.b16 %v199
    %v544 = vunpack.c.l.b16 %v200
    %v545 = vunpack.c.l.b16 %v201
    %v546 = vunpack.c.l.b16 %v202
    %v547 = vunpack.c.l.b16 %v203
    %v548 = vunpack.c.l.b16 %v204
    %v549 = vunpack.c.l.b16 %v205
    %v550 = vunpack.c.l.b16 %v206
    %v551 = vunpack.c.l.b16 %v207
    %v552 = vunpack.c.l.b16 %v208
    %v553 = vunpack.c.l.b16 %v209
    %v554 = vunpack.c.l.b16 %v210
    %v555 = vunpack.c.l.b16 %v211
    %v556 = vunpack.c.l.b16 %v212
    %v557 = vunpack.c.l.b16 %v213
    %v558 = vunpack.c.l.b16 %v214
    %v559 = vunpack.c.l.b16 %v215
    %v560 = vunpack.c.l.b16 %v216
    %v561 = vunpack.c.l.b16 %v217
    %v562 = vunpack.c.l.b16 %v218
    %v563 = vunpack.c.l.b16 %v219
    %v564 = vunpack.c.l.b16 %v220
    %v565 = vunpack.c.l.b16 %v221
    %v566 = vunpack.c.l.b16 %v222
    %v567 = vunpack.c.l.b16 %v223
    %v568 = vunpack.c.l.b16 %v224
    %v569 = vunpack.c.l.b16 %v225
    %v570 = vunpack.c.l.b16 %v226
    %v571 = vunpack.c.l.b16 %v227
    %v572 = vunpack.c.l.b16 %v228
    %v573 = vpack.c.b16 %v502, %v501
    %v574 = vpack.c.b16 %v504, %v503
    %v575 = vpack.c.b16 %v506, %v505
    %v576 = vpack.c.b16 %v508, %v507
    %v577 = vpack.c.b16 %v510, %v509
    %v578 = vpack.c.b16 %v512, %v511
    %v579 = vpack.c.b16 %v514, %v513
    %v580 = vpack.c.b16 %v516, %v515
    %v581 = vpack.c.b16 %v518, %v517
    %v582 = vpack.c.b16 %v520, %v519
    %v583 = vpack.c.b16 %v522, %v521
    %v584 = vpack.c.b16 %v524, %v523
    %v585 = vpack.c.b16 %v526, %v525
    %v586 = vpack.c.b16 %v528, %v527
    %v587 = vpack.c.b16 %v530, %v529
    %v588 = vpack.c.b16 %v532, %v531
    %v589 = vpack.c.b16 %v534, %v533
    %v590 = vpack.c.b16 %v536, %v535
    %v591 = vpack.c.b16 %v538, %v537
    %v592 = vpack.c.b16 %v540, %v539
    %v593 = vpack.c.b16 %v542, %v541
    %v594 = vpack.c.b16 %v544, %v543
    %v595 = vpack.c.b16 %v546, %v545
    %v596 = vpack.c.b16 %v548, %v547
    %v597 = vpack.c.b16 %v550, %v549
    %v598 = vpack.c.b16 %v552, %v551
    %v599 = vpack.c.b16 %v554, %v553
    %v600 = vpack.c.b16 %v556, %v555
    %v601 = vpack.c.b16 %v558, %v557
    %v602 = vpack.c.b16 %v560, %v559
    %v603 = vpack.c.b16 %v562, %v561
    %v604 = vpack.c.b16 %v564, %v563
    %v605 = vpack.c.b16 %v566, %v565
    %v606 = vpack.c.b16 %v568, %v567
    %v607 = vpack.c.b16 %v570, %v569
    %v608 = vpack.c.b16 %v572, %v571
    %vm645 = vcmask 523264
    %v647 = vsel %vm645, %v361, 0
    %v650 = vsel %vm645, %v366, 0
    %v653 = vsel %vm645, %v371, 0
    %v656 = vsel %vm645, %v376, 0
    %v659 = vsel %vm645, %v381, 0
    %v662 = vsel %vm645, %v386, 0
    %v665 = vsel %vm645, %v391, 0
    %v668 = vsel %vm645, %v396, 0
    %670 = vmatprep.subr.bf16.mxu0 0
    %671 = vmatpush1.bf16.msra.mxu0 %v573
    %672 = vmatprep.subr.bf16.mxu0 0
    %673 = vmatpush1.bf16.msra.mxu0 %v574
    %674 = vmatprep.subr.bf16.mxu0 0
    %675 = vmatpush1.bf16.msra.mxu0 %v575
    %676 = vmatprep.subr.bf16.mxu0 0
    %677 = vmatpush1.bf16.msra.mxu0 %v576
    %678 = vmatprep.subr.bf16.mxu0 0
    %679 = vmatpush1.bf16.msra.mxu0 %v577
    %680 = vmatprep.subr.bf16.mxu0 0
    %681 = vmatpush1.bf16.msra.mxu0 %v578
    %682 = vmatprep.subr.bf16.mxu0 0
    %683 = vmatpush1.bf16.msra.mxu0 %v579
    %684 = vmatprep.subr.bf16.mxu0 0
    %685 = vmatpush1.bf16.msra.mxu0 %v580
    %686 = vmatprep.subr.bf16.mxu0 0
    %687 = vmatpush1.bf16.msra.mxu0 %v581
    %688 = vmatprep.subr.bf16.mxu0 0
    %689 = vmatpush1.bf16.msra.mxu0 %v582
    %690 = vmatprep.subr.bf16.mxu0 0
    %691 = vmatpush1.bf16.msra.mxu0 %v583
    %692 = vmatprep.subr.bf16.mxu0 0
    %693 = vmatpush1.bf16.msra.mxu0 %v584
    %694 = vmatprep.subr.bf16.mxu0 0
    %695 = vmatpush1.bf16.msra.mxu0 %v585
    %696 = vmatprep.subr.bf16.mxu0 0
    %697 = vmatpush1.bf16.msra.mxu0 %v586
    %698 = vmatprep.subr.bf16.mxu0 0
    %699 = vmatpush1.bf16.msra.mxu0 %v587
    %700 = vmatprep.subr.bf16.mxu0 0
    %701 = vmatpush1.bf16.msra.mxu0 %v588
    %702 = vmatprep.mubr.bf16.mxu0 %v358
    %703 = vmatmul.mubr.bf16.gmra.mrb[0].mxu0 %v357
    %v704 = vpop.f32.mrb[0].mxu0
    %v705 = vadd.f32 0.0, %v704
    %v706 = vpop.f32.mrb[0].mxu0
    %v707 = vpop.f32.mrb[0].mxu0
    %v708 = vadd.f32 0.0, %v707
    %v709 = vpop.f32.mrb[0].mxu0
    %710 = vmatprep.mubr.bf16.mxu0 %v363
    %711 = vmatmul.mubr.bf16.gmra.mrb[0].mxu0 %v362
    %v712 = vpop.f32.mrb[0].mxu0
    %v713 = vadd.f32 0.0, %v712
    %v714 = vpop.f32.mrb[0].mxu0
    %v715 = vpop.f32.mrb[0].mxu0
    %v716 = vadd.f32 0.0, %v715
    %v717 = vpop.f32.mrb[0].mxu0
    %718 = vmatprep.mubr.bf16.mxu0 %v368
    %719 = vmatmul.mubr.bf16.gmra.mrb[0].mxu0 %v367
    %v720 = vpop.f32.mrb[0].mxu0
    %v721 = vadd.f32 0.0, %v720
    %v722 = vpop.f32.mrb[0].mxu0
    %v723 = vpop.f32.mrb[0].mxu0
    %v724 = vadd.f32 0.0, %v723
    %v725 = vpop.f32.mrb[0].mxu0
    %726 = vmatprep.mubr.bf16.mxu0 %v373
    %727 = vmatmul.mubr.bf16.gmra.mrb[0].mxu0 %v372
    %v728 = vpop.f32.mrb[0].mxu0
    %v729 = vadd.f32 0.0, %v728
    %v730 = vpop.f32.mrb[0].mxu0
    %v731 = vpop.f32.mrb[0].mxu0
    %v732 = vadd.f32 0.0, %v731
    %v733 = vpop.f32.mrb[0].mxu0
    %734 = vmatprep.mubr.bf16.mxu0 %v378
    %735 = vmatmul.mubr.bf16.gmra.mrb[0].mxu0 %v377
    %v736 = vpop.f32.mrb[0].mxu0
    %v737 = vadd.f32 0.0, %v736
    %v738 = vpop.f32.mrb[0].mxu0
    %v739 = vpop.f32.mrb[0].mxu0
    %v740 = vadd.f32 0.0, %v739
    %v741 = vpop.f32.mrb[0].mxu0
    %742 = vmatprep.mubr.bf16.mxu0 %v383
    %743 = vmatmul.mubr.bf16.gmra.mrb[0].mxu0 %v382
    %v744 = vpop.f32.mrb[0].mxu0
    %v745 = vadd.f32 0.0, %v744
    %v746 = vpop.f32.mrb[0].mxu0
    %v747 = vpop.f32.mrb[0].mxu0
    %v748 = vadd.f32 0.0, %v747
    %v749 = vpop.f32.mrb[0].mxu0
    %750 = vmatprep.mubr.bf16.mxu0 %v388
    %751 = vmatmul.mubr.bf16.gmra.mrb[0].mxu0 %v387
    %v752 = vpop.f32.mrb[0].mxu0
    %v753 = vadd.f32 0.0, %v752
    %v754 = vpop.f32.mrb[0].mxu0
    %v755 = vpop.f32.mrb[0].mxu0
    %v756 = vadd.f32 0.0, %v755
    %v757 = vpop.f32.mrb[0].mxu0
    %758 = vmatprep.mubr.bf16.mxu0 %v393
    %759 = vmatmul.mubr.bf16.gmra.mrb[0].mxu0 %v392
    %v760 = vpop.f32.mrb[0].mxu0
    %v761 = vadd.f32 0.0, %v760
    %v762 = vpop.f32.mrb[0].mxu0
    %v763 = vpop.f32.mrb[0].mxu0
    %v764 = vadd.f32 0.0, %v763
    %v765 = vpop.f32.mrb[0].mxu0
    %766 = vdwg.mxu0
    %767 = vmatprep.subr.bf16.mxu0 0
    %768 = vmatpush1.bf16.msra.mxu0 %v589
    %769 = vmatprep.subr.bf16.mxu0 0
    %770 = vmatpush1.bf16.msra.mxu0 %v590
    %771 = vmatprep.subr.bf16.mxu0 0
    %772 = vmatpush1.bf16.msra.mxu0 %v591
    %773 = vmatprep.subr.bf16.mxu0 0
    %774 = vmatpush1.bf16.msra.mxu0 %v592
    %775 = vmatprep.subr.bf16.mxu0 0
    %776 = vmatpush1.bf16.msra.mxu0 %v593
    %777 = vmatprep.subr.bf16.mxu0 0
    %778 = vmatpush1.bf16.msra.mxu0 %v594
    %779 = vmatprep.subr.bf16.mxu0 0
    %780 = vmatpush1.bf16.msra.mxu0 %v595
    %781 = vmatprep.subr.bf16.mxu0 0
    %782 = vmatpush1.bf16.msra.mxu0 %v596
    %783 = vmatprep.subr.bf16.mxu0 0
    %784 = vmatpush1.bf16.msra.mxu0 %v597
    %785 = vmatprep.subr.bf16.mxu0 0
    %786 = vmatpush1.bf16.msra.mxu0 %v598
    %787 = vmatprep.subr.bf16.mxu0 0
    %788 = vmatpush1.bf16.msra.mxu0 %v599
    %789 = vmatprep.subr.bf16.mxu0 0
    %790 = vmatpush1.bf16.msra.mxu0 %v600
    %791 = vmatprep.subr.bf16.mxu0 0
    %792 = vmatpush1.bf16.msra.mxu0 %v601
    %793 = vmatprep.subr.bf16.mxu0 0
    %794 = vmatpush1.bf16.msra.mxu0 %v602
    %795 = vmatprep.subr.bf16.mxu0 0
    %796 = vmatpush1.bf16.msra.mxu0 %v603
    %797 = vmatprep.subr.bf16.mxu0 0
    %798 = vmatpush1.bf16.msra.mxu0 %v604
    %799 = vmatprep.mubr.bf16.mxu0 %v360
    %800 = vmatmul.mubr.bf16.gmra.mrb[0].mxu0 %v359
    %v801 = vpop.f32.mrb[0].mxu0
    %v802 = vadd.f32 %v705, %v801
    %v803 = vpop.f32.mrb[0].mxu0
    %v804 = vpop.f32.mrb[0].mxu0
    %v805 = vadd.f32 %v708, %v804
    %v806 = vpop.f32.mrb[0].mxu0
    %807 = vmatprep.mubr.bf16.mxu0 %v365
    %808 = vmatmul.mubr.bf16.gmra.mrb[0].mxu0 %v364
    %v809 = vpop.f32.mrb[0].mxu0
    %v810 = vadd.f32 %v713, %v809
    %v811 = vpop.f32.mrb[0].mxu0
    %v812 = vpop.f32.mrb[0].mxu0
    %v813 = vadd.f32 %v716, %v812
    %v814 = vpop.f32.mrb[0].mxu0
    %815 = vmatprep.mubr.bf16.mxu0 %v370
    %816 = vmatmul.mubr.bf16.gmra.mrb[0].mxu0 %v369
    %v817 = vpop.f32.mrb[0].mxu0
    %v818 = vadd.f32 %v721, %v817
    %v819 = vpop.f32.mrb[0].mxu0
    %v820 = vpop.f32.mrb[0].mxu0
    %v821 = vadd.f32 %v724, %v820
    %v822 = vpop.f32.mrb[0].mxu0
    %823 = vmatprep.mubr.bf16.mxu0 %v375
    %824 = vmatmul.mubr.bf16.gmra.mrb[0].mxu0 %v374
    %v825 = vpop.f32.mrb[0].mxu0
    %v826 = vadd.f32 %v729, %v825
    %v827 = vpop.f32.mrb[0].mxu0
    %v828 = vpop.f32.mrb[0].mxu0
    %v829 = vadd.f32 %v732, %v828
    %v830 = vpop.f32.mrb[0].mxu0
    %831 = vmatprep.mubr.bf16.mxu0 %v380
    %832 = vmatmul.mubr.bf16.gmra.mrb[0].mxu0 %v379
    %v833 = vpop.f32.mrb[0].mxu0
    %v834 = vadd.f32 %v737, %v833
    %v835 = vpop.f32.mrb[0].mxu0
    %v836 = vpop.f32.mrb[0].mxu0
    %v837 = vadd.f32 %v740, %v836
    %v838 = vpop.f32.mrb[0].mxu0
    %839 = vmatprep.mubr.bf16.mxu0 %v385
    %840 = vmatmul.mubr.bf16.gmra.mrb[0].mxu0 %v384
    %v841 = vpop.f32.mrb[0].mxu0
    %v842 = vadd.f32 %v745, %v841
    %v843 = vpop.f32.mrb[0].mxu0
    %v844 = vpop.f32.mrb[0].mxu0
    %v845 = vadd.f32 %v748, %v844
    %v846 = vpop.f32.mrb[0].mxu0
    %847 = vmatprep.mubr.bf16.mxu0 %v390
    %848 = vmatmul.mubr.bf16.gmra.mrb[0].mxu0 %v389
    %v849 = vpop.f32.mrb[0].mxu0
    %v850 = vadd.f32 %v753, %v849
    %v851 = vpop.f32.mrb[0].mxu0
    %v852 = vpop.f32.mrb[0].mxu0
    %v853 = vadd.f32 %v756, %v852
    %v854 = vpop.f32.mrb[0].mxu0
    %855 = vmatprep.mubr.bf16.mxu0 %v395
    %856 = vmatmul.mubr.bf16.gmra.mrb[0].mxu0 %v394
    %v857 = vpop.f32.mrb[0].mxu0
    %v858 = vadd.f32 %v761, %v857
    %v859 = vpop.f32.mrb[0].mxu0
    %v860 = vpop.f32.mrb[0].mxu0
    %v861 = vadd.f32 %v764, %v860
    %v862 = vpop.f32.mrb[0].mxu0
    %863 = vdwg.mxu0
    %864 = vmatprep.subr.bf16.mxu0 0
    %865 = vmatpush1.bf16.msra.mxu0 %v605
    %866 = vmatprep.subr.bf16.mxu0 0
    %867 = vmatpush1.bf16.msra.mxu0 %v606
    %868 = vmatprep.subr.bf16.mxu0 0
    %869 = vmatpush1.bf16.msra.mxu0 %v607
    %870 = vmatprep.subr.bf16.mxu0 0
    %871 = vmatpush1.bf16.msra.mxu0 %v608
    %872 = vmatprep.subr.bf16.mxu0 0
    %873 = vmatpush1.bf16.msra.mxu0 0
    %874 = vmatprep.subr.bf16.mxu0 0
    %875 = vmatpush1.bf16.msra.mxu0 0
    %876 = vmatprep.subr.bf16.mxu0 0
    %877 = vmatpush1.bf16.msra.mxu0 0
    %878 = vmatprep.subr.bf16.mxu0 0
    %879 = vmatpush1.bf16.msra.mxu0 0
    %880 = vmatprep.subr.bf16.mxu0 0
    %881 = vmatpush1.bf16.msra.mxu0 0
    %882 = vmatprep.subr.bf16.mxu0 0
    %883 = vmatpush1.bf16.msra.mxu0 0
    %884 = vmatprep.subr.bf16.mxu0 0
    %885 = vmatpush1.bf16.msra.mxu0 0
    %886 = vmatprep.subr.bf16.mxu0 0
    %887 = vmatpush1.bf16.msra.mxu0 0
    %888 = vmatprep.subr.bf16.mxu0 0
    %889 = vmatpush1.bf16.msra.mxu0 0
    %890 = vmatprep.subr.bf16.mxu0 0
    %891 = vmatpush1.bf16.msra.mxu0 0
    %892 = vmatprep.subr.bf16.mxu0 0
    %893 = vmatpush1.bf16.msra.mxu0 0
    %894 = vmatprep.subr.bf16.mxu0 0
    %895 = vmatpush1.bf16.msra.mxu0 0
    %896 = vmatprep.mubr.bf16.mxu0 0
    %897 = vmatmul.mubr.bf16.gmra.mrb[0].mxu0 %v647
    %v898 = vpop.f32.mrb[0].mxu0
    %v899 = vadd.f32 %v802, %v898
    %v900 = vpop.f32.mrb[0].mxu0
    %v901 = vpop.f32.mrb[0].mxu0
    %v902 = vadd.f32 %v805, %v901
    %v903 = vpop.f32.mrb[0].mxu0
    %904 = vmatprep.mubr.bf16.mxu0 0
    %905 = vmatmul.mubr.bf16.gmra.mrb[0].mxu0 %v650
    %v906 = vpop.f32.mrb[0].mxu0
    %v907 = vadd.f32 %v810, %v906
    %v908 = vpop.f32.mrb[0].mxu0
    %v909 = vpop.f32.mrb[0].mxu0
    %v910 = vadd.f32 %v813, %v909
    %v911 = vpop.f32.mrb[0].mxu0
    %912 = vmatprep.mubr.bf16.mxu0 0
    %913 = vmatmul.mubr.bf16.gmra.mrb[0].mxu0 %v653
    %v914 = vpop.f32.mrb[0].mxu0
    %v915 = vadd.f32 %v818, %v914
    %v916 = vpop.f32.mrb[0].mxu0
    %v917 = vpop.f32.mrb[0].mxu0
    %v918 = vadd.f32 %v821, %v917
    %v919 = vpop.f32.mrb[0].mxu0
    %920 = vmatprep.mubr.bf16.mxu0 0
    %921 = vmatmul.mubr.bf16.gmra.mrb[0].mxu0 %v656
    %v922 = vpop.f32.mrb[0].mxu0
    %v923 = vadd.f32 %v826, %v922
    %v924 = vpop.f32.mrb[0].mxu0
    %v925 = vpop.f32.mrb[0].mxu0
    %v926 = vadd.f32 %v829, %v925
    %v927 = vpop.f32.mrb[0].mxu0
    %928 = vmatprep.mubr.bf16.mxu0 0
    %929 = vmatmul.mubr.bf16.gmra.mrb[0].mxu0 %v659
    %v930 = vpop.f32.mrb[0].mxu0
    %v931 = vadd.f32 %v834, %v930
    %v932 = vpop.f32.mrb[0].mxu0
    %v933 = vpop.f32.mrb[0].mxu0
    %v934 = vadd.f32 %v837, %v933
    %v935 = vpop.f32.mrb[0].mxu0
    %936 = vmatprep.mubr.bf16.mxu0 0
    %937 = vmatmul.mubr.bf16.gmra.mrb[0].mxu0 %v662
    %v938 = vpop.f32.mrb[0].mxu0
    %v939 = vadd.f32 %v842, %v938
    %v940 = vpop.f32.mrb[0].mxu0
    %v941 = vpop.f32.mrb[0].mxu0
    %v942 = vadd.f32 %v845, %v941
    %v943 = vpop.f32.mrb[0].mxu0
    %944 = vmatprep.mubr.bf16.mxu0 0
    %945 = vmatmul.mubr.bf16.gmra.mrb[0].mxu0 %v665
    %v946 = vpop.f32.mrb[0].mxu0
    %v947 = vadd.f32 %v850, %v946
    %v948 = vpop.f32.mrb[0].mxu0
    %v949 = vpop.f32.mrb[0].mxu0
    %v950 = vadd.f32 %v853, %v949
    %v951 = vpop.f32.mrb[0].mxu0
    %952 = vmatprep.mubr.bf16.mxu0 0
    %953 = vmatmul.mubr.bf16.gmra.mrb[0].mxu0 %v668
    %v954 = vpop.f32.mrb[0].mxu0
    %v955 = vadd.f32 %v858, %v954
    %v956 = vpop.f32.mrb[0].mxu0
    %v957 = vpop.f32.mrb[0].mxu0
    %v958 = vadd.f32 %v861, %v957
    %v959 = vpop.f32.mrb[0].mxu0
    %960 = vdwg.mxu0
    %v961 = vadd.f32 %v93, %v899
    %v962 = vadd.f32 %v94, %v902
    %v963 = vadd.f32 %v95, %v907
    %v964 = vadd.f32 %v96, %v910
    %v965 = vadd.f32 %v97, %v915
    %v966 = vadd.f32 %v98, %v918
    %v967 = vadd.f32 %v99, %v923
    %v968 = vadd.f32 %v100, %v926
    %v969 = vadd.f32 %v101, %v931
    %v970 = vadd.f32 %v102, %v934
    %v971 = vadd.f32 %v103, %v939
    %v972 = vadd.f32 %v104, %v942
    %v973 = vadd.f32 %v105, %v947
    %v974 = vadd.f32 %v106, %v950
    %v975 = vadd.f32 %v107, %v955
    %v976 = vadd.f32 %v108, %v958
    %977 = vst.msk [vmem:[#allocation2] sm:$0xff] %vm645, %v961
    %978 = vst.msk [vmem:[#allocation2 + $0x8] sm:$0xff] %vm645, %v962
    %979 = vst.msk [vmem:[#allocation2 + $0x10] sm:$0xff] %vm645, %v963
    %980 = vst.msk [vmem:[#allocation2 + $0x18] sm:$0xff] %vm645, %v964
    %981 = vst.msk [vmem:[#allocation2 + $0x20] sm:$0xff] %vm645, %v965
    %982 = vst.msk [vmem:[#allocation2 + $0x28] sm:$0xff] %vm645, %v966
    %983 = vst.msk [vmem:[#allocation2 + $0x30] sm:$0xff] %vm645, %v967
    %984 = vst.msk [vmem:[#allocation2 + $0x38] sm:$0xff] %vm645, %v968
    %985 = vst.msk [vmem:[#allocation2 + $0x40] sm:$0xff] %vm645, %v969
    %986 = vst.msk [vmem:[#allocation2 + $0x48] sm:$0xff] %vm645, %v970
    %987 = vst.msk [vmem:[#allocation2 + $0x50] sm:$0xff] %vm645, %v971
    %988 = vst.msk [vmem:[#allocation2 + $0x58] sm:$0xff] %vm645, %v972
    %989 = vst.msk [vmem:[#allocation2 + $0x60] sm:$0xff] %vm645, %v973
    %990 = vst.msk [vmem:[#allocation2 + $0x68] sm:$0xff] %vm645, %v974
    %991 = vst.msk [vmem:[#allocation2 + $0x70] sm:$0xff] %vm645, %v975
    %992 = vst.msk [vmem:[#allocation2 + $0x78] sm:$0xff] %vm645, %v976
    // Predicated region
    $region38: #{resnet_forward.17} parent=1 // pred_check
      %p993 = pneg %p72
    $region39: #{resnet_forward.17} parent=1 // pred_check_branch
      %995 = sbr.rel (%p993) target = $region41
    $region40: #{resnet_forward.17} parent=1 // pred_region
      %v996 = vld [vmem:[#allocation2] sm:$0xff]
      %v997 = vld [vmem:[#allocation2 + $0x8] sm:$0xff]
      %v998 = vld [vmem:[#allocation2 + $0x10] sm:$0xff]
      %v999 = vld [vmem:[#allocation2 + $0x18] sm:$0xff]
      %v1000 = vld [vmem:[#allocation2 + $0x20] sm:$0xff]
      %v1001 = vld [vmem:[#allocation2 + $0x28] sm:$0xff]
      %v1002 = vld [vmem:[#allocation2 + $0x30] sm:$0xff]
      %v1003 = vld [vmem:[#allocation2 + $0x38] sm:$0xff]
      %v1004 = vld [vmem:[#allocation2 + $0x40] sm:$0xff]
      %v1005 = vld [vmem:[#allocation2 + $0x48] sm:$0xff]
      %v1006 = vld [vmem:[#allocation2 + $0x50] sm:$0xff]
      %v1007 = vld [vmem:[#allocation2 + $0x58] sm:$0xff]
      %v1008 = vld [vmem:[#allocation2 + $0x60] sm:$0xff]
      %v1009 = vld [vmem:[#allocation2 + $0x68] sm:$0xff]
      %v1010 = vld [vmem:[#allocation2 + $0x70] sm:$0xff]
      %v1011 = vld [vmem:[#allocation2 + $0x78] sm:$0xff]
      %v1012 = vld [vmem:[#allocation8] sm:$0x1]
      %v1013 = vlaneseq
      %v1014 = vshrl.u32 %v1013, 7
      %v1015 = vsub.s32 0, %v1014
      %v1016 = vrot.slane %v1012, %v1015
      %v1017 = vmul.f32 %v996, %v1016
      %v1018 = vmul.f32 %v997, %v1016
      %v1019 = vmul.f32 %v998, %v1016
      %v1020 = vmul.f32 %v999, %v1016
      %v1021 = vmul.f32 %v1000, %v1016
      %v1022 = vmul.f32 %v1001, %v1016
      %v1023 = vmul.f32 %v1002, %v1016
      %v1024 = vmul.f32 %v1003, %v1016
      %v1025 = vmul.f32 %v1004, %v1016
      %v1026 = vmul.f32 %v1005, %v1016
      %v1027 = vmul.f32 %v1006, %v1016
      %v1028 = vmul.f32 %v1007, %v1016
      %v1029 = vmul.f32 %v1008, %v1016
      %v1030 = vmul.f32 %v1009, %v1016
      %v1031 = vmul.f32 %v1010, %v1016
      %v1032 = vmul.f32 %v1011, %v1016
      %v1033 = vld [vmem:[#allocation8 + $0x1] sm:$0x1]
      %v1034 = vlaneseq
      %v1035 = vshrl.u32 %v1034, 7
      %v1036 = vsub.s32 0, %v1035
      %v1037 = vrot.slane %v1033, %v1036
      %v1038 = vadd.f32 %v1017, %v1037
      %v1039 = vadd.f32 %v1018, %v1037
      %v1040 = vadd.f32 %v1019, %v1037
      %v1041 = vadd.f32 %v1020, %v1037
      %v1042 = vadd.f32 %v1021, %v1037
      %v1043 = vadd.f32 %v1022, %v1037
      %v1044 = vadd.f32 %v1023, %v1037
      %v1045 = vadd.f32 %v1024, %v1037
      %v1046 = vadd.f32 %v1025, %v1037
      %v1047 = vadd.f32 %v1026, %v1037
      %v1048 = vadd.f32 %v1027, %v1037
      %v1049 = vadd.f32 %v1028, %v1037
      %v1050 = vadd.f32 %v1029, %v1037
      %v1051 = vadd.f32 %v1030, %v1037
      %v1052 = vadd.f32 %v1031, %v1037
      %v1053 = vadd.f32 %v1032, %v1037
      %v1054 = vld [vmem:[#allocation9] sm:$0xff]
      %v1055 = vld [vmem:[#allocation9 + $0x8] sm:$0xff]
      %v1056 = vld [vmem:[#allocation9 + $0x10] sm:$0xff]
      %v1057 = vld [vmem:[#allocation9 + $0x18] sm:$0xff]
      %v1058 = vld [vmem:[#allocation9 + $0x20] sm:$0xff]
      %v1059 = vld [vmem:[#allocation9 + $0x28] sm:$0xff]
      %v1060 = vld [vmem:[#allocation9 + $0x30] sm:$0xff]
      %v1061 = vld [vmem:[#allocation9 + $0x38] sm:$0xff]
      %v1062 = vld [vmem:[#allocation9 + $0x40] sm:$0xff]
      %v1063 = vld [vmem:[#allocation9 + $0x48] sm:$0xff]
      %v1064 = vld [vmem:[#allocation9 + $0x50] sm:$0xff]
      %v1065 = vld [vmem:[#allocation9 + $0x58] sm:$0xff]
      %v1066 = vld [vmem:[#allocation9 + $0x60] sm:$0xff]
      %v1067 = vld [vmem:[#allocation9 + $0x68] sm:$0xff]
      %v1068 = vld [vmem:[#allocation9 + $0x70] sm:$0xff]
      %v1069 = vld [vmem:[#allocation9 + $0x78] sm:$0xff]
      %v1070 = vadd.f32 %v1038, %v1054
      %v1071 = vadd.f32 %v1039, %v1055
      %v1072 = vadd.f32 %v1040, %v1056
      %v1073 = vadd.f32 %v1041, %v1057
      %v1074 = vadd.f32 %v1042, %v1058
      %v1075 = vadd.f32 %v1043, %v1059
      %v1076 = vadd.f32 %v1044, %v1060
      %v1077 = vadd.f32 %v1045, %v1061
      %v1078 = vadd.f32 %v1046, %v1062
      %v1079 = vadd.f32 %v1047, %v1063
      %v1080 = vadd.f32 %v1048, %v1064
      %v1081 = vadd.f32 %v1049, %v1065
      %v1082 = vadd.f32 %v1050, %v1066
      %v1083 = vadd.f32 %v1051, %v1067
      %v1084 = vadd.f32 %v1052, %v1068
      %v1085 = vadd.f32 %v1053, %v1069
      %v1086 = vmax.f32 %v1070, 0.0
      %v1087 = vmax.f32 %v1071, 0.0
      %v1088 = vmax.f32 %v1072, 0.0
      %v1089 = vmax.f32 %v1073, 0.0
      %v1090 = vmax.f32 %v1074, 0.0
      %v1091 = vmax.f32 %v1075, 0.0
      %v1092 = vmax.f32 %v1076, 0.0
      %v1093 = vmax.f32 %v1077, 0.0
      %v1094 = vmax.f32 %v1078, 0.0
      %v1095 = vmax.f32 %v1079, 0.0
      %v1096 = vmax.f32 %v1080, 0.0
      %v1097 = vmax.f32 %v1081, 0.0
      %v1098 = vmax.f32 %v1082, 0.0
      %v1099 = vmax.f32 %v1083, 0.0
      %v1100 = vmax.f32 %v1084, 0.0
      %v1101 = vmax.f32 %v1085, 0.0
      %1102 = vst.msk [vmem:[#allocation11] sm:$0xff] %vm645, %v1086
      %1103 = vst.msk [vmem:[#allocation11 + $0x8] sm:$0xff] %vm645, %v1087
      %1104 = vst.msk [vmem:[#allocation11 + $0x10] sm:$0xff] %vm645, %v1088
      %1105 = vst.msk [vmem:[#allocation11 + $0x18] sm:$0xff] %vm645, %v1089
      %1106 = vst.msk [vmem:[#allocation11 + $0x20] sm:$0xff] %vm645, %v1090
      %1107 = vst.msk [vmem:[#allocation11 + $0x28] sm:$0xff] %vm645, %v1091
      %1108 = vst.msk [vmem:[#allocation11 + $0x30] sm:$0xff] %vm645, %v1092
      %1109 = vst.msk [vmem:[#allocation11 + $0x38] sm:$0xff] %vm645, %v1093
      %1110 = vst.msk [vmem:[#allocation11 + $0x40] sm:$0xff] %vm645, %v1094
      %1111 = vst.msk [vmem:[#allocation11 + $0x48] sm:$0xff] %vm645, %v1095
      %1112 = vst.msk [vmem:[#allocation11 + $0x50] sm:$0xff] %vm645, %v1096
      %1113 = vst.msk [vmem:[#allocation11 + $0x58] sm:$0xff] %vm645, %v1097
      %1114 = vst.msk [vmem:[#allocation11 + $0x60] sm:$0xff] %vm645, %v1098
      %1115 = vst.msk [vmem:[#allocation11 + $0x68] sm:$0xff] %vm645, %v1099
      %1116 = vst.msk [vmem:[#allocation11 + $0x70] sm:$0xff] %vm645, %v1100
      %1117 = vst.msk [vmem:[#allocation11 + $0x78] sm:$0xff] %vm645, %v1101
    $region41: #{resnet_forward.17} parent=1 // pred_fallthru
      _
    // Predicated region
    $region42: #{resnet_forward.17} parent=1 // pred_check
      _
    $region43: #{resnet_forward.17} parent=1 // pred_check_branch
      %1119 = sbr.rel (0) target = $region45
    $region44: #{resnet_forward.17} parent=1 // pred_region
      %s1121 = ssub.s32 2048, 2048
      %1122 = vsyncadd [#allocation5], %s1121
      %s1123 = sshll.u32 [#allocation11], 4
      %s1124 = int_to_ptr.vmem [resolvable:$true] %s1123
      %1129 = dma.vmem_to_hbm [thread:$0]  %s1124, 2048, %s4, [#allocation5], 128, 128, 8
    $region45: #{resnet_forward.17} parent=1 // pred_fallthru
      _
    // Predicated region
    $region46: #{resnet_forward.17} parent=1 // pred_check
      _
    $region47: #{resnet_forward.17} parent=1 // pred_check_branch
      %1131 = sbr.rel (0) target = $region49
    $region48: #{resnet_forward.17} parent=1 // pred_region
      %1132 = dma.done [#allocation5], 2048
    $region49: #{resnet_forward.17} parent=1 // pred_fallthru
      _
    %1133 = vsyncpa [#allocation4], 1
    %1134 = vsyncpa [#allocation7], 1
    %1135 = vsyncpa [#allocation10], 1
    %1136 = vsyncpa [#allocation5], 1

// kernel: resnet_forward.19
$region0: #{resnet_forward.19}
  #allocation0 [shape = 'u32[]', space=smem, size = 0x4, offset = 0x4, fixed_abs, tag = 'smem constant byte address 0x4 - core index']
  #allocation1 [shape = 'u32[144,128]{1,0:T(1,128)}', space=vmem, size = 0x12000, scoped, tag = 'internal scratch']
  #allocation2 [shape = 'f32[32,128]{1,0:T(8,128)}', space=vmem, size = 0x4000, scoped, tag = 'scratch operand']
  %s0 = inlined_call_operand.hbm [shape: bf16[32,576], index: 0, kind: input, shape index: {}]
  %s1 = inlined_call_operand.hbm [shape: bf16[576,128], index: 1, kind: input, shape index: {}]
  %s2 = inlined_call_operand.hbm [shape: f32[2,128], index: 2, kind: input, shape index: {}]
  %s3 = inlined_call_operand.hbm [shape: f32[32,128], index: 3, kind: output, shape index: {}]
  %s4 = sld [smem:[#allocation0]]
  $region42: #{resnet_forward.19} parent=0
    _
  %s6 = ssub.s32 1, %s4
  %s7 = scalar_select 0, %s6, %s4
  $region1: #{resnet_forward.19} parent=0
    #allocation3 [shape = 'u8[40960]{0}', space=vmem, size = 0xa000, scoped, tag = 'input window, operand 0, single buffered']
    #allocation4 [shape = 's32[1]{0}', space=sflag, size = 0x4, scoped, tag = 'scoped memory for resnet_forward.19']
    #allocation5 [shape = 's32[1]{0}', space=sflag, size = 0x4, scoped, tag = 'scoped memory for resnet_forward.19']
    #allocation6 [shape = 'u8[147456]{0}', space=vmem, size = 0x24000, scoped, tag = 'input window, operand 1, single buffered']
    #allocation7 [shape = 's32[1]{0}', space=sflag, size = 0x4, scoped, tag = 'scoped memory for resnet_forward.19']
    #allocation8 [shape = 'u8[1024]{0}', space=vmem, size = 0x400, scoped, tag = 'input window, operand 2, single buffered']
    #allocation9 [shape = 'u8[16384]{0}', space=vmem, size = 0x4000, scoped, tag = 'output window, operand 0, single buffered']
    %8 = vsyncpa [#allocation4], 0
    %9 = vsyncpa [#allocation7], 0
    %10 = vsyncpa [#allocation5], 0
    // Predicated region
    $region2: #{resnet_forward.19} parent=1 // pred_check
      _
    $region3: #{resnet_forward.19} parent=1 // pred_check_branch
      %12 = sbr.rel (0) target = $region5
    $region4: #{resnet_forward.19} parent=1 // pred_region
      %s14 = ssub.s32 1280, 1280
      %15 = vsyncadd [#allocation4], %s14
      %s16 = sshll.u32 [#allocation3], 4
      %s17 = int_to_ptr.vmem [resolvable:$true] %s16
      %22 = dma.hbm_to_vmem [thread:$0]  %s0, 1280, %s17, [#allocation4], 320, 320, 20
    $region5: #{resnet_forward.19} parent=1 // pred_fallthru
      _
    // Predicated region
    $region6: #{resnet_forward.19} parent=1 // pred_check
      _
    $region7: #{resnet_forward.19} parent=1 // pred_check_branch
      %24 = sbr.rel (0) target = $region9
    $region8: #{resnet_forward.19} parent=1 // pred_region
      %s26 = ssub.s32 4608, 4608
      %27 = vsyncadd [#allocation7], %s26
      %s28 = sshll.u32 [#allocation6], 4
      %s29 = int_to_ptr.vmem [resolvable:$true] %s28
      %34 = dma.hbm_to_vmem [thread:$0]  %s1, 4608, %s29, [#allocation7], 64, 64, 4
    $region9: #{resnet_forward.19} parent=1 // pred_fallthru
      _
    // Predicated region
    $region10: #{resnet_forward.19} parent=1 // pred_check
      _
    $region11: #{resnet_forward.19} parent=1 // pred_check_branch
      %36 = sbr.rel (0) target = $region13
    $region12: #{resnet_forward.19} parent=1 // pred_region
      %s38 = ssub.s32 32, 32
      %39 = vsyncadd [#allocation7], %s38
      %s41 = sshll.u32 [#allocation8], 4
      %s42 = int_to_ptr.vmem [resolvable:$true] %s41
      %44 = dma.hbm_to_vmem [thread:$0]  %s2, 32, %s42, [#allocation7]
    $region13: #{resnet_forward.19} parent=1 // pred_fallthru
      _
    // Predicated region
    $region14: #{resnet_forward.19} parent=1 // pred_check
      _
    $region15: #{resnet_forward.19} parent=1 // pred_check_branch
      %46 = sbr.rel (0) target = $region17
    $region16: #{resnet_forward.19} parent=1 // pred_region
      %47 = dma.done [#allocation4], 1280
    $region17: #{resnet_forward.19} parent=1 // pred_fallthru
      _
    // Predicated region
    $region18: #{resnet_forward.19} parent=1 // pred_check
      _
    $region19: #{resnet_forward.19} parent=1 // pred_check_branch
      %49 = sbr.rel (0) target = $region21
    $region20: #{resnet_forward.19} parent=1 // pred_region
      %50 = dma.done [#allocation7], 4608
    $region21: #{resnet_forward.19} parent=1 // pred_fallthru
      _
    // Predicated region
    $region22: #{resnet_forward.19} parent=1 // pred_check
      _
    $region23: #{resnet_forward.19} parent=1 // pred_check_branch
      %52 = sbr.rel (0) target = $region25
    $region24: #{resnet_forward.19} parent=1 // pred_region
      %53 = dma.done [#allocation7], 32
    $region25: #{resnet_forward.19} parent=1 // pred_fallthru
      _
    %p55 = scmp.eq.s32.totalorder 0, 0
    // Predicated region
    $region26: #{resnet_forward.19} parent=1 // pred_check
      %p56 = pneg %p55
    $region27: #{resnet_forward.19} parent=1 // pred_check_branch
      %58 = sbr.rel (%p56) target = $region29
    $region28: #{resnet_forward.19} parent=1 // pred_region
      %59 = vst [vmem:[#allocation2] sm:$0xff] 0.0
      %60 = vst [vmem:[#allocation2 + $0x8] sm:$0xff] 0.0
      %61 = vst [vmem:[#allocation2 + $0x10] sm:$0xff] 0.0
      %62 = vst [vmem:[#allocation2 + $0x18] sm:$0xff] 0.0
    $region29: #{resnet_forward.19} parent=1 // pred_fallthru
      _
    %v63 = vld [vmem:[#allocation2] sm:$0xff]
    %v64 = vld [vmem:[#allocation2 + $0x8] sm:$0xff]
    %v65 = vld [vmem:[#allocation2 + $0x10] sm:$0xff]
    %v66 = vld [vmem:[#allocation2 + $0x18] sm:$0xff]
    %v67 = vld [vmem:[#allocation3] sm:$0xff]
    %v68 = vld [vmem:[#allocation3 + $0x8] sm:$0xff]
    %v69 = vld [vmem:[#allocation3 + $0x10] sm:$0xf]
    %v70 = vld [vmem:[#allocation3 + $0x14] sm:$0xff]
    %v71 = vld [vmem:[#allocation3 + $0x1c] sm:$0xff]
    %v72 = vld [vmem:[#allocation3 + $0x24] sm:$0xf]
    %v73 = vld [vmem:[#allocation3 + $0x28] sm:$0xff]
    %v74 = vld [vmem:[#allocation3 + $0x30] sm:$0xff]
    %v75 = vld [vmem:[#allocation3 + $0x38] sm:$0xf]
    %v76 = vld [vmem:[#allocation3 + $0x3c] sm:$0xff]
    %v77 = vld [vmem:[#allocation3 + $0x44] sm:$0xff]
    %v78 = vld [vmem:[#allocation3 + $0x4c] sm:$0xf]
    %v79 = vld [vmem:[#allocation6] sm:$0xf]
    %v80 = vld [vmem:[#allocation6 + $0x4] sm:$0xf]
    %v81 = vld [vmem:[#allocation6 + $0x8] sm:$0xf]
    %v82 = vld [vmem:[#allocation6 + $0xc] sm:$0xf]
    %v83 = vld [vmem:[#allocation6 + $0x10] sm:$0xf]
    %v84 = vld [vmem:[#allocation6 + $0x14] sm:$0xf]
    %v85 = vld [vmem:[#allocation6 + $0x18] sm:$0xf]
    %v86 = vld [vmem:[#allocation6 + $0x1c] sm:$0xf]
    %v87 = vld [vmem:[#allocation6 + $0x20] sm:$0xf]
    %v88 = vld [vmem:[#allocation6 + $0x24] sm:$0xf]
    %v89 = vld [vmem:[#allocation6 + $0x28] sm:$0xf]
    %v90 = vld [vmem:[#allocation6 + $0x2c] sm:$0xf]
    %v91 = vld [vmem:[#allocation6 + $0x30] sm:$0xf]
    %v92 = vld [vmem:[#allocation6 + $0x34] sm:$0xf]
    %v93 = vld [vmem:[#allocation6 + $0x38] sm:$0xf]
    %v94 = vld [vmem:[#allocation6 + $0x3c] sm:$0xf]
    %v95 = vld [vmem:[#allocation6 + $0x40] sm:$0xf]
    %v96 = vld [vmem:[#allocation6 + $0x44] sm:$0xf]
    %v97 = vld [vmem:[#allocation6 + $0x48] sm:$0xf]
    %v98 = vld [vmem:[#allocation6 + $0x4c] sm:$0xf]
    %v99 = vld [vmem:[#allocation6 + $0x50] sm:$0xf]
    %v100 = vld [vmem:[#allocation6 + $0x54] sm:$0xf]
    %v101 = vld [vmem:[#allocation6 + $0x58] sm:$0xf]
    %v102 = vld [vmem:[#allocation6 + $0x5c] sm:$0xf]
    %v103 = vld [vmem:[#allocation6 + $0x60] sm:$0xf]
    %v104 = vld [vmem:[#allocation6 + $0x64] sm:$0xf]
    %v105 = vld [vmem:[#allocation6 + $0x68] sm:$0xf]
    %v106 = vld [vmem:[#allocation6 + $0x6c] sm:$0xf]
    %v107 = vld [vmem:[#allocation6 + $0x70] sm:$0xf]
    %v108 = vld [vmem:[#allocation6 + $0x74] sm:$0xf]
    %v109 = vld [vmem:[#allocation6 + $0x78] sm:$0xf]
    %v110 = vld [vmem:[#allocation6 + $0x7c] sm:$0xf]
    %v111 = vld [vmem:[#allocation6 + $0x80] sm:$0xf]
    %v112 = vld [vmem:[#allocation6 + $0x84] sm:$0xf]
    %v113 = vld [vmem:[#allocation6 + $0x88] sm:$0xf]
    %v114 = vld [vmem:[#allocation6 + $0x8c] sm:$0xf]
    %v115 = vld [vmem:[#allocation6 + $0x90] sm:$0xf]
    %v116 = vld [vmem:[#allocation6 + $0x94] sm:$0xf]
    %v117 = vld [vmem:[#allocation6 + $0x98] sm:$0xf]
    %v118 = vld [vmem:[#allocation6 + $0x9c] sm:$0xf]
    %v119 = vld [vmem:[#allocation6 + $0xa0] sm:$0xf]
    %v120 = vld [vmem:[#allocation6 + $0xa4] sm:$0xf]
    %v121 = vld [vmem:[#allocation6 + $0xa8] sm:$0xf]
    %v122 = vld [vmem:[#allocation6 + $0xac] sm:$0xf]
    %v123 = vld [vmem:[#allocation6 + $0xb0] sm:$0xf]
    %v124 = vld [vmem:[#allocation6 + $0xb4] sm:$0xf]
    %v125 = vld [vmem:[#allocation6 + $0xb8] sm:$0xf]
    %v126 = vld [vmem:[#allocation6 + $0xbc] sm:$0xf]
    %v127 = vld [vmem:[#allocation6 + $0xc0] sm:$0xf]
    %v128 = vld [vmem:[#allocation6 + $0xc4] sm:$0xf]
    %v129 = vld [vmem:[#allocation6 + $0xc8] sm:$0xf]
    %v130 = vld [vmem:[#allocation6 + $0xcc] sm:$0xf]
    %v131 = vld [vmem:[#allocation6 + $0xd0] sm:$0xf]
    %v132 = vld [vmem:[#allocation6 + $0xd4] sm:$0xf]
    %v133 = vld [vmem:[#allocation6 + $0xd8] sm:$0xf]
    %v134 = vld [vmem:[#allocation6 + $0xdc] sm:$0xf]
    %v135 = vld [vmem:[#allocation6 + $0xe0] sm:$0xf]
    %v136 = vld [vmem:[#allocation6 + $0xe4] sm:$0xf]
    %v137 = vld [vmem:[#allocation6 + $0xe8] sm:$0xf]
    %v138 = vld [vmem:[#allocation6 + $0xec] sm:$0xf]
    %v139 = vld [vmem:[#allocation6 + $0xf0] sm:$0xf]
    %v140 = vld [vmem:[#allocation6 + $0xf4] sm:$0xf]
    %v141 = vld [vmem:[#allocation6 + $0xf8] sm:$0xf]
    %v142 = vld [vmem:[#allocation6 + $0xfc] sm:$0xf]
    %v143 = vld [vmem:[#allocation6 + $0x100] sm:$0xf]
    %v144 = vld [vmem:[#allocation6 + $0x104] sm:$0xf]
    %v145 = vld [vmem:[#allocation6 + $0x108] sm:$0xf]
    %v146 = vld [vmem:[#allocation6 + $0x10c] sm:$0xf]
    %v147 = vld [vmem:[#allocation6 + $0x110] sm:$0xf]
    %v148 = vld [vmem:[#allocation6 + $0x114] sm:$0xf]
    %v149 = vld [vmem:[#allocation6 + $0x118] sm:$0xf]
    %v150 = vld [vmem:[#allocation6 + $0x11c] sm:$0xf]
    %v163 = vunpack.c.l.b16 %v67
    %v164 = vunpack.c.h.b16 %v67
    %v165 = vunpack.c.l.b16 %v68
    %v166 = vunpack.c.h.b16 %v68
    %v167 = vunpack.c.l.b16 %v69
    %v168 = vunpack.c.l.b16 %v70
    %v169 = vunpack.c.h.b16 %v70
    %v170 = vunpack.c.l.b16 %v71
    %v171 = vunpack.c.h.b16 %v71
    %v172 = vunpack.c.l.b16 %v72
    %v173 = vunpack.c.l.b16 %v73
    %v174 = vunpack.c.h.b16 %v73
    %v175 = vunpack.c.l.b16 %v74
    %v176 = vunpack.c.h.b16 %v74
    %v177 = vunpack.c.l.b16 %v75
    %v178 = vunpack.c.l.b16 %v76
    %v179 = vunpack.c.h.b16 %v76
    %v180 = vunpack.c.l.b16 %v77
    %v181 = vunpack.c.h.b16 %v77
    %v182 = vunpack.c.l.b16 %v78
    %v183 = vpack.c.b16 %v168, %v163
    %v184 = vpack.c.b16 %v169, %v164
    %v185 = vpack.c.b16 %v170, %v165
    %v186 = vpack.c.b16 %v171, %v166
    %v187 = vpack.c.b16 %v172, %v167
    %v188 = vpack.c.b16 %v178, %v173
    %v189 = vpack.c.b16 %v179, %v174
    %v190 = vpack.c.b16 %v180, %v175
    %v191 = vpack.c.b16 %v181, %v176
    %v192 = vpack.c.b16 %v182, %v177
    %v273 = vunpack.c.l.b16 %v79
    %v274 = vunpack.c.l.b16 %v80
    %v275 = vunpack.c.l.b16 %v81
    %v276 = vunpack.c.l.b16 %v82
    %v277 = vunpack.c.l.b16 %v83
    %v278 = vunpack.c.l.b16 %v84
    %v279 = vunpack.c.l.b16 %v85
    %v280 = vunpack.c.l.b16 %v86
    %v281 = vunpack.c.l.b16 %v87
    %v282 = vunpack.c.l.b16 %v88
    %v283 = vunpack.c.l.b16 %v89
    %v284 = vunpack.c.l.b16 %v90
    %v285 = vunpack.c.l.b16 %v91
    %v286 = vunpack.c.l.b16 %v92
    %v287 = vunpack.c.l.b16 %v93
    %v288 = vunpack.c.l.b16 %v94
    %v289 = vunpack.c.l.b16 %v95
    %v290 = vunpack.c.l.b16 %v96
    %v291 = vunpack.c.l.b16 %v97
    %v292 = vunpack.c.l.b16 %v98
    %v293 = vunpack.c.l.b16 %v99
    %v294 = vunpack.c.l.b16 %v100
    %v295 = vunpack.c.l.b16 %v101
    %v296 = vunpack.c.l.b16 %v102
    %v297 = vunpack.c.l.b16 %v103
    %v298 = vunpack.c.l.b16 %v104
    %v299 = vunpack.c.l.b16 %v105
    %v300 = vunpack.c.l.b16 %v106
    %v301 = vunpack.c.l.b16 %v107
    %v302 = vunpack.c.l.b16 %v108
    %v303 = vunpack.c.l.b16 %v109
    %v304 = vunpack.c.l.b16 %v110
    %v305 = vunpack.c.l.b16 %v111
    %v306 = vunpack.c.l.b16 %v112
    %v307 = vunpack.c.l.b16 %v113
    %v308 = vunpack.c.l.b16 %v114
    %v309 = vunpack.c.l.b16 %v115
    %v310 = vunpack.c.l.b16 %v116
    %v311 = vunpack.c.l.b16 %v117
    %v312 = vunpack.c.l.b16 %v118
    %v313 = vunpack.c.l.b16 %v119
    %v314 = vunpack.c.l.b16 %v120
    %v315 = vunpack.c.l.b16 %v121
    %v316 = vunpack.c.l.b16 %v122
    %v317 = vunpack.c.l.b16 %v123
    %v318 = vunpack.c.l.b16 %v124
    %v319 = vunpack.c.l.b16 %v125
    %v320 = vunpack.c.l.b16 %v126
    %v321 = vunpack.c.l.b16 %v127
    %v322 = vunpack.c.l.b16 %v128
    %v323 = vunpack.c.l.b16 %v129
    %v324 = vunpack.c.l.b16 %v130
    %v325 = vunpack.c.l.b16 %v131
    %v326 = vunpack.c.l.b16 %v132
    %v327 = vunpack.c.l.b16 %v133
    %v328 = vunpack.c.l.b16 %v134
    %v329 = vunpack.c.l.b16 %v135
    %v330 = vunpack.c.l.b16 %v136
    %v331 = vunpack.c.l.b16 %v137
    %v332 = vunpack.c.l.b16 %v138
    %v333 = vunpack.c.l.b16 %v139
    %v334 = vunpack.c.l.b16 %v140
    %v335 = vunpack.c.l.b16 %v141
    %v336 = vunpack.c.l.b16 %v142
    %v337 = vunpack.c.l.b16 %v143
    %v338 = vunpack.c.l.b16 %v144
    %v339 = vunpack.c.l.b16 %v145
    %v340 = vunpack.c.l.b16 %v146
    %v341 = vunpack.c.l.b16 %v147
    %v342 = vunpack.c.l.b16 %v148
    %v343 = vunpack.c.l.b16 %v149
    %v344 = vunpack.c.l.b16 %v150
    %v345 = vpack.c.b16 %v274, %v273
    %v346 = vpack.c.b16 %v276, %v275
    %v347 = vpack.c.b16 %v278, %v277
    %v348 = vpack.c.b16 %v280, %v279
    %v349 = vpack.c.b16 %v282, %v281
    %v350 = vpack.c.b16 %v284, %v283
    %v351 = vpack.c.b16 %v286, %v285
    %v352 = vpack.c.b16 %v288, %v287
    %v353 = vpack.c.b16 %v290, %v289
    %v354 = vpack.c.b16 %v292, %v291
    %v355 = vpack.c.b16 %v294, %v293
    %v356 = vpack.c.b16 %v296, %v295
    %v357 = vpack.c.b16 %v298, %v297
    %v358 = vpack.c.b16 %v300, %v299
    %v359 = vpack.c.b16 %v302, %v301
    %v360 = vpack.c.b16 %v304, %v303
    %v361 = vpack.c.b16 %v306, %v305
    %v362 = vpack.c.b16 %v308, %v307
    %v363 = vpack.c.b16 %v310, %v309
    %v364 = vpack.c.b16 %v312, %v311
    %v365 = vpack.c.b16 %v314, %v313
    %v366 = vpack.c.b16 %v316, %v315
    %v367 = vpack.c.b16 %v318, %v317
    %v368 = vpack.c.b16 %v320, %v319
    %v369 = vpack.c.b16 %v322, %v321
    %v370 = vpack.c.b16 %v324, %v323
    %v371 = vpack.c.b16 %v326, %v325
    %v372 = vpack.c.b16 %v328, %v327
    %v373 = vpack.c.b16 %v330, %v329
    %v374 = vpack.c.b16 %v332, %v331
    %v375 = vpack.c.b16 %v334, %v333
    %v376 = vpack.c.b16 %v336, %v335
    %v377 = vpack.c.b16 %v338, %v337
    %v378 = vpack.c.b16 %v340, %v339
    %v379 = vpack.c.b16 %v342, %v341
    %v380 = vpack.c.b16 %v344, %v343
    %vm417 = vcmask 523264
    %v419 = vsel %vm417, %v187, 0
    %v422 = vsel %vm417, %v192, 0
    %424 = vmatprep.subr.bf16.mxu0 0
    %425 = vmatpush1.bf16.msra.mxu0 %v345
    %426 = vmatprep.subr.bf16.mxu0 0
    %427 = vmatpush1.bf16.msra.mxu0 %v346
    %428 = vmatprep.subr.bf16.mxu0 0
    %429 = vmatpush1.bf16.msra.mxu0 %v347
    %430 = vmatprep.subr.bf16.mxu0 0
    %431 = vmatpush1.bf16.msra.mxu0 %v348
    %432 = vmatprep.subr.bf16.mxu0 0
    %433 = vmatpush1.bf16.msra.mxu0 %v349
    %434 = vmatprep.subr.bf16.mxu0 0
    %435 = vmatpush1.bf16.msra.mxu0 %v350
    %436 = vmatprep.subr.bf16.mxu0 0
    %437 = vmatpush1.bf16.msra.mxu0 %v351
    %438 = vmatprep.subr.bf16.mxu0 0
    %439 = vmatpush1.bf16.msra.mxu0 %v352
    %440 = vmatprep.subr.bf16.mxu0 0
    %441 = vmatpush1.bf16.msra.mxu0 %v353
    %442 = vmatprep.subr.bf16.mxu0 0
    %443 = vmatpush1.bf16.msra.mxu0 %v354
    %444 = vmatprep.subr.bf16.mxu0 0
    %445 = vmatpush1.bf16.msra.mxu0 %v355
    %446 = vmatprep.subr.bf16.mxu0 0
    %447 = vmatpush1.bf16.msra.mxu0 %v356
    %448 = vmatprep.subr.bf16.mxu0 0
    %449 = vmatpush1.bf16.msra.mxu0 %v357
    %450 = vmatprep.subr.bf16.mxu0 0
    %451 = vmatpush1.bf16.msra.mxu0 %v358
    %452 = vmatprep.subr.bf16.mxu0 0
    %453 = vmatpush1.bf16.msra.mxu0 %v359
    %454 = vmatprep.subr.bf16.mxu0 0
    %455 = vmatpush1.bf16.msra.mxu0 %v360
    %456 = vmatprep.mubr.bf16.mxu0 %v184
    %457 = vmatmul.mubr.bf16.gmra.mrb[0].mxu0 %v183
    %v458 = vpop.f32.mrb[0].mxu0
    %v459 = vadd.f32 0.0, %v458
    %v460 = vpop.f32.mrb[0].mxu0
    %v461 = vpop.f32.mrb[0].mxu0
    %v462 = vadd.f32 0.0, %v461
    %v463 = vpop.f32.mrb[0].mxu0
    %464 = vmatprep.mubr.bf16.mxu0 %v189
    %465 = vmatmul.mubr.bf16.gmra.mrb[0].mxu0 %v188
    %v466 = vpop.f32.mrb[0].mxu0
    %v467 = vadd.f32 0.0, %v466
    %v468 = vpop.f32.mrb[0].mxu0
    %v469 = vpop.f32.mrb[0].mxu0
    %v470 = vadd.f32 0.0, %v469
    %v471 = vpop.f32.mrb[0].mxu0
    %472 = vdwg.mxu0
    %473 = vmatprep.subr.bf16.mxu0 0
    %474 = vmatpush1.bf16.msra.mxu0 %v361
    %475 = vmatprep.subr.bf16.mxu0 0
    %476 = vmatpush1.bf16.msra.mxu0 %v362
    %477 = vmatprep.subr.bf16.mxu0 0
    %478 = vmatpush1.bf16.msra.mxu0 %v363
    %479 = vmatprep.subr.bf16.mxu0 0
    %480 = vmatpush1.bf16.msra.mxu0 %v364
    %481 = vmatprep.subr.bf16.mxu0 0
    %482 = vmatpush1.bf16.msra.mxu0 %v365
    %483 = vmatprep.subr.bf16.mxu0 0
    %484 = vmatpush1.bf16.msra.mxu0 %v366
    %485 = vmatprep.subr.bf16.mxu0 0
    %486 = vmatpush1.bf16.msra.mxu0 %v367
    %487 = vmatprep.subr.bf16.mxu0 0
    %488 = vmatpush1.bf16.msra.mxu0 %v368
    %489 = vmatprep.subr.bf16.mxu0 0
    %490 = vmatpush1.bf16.msra.mxu0 %v369
    %491 = vmatprep.subr.bf16.mxu0 0
    %492 = vmatpush1.bf16.msra.mxu0 %v370
    %493 = vmatprep.subr.bf16.mxu0 0
    %494 = vmatpush1.bf16.msra.mxu0 %v371
    %495 = vmatprep.subr.bf16.mxu0 0
    %496 = vmatpush1.bf16.msra.mxu0 %v372
    %497 = vmatprep.subr.bf16.mxu0 0
    %498 = vmatpush1.bf16.msra.mxu0 %v373
    %499 = vmatprep.subr.bf16.mxu0 0
    %500 = vmatpush1.bf16.msra.mxu0 %v374
    %501 = vmatprep.subr.bf16.mxu0 0
    %502 = vmatpush1.bf16.msra.mxu0 %v375
    %503 = vmatprep.subr.bf16.mxu0 0
    %504 = vmatpush1.bf16.msra.mxu0 %v376
    %505 = vmatprep.mubr.bf16.mxu0 %v186
    %506 = vmatmul.mubr.bf16.gmra.mrb[0].mxu0 %v185
    %v507 = vpop.f32.mrb[0].mxu0
    %v508 = vadd.f32 %v459, %v507
    %v509 = vpop.f32.mrb[0].mxu0
    %v510 = vpop.f32.mrb[0].mxu0
    %v511 = vadd.f32 %v462, %v510
    %v512 = vpop.f32.mrb[0].mxu0
    %513 = vmatprep.mubr.bf16.mxu0 %v191
    %514 = vmatmul.mubr.bf16.gmra.mrb[0].mxu0 %v190
    %v515 = vpop.f32.mrb[0].mxu0
    %v516 = vadd.f32 %v467, %v515
    %v517 = vpop.f32.mrb[0].mxu0
    %v518 = vpop.f32.mrb[0].mxu0
    %v519 = vadd.f32 %v470, %v518
    %v520 = vpop.f32.mrb[0].mxu0
    %521 = vdwg.mxu0
    %522 = vmatprep.subr.bf16.mxu0 0
    %523 = vmatpush1.bf16.msra.mxu0 %v377
    %524 = vmatprep.subr.bf16.mxu0 0
    %525 = vmatpush1.bf16.msra.mxu0 %v378
    %526 = vmatprep.subr.bf16.mxu0 0
    %527 = vmatpush1.bf16.msra.mxu0 %v379
    %528 = vmatprep.subr.bf16.mxu0 0
    %529 = vmatpush1.bf16.msra.mxu0 %v380
    %530 = vmatprep.subr.bf16.mxu0 0
    %531 = vmatpush1.bf16.msra.mxu0 0
    %532 = vmatprep.subr.bf16.mxu0 0
    %533 = vmatpush1.bf16.msra.mxu0 0
    %534 = vmatprep.subr.bf16.mxu0 0
    %535 = vmatpush1.bf16.msra.mxu0 0
    %536 = vmatprep.subr.bf16.mxu0 0
    %537 = vmatpush1.bf16.msra.mxu0 0
    %538 = vmatprep.subr.bf16.mxu0 0
    %539 = vmatpush1.bf16.msra.mxu0 0
    %540 = vmatprep.subr.bf16.mxu0 0
    %541 = vmatpush1.bf16.msra.mxu0 0
    %542 = vmatprep.subr.bf16.mxu0 0
    %543 = vmatpush1.bf16.msra.mxu0 0
    %544 = vmatprep.subr.bf16.mxu0 0
    %545 = vmatpush1.bf16.msra.mxu0 0
    %546 = vmatprep.subr.bf16.mxu0 0
    %547 = vmatpush1.bf16.msra.mxu0 0
    %548 = vmatprep.subr.bf16.mxu0 0
    %549 = vmatpush1.bf16.msra.mxu0 0
    %550 = vmatprep.subr.bf16.mxu0 0
    %551 = vmatpush1.bf16.msra.mxu0 0
    %552 = vmatprep.subr.bf16.mxu0 0
    %553 = vmatpush1.bf16.msra.mxu0 0
    %554 = vmatprep.mubr.bf16.mxu0 0
    %555 = vmatmul.mubr.bf16.gmra.mrb[0].mxu0 %v419
    %v556 = vpop.f32.mrb[0].mxu0
    %v557 = vadd.f32 %v508, %v556
    %v558 = vpop.f32.mrb[0].mxu0
    %v559 = vpop.f32.mrb[0].mxu0
    %v560 = vadd.f32 %v511, %v559
    %v561 = vpop.f32.mrb[0].mxu0
    %562 = vmatprep.mubr.bf16.mxu0 0
    %563 = vmatmul.mubr.bf16.gmra.mrb[0].mxu0 %v422
    %v564 = vpop.f32.mrb[0].mxu0
    %v565 = vadd.f32 %v516, %v564
    %v566 = vpop.f32.mrb[0].mxu0
    %v567 = vpop.f32.mrb[0].mxu0
    %v568 = vadd.f32 %v519, %v567
    %v569 = vpop.f32.mrb[0].mxu0
    %570 = vdwg.mxu0
    %v571 = vadd.f32 %v63, %v557
    %v572 = vadd.f32 %v64, %v560
    %v573 = vadd.f32 %v65, %v565
    %v574 = vadd.f32 %v66, %v568
    %575 = vst [vmem:[#allocation2] sm:$0xff] %v571
    %576 = vst [vmem:[#allocation2 + $0x8] sm:$0xff] %v572
    %577 = vst [vmem:[#allocation2 + $0x10] sm:$0xff] %v573
    %578 = vst [vmem:[#allocation2 + $0x18] sm:$0xff] %v574
    // Predicated region
    $region30: #{resnet_forward.19} parent=1 // pred_check
      %p579 = pneg %p55
    $region31: #{resnet_forward.19} parent=1 // pred_check_branch
      %581 = sbr.rel (%p579) target = $region33
    $region32: #{resnet_forward.19} parent=1 // pred_region
      %v582 = vld [vmem:[#allocation2] sm:$0xff]
      %v583 = vld [vmem:[#allocation2 + $0x8] sm:$0xff]
      %v584 = vld [vmem:[#allocation2 + $0x10] sm:$0xff]
      %v585 = vld [vmem:[#allocation2 + $0x18] sm:$0xff]
      %v586 = vld [vmem:[#allocation8] sm:$0x1]
      %v587 = vlaneseq
      %v588 = vshrl.u32 %v587, 7
      %v589 = vsub.s32 0, %v588
      %v590 = vrot.slane %v586, %v589
      %v591 = vmul.f32 %v582, %v590
      %v592 = vmul.f32 %v583, %v590
      %v593 = vmul.f32 %v584, %v590
      %v594 = vmul.f32 %v585, %v590
      %v595 = vld [vmem:[#allocation8 + $0x1] sm:$0x1]
      %v596 = vlaneseq
      %v597 = vshrl.u32 %v596, 7
      %v598 = vsub.s32 0, %v597
      %v599 = vrot.slane %v595, %v598
      %v600 = vadd.f32 %v591, %v599
      %v601 = vadd.f32 %v592, %v599
      %v602 = vadd.f32 %v593, %v599
      %v603 = vadd.f32 %v594, %v599
      %v604 = vmax.f32 %v600, 0.0
      %v605 = vmax.f32 %v601, 0.0
      %v606 = vmax.f32 %v602, 0.0
      %v607 = vmax.f32 %v603, 0.0
      %608 = vst [vmem:[#allocation9] sm:$0xff] %v604
      %609 = vst [vmem:[#allocation9 + $0x8] sm:$0xff] %v605
      %610 = vst [vmem:[#allocation9 + $0x10] sm:$0xff] %v606
      %611 = vst [vmem:[#allocation9 + $0x18] sm:$0xff] %v607
    $region33: #{resnet_forward.19} parent=1 // pred_fallthru
      _
    // Predicated region
    $region34: #{resnet_forward.19} parent=1 // pred_check
      _
    $region35: #{resnet_forward.19} parent=1 // pred_check_branch
      %613 = sbr.rel (0) target = $region37
    $region36: #{resnet_forward.19} parent=1 // pred_region
      %s615 = ssub.s32 512, 512
      %616 = vsyncadd [#allocation5], %s615
      %s617 = sshll.u32 [#allocation9], 4
      %s618 = int_to_ptr.vmem [resolvable:$true] %s617
      %623 = dma.vmem_to_hbm [thread:$0]  %s618, 512, %s3, [#allocation5], 128, 128, 8
    $region37: #{resnet_forward.19} parent=1 // pred_fallthru
      _
    // Predicated region
    $region38: #{resnet_forward.19} parent=1 // pred_check
      _
    $region39: #{resnet_forward.19} parent=1 // pred_check_branch
      %625 = sbr.rel (0) target = $region41
    $region40: #{resnet_forward.19} parent=1 // pred_region
      %626 = dma.done [#allocation5], 512
    $region41: #{resnet_forward.19} parent=1 // pred_fallthru
      _
    %627 = vsyncpa [#allocation4], 1
    %628 = vsyncpa [#allocation7], 1
    %629 = vsyncpa [#allocation5], 1

// kernel: resnet_forward.18
$region0: #{resnet_forward.18}
  #allocation0 [shape = 'u32[]', space=smem, size = 0x4, offset = 0x4, fixed_abs, tag = 'smem constant byte address 0x4 - core index']
  #allocation1 [shape = 'u32[144,128]{1,0:T(1,128)}', space=vmem, size = 0x12000, scoped, tag = 'internal scratch']
  #allocation2 [shape = 'f32[32,128]{1,0:T(8,128)}', space=vmem, size = 0x4000, scoped, tag = 'scratch operand']
  %s0 = inlined_call_operand.hbm [shape: bf16[32,64], index: 0, kind: input, shape index: {}]
  %s1 = inlined_call_operand.hbm [shape: bf16[64,128], index: 1, kind: input, shape index: {}]
  %s2 = inlined_call_operand.hbm [shape: f32[2,128], index: 2, kind: input, shape index: {}]
  %s3 = inlined_call_operand.hbm [shape: f32[32,128], index: 3, kind: output, shape index: {}]
  %s4 = sld [smem:[#allocation0]]
  $region42: #{resnet_forward.18} parent=0
    _
  %s6 = ssub.s32 1, %s4
  %s7 = scalar_select 0, %s6, %s4
  $region1: #{resnet_forward.18} parent=0
    #allocation3 [shape = 'u8[8192]{0}', space=vmem, size = 0x2000, scoped, tag = 'input window, operand 0, single buffered']
    #allocation4 [shape = 's32[1]{0}', space=sflag, size = 0x4, scoped, tag = 'scoped memory for resnet_forward.18']
    #allocation5 [shape = 's32[1]{0}', space=sflag, size = 0x4, scoped, tag = 'scoped memory for resnet_forward.18']
    #allocation6 [shape = 'u8[16384]{0}', space=vmem, size = 0x4000, scoped, tag = 'input window, operand 1, single buffered']
    #allocation7 [shape = 's32[1]{0}', space=sflag, size = 0x4, scoped, tag = 'scoped memory for resnet_forward.18']
    #allocation8 [shape = 'u8[1024]{0}', space=vmem, size = 0x400, scoped, tag = 'input window, operand 2, single buffered']
    #allocation9 [shape = 'u8[16384]{0}', space=vmem, size = 0x4000, scoped, tag = 'output window, operand 0, single buffered']
    %8 = vsyncpa [#allocation4], 0
    %9 = vsyncpa [#allocation7], 0
    %10 = vsyncpa [#allocation5], 0
    // Predicated region
    $region2: #{resnet_forward.18} parent=1 // pred_check
      _
    $region3: #{resnet_forward.18} parent=1 // pred_check_branch
      %12 = sbr.rel (0) target = $region5
    $region4: #{resnet_forward.18} parent=1 // pred_region
      %s14 = ssub.s32 256, 256
      %15 = vsyncadd [#allocation4], %s14
      %s16 = sshll.u32 [#allocation3], 4
      %s17 = int_to_ptr.vmem [resolvable:$true] %s16
      %22 = dma.hbm_to_vmem [thread:$0]  %s0, 256, %s17, [#allocation4], 64, 64, 4
    $region5: #{resnet_forward.18} parent=1 // pred_fallthru
      _
    // Predicated region
    $region6: #{resnet_forward.18} parent=1 // pred_check
      _
    $region7: #{resnet_forward.18} parent=1 // pred_check_branch
      %24 = sbr.rel (0) target = $region9
    $region8: #{resnet_forward.18} parent=1 // pred_region
      %s26 = ssub.s32 512, 512
      %27 = vsyncadd [#allocation7], %s26
      %s28 = sshll.u32 [#allocation6], 4
      %s29 = int_to_ptr.vmem [resolvable:$true] %s28
      %34 = dma.hbm_to_vmem [thread:$0]  %s1, 512, %s29, [#allocation7], 64, 64, 4
    $region9: #{resnet_forward.18} parent=1 // pred_fallthru
      _
    // Predicated region
    $region10: #{resnet_forward.18} parent=1 // pred_check
      _
    $region11: #{resnet_forward.18} parent=1 // pred_check_branch
      %36 = sbr.rel (0) target = $region13
    $region12: #{resnet_forward.18} parent=1 // pred_region
      %s38 = ssub.s32 32, 32
      %39 = vsyncadd [#allocation7], %s38
      %s41 = sshll.u32 [#allocation8], 4
      %s42 = int_to_ptr.vmem [resolvable:$true] %s41
      %44 = dma.hbm_to_vmem [thread:$0]  %s2, 32, %s42, [#allocation7]
    $region13: #{resnet_forward.18} parent=1 // pred_fallthru
      _
    // Predicated region
    $region14: #{resnet_forward.18} parent=1 // pred_check
      _
    $region15: #{resnet_forward.18} parent=1 // pred_check_branch
      %46 = sbr.rel (0) target = $region17
    $region16: #{resnet_forward.18} parent=1 // pred_region
      %47 = dma.done [#allocation4], 256
    $region17: #{resnet_forward.18} parent=1 // pred_fallthru
      _
    // Predicated region
    $region18: #{resnet_forward.18} parent=1 // pred_check
      _
    $region19: #{resnet_forward.18} parent=1 // pred_check_branch
      %49 = sbr.rel (0) target = $region21
    $region20: #{resnet_forward.18} parent=1 // pred_region
      %50 = dma.done [#allocation7], 512
    $region21: #{resnet_forward.18} parent=1 // pred_fallthru
      _
    // Predicated region
    $region22: #{resnet_forward.18} parent=1 // pred_check
      _
    $region23: #{resnet_forward.18} parent=1 // pred_check_branch
      %52 = sbr.rel (0) target = $region25
    $region24: #{resnet_forward.18} parent=1 // pred_region
      %53 = dma.done [#allocation7], 32
    $region25: #{resnet_forward.18} parent=1 // pred_fallthru
      _
    %p55 = scmp.eq.s32.totalorder 0, 0
    // Predicated region
    $region26: #{resnet_forward.18} parent=1 // pred_check
      %p56 = pneg %p55
    $region27: #{resnet_forward.18} parent=1 // pred_check_branch
      %58 = sbr.rel (%p56) target = $region29
    $region28: #{resnet_forward.18} parent=1 // pred_region
      %59 = vst [vmem:[#allocation2] sm:$0xff] 0.0
      %60 = vst [vmem:[#allocation2 + $0x8] sm:$0xff] 0.0
      %61 = vst [vmem:[#allocation2 + $0x10] sm:$0xff] 0.0
      %62 = vst [vmem:[#allocation2 + $0x18] sm:$0xff] 0.0
    $region29: #{resnet_forward.18} parent=1 // pred_fallthru
      _
    %v63 = vld [vmem:[#allocation2] sm:$0xff]
    %v64 = vld [vmem:[#allocation2 + $0x8] sm:$0xff]
    %v65 = vld [vmem:[#allocation2 + $0x10] sm:$0xff]
    %v66 = vld [vmem:[#allocation2 + $0x18] sm:$0xff]
    %v67 = vld [vmem:[#allocation3] sm:$0xf]
    %v68 = vld [vmem:[#allocation3 + $0x4] sm:$0xf]
    %v69 = vld [vmem:[#allocation3 + $0x8] sm:$0xf]
    %v70 = vld [vmem:[#allocation3 + $0xc] sm:$0xf]
    %v71 = vld [vmem:[#allocation6] sm:$0xf]
    %v72 = vld [vmem:[#allocation6 + $0x4] sm:$0xf]
    %v73 = vld [vmem:[#allocation6 + $0x8] sm:$0xf]
    %v74 = vld [vmem:[#allocation6 + $0xc] sm:$0xf]
    %v75 = vld [vmem:[#allocation6 + $0x10] sm:$0xf]
    %v76 = vld [vmem:[#allocation6 + $0x14] sm:$0xf]
    %v77 = vld [vmem:[#allocation6 + $0x18] sm:$0xf]
    %v78 = vld [vmem:[#allocation6 + $0x1c] sm:$0xf]
    %v83 = vunpack.c.l.b16 %v67
    %v84 = vunpack.c.l.b16 %v68
    %v85 = vunpack.c.l.b16 %v69
    %v86 = vunpack.c.l.b16 %v70
    %v87 = vpack.c.b16 %v84, %v83
    %v88 = vpack.c.b16 %v86, %v85
    %v97 = vunpack.c.l.b16 %v71
    %v98 = vunpack.c.l.b16 %v72
    %v99 = vunpack.c.l.b16 %v73
    %v100 = vunpack.c.l.b16 %v74
    %v101 = vunpack.c.l.b16 %v75
    %v102 = vunpack.c.l.b16 %v76
    %v103 = vunpack.c.l.b16 %v77
    %v104 = vunpack.c.l.b16 %v78
    %v105 = vpack.c.b16 %v98, %v97
    %v106 = vpack.c.b16 %v100, %v99
    %v107 = vpack.c.b16 %v102, %v101
    %v108 = vpack.c.b16 %v104, %v103
    %vm113 = vcmask 523264
    %v115 = vsel %vm113, %v87, 0
    %v118 = vsel %vm113, %v88, 0
    %120 = vmatprep.subr.bf16.mxu0 0
    %121 = vmatpush1.bf16.msra.mxu0 %v105
    %122 = vmatprep.subr.bf16.mxu0 0
    %123 = vmatpush1.bf16.msra.mxu0 %v106
    %124 = vmatprep.subr.bf16.mxu0 0
    %125 = vmatpush1.bf16.msra.mxu0 %v107
    %126 = vmatprep.subr.bf16.mxu0 0
    %127 = vmatpush1.bf16.msra.mxu0 %v108
    %128 = vmatprep.subr.bf16.mxu0 0
    %129 = vmatpush1.bf16.msra.mxu0 0
    %130 = vmatprep.subr.bf16.mxu0 0
    %131 = vmatpush1.bf16.msra.mxu0 0
    %132 = vmatprep.subr.bf16.mxu0 0
    %133 = vmatpush1.bf16.msra.mxu0 0
    %134 = vmatprep.subr.bf16.mxu0 0
    %135 = vmatpush1.bf16.msra.mxu0 0
    %136 = vmatprep.subr.bf16.mxu0 0
    %137 = vmatpush1.bf16.msra.mxu0 0
    %138 = vmatprep.subr.bf16.mxu0 0
    %139 = vmatpush1.bf16.msra.mxu0 0
    %140 = vmatprep.subr.bf16.mxu0 0
    %141 = vmatpush1.bf16.msra.mxu0 0
    %142 = vmatprep.subr.bf16.mxu0 0
    %143 = vmatpush1.bf16.msra.mxu0 0
    %144 = vmatprep.subr.bf16.mxu0 0
    %145 = vmatpush1.bf16.msra.mxu0 0
    %146 = vmatprep.subr.bf16.mxu0 0
    %147 = vmatpush1.bf16.msra.mxu0 0
    %148 = vmatprep.subr.bf16.mxu0 0
    %149 = vmatpush1.bf16.msra.mxu0 0
    %150 = vmatprep.subr.bf16.mxu0 0
    %151 = vmatpush1.bf16.msra.mxu0 0
    %152 = vmatprep.mubr.bf16.mxu0 0
    %153 = vmatmul.mubr.bf16.gmra.mrb[0].mxu0 %v115
    %v154 = vpop.f32.mrb[0].mxu0
    %v155 = vadd.f32 0.0, %v154
    %v156 = vpop.f32.mrb[0].mxu0
    %v157 = vpop.f32.mrb[0].mxu0
    %v158 = vadd.f32 0.0, %v157
    %v159 = vpop.f32.mrb[0].mxu0
    %160 = vmatprep.mubr.bf16.mxu0 0
    %161 = vmatmul.mubr.bf16.gmra.mrb[0].mxu0 %v118
    %v162 = vpop.f32.mrb[0].mxu0
    %v163 = vadd.f32 0.0, %v162
    %v164 = vpop.f32.mrb[0].mxu0
    %v165 = vpop.f32.mrb[0].mxu0
    %v166 = vadd.f32 0.0, %v165
    %v167 = vpop.f32.mrb[0].mxu0
    %168 = vdwg.mxu0
    %v169 = vadd.f32 %v63, %v155
    %v170 = vadd.f32 %v64, %v158
    %v171 = vadd.f32 %v65, %v163
    %v172 = vadd.f32 %v66, %v166
    %173 = vst [vmem:[#allocation2] sm:$0xff] %v169
    %174 = vst [vmem:[#allocation2 + $0x8] sm:$0xff] %v170
    %175 = vst [vmem:[#allocation2 + $0x10] sm:$0xff] %v171
    %176 = vst [vmem:[#allocation2 + $0x18] sm:$0xff] %v172
    // Predicated region
    $region30: #{resnet_forward.18} parent=1 // pred_check
      %p177 = pneg %p55
    $region31: #{resnet_forward.18} parent=1 // pred_check_branch
      %179 = sbr.rel (%p177) target = $region33
    $region32: #{resnet_forward.18} parent=1 // pred_region
      %v180 = vld [vmem:[#allocation2] sm:$0xff]
      %v181 = vld [vmem:[#allocation2 + $0x8] sm:$0xff]
      %v182 = vld [vmem:[#allocation2 + $0x10] sm:$0xff]
      %v183 = vld [vmem:[#allocation2 + $0x18] sm:$0xff]
      %v184 = vld [vmem:[#allocation8] sm:$0x1]
      %v185 = vlaneseq
      %v186 = vshrl.u32 %v185, 7
      %v187 = vsub.s32 0, %v186
      %v188 = vrot.slane %v184, %v187
      %v189 = vmul.f32 %v180, %v188
      %v190 = vmul.f32 %v181, %v188
      %v191 = vmul.f32 %v182, %v188
      %v192 = vmul.f32 %v183, %v188
      %v193 = vld [vmem:[#allocation8 + $0x1] sm:$0x1]
      %v194 = vlaneseq
      %v195 = vshrl.u32 %v194, 7
      %v196 = vsub.s32 0, %v195
      %v197 = vrot.slane %v193, %v196
      %v198 = vadd.f32 %v189, %v197
      %v199 = vadd.f32 %v190, %v197
      %v200 = vadd.f32 %v191, %v197
      %v201 = vadd.f32 %v192, %v197
      %202 = vst [vmem:[#allocation9] sm:$0xff] %v198
      %203 = vst [vmem:[#allocation9 + $0x8] sm:$0xff] %v199
      %204 = vst [vmem:[#allocation9 + $0x10] sm:$0xff] %v200
      %205 = vst [vmem:[#allocation9 + $0x18] sm:$0xff] %v201
    $region33: #{resnet_forward.18} parent=1 // pred_fallthru
      _
    // Predicated region
    $region34: #{resnet_forward.18} parent=1 // pred_check
      _
    $region35: #{resnet_forward.18} parent=1 // pred_check_branch
      %207 = sbr.rel (0) target = $region37
    $region36: #{resnet_forward.18} parent=1 // pred_region
      %s209 = ssub.s32 512, 512
      %210 = vsyncadd [#allocation5], %s209
      %s211 = sshll.u32 [#allocation9], 4
      %s212 = int_to_ptr.vmem [resolvable:$true] %s211
      %217 = dma.vmem_to_hbm [thread:$0]  %s212, 512, %s3, [#allocation5], 128, 128, 8
    $region37: #{resnet_forward.18} parent=1 // pred_fallthru
      _
    // Predicated region
    $region38: #{resnet_forward.18} parent=1 // pred_check
      _
    $region39: #{resnet_forward.18} parent=1 // pred_check_branch
      %219 = sbr.rel (0) target = $region41
    $region40: #{resnet_forward.18} parent=1 // pred_region
      %220 = dma.done [#allocation5], 512
    $region41: #{resnet_forward.18} parent=1 // pred_fallthru
      _
    %221 = vsyncpa [#allocation4], 1
    %222 = vsyncpa [#allocation7], 1
    %223 = vsyncpa [#allocation5], 1

// kernel: resnet_forward.20
$region0: #{resnet_forward.20}
  #allocation0 [shape = 'u32[]', space=smem, size = 0x4, offset = 0x4, fixed_abs, tag = 'smem constant byte address 0x4 - core index']
  #allocation1 [shape = 'u32[144,128]{1,0:T(1,128)}', space=vmem, size = 0x12000, scoped, tag = 'internal scratch']
  #allocation2 [shape = 'f32[32,128]{1,0:T(8,128)}', space=vmem, size = 0x4000, scoped, tag = 'scratch operand']
  %s0 = inlined_call_operand.hbm [shape: bf16[32,1152], index: 0, kind: input, shape index: {}]
  %s1 = inlined_call_operand.hbm [shape: bf16[1152,128], index: 1, kind: input, shape index: {}]
  %s2 = inlined_call_operand.hbm [shape: f32[2,128], index: 2, kind: input, shape index: {}]
  %s3 = inlined_call_operand.hbm [shape: f32[32,128], index: 3, kind: input, shape index: {}]
  %s4 = inlined_call_operand.hbm [shape: f32[32,128], index: 4, kind: output, shape index: {}]
  %s5 = sld [smem:[#allocation0]]
  $region73: #{resnet_forward.20} parent=0
    _
  %s7 = ssub.s32 1, %s5
  %s8 = scalar_select 0, %s7, %s5
  $region1: #{resnet_forward.20} parent=0
    #allocation3 [shape = 'u8[49152]{0}', space=vmem, size = 0xc000, scoped, tag = 'input window, operand 0']
    #allocation4 [shape = 's32[2]{0}', space=sflag, size = 0x8, scoped, tag = 'scoped memory for resnet_forward.20']
    #allocation5 [shape = 's32[2]{0}', space=sflag, size = 0x8, scoped, tag = 'scoped memory for resnet_forward.20']
    #allocation6 [shape = 'u8[196608]{0}', space=vmem, size = 0x30000, scoped, tag = 'input window, operand 1']
    #allocation7 [shape = 's32[2]{0}', space=sflag, size = 0x8, scoped, tag = 'scoped memory for resnet_forward.20']
    #allocation8 [shape = 'u8[1024]{0}', space=vmem, size = 0x400, scoped, tag = 'input window, operand 2, single buffered']
    #allocation9 [shape = 'u8[16384]{0}', space=vmem, size = 0x4000, scoped, tag = 'input window, operand 3, single buffered']
    #allocation10 [shape = 's32[1]{0}', space=sflag, size = 0x4, scoped, tag = 'scoped memory for resnet_forward.20']
    #allocation11 [shape = 'u8[16384]{0}', space=vmem, size = 0x4000, scoped, tag = 'output window, operand 0, single buffered']
    %9 = vsyncpa [#allocation4], 0
    %s10 = scalar_lea.sflag [#allocation4], 1
    %11 = vsyncpa %s10, 0
    %12 = vsyncpa [#allocation7], 0
    %s13 = scalar_lea.sflag [#allocation7], 1
    %14 = vsyncpa %s13, 0
    %15 = vsyncpa [#allocation10], 0
    %16 = vsyncpa [#allocation5], 0
    loop: start=0, step=1, limit=5
    $region2: #{resnet_forward.20} parent=1 // loop_pre_header
      _
    $region3: #{resnet_forward.20} parent=1 // loop_header
      %s18 = sphi 0, %s22
      %p19 = scmp.ge.s32.totalorder %s18, 5
      %s25 = sphi 0, %s44
      %s26 = sphi 0, %s40
      %s27 = sphi 0, %s36
      %s28 = sphi 0, %s25
      %s29 = sphi 0, %s26
      %s30 = sphi 0, %s27
      %s31 = sphi 0, %s28
      %s32 = sphi 0, %s29
      %s33 = sphi 0, %s30
      %s49 = sphi 0, %s51
      %s52 = sphi 0, %s49
      %s53 = sphi 0, %s52
      %s69 = sphi 0, %s53
      %s77 = sphi 0, %s79
      %s80 = sphi 0, %s77
      %s81 = sphi 0, %s80
      %s97 = sphi 0, %s81
      %s103 = sphi 0, %s105
      %s106 = sphi 0, %s103
      %s107 = sphi 0, %s106
      %s123 = sphi 0, %s107
      %s131 = sphi 0, %s133
      %s134 = sphi 0, %s131
      %s135 = sphi 0, %s134
      %s151 = sphi 0, %s135
      %s159 = sphi 0, %s161
      %s162 = sphi 0, %s159
      %s163 = sphi 0, %s162
      %s179 = sphi 0, %s163
    $region4: #{resnet_forward.20} parent=1 // loop_header_branch
      %21 = sbr.rel (%p19) target = $region8
    $region5: #{resnet_forward.20} parent=1 // loop_body
      %s23 = ssub.s32 %s18, 1
      %s24 = ssub.s32 %s18, 2
      %s34 = sadd.s32 1, %s27
      %p35 = scmp.ge.s32.totalorder %s34, 3
      %s36 = scalar_select %p35, 0, %s34
      %s37 = sadd.s32 1, %s26
      %s38 = scalar_select %p35, %s37, %s26
      %p39 = scmp.ge.s32.totalorder %s38, 1
      %s40 = scalar_select %p39, 0, %s38
      %s41 = sadd.s32 1, %s25
      %s42 = scalar_select %p39, %s41, %s25
      %p43 = scmp.ge.s32.totalorder %s42, 1
      %s44 = scalar_select %p43, 0, %s42
      %s45 = ssub.s32 %s25, %s44
      %s46 = ssub.s32 %s27, %s36
      %s47 = sor.u32 %s45, %s46
      %p48 = scmp.eq.s32.totalorder %s47, 0
      %s50 = sadd.s32 %s49, 1
      %s51 = scalar_select %p48, %s49, %s50
      %p54 = pneg %p48
      %p55 = scmp.eq.s32.totalorder %s18, 2
      %p56 = por %p54, %p55
      %p57 = scmp.ne.s32.totalorder %s49, %s52
      %p58 = scmp.eq.s32.totalorder %s18, 0
      %p59 = por %p57, %p58
      %p60 = scmp.ne.s32.totalorder %s49, %s52
      %p61 = scmp.eq.s32.totalorder %s23, 2
      %p62 = por %p60, %p61
      %p63 = scmp.ne.s32.totalorder %s52, %s53
      %p64 = scmp.eq.s32.totalorder %s23, 0
      %p65 = por %p63, %p64
      %p66 = scmp.ne.s32.totalorder %s52, %s53
      %p67 = scmp.eq.s32.totalorder %s24, 2
      %p68 = por %p66, %p67
      %p70 = scmp.ne.s32.totalorder %s53, %s69
      %p71 = scmp.eq.s32.totalorder %s24, 0
      %p72 = por %p70, %p71
      %s73 = ssub.s32 %s27, %s36
      %s74 = ssub.s32 %s26, %s40
      %s75 = sor.u32 %s73, %s74
      %p76 = scmp.eq.s32.totalorder %s75, 0
      %s78 = sadd.s32 %s77, 1
      %s79 = scalar_select %p76, %s77, %s78
      %p82 = pneg %p76
      %p83 = scmp.eq.s32.totalorder %s18, 2
      %p84 = por %p82, %p83
      %p85 = scmp.ne.s32.totalorder %s77, %s80
      %p86 = scmp.eq.s32.totalorder %s18, 0
      %p87 = por %p85, %p86
      %p88 = scmp.ne.s32.totalorder %s77, %s80
      %p89 = scmp.eq.s32.totalorder %s23, 2
      %p90 = por %p88, %p89
      %p91 = scmp.ne.s32.totalorder %s80, %s81
      %p92 = scmp.eq.s32.totalorder %s23, 0
      %p93 = por %p91, %p92
      %p94 = scmp.ne.s32.totalorder %s80, %s81
      %p95 = scmp.eq.s32.totalorder %s24, 2
      %p96 = por %p94, %p95
      %p98 = scmp.ne.s32.totalorder %s81, %s97
      %p99 = scmp.eq.s32.totalorder %s24, 0
      %p100 = por %p98, %p99
      %s101 = ssub.s32 %s26, %s40
      %p102 = scmp.eq.s32.totalorder %s101, 0
      %s104 = sadd.s32 %s103, 1
      %s105 = scalar_select %p102, %s103, %s104
      %p108 = pneg %p102
      %p109 = scmp.eq.s32.totalorder %s18, 2
      %p110 = por %p108, %p109
      %p111 = scmp.ne.s32.totalorder %s103, %s106
      %p112 = scmp.eq.s32.totalorder %s18, 0
      %p113 = por %p111, %p112
      %p114 = scmp.ne.s32.totalorder %s103, %s106
      %p115 = scmp.eq.s32.totalorder %s23, 2
      %p116 = por %p114, %p115
      %p117 = scmp.ne.s32.totalorder %s106, %s107
      %p118 = scmp.eq.s32.totalorder %s23, 0
      %p119 = por %p117, %p118
      %p120 = scmp.ne.s32.totalorder %s106, %s107
      %p121 = scmp.eq.s32.totalorder %s24, 2
      %p122 = por %p120, %p121
      %p124 = scmp.ne.s32.totalorder %s107, %s123
      %p125 = scmp.eq.s32.totalorder %s24, 0
      %p126 = por %p124, %p125
      %s127 = ssub.s32 %s25, %s44
      %s128 = ssub.s32 %s26, %s40
      %s129 = sor.u32 %s127, %s128
      %p130 = scmp.eq.s32.totalorder %s129, 0
      %s132 = sadd.s32 %s131, 1
      %s133 = scalar_select %p130, %s131, %s132
      %p136 = pneg %p130
      %p137 = scmp.eq.s32.totalorder %s18, 2
      %p138 = por %p136, %p137
      %p139 = scmp.ne.s32.totalorder %s131, %s134
      %p140 = scmp.eq.s32.totalorder %s18, 0
      %p141 = por %p139, %p140
      %p142 = scmp.ne.s32.totalorder %s131, %s134
      %p143 = scmp.eq.s32.totalorder %s23, 2
      %p144 = por %p142, %p143
      %p145 = scmp.ne.s32.totalorder %s134, %s135
      %p146 = scmp.eq.s32.totalorder %s23, 0
      %p147 = por %p145, %p146
      %p148 = scmp.ne.s32.totalorder %s134, %s135
      %p149 = scmp.eq.s32.totalorder %s24, 2
      %p150 = por %p148, %p149
      %p152 = scmp.ne.s32.totalorder %s135, %s151
      %p153 = scmp.eq.s32.totalorder %s24, 0
      %p154 = por %p152, %p153
      %s155 = ssub.s32 %s25, %s44
      %s156 = ssub.s32 %s26, %s40
      %s157 = sor.u32 %s155, %s156
      %p158 = scmp.eq.s32.totalorder %s157, 0
      %s160 = sadd.s32 %s159, 1
      %s161 = scalar_select %p158, %s159, %s160
      %p164 = pneg %p158
      %p165 = scmp.eq.s32.totalorder %s18, 2
      %p166 = por %p164, %p165
      %p167 = scmp.ne.s32.totalorder %s159, %s162
      %p168 = scmp.eq.s32.totalorder %s18, 0
      %p169 = por %p167, %p168
      %p170 = scmp.ne.s32.totalorder %s159, %s162
      %p171 = scmp.eq.s32.totalorder %s23, 2
      %p172 = por %p170, %p171
      %p173 = scmp.ne.s32.totalorder %s162, %s163
      %p174 = scmp.eq.s32.totalorder %s23, 0
      %p175 = por %p173, %p174
      %p176 = scmp.ne.s32.totalorder %s162, %s163
      %p177 = scmp.eq.s32.totalorder %s24, 2
      %p178 = por %p176, %p177
      %p180 = scmp.ne.s32.totalorder %s163, %s179
      %p181 = scmp.eq.s32.totalorder %s24, 0
      %p182 = por %p180, %p181
      %p183 = scmp.le.s32.totalorder 1, %s18
      %p184 = scmp.lt.s32.totalorder %s18, 4
      %p185 = pnand %p183, %p184
      %p186 = pneg %p185
      // Predicated region
      $region9: #{resnet_forward.20} parent=5 // pred_check
        _
      $region10: #{resnet_forward.20} parent=5 // pred_check_branch
        %188 = sbr.rel (%p185) target = $region12
      $region11: #{resnet_forward.20} parent=5 // pred_region
        %s189 = ssub.s32 %s18, 1
        // Predicated region
        $region13: #{resnet_forward.20} parent=11 // pred_check
          %p190 = pneg %p119
        $region14: #{resnet_forward.20} parent=11 // pred_check_branch
          %192 = sbr.rel (%p190) target = $region16
        $region15: #{resnet_forward.20} parent=11 // pred_region
          %s194 = ssub.s32 32, 32
          %195 = vsyncadd [#allocation7], %s194
          %s196 = smul.addr %s29, 32
          %s197 = scalar_lea.hbm %s2, %s196
          %s199 = sshll.u32 [#allocation8], 4
          %s200 = int_to_ptr.vmem [resolvable:$true] %s199
          %202 = dma.hbm_to_vmem [thread:$0]  %s197, 32, %s200, [#allocation7]
        $region16: #{resnet_forward.20} parent=11 // pred_fallthru
          _
        // Predicated region
        $region17: #{resnet_forward.20} parent=11 // pred_check
          %p203 = pneg %p147
        $region18: #{resnet_forward.20} parent=11 // pred_check_branch
          %205 = sbr.rel (%p203) target = $region20
        $region19: #{resnet_forward.20} parent=11 // pred_region
          %s206 = smul.u32 4, %s28
          %s208 = ssub.s32 512, 512
          %209 = vsyncadd [#allocation10], %s208
          %s210 = sadd.s32 %s29, %s206
          %s211 = smul.addr %s210, 128
          %s212 = scalar_lea.hbm %s3, %s211
          %s213 = sshll.u32 [#allocation9], 4
          %s214 = int_to_ptr.vmem [resolvable:$true] %s213
          %219 = dma.hbm_to_vmem [thread:$0]  %s212, 512, %s214, [#allocation10], 128, 128, 8
        $region20: #{resnet_forward.20} parent=11 // pred_fallthru
          _
      $region12: #{resnet_forward.20} parent=5 // pred_fallthru
        _
      %p220 = scmp.lt.s32.totalorder %s18, 3
      // Predicated region
      $region21: #{resnet_forward.20} parent=5 // pred_check
        %p221 = pneg %p220
      $region22: #{resnet_forward.20} parent=5 // pred_check_branch
        %223 = sbr.rel (%p221) target = $region24
      $region23: #{resnet_forward.20} parent=5 // pred_region
        // Predicated region
        $region25: #{resnet_forward.20} parent=23 // pred_check
          %p224 = pneg %p59
        $region26: #{resnet_forward.20} parent=23 // pred_check_branch
          %226 = sbr.rel (%p224) target = $region28
        $region27: #{resnet_forward.20} parent=23 // pred_region
          %s227 = sand.u32 %s49, 1
          %s228 = scalar_lea.sflag [#allocation4], %s227
          %s229 = sand.u32 %s49, 1
          %s230 = smul.addr %s229, 48
          %s231 = scalar_lea.vmem [#allocation3], %s230
          %s232 = smul.u32 4, %s25
          %s233 = smul.u32 3, %s27
          %s235 = ssub.s32 768, 768
          %236 = vsyncadd %s228, %s235
          %s237 = smul.addr %s232, 9
          %s238 = sadd.s32 %s233, %s237
          %s239 = smul.addr %s238, 64
          %s240 = scalar_lea.hbm %s0, %s239
          %s241 = sshll.u32 %s231, 4
          %s242 = int_to_ptr.vmem [resolvable:$true] %s241
          %247 = dma.hbm_to_vmem [thread:$0]  %s240, 768, %s242, %s228, 576, 192, 12
        $region28: #{resnet_forward.20} parent=23 // pred_fallthru
          _
        // Predicated region
        $region29: #{resnet_forward.20} parent=23 // pred_check
          %p248 = pneg %p87
        $region30: #{resnet_forward.20} parent=23 // pred_check_branch
          %250 = sbr.rel (%p248) target = $region32
        $region31: #{resnet_forward.20} parent=23 // pred_region
          %s251 = sand.u32 %s18, 1
          %s252 = scalar_lea.sflag [#allocation7], %s251
          %s253 = sand.u32 %s77, 1
          %s254 = smul.addr %s253, 192
          %s255 = scalar_lea.vmem [#allocation6], %s254
          %s256 = smul.u32 48, %s27
          %s258 = ssub.s32 3072, 3072
          %259 = vsyncadd %s252, %s258
          %s260 = sadd.s32 %s26, %s256
          %s261 = smul.addr %s260, 64
          %s262 = scalar_lea.hbm %s1, %s261
          %s263 = sshll.u32 %s255, 4
          %s264 = int_to_ptr.vmem [resolvable:$true] %s263
          %269 = dma.hbm_to_vmem [thread:$0]  %s262, 3072, %s264, %s252, 64, 64, 4
        $region32: #{resnet_forward.20} parent=23 // pred_fallthru
          _
      $region24: #{resnet_forward.20} parent=5 // pred_fallthru
        _
      %p270 = scmp.le.s32.totalorder 1, %s18
      %p271 = scmp.lt.s32.totalorder %s18, 4
      %p272 = pnand %p270, %p271
      %p273 = pneg %p272
      // Predicated region
      $region33: #{resnet_forward.20} parent=5 // pred_check
        _
      $region34: #{resnet_forward.20} parent=5 // pred_check_branch
        %275 = sbr.rel (%p272) target = $region36
      $region35: #{resnet_forward.20} parent=5 // pred_region
        %s276 = ssub.s32 %s18, 1
        %s277 = sand.u32 %s52, 1
        %s278 = scalar_lea.sflag [#allocation4], %s277
        %s279 = sand.u32 %s52, 1
        %s280 = smul.addr %s279, 48
        %s281 = scalar_lea.vmem [#allocation3], %s280
        // Predicated region
        $region37: #{resnet_forward.20} parent=35 // pred_check
          %p282 = pneg %p65
        $region38: #{resnet_forward.20} parent=35 // pred_check_branch
          %284 = sbr.rel (%p282) target = $region40
        $region39: #{resnet_forward.20} parent=35 // pred_region
          %285 = dma.done %s278, 768
        $region40: #{resnet_forward.20} parent=35 // pred_fallthru
          _
        %s286 = sand.u32 %s23, 1
        %s287 = scalar_lea.sflag [#allocation7], %s286
        %s288 = sand.u32 %s80, 1
        %s289 = smul.addr %s288, 192
        %s290 = scalar_lea.vmem [#allocation6], %s289
        // Predicated region
        $region41: #{resnet_forward.20} parent=35 // pred_check
          %p291 = pneg %p93
        $region42: #{resnet_forward.20} parent=35 // pred_check_branch
          %293 = sbr.rel (%p291) target = $region44
        $region43: #{resnet_forward.20} parent=35 // pred_region
          %294 = dma.done %s287, 3072
        $region44: #{resnet_forward.20} parent=35 // pred_fallthru
          _
        // Predicated region
        $region45: #{resnet_forward.20} parent=35 // pred_check
          %p295 = pneg %p119
        $region46: #{resnet_forward.20} parent=35 // pred_check_branch
          %297 = sbr.rel (%p295) target = $region48
        $region47: #{resnet_forward.20} parent=35 // pred_region
          %298 = dma.done [#allocation7], 32
        $region48: #{resnet_forward.20} parent=35 // pred_fallthru
          _
        // Predicated region
        $region49: #{resnet_forward.20} parent=35 // pred_check
          %p299 = pneg %p147
        $region50: #{resnet_forward.20} parent=35 // pred_check_branch
          %301 = sbr.rel (%p299) target = $region52
        $region51: #{resnet_forward.20} parent=35 // pred_region
          %302 = dma.done [#allocation10], 512
        $region52: #{resnet_forward.20} parent=35 // pred_fallthru
          _
        %s303 = sand.u32 %s52, 1
        %s304 = scalar_lea.sflag [#allocation4], %s303
        %s305 = sand.u32 %s52, 1
        %s306 = smul.addr %s305, 48
        %s307 = scalar_lea.vmem [#allocation3], %s306
        %p308 = pneg %p65
        %p309 = pneg %p62
        %s310 = sand.u32 %s23, 1
        %s311 = scalar_lea.sflag [#allocation7], %s310
        %s312 = sand.u32 %s80, 1
        %s313 = smul.addr %s312, 192
        %s314 = scalar_lea.vmem [#allocation6], %s313
        %p315 = pneg %p93
        %p316 = pneg %p90
        %p317 = pneg %p119
        %p318 = pneg %p116
        %p319 = pneg %p147
        %p320 = pneg %p144
        %p321 = pneg %p175
        %p322 = pneg %p172
        %s323 = smul.u32 4, %s28
        %s324 = smul.u32 3, %s30
        %s325 = smul.u32 48, %s30
        %s326 = smul.u32 4, %s28
        %s327 = smul.u32 4, %s28
        %p329 = scmp.eq.s32.totalorder %s30, 0
        // Predicated region
        $region53: #{resnet_forward.20} parent=35 // pred_check
          %p330 = pneg %p329
        $region54: #{resnet_forward.20} parent=35 // pred_check_branch
          %332 = sbr.rel (%p330) target = $region56
        $region55: #{resnet_forward.20} parent=35 // pred_region
          %333 = vst [vmem:[#allocation2] sm:$0xff] 0.0
          %334 = vst [vmem:[#allocation2 + $0x8] sm:$0xff] 0.0
          %335 = vst [vmem:[#allocation2 + $0x10] sm:$0xff] 0.0
          %336 = vst [vmem:[#allocation2 + $0x18] sm:$0xff] 0.0
        $region56: #{resnet_forward.20} parent=35 // pred_fallthru
          _
        %v337 = vld [vmem:[#allocation2] sm:$0xff]
        %v338 = vld [vmem:[#allocation2 + $0x8] sm:$0xff]
        %v339 = vld [vmem:[#allocation2 + $0x10] sm:$0xff]
        %v340 = vld [vmem:[#allocation2 + $0x18] sm:$0xff]
        %v341 = vld [vmem:[%s281] sm:$0xff]
        %v342 = vld [vmem:[%s281 + $0x8] sm:$0xf]
        %v343 = vld [vmem:[%s281 + $0xc] sm:$0xff]
        %v344 = vld [vmem:[%s281 + $0x14] sm:$0xf]
        %v345 = vld [vmem:[%s281 + $0x18] sm:$0xff]
        %v346 = vld [vmem:[%s281 + $0x20] sm:$0xf]
        %v347 = vld [vmem:[%s281 + $0x24] sm:$0xff]
        %v348 = vld [vmem:[%s281 + $0x2c] sm:$0xf]
        %v349 = vld [vmem:[%s290] sm:$0xf]
        %v350 = vld [vmem:[%s290 + $0x4] sm:$0xf]
        %v351 = vld [vmem:[%s290 + $0x8] sm:$0xf]
        %v352 = vld [vmem:[%s290 + $0xc] sm:$0xf]
        %v353 = vld [vmem:[%s290 + $0x10] sm:$0xf]
        %v354 = vld [vmem:[%s290 + $0x14] sm:$0xf]
        %v355 = vld [vmem:[%s290 + $0x18] sm:$0xf]
        %v356 = vld [vmem:[%s290 + $0x1c] sm:$0xf]
        %v357 = vld [vmem:[%s290 + $0x20] sm:$0xf]
        %v358 = vld [vmem:[%s290 + $0x24] sm:$0xf]
        %v359 = vld [vmem:[%s290 + $0x28] sm:$0xf]
        %v360 = vld [vmem:[%s290 + $0x2c] sm:$0xf]
        %v361 = vld [vmem:[%s290 + $0x30] sm:$0xf]
        %v362 = vld [vmem:[%s290 + $0x34] sm:$0xf]
        %v363 = vld [vmem:[%s290 + $0x38] sm:$0xf]
        %v364 = vld [vmem:[%s290 + $0x3c] sm:$0xf]
        %v365 = vld [vmem:[%s290 + $0x40] sm:$0xf]
        %v366 = vld [vmem:[%s290 + $0x44] sm:$0xf]
        %v367 = vld [vmem:[%s290 + $0x48] sm:$0xf]
        %v368 = vld [vmem:[%s290 + $0x4c] sm:$0xf]
        %v369 = vld [vmem:[%s290 + $0x50] sm:$0xf]
        %v370 = vld [vmem:[%s290 + $0x54] sm:$0xf]
        %v371 = vld [vmem:[%s290 + $0x58] sm:$0xf]
        %v372 = vld [vmem:[%s290 + $0x5c] sm:$0xf]
        %v373 = vld [vmem:[%s290 + $0x60] sm:$0xf]
        %v374 = vld [vmem:[%s290 + $0x64] sm:$0xf]
        %v375 = vld [vmem:[%s290 + $0x68] sm:$0xf]
        %v376 = vld [vmem:[%s290 + $0x6c] sm:$0xf]
        %v377 = vld [vmem:[%s290 + $0x70] sm:$0xf]
        %v378 = vld [vmem:[%s290 + $0x74] sm:$0xf]
        %v379 = vld [vmem:[%s290 + $0x78] sm:$0xf]
        %v380 = vld [vmem:[%s290 + $0x7c] sm:$0xf]
        %v381 = vld [vmem:[%s290 + $0x80] sm:$0xf]
        %v382 = vld [vmem:[%s290 + $0x84] sm:$0xf]
        %v383 = vld [vmem:[%s290 + $0x88] sm:$0xf]
        %v384 = vld [vmem:[%s290 + $0x8c] sm:$0xf]
        %v385 = vld [vmem:[%s290 + $0x90] sm:$0xf]
        %v386 = vld [vmem:[%s290 + $0x94] sm:$0xf]
        %v387 = vld [vmem:[%s290 + $0x98] sm:$0xf]
        %v388 = vld [vmem:[%s290 + $0x9c] sm:$0xf]
        %v389 = vld [vmem:[%s290 + $0xa0] sm:$0xf]
        %v390 = vld [vmem:[%s290 + $0xa4] sm:$0xf]
        %v391 = vld [vmem:[%s290 + $0xa8] sm:$0xf]
        %v392 = vld [vmem:[%s290 + $0xac] sm:$0xf]
        %v393 = vld [vmem:[%s290 + $0xb0] sm:$0xf]
        %v394 = vld [vmem:[%s290 + $0xb4] sm:$0xf]
        %v395 = vld [vmem:[%s290 + $0xb8] sm:$0xf]
        %v396 = vld [vmem:[%s290 + $0xbc] sm:$0xf]
        %v405 = vunpack.c.l.b16 %v341
        %v406 = vunpack.c.h.b16 %v341
        %v407 = vunpack.c.l.b16 %v342
        %v408 = vunpack.c.l.b16 %v343
        %v409 = vunpack.c.h.b16 %v343
        %v410 = vunpack.c.l.b16 %v344
        %v411 = vunpack.c.l.b16 %v345
        %v412 = vunpack.c.h.b16 %v345
        %v413 = vunpack.c.l.b16 %v346
        %v414 = vunpack.c.l.b16 %v347
        %v415 = vunpack.c.h.b16 %v347
        %v416 = vunpack.c.l.b16 %v348
        %v417 = vpack.c.b16 %v408, %v405
        %v418 = vpack.c.b16 %v409, %v406
        %v419 = vpack.c.b16 %v410, %v407
        %v420 = vpack.c.b16 %v414, %v411
        %v421 = vpack.c.b16 %v415, %v412
        %v422 = vpack.c.b16 %v416, %v413
        %v477 = vunpack.c.l.b16 %v349
        %v478 = vunpack.c.l.b16 %v350
        %v479 = vunpack.c.l.b16 %v351
        %v480 = vunpack.c.l.b16 %v352
        %v481 = vunpack.c.l.b16 %v353
        %v482 = vunpack.c.l.b16 %v354
        %v483 = vunpack.c.l.b16 %v355
        %v484 = vunpack.c.l.b16 %v356
        %v485 = vunpack.c.l.b16 %v357
        %v486 = vunpack.c.l.b16 %v358
        %v487 = vunpack.c.l.b16 %v359
        %v488 = vunpack.c.l.b16 %v360
        %v489 = vunpack.c.l.b16 %v361
        %v490 = vunpack.c.l.b16 %v362
        %v491 = vunpack.c.l.b16 %v363
        %v492 = vunpack.c.l.b16 %v364
        %v493 = vunpack.c.l.b16 %v365
        %v494 = vunpack.c.l.b16 %v366
        %v495 = vunpack.c.l.b16 %v367
        %v496 = vunpack.c.l.b16 %v368
        %v497 = vunpack.c.l.b16 %v369
        %v498 = vunpack.c.l.b16 %v370
        %v499 = vunpack.c.l.b16 %v371
        %v500 = vunpack.c.l.b16 %v372
        %v501 = vunpack.c.l.b16 %v373
        %v502 = vunpack.c.l.b16 %v374
        %v503 = vunpack.c.l.b16 %v375
        %v504 = vunpack.c.l.b16 %v376
        %v505 = vunpack.c.l.b16 %v377
        %v506 = vunpack.c.l.b16 %v378
        %v507 = vunpack.c.l.b16 %v379
        %v508 = vunpack.c.l.b16 %v380
        %v509 = vunpack.c.l.b16 %v381
        %v510 = vunpack.c.l.b16 %v382
        %v511 = vunpack.c.l.b16 %v383
        %v512 = vunpack.c.l.b16 %v384
        %v513 = vunpack.c.l.b16 %v385
        %v514 = vunpack.c.l.b16 %v386
        %v515 = vunpack.c.l.b16 %v387
        %v516 = vunpack.c.l.b16 %v388
        %v517 = vunpack.c.l.b16 %v389
        %v518 = vunpack.c.l.b16 %v390
        %v519 = vunpack.c.l.b16 %v391
        %v520 = vunpack.c.l.b16 %v392
        %v521 = vunpack.c.l.b16 %v393
        %v522 = vunpack.c.l.b16 %v394
        %v523 = vunpack.c.l.b16 %v395
        %v524 = vunpack.c.l.b16 %v396
        %v525 = vpack.c.b16 %v478, %v477
        %v526 = vpack.c.b16 %v480, %v479
        %v527 = vpack.c.b16 %v482, %v481
        %v528 = vpack.c.b16 %v484, %v483
        %v529 = vpack.c.b16 %v486, %v485
        %v530 = vpack.c.b16 %v488, %v487
        %v531 = vpack.c.b16 %v490, %v489
        %v532 = vpack.c.b16 %v492, %v491
        %v533 = vpack.c.b16 %v494, %v493
        %v534 = vpack.c.b16 %v496, %v495
        %v535 = vpack.c.b16 %v498, %v497
        %v536 = vpack.c.b16 %v500, %v499
        %v537 = vpack.c.b16 %v502, %v501
        %v538 = vpack.c.b16 %v504, %v503
        %v539 = vpack.c.b16 %v506, %v505
        %v540 = vpack.c.b16 %v508, %v507
        %v541 = vpack.c.b16 %v510, %v509
        %v542 = vpack.c.b16 %v512, %v511
        %v543 = vpack.c.b16 %v514, %v513
        %v544 = vpack.c.b16 %v516, %v515
        %v545 = vpack.c.b16 %v518, %v517
        %v546 = vpack.c.b16 %v520, %v519
        %v547 = vpack.c.b16 %v522, %v521
        %v548 = vpack.c.b16 %v524, %v523
        %573 = vmatprep.subr.bf16.mxu0 0
        %574 = vmatpush1.bf16.msra.mxu0 %v525
        %575 = vmatprep.subr.bf16.mxu0 0
        %576 = vmatpush1.bf16.msra.mxu0 %v526
        %577 = vmatprep.subr.bf16.mxu0 0
        %578 = vmatpush1.bf16.msra.mxu0 %v527
        %579 = vmatprep.subr.bf16.mxu0 0
        %580 = vmatpush1.bf16.msra.mxu0 %v528
        %581 = vmatprep.subr.bf16.mxu0 0
        %582 = vmatpush1.bf16.msra.mxu0 %v529
        %583 = vmatprep.subr.bf16.mxu0 0
        %584 = vmatpush1.bf16.msra.mxu0 %v530
        %585 = vmatprep.subr.bf16.mxu0 0
        %586 = vmatpush1.bf16.msra.mxu0 %v531
        %587 = vmatprep.subr.bf16.mxu0 0
        %588 = vmatpush1.bf16.msra.mxu0 %v532
        %589 = vmatprep.subr.bf16.mxu0 0
        %590 = vmatpush1.bf16.msra.mxu0 %v533
        %591 = vmatprep.subr.bf16.mxu0 0
        %592 = vmatpush1.bf16.msra.mxu0 %v534
        %593 = vmatprep.subr.bf16.mxu0 0
        %594 = vmatpush1.bf16.msra.mxu0 %v535
        %595 = vmatprep.subr.bf16.mxu0 0
        %596 = vmatpush1.bf16.msra.mxu0 %v536
        %597 = vmatprep.subr.bf16.mxu0 0
        %598 = vmatpush1.bf16.msra.mxu0 %v537
        %599 = vmatprep.subr.bf16.mxu0 0
        %600 = vmatpush1.bf16.msra.mxu0 %v538
        %601 = vmatprep.subr.bf16.mxu0 0
        %602 = vmatpush1.bf16.msra.mxu0 %v539
        %603 = vmatprep.subr.bf16.mxu0 0
        %604 = vmatpush1.bf16.msra.mxu0 %v540
        %605 = vmatprep.mubr.bf16.mxu0 %v418
        %606 = vmatmul.mubr.bf16.gmra.mrb[0].mxu0 %v417
        %v607 = vpop.f32.mrb[0].mxu0
        %v608 = vadd.f32 0.0, %v607
        %v609 = vpop.f32.mrb[0].mxu0
        %v610 = vpop.f32.mrb[0].mxu0
        %v611 = vadd.f32 0.0, %v610
        %v612 = vpop.f32.mrb[0].mxu0
        %613 = vmatprep.mubr.bf16.mxu0 %v421
        %614 = vmatmul.mubr.bf16.gmra.mrb[0].mxu0 %v420
        %v615 = vpop.f32.mrb[0].mxu0
        %v616 = vadd.f32 0.0, %v615
        %v617 = vpop.f32.mrb[0].mxu0
        %v618 = vpop.f32.mrb[0].mxu0
        %v619 = vadd.f32 0.0, %v618
        %v620 = vpop.f32.mrb[0].mxu0
        %621 = vdwg.mxu0
        %622 = vmatprep.subr.bf16.mxu0 0
        %623 = vmatpush1.bf16.msra.mxu0 %v541
        %624 = vmatprep.subr.bf16.mxu0 0
        %625 = vmatpush1.bf16.msra.mxu0 %v542
        %626 = vmatprep.subr.bf16.mxu0 0
        %627 = vmatpush1.bf16.msra.mxu0 %v543
        %628 = vmatprep.subr.bf16.mxu0 0
        %629 = vmatpush1.bf16.msra.mxu0 %v544
        %630 = vmatprep.subr.bf16.mxu0 0
        %631 = vmatpush1.bf16.msra.mxu0 %v545
        %632 = vmatprep.subr.bf16.mxu0 0
        %633 = vmatpush1.bf16.msra.mxu0 %v546
        %634 = vmatprep.subr.bf16.mxu0 0
        %635 = vmatpush1.bf16.msra.mxu0 %v547
        %636 = vmatprep.subr.bf16.mxu0 0
        %637 = vmatpush1.bf16.msra.mxu0 %v548
        %638 = vmatprep.subr.bf16.mxu0 0
        %639 = vmatpush1.bf16.msra.mxu0 0
        %640 = vmatprep.subr.bf16.mxu0 0
        %641 = vmatpush1.bf16.msra.mxu0 0
        %642 = vmatprep.subr.bf16.mxu0 0
        %643 = vmatpush1.bf16.msra.mxu0 0
        %644 = vmatprep.subr.bf16.mxu0 0
        %645 = vmatpush1.bf16.msra.mxu0 0
        %646 = vmatprep.subr.bf16.mxu0 0
        %647 = vmatpush1.bf16.msra.mxu0 0
        %648 = vmatprep.subr.bf16.mxu0 0
        %649 = vmatpush1.bf16.msra.mxu0 0
        %650 = vmatprep.subr.bf16.mxu0 0
        %651 = vmatpush1.bf16.msra.mxu0 0
        %652 = vmatprep.subr.bf16.mxu0 0
        %653 = vmatpush1.bf16.msra.mxu0 0
        %654 = vmatprep.mubr.bf16.mxu0 0
        %655 = vmatmul.mubr.bf16.gmra.mrb[0].mxu0 %v419
        %v656 = vpop.f32.mrb[0].mxu0
        %v657 = vadd.f32 %v608, %v656
        %v658 = vpop.f32.mrb[0].mxu0
        %v659 = vpop.f32.mrb[0].mxu0
        %v660 = vadd.f32 %v611, %v659
        %v661 = vpop.f32.mrb[0].mxu0
        %662 = vmatprep.mubr.bf16.mxu0 0
        %663 = vmatmul.mubr.bf16.gmra.mrb[0].mxu0 %v422
        %v664 = vpop.f32.mrb[0].mxu0
        %v665 = vadd.f32 %v616, %v664
        %v666 = vpop.f32.mrb[0].mxu0
        %v667 = vpop.f32.mrb[0].mxu0
        %v668 = vadd.f32 %v619, %v667
        %v669 = vpop.f32.mrb[0].mxu0
        %670 = vdwg.mxu0
        %v671 = vadd.f32 %v337, %v657
        %v672 = vadd.f32 %v338, %v660
        %v673 = vadd.f32 %v339, %v665
        %v674 = vadd.f32 %v340, %v668
        %675 = vst [vmem:[#allocation2] sm:$0xff] %v671
        %676 = vst [vmem:[#allocation2 + $0x8] sm:$0xff] %v672
        %677 = vst [vmem:[#allocation2 + $0x10] sm:$0xff] %v673
        %678 = vst [vmem:[#allocation2 + $0x18] sm:$0xff] %v674
        %p679 = scmp.eq.s32.totalorder %s30, 2
        // Predicated region
        $region57: #{resnet_forward.20} parent=35 // pred_check
          %p680 = pneg %p679
        $region58: #{resnet_forward.20} parent=35 // pred_check_branch
          %682 = sbr.rel (%p680) target = $region60
        $region59: #{resnet_forward.20} parent=35 // pred_region
          %v683 = vld [vmem:[#allocation2] sm:$0xff]
          %v684 = vld [vmem:[#allocation2 + $0x8] sm:$0xff]
          %v685 = vld [vmem:[#allocation2 + $0x10] sm:$0xff]
          %v686 = vld [vmem:[#allocation2 + $0x18] sm:$0xff]
          %v687 = vld [vmem:[#allocation8] sm:$0x1]
          %v688 = vlaneseq
          %v689 = vshrl.u32 %v688, 7
          %v690 = vsub.s32 0, %v689
          %v691 = vrot.slane %v687, %v690
          %v692 = vmul.f32 %v683, %v691
          %v693 = vmul.f32 %v684, %v691
          %v694 = vmul.f32 %v685, %v691
          %v695 = vmul.f32 %v686, %v691
          %v696 = vld [vmem:[#allocation8 + $0x1] sm:$0x1]
          %v697 = vlaneseq
          %v698 = vshrl.u32 %v697, 7
          %v699 = vsub.s32 0, %v698
          %v700 = vrot.slane %v696, %v699
          %v701 = vadd.f32 %v692, %v700
          %v702 = vadd.f32 %v693, %v700
          %v703 = vadd.f32 %v694, %v700
          %v704 = vadd.f32 %v695, %v700
          %v705 = vld [vmem:[#allocation9] sm:$0xff]
          %v706 = vld [vmem:[#allocation9 + $0x8] sm:$0xff]
          %v707 = vld [vmem:[#allocation9 + $0x10] sm:$0xff]
          %v708 = vld [vmem:[#allocation9 + $0x18] sm:$0xff]
          %v709 = vadd.f32 %v701, %v705
          %v710 = vadd.f32 %v702, %v706
          %v711 = vadd.f32 %v703, %v707
          %v712 = vadd.f32 %v704, %v708
          %v713 = vmax.f32 %v709, 0.0
          %v714 = vmax.f32 %v710, 0.0
          %v715 = vmax.f32 %v711, 0.0
          %v716 = vmax.f32 %v712, 0.0
          %717 = vst [vmem:[#allocation11] sm:$0xff] %v713
          %718 = vst [vmem:[#allocation11 + $0x8] sm:$0xff] %v714
          %719 = vst [vmem:[#allocation11 + $0x10] sm:$0xff] %v715
          %720 = vst [vmem:[#allocation11 + $0x18] sm:$0xff] %v716
        $region60: #{resnet_forward.20} parent=35 // pred_fallthru
          _
        // Predicated region
        $region61: #{resnet_forward.20} parent=35 // pred_check
          %p721 = pneg %p172
        $region62: #{resnet_forward.20} parent=35 // pred_check_branch
          %723 = sbr.rel (%p721) target = $region64
        $region63: #{resnet_forward.20} parent=35 // pred_region
          %s724 = smul.u32 4, %s28
          %s726 = ssub.s32 512, 512
          %727 = vsyncadd [#allocation5], %s726
          %s728 = sadd.s32 %s29, %s724
          %s729 = smul.addr %s728, 128
          %s730 = scalar_lea.hbm %s4, %s729
          %s731 = sshll.u32 [#allocation11], 4
          %s732 = int_to_ptr.vmem [resolvable:$true] %s731
          %737 = dma.vmem_to_hbm [thread:$0]  %s732, 512, %s730, [#allocation5], 128, 128, 8
        $region64: #{resnet_forward.20} parent=35 // pred_fallthru
          _
        // Predicated region
        $region65: #{resnet_forward.20} parent=35 // pred_check
          %p738 = pneg %p172
        $region66: #{resnet_forward.20} parent=35 // pred_check_branch
          %740 = sbr.rel (%p738) target = $region68
        $region67: #{resnet_forward.20} parent=35 // pred_region
          %741 = dma.done [#allocation5], 512
        $region68: #{resnet_forward.20} parent=35 // pred_fallthru
          _
      $region36: #{resnet_forward.20} parent=5 // pred_fallthru
        _
      %p742 = scmp.le.s32.totalorder 2, %s18
      // Predicated region
      $region69: #{resnet_forward.20} parent=5 // pred_check
        %p743 = pneg %p742
      $region70: #{resnet_forward.20} parent=5 // pred_check_branch
        %745 = sbr.rel (%p743) target = $region72
      $region71: #{resnet_forward.20} parent=5 // pred_region
        %s746 = ssub.s32 %s18, 2
      $region72: #{resnet_forward.20} parent=5 // pred_fallthru
        _
    $region6: #{resnet_forward.20} parent=1 // loop_footer
      %s22 = sadd.s32 1, %s18
    $region7: #{resnet_forward.20} parent=1 // loop_footer_branch
      %17 = sbr.rel target = $region3
    $region8: #{resnet_forward.20} parent=1 // loop_exit
      _
    %747 = vsyncpa [#allocation4], 1
    %s748 = scalar_lea.sflag [#allocation4], 1
    %749 = vsyncpa %s748, 1
    %750 = vsyncpa [#allocation7], 1
    %s751 = scalar_lea.sflag [#allocation7], 1
    %752 = vsyncpa %s751, 1
    %753 = vsyncpa [#allocation10], 1
    %754 = vsyncpa [#allocation5], 1
    %s755 = scalar_lea.sflag [#allocation5], 1
    %756 = vsyncpa %s755, 1

// kernel: resnet_forward.22
$region0: #{resnet_forward.22}
  #allocation0 [shape = 'u32[]', space=smem, size = 0x4, offset = 0x4, fixed_abs, tag = 'smem constant byte address 0x4 - core index']
  #allocation1 [shape = 'u32[144,128]{1,0:T(1,128)}', space=vmem, size = 0x12000, scoped, tag = 'internal scratch']
  #allocation2 [shape = 'f32[8,256]{1,0:T(8,128)}', space=vmem, size = 0x2000, scoped, tag = 'scratch operand']
  %s0 = inlined_call_operand.hbm [shape: bf16[8,1152], index: 0, kind: input, shape index: {}]
  %s1 = inlined_call_operand.hbm [shape: bf16[1152,256], index: 1, kind: input, shape index: {}]
  %s2 = inlined_call_operand.hbm [shape: f32[2,256], index: 2, kind: input, shape index: {}]
  %s3 = inlined_call_operand.hbm [shape: f32[8,256], index: 3, kind: output, shape index: {}]
  %s4 = sld [smem:[#allocation0]]
  $region65: #{resnet_forward.22} parent=0
    _
  %s6 = ssub.s32 1, %s4
  %s7 = scalar_select 0, %s6, %s4
  $region1: #{resnet_forward.22} parent=0
    #allocation3 [shape = 'u8[12288]{0}', space=vmem, size = 0x3000, scoped, tag = 'input window, operand 0']
    #allocation4 [shape = 's32[2]{0}', space=sflag, size = 0x8, scoped, tag = 'scoped memory for resnet_forward.22']
    #allocation5 [shape = 's32[2]{0}', space=sflag, size = 0x8, scoped, tag = 'scoped memory for resnet_forward.22']
    #allocation6 [shape = 'u8[393216]{0}', space=vmem, size = 0x60000, scoped, tag = 'input window, operand 1']
    #allocation7 [shape = 's32[2]{0}', space=sflag, size = 0x8, scoped, tag = 'scoped memory for resnet_forward.22']
    #allocation8 [shape = 'u8[2048]{0}', space=vmem, size = 0x800, scoped, tag = 'input window, operand 2, single buffered']
    #allocation9 [shape = 'u8[8192]{0}', space=vmem, size = 0x2000, scoped, tag = 'output window, operand 0, single buffered']
    %8 = vsyncpa [#allocation4], 0
    %s9 = scalar_lea.sflag [#allocation4], 1
    %10 = vsyncpa %s9, 0
    %11 = vsyncpa [#allocation7], 0
    %s12 = scalar_lea.sflag [#allocation7], 1
    %13 = vsyncpa %s12, 0
    %14 = vsyncpa [#allocation5], 0
    loop: start=0, step=1, limit=5
    $region2: #{resnet_forward.22} parent=1 // loop_pre_header
      _
    $region3: #{resnet_forward.22} parent=1 // loop_header
      %s16 = sphi 0, %s20
      %p17 = scmp.ge.s32.totalorder %s16, 5
      %s23 = sphi 0, %s42
      %s24 = sphi 0, %s38
      %s25 = sphi 0, %s34
      %s26 = sphi 0, %s23
      %s27 = sphi 0, %s24
      %s28 = sphi 0, %s25
      %s29 = sphi 0, %s26
      %s30 = sphi 0, %s27
      %s31 = sphi 0, %s28
      %s47 = sphi 0, %s49
      %s50 = sphi 0, %s47
      %s51 = sphi 0, %s50
      %s67 = sphi 0, %s51
      %s75 = sphi 0, %s77
      %s78 = sphi 0, %s75
      %s79 = sphi 0, %s78
      %s95 = sphi 0, %s79
      %s101 = sphi 0, %s103
      %s104 = sphi 0, %s101
      %s105 = sphi 0, %s104
      %s121 = sphi 0, %s105
      %s129 = sphi 0, %s131
      %s132 = sphi 0, %s129
      %s133 = sphi 0, %s132
      %s149 = sphi 0, %s133
    $region4: #{resnet_forward.22} parent=1 // loop_header_branch
      %19 = sbr.rel (%p17) target = $region8
    $region5: #{resnet_forward.22} parent=1 // loop_body
      %s21 = ssub.s32 %s16, 1
      %s22 = ssub.s32 %s16, 2
      %s32 = sadd.s32 1, %s25
      %p33 = scmp.ge.s32.totalorder %s32, 3
      %s34 = scalar_select %p33, 0, %s32
      %s35 = sadd.s32 1, %s24
      %s36 = scalar_select %p33, %s35, %s24
      %p37 = scmp.ge.s32.totalorder %s36, 1
      %s38 = scalar_select %p37, 0, %s36
      %s39 = sadd.s32 1, %s23
      %s40 = scalar_select %p37, %s39, %s23
      %p41 = scmp.ge.s32.totalorder %s40, 1
      %s42 = scalar_select %p41, 0, %s40
      %s43 = ssub.s32 %s23, %s42
      %s44 = ssub.s32 %s25, %s34
      %s45 = sor.u32 %s43, %s44
      %p46 = scmp.eq.s32.totalorder %s45, 0
      %s48 = sadd.s32 %s47, 1
      %s49 = scalar_select %p46, %s47, %s48
      %p52 = pneg %p46
      %p53 = scmp.eq.s32.totalorder %s16, 2
      %p54 = por %p52, %p53
      %p55 = scmp.ne.s32.totalorder %s47, %s50
      %p56 = scmp.eq.s32.totalorder %s16, 0
      %p57 = por %p55, %p56
      %p58 = scmp.ne.s32.totalorder %s47, %s50
      %p59 = scmp.eq.s32.totalorder %s21, 2
      %p60 = por %p58, %p59
      %p61 = scmp.ne.s32.totalorder %s50, %s51
      %p62 = scmp.eq.s32.totalorder %s21, 0
      %p63 = por %p61, %p62
      %p64 = scmp.ne.s32.totalorder %s50, %s51
      %p65 = scmp.eq.s32.totalorder %s22, 2
      %p66 = por %p64, %p65
      %p68 = scmp.ne.s32.totalorder %s51, %s67
      %p69 = scmp.eq.s32.totalorder %s22, 0
      %p70 = por %p68, %p69
      %s71 = ssub.s32 %s25, %s34
      %s72 = ssub.s32 %s24, %s38
      %s73 = sor.u32 %s71, %s72
      %p74 = scmp.eq.s32.totalorder %s73, 0
      %s76 = sadd.s32 %s75, 1
      %s77 = scalar_select %p74, %s75, %s76
      %p80 = pneg %p74
      %p81 = scmp.eq.s32.totalorder %s16, 2
      %p82 = por %p80, %p81
      %p83 = scmp.ne.s32.totalorder %s75, %s78
      %p84 = scmp.eq.s32.totalorder %s16, 0
      %p85 = por %p83, %p84
      %p86 = scmp.ne.s32.totalorder %s75, %s78
      %p87 = scmp.eq.s32.totalorder %s21, 2
      %p88 = por %p86, %p87
      %p89 = scmp.ne.s32.totalorder %s78, %s79
      %p90 = scmp.eq.s32.totalorder %s21, 0
      %p91 = por %p89, %p90
      %p92 = scmp.ne.s32.totalorder %s78, %s79
      %p93 = scmp.eq.s32.totalorder %s22, 2
      %p94 = por %p92, %p93
      %p96 = scmp.ne.s32.totalorder %s79, %s95
      %p97 = scmp.eq.s32.totalorder %s22, 0
      %p98 = por %p96, %p97
      %s99 = ssub.s32 %s24, %s38
      %p100 = scmp.eq.s32.totalorder %s99, 0
      %s102 = sadd.s32 %s101, 1
      %s103 = scalar_select %p100, %s101, %s102
      %p106 = pneg %p100
      %p107 = scmp.eq.s32.totalorder %s16, 2
      %p108 = por %p106, %p107
      %p109 = scmp.ne.s32.totalorder %s101, %s104
      %p110 = scmp.eq.s32.totalorder %s16, 0
      %p111 = por %p109, %p110
      %p112 = scmp.ne.s32.totalorder %s101, %s104
      %p113 = scmp.eq.s32.totalorder %s21, 2
      %p114 = por %p112, %p113
      %p115 = scmp.ne.s32.totalorder %s104, %s105
      %p116 = scmp.eq.s32.totalorder %s21, 0
      %p117 = por %p115, %p116
      %p118 = scmp.ne.s32.totalorder %s104, %s105
      %p119 = scmp.eq.s32.totalorder %s22, 2
      %p120 = por %p118, %p119
      %p122 = scmp.ne.s32.totalorder %s105, %s121
      %p123 = scmp.eq.s32.totalorder %s22, 0
      %p124 = por %p122, %p123
      %s125 = ssub.s32 %s23, %s42
      %s126 = ssub.s32 %s24, %s38
      %s127 = sor.u32 %s125, %s126
      %p128 = scmp.eq.s32.totalorder %s127, 0
      %s130 = sadd.s32 %s129, 1
      %s131 = scalar_select %p128, %s129, %s130
      %p134 = pneg %p128
      %p135 = scmp.eq.s32.totalorder %s16, 2
      %p136 = por %p134, %p135
      %p137 = scmp.ne.s32.totalorder %s129, %s132
      %p138 = scmp.eq.s32.totalorder %s16, 0
      %p139 = por %p137, %p138
      %p140 = scmp.ne.s32.totalorder %s129, %s132
      %p141 = scmp.eq.s32.totalorder %s21, 2
      %p142 = por %p140, %p141
      %p143 = scmp.ne.s32.totalorder %s132, %s133
      %p144 = scmp.eq.s32.totalorder %s21, 0
      %p145 = por %p143, %p144
      %p146 = scmp.ne.s32.totalorder %s132, %s133
      %p147 = scmp.eq.s32.totalorder %s22, 2
      %p148 = por %p146, %p147
      %p150 = scmp.ne.s32.totalorder %s133, %s149
      %p151 = scmp.eq.s32.totalorder %s22, 0
      %p152 = por %p150, %p151
      %p153 = scmp.le.s32.totalorder 1, %s16
      %p154 = scmp.lt.s32.totalorder %s16, 4
      %p155 = pnand %p153, %p154
      %p156 = pneg %p155
      // Predicated region
      $region9: #{resnet_forward.22} parent=5 // pred_check
        _
      $region10: #{resnet_forward.22} parent=5 // pred_check_branch
        %158 = sbr.rel (%p155) target = $region12
      $region11: #{resnet_forward.22} parent=5 // pred_region
        %s159 = ssub.s32 %s16, 1
        // Predicated region
        $region13: #{resnet_forward.22} parent=11 // pred_check
          %p160 = pneg %p117
        $region14: #{resnet_forward.22} parent=11 // pred_check_branch
          %162 = sbr.rel (%p160) target = $region16
        $region15: #{resnet_forward.22} parent=11 // pred_region
          %s163 = smul.u32 2, %s27
          %s165 = ssub.s32 64, 64
          %166 = vsyncadd [#allocation7], %s165
          %s167 = smul.addr %s163, 32
          %s168 = scalar_lea.hbm %s2, %s167
          %s170 = sshll.u32 [#allocation8], 4
          %s171 = int_to_ptr.vmem [resolvable:$true] %s170
          %173 = dma.hbm_to_vmem [thread:$0]  %s168, 64, %s171, [#allocation7]
        $region16: #{resnet_forward.22} parent=11 // pred_fallthru
          _
      $region12: #{resnet_forward.22} parent=5 // pred_fallthru
        _
      %p174 = scmp.lt.s32.totalorder %s16, 3
      // Predicated region
      $region17: #{resnet_forward.22} parent=5 // pred_check
        %p175 = pneg %p174
      $region18: #{resnet_forward.22} parent=5 // pred_check_branch
        %177 = sbr.rel (%p175) target = $region20
      $region19: #{resnet_forward.22} parent=5 // pred_region
        // Predicated region
        $region21: #{resnet_forward.22} parent=19 // pred_check
          %p178 = pneg %p57
        $region22: #{resnet_forward.22} parent=19 // pred_check_branch
          %180 = sbr.rel (%p178) target = $region24
        $region23: #{resnet_forward.22} parent=19 // pred_region
          %s181 = sand.u32 %s47, 1
          %s182 = scalar_lea.sflag [#allocation4], %s181
          %s183 = sand.u32 %s47, 1
          %s184 = smul.addr %s183, 12
          %s185 = scalar_lea.vmem [#allocation3], %s184
          %s186 = smul.u32 3, %s25
          %s188 = ssub.s32 192, 192
          %189 = vsyncadd %s182, %s188
          %s190 = smul.addr %s23, 9
          %s191 = sadd.s32 %s186, %s190
          %s192 = smul.addr %s191, 64
          %s193 = scalar_lea.hbm %s0, %s192
          %s195 = sshll.u32 %s185, 4
          %s196 = int_to_ptr.vmem [resolvable:$true] %s195
          %198 = dma.hbm_to_vmem [thread:$0]  %s193, 192, %s196, %s182
        $region24: #{resnet_forward.22} parent=19 // pred_fallthru
          _
        // Predicated region
        $region25: #{resnet_forward.22} parent=19 // pred_check
          %p199 = pneg %p85
        $region26: #{resnet_forward.22} parent=19 // pred_check_branch
          %201 = sbr.rel (%p199) target = $region28
        $region27: #{resnet_forward.22} parent=19 // pred_region
          %s202 = sand.u32 %s16, 1
          %s203 = scalar_lea.sflag [#allocation7], %s202
          %s204 = sand.u32 %s75, 1
          %s205 = smul.addr %s204, 384
          %s206 = scalar_lea.vmem [#allocation6], %s205
          %s207 = smul.u32 48, %s25
          %s208 = smul.u32 2, %s24
          %s210 = ssub.s32 6144, 6144
          %211 = vsyncadd %s203, %s210
          %s212 = smul.addr %s207, 2
          %s213 = sadd.s32 %s208, %s212
          %s214 = smul.addr %s213, 64
          %s215 = scalar_lea.hbm %s1, %s214
          %s216 = sshll.u32 %s206, 4
          %s217 = int_to_ptr.vmem [resolvable:$true] %s216
          %222 = dma.hbm_to_vmem [thread:$0]  %s215, 6144, %s217, %s203, 128, 128, 8
        $region28: #{resnet_forward.22} parent=19 // pred_fallthru
          _
      $region20: #{resnet_forward.22} parent=5 // pred_fallthru
        _
      %p223 = scmp.le.s32.totalorder 1, %s16
      %p224 = scmp.lt.s32.totalorder %s16, 4
      %p225 = pnand %p223, %p224
      %p226 = pneg %p225
      // Predicated region
      $region29: #{resnet_forward.22} parent=5 // pred_check
        _
      $region30: #{resnet_forward.22} parent=5 // pred_check_branch
        %228 = sbr.rel (%p225) target = $region32
      $region31: #{resnet_forward.22} parent=5 // pred_region
        %s229 = ssub.s32 %s16, 1
        %s230 = sand.u32 %s50, 1
        %s231 = scalar_lea.sflag [#allocation4], %s230
        %s232 = sand.u32 %s50, 1
        %s233 = smul.addr %s232, 12
        %s234 = scalar_lea.vmem [#allocation3], %s233
        // Predicated region
        $region33: #{resnet_forward.22} parent=31 // pred_check
          %p235 = pneg %p63
        $region34: #{resnet_forward.22} parent=31 // pred_check_branch
          %237 = sbr.rel (%p235) target = $region36
        $region35: #{resnet_forward.22} parent=31 // pred_region
          %238 = dma.done %s231, 192
        $region36: #{resnet_forward.22} parent=31 // pred_fallthru
          _
        %s239 = sand.u32 %s21, 1
        %s240 = scalar_lea.sflag [#allocation7], %s239
        %s241 = sand.u32 %s78, 1
        %s242 = smul.addr %s241, 384
        %s243 = scalar_lea.vmem [#allocation6], %s242
        // Predicated region
        $region37: #{resnet_forward.22} parent=31 // pred_check
          %p244 = pneg %p91
        $region38: #{resnet_forward.22} parent=31 // pred_check_branch
          %246 = sbr.rel (%p244) target = $region40
        $region39: #{resnet_forward.22} parent=31 // pred_region
          %247 = dma.done %s240, 6144
        $region40: #{resnet_forward.22} parent=31 // pred_fallthru
          _
        // Predicated region
        $region41: #{resnet_forward.22} parent=31 // pred_check
          %p248 = pneg %p117
        $region42: #{resnet_forward.22} parent=31 // pred_check_branch
          %250 = sbr.rel (%p248) target = $region44
        $region43: #{resnet_forward.22} parent=31 // pred_region
          %251 = dma.done [#allocation7], 64
        $region44: #{resnet_forward.22} parent=31 // pred_fallthru
          _
        %s252 = sand.u32 %s50, 1
        %s253 = scalar_lea.sflag [#allocation4], %s252
        %s254 = sand.u32 %s50, 1
        %s255 = smul.addr %s254, 12
        %s256 = scalar_lea.vmem [#allocation3], %s255
        %p257 = pneg %p63
        %p258 = pneg %p60
        %s259 = sand.u32 %s21, 1
        %s260 = scalar_lea.sflag [#allocation7], %s259
        %s261 = sand.u32 %s78, 1
        %s262 = smul.addr %s261, 384
        %s263 = scalar_lea.vmem [#allocation6], %s262
        %p264 = pneg %p91
        %p265 = pneg %p88
        %p266 = pneg %p117
        %p267 = pneg %p114
        %p268 = pneg %p145
        %p269 = pneg %p142
        %s270 = smul.u32 3, %s28
        %s271 = smul.u32 48, %s28
        %s272 = smul.u32 2, %s27
        %s273 = smul.u32 2, %s27
        %s274 = smul.u32 2, %s27
        %p276 = scmp.eq.s32.totalorder %s28, 0
        // Predicated region
        $region45: #{resnet_forward.22} parent=31 // pred_check
          %p277 = pneg %p276
        $region46: #{resnet_forward.22} parent=31 // pred_check_branch
          %279 = sbr.rel (%p277) target = $region48
        $region47: #{resnet_forward.22} parent=31 // pred_region
          %280 = vst [vmem:[#allocation2] sm:$0xff] 0.0
          %281 = vst [vmem:[#allocation2 + $0x8] sm:$0xff] 0.0
        $region48: #{resnet_forward.22} parent=31 // pred_fallthru
          _
        %v282 = vld [vmem:[#allocation2] sm:$0xff]
        %v283 = vld [vmem:[#allocation2 + $0x8] sm:$0xff]
        %v284 = vld [vmem:[%s234] sm:$0xff]
        %v285 = vld [vmem:[%s234 + $0x8] sm:$0xf]
        %v286 = vld [vmem:[%s243] sm:$0xff]
        %v287 = vld [vmem:[%s243 + $0x8] sm:$0xff]
        %v288 = vld [vmem:[%s243 + $0x10] sm:$0xff]
        %v289 = vld [vmem:[%s243 + $0x18] sm:$0xff]
        %v290 = vld [vmem:[%s243 + $0x20] sm:$0xff]
        %v291 = vld [vmem:[%s243 + $0x28] sm:$0xff]
        %v292 = vld [vmem:[%s243 + $0x30] sm:$0xff]
        %v293 = vld [vmem:[%s243 + $0x38] sm:$0xff]
        %v294 = vld [vmem:[%s243 + $0x40] sm:$0xff]
        %v295 = vld [vmem:[%s243 + $0x48] sm:$0xff]
        %v296 = vld [vmem:[%s243 + $0x50] sm:$0xff]
        %v297 = vld [vmem:[%s243 + $0x58] sm:$0xff]
        %v298 = vld [vmem:[%s243 + $0x60] sm:$0xff]
        %v299 = vld [vmem:[%s243 + $0x68] sm:$0xff]
        %v300 = vld [vmem:[%s243 + $0x70] sm:$0xff]
        %v301 = vld [vmem:[%s243 + $0x78] sm:$0xff]
        %v302 = vld [vmem:[%s243 + $0x80] sm:$0xff]
        %v303 = vld [vmem:[%s243 + $0x88] sm:$0xff]
        %v304 = vld [vmem:[%s243 + $0x90] sm:$0xff]
        %v305 = vld [vmem:[%s243 + $0x98] sm:$0xff]
        %v306 = vld [vmem:[%s243 + $0xa0] sm:$0xff]
        %v307 = vld [vmem:[%s243 + $0xa8] sm:$0xff]
        %v308 = vld [vmem:[%s243 + $0xb0] sm:$0xff]
        %v309 = vld [vmem:[%s243 + $0xb8] sm:$0xff]
        %v310 = vld [vmem:[%s243 + $0xc0] sm:$0xff]
        %v311 = vld [vmem:[%s243 + $0xc8] sm:$0xff]
        %v312 = vld [vmem:[%s243 + $0xd0] sm:$0xff]
        %v313 = vld [vmem:[%s243 + $0xd8] sm:$0xff]
        %v314 = vld [vmem:[%s243 + $0xe0] sm:$0xff]
        %v315 = vld [vmem:[%s243 + $0xe8] sm:$0xff]
        %v316 = vld [vmem:[%s243 + $0xf0] sm:$0xff]
        %v317 = vld [vmem:[%s243 + $0xf8] sm:$0xff]
        %v318 = vld [vmem:[%s243 + $0x100] sm:$0xff]
        %v319 = vld [vmem:[%s243 + $0x108] sm:$0xff]
        %v320 = vld [vmem:[%s243 + $0x110] sm:$0xff]
        %v321 = vld [vmem:[%s243 + $0x118] sm:$0xff]
        %v322 = vld [vmem:[%s243 + $0x120] sm:$0xff]
        %v323 = vld [vmem:[%s243 + $0x128] sm:$0xff]
        %v324 = vld [vmem:[%s243 + $0x130] sm:$0xff]
        %v325 = vld [vmem:[%s243 + $0x138] sm:$0xff]
        %v326 = vld [vmem:[%s243 + $0x140] sm:$0xff]
        %v327 = vld [vmem:[%s243 + $0x148] sm:$0xff]
        %v328 = vld [vmem:[%s243 + $0x150] sm:$0xff]
        %v329 = vld [vmem:[%s243 + $0x158] sm:$0xff]
        %v330 = vld [vmem:[%s243 + $0x160] sm:$0xff]
        %v331 = vld [vmem:[%s243 + $0x168] sm:$0xff]
        %v332 = vld [vmem:[%s243 + $0x170] sm:$0xff]
        %v333 = vld [vmem:[%s243 + $0x178] sm:$0xff]
        %v336 = vunpack.c.l.b16 %v284
        %v337 = vunpack.c.h.b16 %v284
        %v338 = vunpack.c.l.b16 %v285
        %v339 = vpack.c.b16 %v336, %v336
        %v340 = vpack.c.b16 %v337, %v337
        %v341 = vpack.c.b16 %v338, %v338
        %v393 = vunpack.c.l.b16 %v286
        %v394 = vunpack.c.h.b16 %v286
        %v395 = vunpack.c.l.b16 %v287
        %v396 = vunpack.c.h.b16 %v287
        %v397 = vunpack.c.l.b16 %v288
        %v398 = vunpack.c.h.b16 %v288
        %v399 = vunpack.c.l.b16 %v289
        %v400 = vunpack.c.h.b16 %v289
        %v401 = vunpack.c.l.b16 %v290
        %v402 = vunpack.c.h.b16 %v290
        %v403 = vunpack.c.l.b16 %v291
        %v404 = vunpack.c.h.b16 %v291
        %v405 = vunpack.c.l.b16 %v292
        %v406 = vunpack.c.h.b16 %v292
        %v407 = vunpack.c.l.b16 %v293
        %v408 = vunpack.c.h.b16 %v293
        %v409 = vunpack.c.l.b16 %v294
        %v410 = vunpack.c.h.b16 %v294
        %v411 = vunpack.c.l.b16 %v295
        %v412 = vunpack.c.h.b16 %v295
        %v413 = vunpack.c.l.b16 %v296
        %v414 = vunpack.c.h.b16 %v296
        %v415 = vunpack.c.l.b16 %v297
        %v416 = vunpack.c.h.b16 %v297
        %v417 = vunpack.c.l.b16 %v298
        %v418 = vunpack.c.h.b16 %v298
        %v419 = vunpack.c.l.b16 %v299
        %v420 = vunpack.c.h.b16 %v299
        %v421 = vunpack.c.l.b16 %v300
        %v422 = vunpack.c.h.b16 %v300
        %v423 = vunpack.c.l.b16 %v301
        %v424 = vunpack.c.h.b16 %v301
        %v425 = vunpack.c.l.b16 %v302
        %v426 = vunpack.c.h.b16 %v302
        %v427 = vunpack.c.l.b16 %v303
        %v428 = vunpack.c.h.b16 %v303
        %v429 = vunpack.c.l.b16 %v304
        %v430 = vunpack.c.h.b16 %v304
        %v431 = vunpack.c.l.b16 %v305
        %v432 = vunpack.c.h.b16 %v305
        %v433 = vunpack.c.l.b16 %v306
        %v434 = vunpack.c.h.b16 %v306
        %v435 = vunpack.c.l.b16 %v307
        %v436 = vunpack.c.h.b16 %v307
        %v437 = vunpack.c.l.b16 %v308
        %v438 = vunpack.c.h.b16 %v308
        %v439 = vunpack.c.l.b16 %v309
        %v440 = vunpack.c.h.b16 %v309
        %v441 = vunpack.c.l.b16 %v310
        %v442 = vunpack.c.h.b16 %v310
        %v443 = vunpack.c.l.b16 %v311
        %v444 = vunpack.c.h.b16 %v311
        %v445 = vunpack.c.l.b16 %v312
        %v446 = vunpack.c.h.b16 %v312
        %v447 = vunpack.c.l.b16 %v313
        %v448 = vunpack.c.h.b16 %v313
        %v449 = vunpack.c.l.b16 %v314
        %v450 = vunpack.c.h.b16 %v314
        %v451 = vunpack.c.l.b16 %v315
        %v452 = vunpack.c.h.b16 %v315
        %v453 = vunpack.c.l.b16 %v316
        %v454 = vunpack.c.h.b16 %v316
        %v455 = vunpack.c.l.b16 %v317
        %v456 = vunpack.c.h.b16 %v317
        %v457 = vunpack.c.l.b16 %v318
        %v458 = vunpack.c.h.b16 %v318
        %v459 = vunpack.c.l.b16 %v319
        %v460 = vunpack.c.h.b16 %v319
        %v461 = vunpack.c.l.b16 %v320
        %v462 = vunpack.c.h.b16 %v320
        %v463 = vunpack.c.l.b16 %v321
        %v464 = vunpack.c.h.b16 %v321
        %v465 = vunpack.c.l.b16 %v322
        %v466 = vunpack.c.h.b16 %v322
        %v467 = vunpack.c.l.b16 %v323
        %v468 = vunpack.c.h.b16 %v323
        %v469 = vunpack.c.l.b16 %v324
        %v470 = vunpack.c.h.b16 %v324
        %v471 = vunpack.c.l.b16 %v325
        %v472 = vunpack.c.h.b16 %v325
        %v473 = vunpack.c.l.b16 %v326
        %v474 = vunpack.c.h.b16 %v326
        %v475 = vunpack.c.l.b16 %v327
        %v476 = vunpack.c.h.b16 %v327
        %v477 = vunpack.c.l.b16 %v328
        %v478 = vunpack.c.h.b16 %v328
        %v479 = vunpack.c.l.b16 %v329
        %v480 = vunpack.c.h.b16 %v329
        %v481 = vunpack.c.l.b16 %v330
        %v482 = vunpack.c.h.b16 %v330
        %v483 = vunpack.c.l.b16 %v331
        %v484 = vunpack.c.h.b16 %v331
        %v485 = vunpack.c.l.b16 %v332
        %v486 = vunpack.c.h.b16 %v332
        %v487 = vunpack.c.l.b16 %v333
        %v488 = vunpack.c.h.b16 %v333
        %v489 = vpack.c.b16 %v395, %v393
        %v490 = vpack.c.b16 %v396, %v394
        %v491 = vpack.c.b16 %v399, %v397
        %v492 = vpack.c.b16 %v400, %v398
        %v493 = vpack.c.b16 %v403, %v401
        %v494 = vpack.c.b16 %v404, %v402
        %v495 = vpack.c.b16 %v407, %v405
        %v496 = vpack.c.b16 %v408, %v406
        %v497 = vpack.c.b16 %v411, %v409
        %v498 = vpack.c.b16 %v412, %v410
        %v499 = vpack.c.b16 %v415, %v413
        %v500 = vpack.c.b16 %v416, %v414
        %v501 = vpack.c.b16 %v419, %v417
        %v502 = vpack.c.b16 %v420, %v418
        %v503 = vpack.c.b16 %v423, %v421
        %v504 = vpack.c.b16 %v424, %v422
        %v505 = vpack.c.b16 %v427, %v425
        %v506 = vpack.c.b16 %v428, %v426
        %v507 = vpack.c.b16 %v431, %v429
        %v508 = vpack.c.b16 %v432, %v430
        %v509 = vpack.c.b16 %v435, %v433
        %v510 = vpack.c.b16 %v436, %v434
        %v511 = vpack.c.b16 %v439, %v437
        %v512 = vpack.c.b16 %v440, %v438
        %v513 = vpack.c.b16 %v443, %v441
        %v514 = vpack.c.b16 %v444, %v442
        %v515 = vpack.c.b16 %v447, %v445
        %v516 = vpack.c.b16 %v448, %v446
        %v517 = vpack.c.b16 %v451, %v449
        %v518 = vpack.c.b16 %v452, %v450
        %v519 = vpack.c.b16 %v455, %v453
        %v520 = vpack.c.b16 %v456, %v454
        %v521 = vpack.c.b16 %v459, %v457
        %v522 = vpack.c.b16 %v460, %v458
        %v523 = vpack.c.b16 %v463, %v461
        %v524 = vpack.c.b16 %v464, %v462
        %v525 = vpack.c.b16 %v467, %v465
        %v526 = vpack.c.b16 %v468, %v466
        %v527 = vpack.c.b16 %v471, %v469
        %v528 = vpack.c.b16 %v472, %v470
        %v529 = vpack.c.b16 %v475, %v473
        %v530 = vpack.c.b16 %v476, %v474
        %v531 = vpack.c.b16 %v479, %v477
        %v532 = vpack.c.b16 %v480, %v478
        %v533 = vpack.c.b16 %v483, %v481
        %v534 = vpack.c.b16 %v484, %v482
        %v535 = vpack.c.b16 %v487, %v485
        %v536 = vpack.c.b16 %v488, %v486
        %585 = vmatprep.subr.bf16.mxu0 %v490
        %586 = vmatpush1.bf16.msra.mxu0 %v489
        %587 = vmatprep.subr.bf16.mxu0 %v492
        %588 = vmatpush1.bf16.msra.mxu0 %v491
        %589 = vmatprep.subr.bf16.mxu0 %v494
        %590 = vmatpush1.bf16.msra.mxu0 %v493
        %591 = vmatprep.subr.bf16.mxu0 %v496
        %592 = vmatpush1.bf16.msra.mxu0 %v495
        %593 = vmatprep.subr.bf16.mxu0 %v498
        %594 = vmatpush1.bf16.msra.mxu0 %v497
        %595 = vmatprep.subr.bf16.mxu0 %v500
        %596 = vmatpush1.bf16.msra.mxu0 %v499
        %597 = vmatprep.subr.bf16.mxu0 %v502
        %598 = vmatpush1.bf16.msra.mxu0 %v501
        %599 = vmatprep.subr.bf16.mxu0 %v504
        %600 = vmatpush1.bf16.msra.mxu0 %v503
        %601 = vmatprep.subr.bf16.mxu0 %v506
        %602 = vmatpush1.bf16.msra.mxu0 %v505
        %603 = vmatprep.subr.bf16.mxu0 %v508
        %604 = vmatpush1.bf16.msra.mxu0 %v507
        %605 = vmatprep.subr.bf16.mxu0 %v510
        %606 = vmatpush1.bf16.msra.mxu0 %v509
        %607 = vmatprep.subr.bf16.mxu0 %v512
        %608 = vmatpush1.bf16.msra.mxu0 %v511
        %609 = vmatprep.subr.bf16.mxu0 %v514
        %610 = vmatpush1.bf16.msra.mxu0 %v513
        %611 = vmatprep.subr.bf16.mxu0 %v516
        %612 = vmatpush1.bf16.msra.mxu0 %v515
        %613 = vmatprep.subr.bf16.mxu0 %v518
        %614 = vmatpush1.bf16.msra.mxu0 %v517
        %615 = vmatprep.subr.bf16.mxu0 %v520
        %616 = vmatpush1.bf16.msra.mxu0 %v519
        %617 = vmatprep.mubr.bf16.mxu0 %v340
        %618 = vmatmul.mubr.bf16.gmra.mrb[0].mxu0 %v339
        %v619 = vpop.f32.mrb[0].mxu0
        %v620 = vadd.f32 0.0, %v619
        %v621 = vpop.f32.mrb[0].mxu0
        %v622 = vadd.f32 0.0, %v621
        %v623 = vpop.f32.mrb[0].mxu0
        %v624 = vpop.f32.mrb[0].mxu0
        %625 = vdwg.mxu0
        %626 = vmatprep.subr.bf16.mxu0 %v522
        %627 = vmatpush1.bf16.msra.mxu0 %v521
        %628 = vmatprep.subr.bf16.mxu0 %v524
        %629 = vmatpush1.bf16.msra.mxu0 %v523
        %630 = vmatprep.subr.bf16.mxu0 %v526
        %631 = vmatpush1.bf16.msra.mxu0 %v525
        %632 = vmatprep.subr.bf16.mxu0 %v528
        %633 = vmatpush1.bf16.msra.mxu0 %v527
        %634 = vmatprep.subr.bf16.mxu0 %v530
        %635 = vmatpush1.bf16.msra.mxu0 %v529
        %636 = vmatprep.subr.bf16.mxu0 %v532
        %637 = vmatpush1.bf16.msra.mxu0 %v531
        %638 = vmatprep.subr.bf16.mxu0 %v534
        %639 = vmatpush1.bf16.msra.mxu0 %v533
        %640 = vmatprep.subr.bf16.mxu0 %v536
        %641 = vmatpush1.bf16.msra.mxu0 %v535
        %642 = vmatprep.subr.bf16.mxu0 0
        %643 = vmatpush1.bf16.msra.mxu0 0
        %644 = vmatprep.subr.bf16.mxu0 0
        %645 = vmatpush1.bf16.msra.mxu0 0
        %646 = vmatprep.subr.bf16.mxu0 0
        %647 = vmatpush1.bf16.msra.mxu0 0
        %648 = vmatprep.subr.bf16.mxu0 0
        %649 = vmatpush1.bf16.msra.mxu0 0
        %650 = vmatprep.subr.bf16.mxu0 0
        %651 = vmatpush1.bf16.msra.mxu0 0
        %652 = vmatprep.subr.bf16.mxu0 0
        %653 = vmatpush1.bf16.msra.mxu0 0
        %654 = vmatprep.subr.bf16.mxu0 0
        %655 = vmatpush1.bf16.msra.mxu0 0
        %656 = vmatprep.subr.bf16.mxu0 0
        %657 = vmatpush1.bf16.msra.mxu0 0
        %658 = vmatprep.mubr.bf16.mxu0 0
        %659 = vmatmul.mubr.bf16.gmra.mrb[0].mxu0 %v341
        %v660 = vpop.f32.mrb[0].mxu0
        %v661 = vadd.f32 %v620, %v660
        %v662 = vpop.f32.mrb[0].mxu0
        %v663 = vadd.f32 %v622, %v662
        %v664 = vpop.f32.mrb[0].mxu0
        %v665 = vpop.f32.mrb[0].mxu0
        %666 = vdwg.mxu0
        %v667 = vadd.f32 %v282, %v661
        %v668 = vadd.f32 %v283, %v663
        %669 = vst [vmem:[#allocation2] sm:$0xff] %v667
        %670 = vst [vmem:[#allocation2 + $0x8] sm:$0xff] %v668
        %p671 = scmp.eq.s32.totalorder %s28, 2
        // Predicated region
        $region49: #{resnet_forward.22} parent=31 // pred_check
          %p672 = pneg %p671
        $region50: #{resnet_forward.22} parent=31 // pred_check_branch
          %674 = sbr.rel (%p672) target = $region52
        $region51: #{resnet_forward.22} parent=31 // pred_region
          %v675 = vld [vmem:[#allocation2] sm:$0xff]
          %v676 = vld [vmem:[#allocation2 + $0x8] sm:$0xff]
          %v677 = vld [vmem:[#allocation8] ss:$2 sm:$0x3]
          %v679 = vlaneseq
          %v680 = vshrl.u32 %v679, 7
          %v681 = vsub.s32 0, %v680
          %v682 = vrot.slane %v677, %v681
          %v683 = vlaneseq
          %v684 = vshrl.u32 %v683, 7
          %v685 = vsub.s32 1, %v684
          %v686 = vrot.slane %v677, %v685
          %v689 = vmul.f32 %v675, %v682
          %v690 = vmul.f32 %v676, %v686
          %s691 = scalar_lea.vmem [#allocation8], 1
          %v692 = vld [vmem:[%s691] ss:$2 sm:$0x3]
          %v694 = vlaneseq
          %v695 = vshrl.u32 %v694, 7
          %v696 = vsub.s32 0, %v695
          %v697 = vrot.slane %v692, %v696
          %v698 = vlaneseq
          %v699 = vshrl.u32 %v698, 7
          %v700 = vsub.s32 1, %v699
          %v701 = vrot.slane %v692, %v700
          %v704 = vadd.f32 %v689, %v697
          %v705 = vadd.f32 %v690, %v701
          %v706 = vmax.f32 %v704, 0.0
          %v707 = vmax.f32 %v705, 0.0
          %708 = vst [vmem:[#allocation9] sm:$0xff] %v706
          %709 = vst [vmem:[#allocation9 + $0x8] sm:$0xff] %v707
        $region52: #{resnet_forward.22} parent=31 // pred_fallthru
          _
        // Predicated region
        $region53: #{resnet_forward.22} parent=31 // pred_check
          %p710 = pneg %p142
        $region54: #{resnet_forward.22} parent=31 // pred_check_branch
          %712 = sbr.rel (%p710) target = $region56
        $region55: #{resnet_forward.22} parent=31 // pred_region
          %s713 = smul.u32 2, %s27
          %s715 = ssub.s32 256, 256
          %716 = vsyncadd [#allocation5], %s715
          %s717 = smul.addr %s26, 2
          %s718 = sadd.s32 %s713, %s717
          %s719 = smul.addr %s718, 128
          %s720 = scalar_lea.hbm %s3, %s719
          %s722 = sshll.u32 [#allocation9], 4
          %s723 = int_to_ptr.vmem [resolvable:$true] %s722
          %725 = dma.vmem_to_hbm [thread:$0]  %s723, 256, %s720, [#allocation5]
        $region56: #{resnet_forward.22} parent=31 // pred_fallthru
          _
        // Predicated region
        $region57: #{resnet_forward.22} parent=31 // pred_check
          %p726 = pneg %p142
        $region58: #{resnet_forward.22} parent=31 // pred_check_branch
          %728 = sbr.rel (%p726) target = $region60
        $region59: #{resnet_forward.22} parent=31 // pred_region
          %729 = dma.done [#allocation5], 256
        $region60: #{resnet_forward.22} parent=31 // pred_fallthru
          _
      $region32: #{resnet_forward.22} parent=5 // pred_fallthru
        _
      %p730 = scmp.le.s32.totalorder 2, %s16
      // Predicated region
      $region61: #{resnet_forward.22} parent=5 // pred_check
        %p731 = pneg %p730
      $region62: #{resnet_forward.22} parent=5 // pred_check_branch
        %733 = sbr.rel (%p731) target = $region64
      $region63: #{resnet_forward.22} parent=5 // pred_region
        %s734 = ssub.s32 %s16, 2
      $region64: #{resnet_forward.22} parent=5 // pred_fallthru
        _
    $region6: #{resnet_forward.22} parent=1 // loop_footer
      %s20 = sadd.s32 1, %s16
    $region7: #{resnet_forward.22} parent=1 // loop_footer_branch
      %15 = sbr.rel target = $region3
    $region8: #{resnet_forward.22} parent=1 // loop_exit
      _
    %735 = vsyncpa [#allocation4], 1
    %s736 = scalar_lea.sflag [#allocation4], 1
    %737 = vsyncpa %s736, 1
    %738 = vsyncpa [#allocation7], 1
    %s739 = scalar_lea.sflag [#allocation7], 1
    %740 = vsyncpa %s739, 1
    %741 = vsyncpa [#allocation5], 1
    %s742 = scalar_lea.sflag [#allocation5], 1
    %743 = vsyncpa %s742, 1

// kernel: resnet_forward.21
$region0: #{resnet_forward.21}
  #allocation0 [shape = 'u32[]', space=smem, size = 0x4, offset = 0x4, fixed_abs, tag = 'smem constant byte address 0x4 - core index']
  #allocation1 [shape = 'u32[144,128]{1,0:T(1,128)}', space=vmem, size = 0x12000, scoped, tag = 'internal scratch']
  #allocation2 [shape = 'f32[8,256]{1,0:T(8,128)}', space=vmem, size = 0x2000, scoped, tag = 'scratch operand']
  %s0 = inlined_call_operand.hbm [shape: bf16[8,128], index: 0, kind: input, shape index: {}]
  %s1 = inlined_call_operand.hbm [shape: bf16[128,256], index: 1, kind: input, shape index: {}]
  %s2 = inlined_call_operand.hbm [shape: f32[2,256], index: 2, kind: input, shape index: {}]
  %s3 = inlined_call_operand.hbm [shape: f32[8,256], index: 3, kind: output, shape index: {}]
  %s4 = sld [smem:[#allocation0]]
  $region42: #{resnet_forward.21} parent=0
    _
  %s6 = ssub.s32 1, %s4
  %s7 = scalar_select 0, %s6, %s4
  $region1: #{resnet_forward.21} parent=0
    #allocation3 [shape = 'u8[2048]{0}', space=vmem, size = 0x800, scoped, tag = 'input window, operand 0, single buffered']
    #allocation4 [shape = 's32[1]{0}', space=sflag, size = 0x4, scoped, tag = 'scoped memory for resnet_forward.21']
    #allocation5 [shape = 's32[1]{0}', space=sflag, size = 0x4, scoped, tag = 'scoped memory for resnet_forward.21']
    #allocation6 [shape = 'u8[65536]{0}', space=vmem, size = 0x10000, scoped, tag = 'input window, operand 1, single buffered']
    #allocation7 [shape = 's32[1]{0}', space=sflag, size = 0x4, scoped, tag = 'scoped memory for resnet_forward.21']
    #allocation8 [shape = 'u8[2048]{0}', space=vmem, size = 0x800, scoped, tag = 'input window, operand 2, single buffered']
    #allocation9 [shape = 'u8[8192]{0}', space=vmem, size = 0x2000, scoped, tag = 'output window, operand 0, single buffered']
    %8 = vsyncpa [#allocation4], 0
    %9 = vsyncpa [#allocation7], 0
    %10 = vsyncpa [#allocation5], 0
    // Predicated region
    $region2: #{resnet_forward.21} parent=1 // pred_check
      _
    $region3: #{resnet_forward.21} parent=1 // pred_check_branch
      %12 = sbr.rel (0) target = $region5
    $region4: #{resnet_forward.21} parent=1 // pred_region
      %s14 = ssub.s32 64, 64
      %15 = vsyncadd [#allocation4], %s14
      %s17 = sshll.u32 [#allocation3], 4
      %s18 = int_to_ptr.vmem [resolvable:$true] %s17
      %20 = dma.hbm_to_vmem [thread:$0]  %s0, 64, %s18, [#allocation4]
    $region5: #{resnet_forward.21} parent=1 // pred_fallthru
      _
    // Predicated region
    $region6: #{resnet_forward.21} parent=1 // pred_check
      _
    $region7: #{resnet_forward.21} parent=1 // pred_check_branch
      %22 = sbr.rel (0) target = $region9
    $region8: #{resnet_forward.21} parent=1 // pred_region
      %s24 = ssub.s32 2048, 2048
      %25 = vsyncadd [#allocation7], %s24
      %s26 = sshll.u32 [#allocation6], 4
      %s27 = int_to_ptr.vmem [resolvable:$true] %s26
      %32 = dma.hbm_to_vmem [thread:$0]  %s1, 2048, %s27, [#allocation7], 128, 128, 8
    $region9: #{resnet_forward.21} parent=1 // pred_fallthru
      _
    // Predicated region
    $region10: #{resnet_forward.21} parent=1 // pred_check
      _
    $region11: #{resnet_forward.21} parent=1 // pred_check_branch
      %34 = sbr.rel (0) target = $region13
    $region12: #{resnet_forward.21} parent=1 // pred_region
      %s36 = ssub.s32 64, 64
      %37 = vsyncadd [#allocation7], %s36
      %s39 = sshll.u32 [#allocation8], 4
      %s40 = int_to_ptr.vmem [resolvable:$true] %s39
      %42 = dma.hbm_to_vmem [thread:$0]  %s2, 64, %s40, [#allocation7]
    $region13: #{resnet_forward.21} parent=1 // pred_fallthru
      _
    // Predicated region
    $region14: #{resnet_forward.21} parent=1 // pred_check
      _
    $region15: #{resnet_forward.21} parent=1 // pred_check_branch
      %44 = sbr.rel (0) target = $region17
    $region16: #{resnet_forward.21} parent=1 // pred_region
      %45 = dma.done [#allocation4], 64
    $region17: #{resnet_forward.21} parent=1 // pred_fallthru
      _
    // Predicated region
    $region18: #{resnet_forward.21} parent=1 // pred_check
      _
    $region19: #{resnet_forward.21} parent=1 // pred_check_branch
      %47 = sbr.rel (0) target = $region21
    $region20: #{resnet_forward.21} parent=1 // pred_region
      %48 = dma.done [#allocation7], 2048
    $region21: #{resnet_forward.21} parent=1 // pred_fallthru
      _
    // Predicated region
    $region22: #{resnet_forward.21} parent=1 // pred_check
      _
    $region23: #{resnet_forward.21} parent=1 // pred_check_branch
      %50 = sbr.rel (0) target = $region25
    $region24: #{resnet_forward.21} parent=1 // pred_region
      %51 = dma.done [#allocation7], 64
    $region25: #{resnet_forward.21} parent=1 // pred_fallthru
      _
    %p53 = scmp.eq.s32.totalorder 0, 0
    // Predicated region
    $region26: #{resnet_forward.21} parent=1 // pred_check
      %p54 = pneg %p53
    $region27: #{resnet_forward.21} parent=1 // pred_check_branch
      %56 = sbr.rel (%p54) target = $region29
    $region28: #{resnet_forward.21} parent=1 // pred_region
      %57 = vst [vmem:[#allocation2] sm:$0xff] 0.0
      %58 = vst [vmem:[#allocation2 + $0x8] sm:$0xff] 0.0
    $region29: #{resnet_forward.21} parent=1 // pred_fallthru
      _
    %v59 = vld [vmem:[#allocation2] sm:$0xff]
    %v60 = vld [vmem:[#allocation2 + $0x8] sm:$0xff]
    %v61 = vld [vmem:[#allocation3] sm:$0xf]
    %v62 = vld [vmem:[#allocation6] sm:$0xff]
    %v63 = vld [vmem:[#allocation6 + $0x8] sm:$0xff]
    %v64 = vld [vmem:[#allocation6 + $0x10] sm:$0xff]
    %v65 = vld [vmem:[#allocation6 + $0x18] sm:$0xff]
    %v66 = vld [vmem:[#allocation6 + $0x20] sm:$0xff]
    %v67 = vld [vmem:[#allocation6 + $0x28] sm:$0xff]
    %v68 = vld [vmem:[#allocation6 + $0x30] sm:$0xff]
    %v69 = vld [vmem:[#allocation6 + $0x38] sm:$0xff]
    %v70 = vld [vmem:[#allocation6 + $0x40] sm:$0xff]
    %v71 = vld [vmem:[#allocation6 + $0x48] sm:$0xff]
    %v72 = vld [vmem:[#allocation6 + $0x50] sm:$0xff]
    %v73 = vld [vmem:[#allocation6 + $0x58] sm:$0xff]
    %v74 = vld [vmem:[#allocation6 + $0x60] sm:$0xff]
    %v75 = vld [vmem:[#allocation6 + $0x68] sm:$0xff]
    %v76 = vld [vmem:[#allocation6 + $0x70] sm:$0xff]
    %v77 = vld [vmem:[#allocation6 + $0x78] sm:$0xff]
    %v94 = vunpack.c.l.b16 %v62
    %v95 = vunpack.c.h.b16 %v62
    %v96 = vunpack.c.l.b16 %v63
    %v97 = vunpack.c.h.b16 %v63
    %v98 = vunpack.c.l.b16 %v64
    %v99 = vunpack.c.h.b16 %v64
    %v100 = vunpack.c.l.b16 %v65
    %v101 = vunpack.c.h.b16 %v65
    %v102 = vunpack.c.l.b16 %v66
    %v103 = vunpack.c.h.b16 %v66
    %v104 = vunpack.c.l.b16 %v67
    %v105 = vunpack.c.h.b16 %v67
    %v106 = vunpack.c.l.b16 %v68
    %v107 = vunpack.c.h.b16 %v68
    %v108 = vunpack.c.l.b16 %v69
    %v109 = vunpack.c.h.b16 %v69
    %v110 = vunpack.c.l.b16 %v70
    %v111 = vunpack.c.h.b16 %v70
    %v112 = vunpack.c.l.b16 %v71
    %v113 = vunpack.c.h.b16 %v71
    %v114 = vunpack.c.l.b16 %v72
    %v115 = vunpack.c.h.b16 %v72
    %v116 = vunpack.c.l.b16 %v73
    %v117 = vunpack.c.h.b16 %v73
    %v118 = vunpack.c.l.b16 %v74
    %v119 = vunpack.c.h.b16 %v74
    %v120 = vunpack.c.l.b16 %v75
    %v121 = vunpack.c.h.b16 %v75
    %v122 = vunpack.c.l.b16 %v76
    %v123 = vunpack.c.h.b16 %v76
    %v124 = vunpack.c.l.b16 %v77
    %v125 = vunpack.c.h.b16 %v77
    %v126 = vpack.c.b16 %v96, %v94
    %v127 = vpack.c.b16 %v97, %v95
    %v128 = vpack.c.b16 %v100, %v98
    %v129 = vpack.c.b16 %v101, %v99
    %v130 = vpack.c.b16 %v104, %v102
    %v131 = vpack.c.b16 %v105, %v103
    %v132 = vpack.c.b16 %v108, %v106
    %v133 = vpack.c.b16 %v109, %v107
    %v134 = vpack.c.b16 %v112, %v110
    %v135 = vpack.c.b16 %v113, %v111
    %v136 = vpack.c.b16 %v116, %v114
    %v137 = vpack.c.b16 %v117, %v115
    %v138 = vpack.c.b16 %v120, %v118
    %v139 = vpack.c.b16 %v121, %v119
    %v140 = vpack.c.b16 %v124, %v122
    %v141 = vpack.c.b16 %v125, %v123
    %158 = vmatprep.subr.bf16.mxu0 %v127
    %159 = vmatpush1.bf16.msra.mxu0 %v126
    %160 = vmatprep.subr.bf16.mxu0 %v129
    %161 = vmatpush1.bf16.msra.mxu0 %v128
    %162 = vmatprep.subr.bf16.mxu0 %v131
    %163 = vmatpush1.bf16.msra.mxu0 %v130
    %164 = vmatprep.subr.bf16.mxu0 %v133
    %165 = vmatpush1.bf16.msra.mxu0 %v132
    %166 = vmatprep.subr.bf16.mxu0 %v135
    %167 = vmatpush1.bf16.msra.mxu0 %v134
    %168 = vmatprep.subr.bf16.mxu0 %v137
    %169 = vmatpush1.bf16.msra.mxu0 %v136
    %170 = vmatprep.subr.bf16.mxu0 %v139
    %171 = vmatpush1.bf16.msra.mxu0 %v138
    %172 = vmatprep.subr.bf16.mxu0 %v141
    %173 = vmatpush1.bf16.msra.mxu0 %v140
    %174 = vmatprep.subr.bf16.mxu0 0
    %175 = vmatpush1.bf16.msra.mxu0 0
    %176 = vmatprep.subr.bf16.mxu0 0
    %177 = vmatpush1.bf16.msra.mxu0 0
    %178 = vmatprep.subr.bf16.mxu0 0
    %179 = vmatpush1.bf16.msra.mxu0 0
    %180 = vmatprep.subr.bf16.mxu0 0
    %181 = vmatpush1.bf16.msra.mxu0 0
    %182 = vmatprep.subr.bf16.mxu0 0
    %183 = vmatpush1.bf16.msra.mxu0 0
    %184 = vmatprep.subr.bf16.mxu0 0
    %185 = vmatpush1.bf16.msra.mxu0 0
    %186 = vmatprep.subr.bf16.mxu0 0
    %187 = vmatpush1.bf16.msra.mxu0 0
    %188 = vmatprep.subr.bf16.mxu0 0
    %189 = vmatpush1.bf16.msra.mxu0 0
    %190 = vmatprep.mubr.bf16.mxu0 0
    %191 = vmatmul.mubr.bf16.gmra.mrb[0].mxu0 %v61
    %v192 = vpop.f32.mrb[0].mxu0
    %v193 = vadd.f32 0.0, %v192
    %v194 = vpop.f32.mrb[0].mxu0
    %v195 = vadd.f32 0.0, %v194
    %v196 = vpop.f32.mrb[0].mxu0
    %v197 = vpop.f32.mrb[0].mxu0
    %198 = vdwg.mxu0
    %v199 = vadd.f32 %v59, %v193
    %v200 = vadd.f32 %v60, %v195
    %201 = vst [vmem:[#allocation2] sm:$0xff] %v199
    %202 = vst [vmem:[#allocation2 + $0x8] sm:$0xff] %v200
    // Predicated region
    $region30: #{resnet_forward.21} parent=1 // pred_check
      %p203 = pneg %p53
    $region31: #{resnet_forward.21} parent=1 // pred_check_branch
      %205 = sbr.rel (%p203) target = $region33
    $region32: #{resnet_forward.21} parent=1 // pred_region
      %v206 = vld [vmem:[#allocation2] sm:$0xff]
      %v207 = vld [vmem:[#allocation2 + $0x8] sm:$0xff]
      %v208 = vld [vmem:[#allocation8] ss:$2 sm:$0x3]
      %v210 = vlaneseq
      %v211 = vshrl.u32 %v210, 7
      %v212 = vsub.s32 0, %v211
      %v213 = vrot.slane %v208, %v212
      %v214 = vlaneseq
      %v215 = vshrl.u32 %v214, 7
      %v216 = vsub.s32 1, %v215
      %v217 = vrot.slane %v208, %v216
      %v220 = vmul.f32 %v206, %v213
      %v221 = vmul.f32 %v207, %v217
      %s222 = scalar_lea.vmem [#allocation8], 1
      %v223 = vld [vmem:[%s222] ss:$2 sm:$0x3]
      %v225 = vlaneseq
      %v226 = vshrl.u32 %v225, 7
      %v227 = vsub.s32 0, %v226
      %v228 = vrot.slane %v223, %v227
      %v229 = vlaneseq
      %v230 = vshrl.u32 %v229, 7
      %v231 = vsub.s32 1, %v230
      %v232 = vrot.slane %v223, %v231
      %v235 = vadd.f32 %v220, %v228
      %v236 = vadd.f32 %v221, %v232
      %237 = vst [vmem:[#allocation9] sm:$0xff] %v235
      %238 = vst [vmem:[#allocation9 + $0x8] sm:$0xff] %v236
    $region33: #{resnet_forward.21} parent=1 // pred_fallthru
      _
    // Predicated region
    $region34: #{resnet_forward.21} parent=1 // pred_check
      _
    $region35: #{resnet_forward.21} parent=1 // pred_check_branch
      %240 = sbr.rel (0) target = $region37
    $region36: #{resnet_forward.21} parent=1 // pred_region
      %s242 = ssub.s32 256, 256
      %243 = vsyncadd [#allocation5], %s242
      %s245 = sshll.u32 [#allocation9], 4
      %s246 = int_to_ptr.vmem [resolvable:$true] %s245
      %248 = dma.vmem_to_hbm [thread:$0]  %s246, 256, %s3, [#allocation5]
    $region37: #{resnet_forward.21} parent=1 // pred_fallthru
      _
    // Predicated region
    $region38: #{resnet_forward.21} parent=1 // pred_check
      _
    $region39: #{resnet_forward.21} parent=1 // pred_check_branch
      %250 = sbr.rel (0) target = $region41
    $region40: #{resnet_forward.21} parent=1 // pred_region
      %251 = dma.done [#allocation5], 256
    $region41: #{resnet_forward.21} parent=1 // pred_fallthru
      _
    %252 = vsyncpa [#allocation4], 1
    %253 = vsyncpa [#allocation7], 1
    %254 = vsyncpa [#allocation5], 1

// kernel: resnet_forward.23
$region0: #{resnet_forward.23}
  #allocation0 [shape = 'u32[]', space=smem, size = 0x4, offset = 0x4, fixed_abs, tag = 'smem constant byte address 0x4 - core index']
  #allocation1 [shape = 'u32[144,128]{1,0:T(1,128)}', space=vmem, size = 0x12000, scoped, tag = 'internal scratch']
  #allocation2 [shape = 'f32[8,256]{1,0:T(8,128)}', space=vmem, size = 0x2000, scoped, tag = 'scratch operand']
  %s0 = inlined_call_operand.hbm [shape: bf16[8,2304], index: 0, kind: input, shape index: {}]
  %s1 = inlined_call_operand.hbm [shape: bf16[2304,256], index: 1, kind: input, shape index: {}]
  %s2 = inlined_call_operand.hbm [shape: f32[2,256], index: 2, kind: input, shape index: {}]
  %s3 = inlined_call_operand.hbm [shape: f32[8,256], index: 3, kind: input, shape index: {}]
  %s4 = inlined_call_operand.hbm [shape: f32[8,256], index: 4, kind: output, shape index: {}]
  %s5 = sld [smem:[#allocation0]]
  $region73: #{resnet_forward.23} parent=0
    _
  %s7 = ssub.s32 1, %s5
  %s8 = scalar_select 0, %s7, %s5
  $region1: #{resnet_forward.23} parent=0
    #allocation3 [shape = 'u8[12288]{0}', space=vmem, size = 0x3000, scoped, tag = 'input window, operand 0']
    #allocation4 [shape = 's32[2]{0}', space=sflag, size = 0x8, scoped, tag = 'scoped memory for resnet_forward.23']
    #allocation5 [shape = 's32[2]{0}', space=sflag, size = 0x8, scoped, tag = 'scoped memory for resnet_forward.23']
    #allocation6 [shape = 'u8[393216]{0}', space=vmem, size = 0x60000, scoped, tag = 'input window, operand 1']
    #allocation7 [shape = 's32[2]{0}', space=sflag, size = 0x8, scoped, tag = 'scoped memory for resnet_forward.23']
    #allocation8 [shape = 'u8[2048]{0}', space=vmem, size = 0x800, scoped, tag = 'input window, operand 2, single buffered']
    #allocation9 [shape = 'u8[8192]{0}', space=vmem, size = 0x2000, scoped, tag = 'input window, operand 3, single buffered']
    #allocation10 [shape = 's32[1]{0}', space=sflag, size = 0x4, scoped, tag = 'scoped memory for resnet_forward.23']
    #allocation11 [shape = 'u8[8192]{0}', space=vmem, size = 0x2000, scoped, tag = 'output window, operand 0, single buffered']
    %9 = vsyncpa [#allocation4], 0
    %s10 = scalar_lea.sflag [#allocation4], 1
    %11 = vsyncpa %s10, 0
    %12 = vsyncpa [#allocation7], 0
    %s13 = scalar_lea.sflag [#allocation7], 1
    %14 = vsyncpa %s13, 0
    %15 = vsyncpa [#allocation10], 0
    %16 = vsyncpa [#allocation5], 0
    loop: start=0, step=1, limit=8
    $region2: #{resnet_forward.23} parent=1 // loop_pre_header
      _
    $region3: #{resnet_forward.23} parent=1 // loop_header
      %s18 = sphi 0, %s22
      %p19 = scmp.ge.s32.totalorder %s18, 8
      %s25 = sphi 0, %s44
      %s26 = sphi 0, %s40
      %s27 = sphi 0, %s36
      %s28 = sphi 0, %s25
      %s29 = sphi 0, %s26
      %s30 = sphi 0, %s27
      %s31 = sphi 0, %s28
      %s32 = sphi 0, %s29
      %s33 = sphi 0, %s30
      %s49 = sphi 0, %s51
      %s52 = sphi 0, %s49
      %s53 = sphi 0, %s52
      %s69 = sphi 0, %s53
      %s77 = sphi 0, %s79
      %s80 = sphi 0, %s77
      %s81 = sphi 0, %s80
      %s97 = sphi 0, %s81
      %s103 = sphi 0, %s105
      %s106 = sphi 0, %s103
      %s107 = sphi 0, %s106
      %s123 = sphi 0, %s107
      %s131 = sphi 0, %s133
      %s134 = sphi 0, %s131
      %s135 = sphi 0, %s134
      %s151 = sphi 0, %s135
      %s159 = sphi 0, %s161
      %s162 = sphi 0, %s159
      %s163 = sphi 0, %s162
      %s179 = sphi 0, %s163
    $region4: #{resnet_forward.23} parent=1 // loop_header_branch
      %21 = sbr.rel (%p19) target = $region8
    $region5: #{resnet_forward.23} parent=1 // loop_body
      %s23 = ssub.s32 %s18, 1
      %s24 = ssub.s32 %s18, 2
      %s34 = sadd.s32 1, %s27
      %p35 = scmp.ge.s32.totalorder %s34, 6
      %s36 = scalar_select %p35, 0, %s34
      %s37 = sadd.s32 1, %s26
      %s38 = scalar_select %p35, %s37, %s26
      %p39 = scmp.ge.s32.totalorder %s38, 1
      %s40 = scalar_select %p39, 0, %s38
      %s41 = sadd.s32 1, %s25
      %s42 = scalar_select %p39, %s41, %s25
      %p43 = scmp.ge.s32.totalorder %s42, 1
      %s44 = scalar_select %p43, 0, %s42
      %s45 = ssub.s32 %s25, %s44
      %s46 = ssub.s32 %s27, %s36
      %s47 = sor.u32 %s45, %s46
      %p48 = scmp.eq.s32.totalorder %s47, 0
      %s50 = sadd.s32 %s49, 1
      %s51 = scalar_select %p48, %s49, %s50
      %p54 = pneg %p48
      %p55 = scmp.eq.s32.totalorder %s18, 5
      %p56 = por %p54, %p55
      %p57 = scmp.ne.s32.totalorder %s49, %s52
      %p58 = scmp.eq.s32.totalorder %s18, 0
      %p59 = por %p57, %p58
      %p60 = scmp.ne.s32.totalorder %s49, %s52
      %p61 = scmp.eq.s32.totalorder %s23, 5
      %p62 = por %p60, %p61
      %p63 = scmp.ne.s32.totalorder %s52, %s53
      %p64 = scmp.eq.s32.totalorder %s23, 0
      %p65 = por %p63, %p64
      %p66 = scmp.ne.s32.totalorder %s52, %s53
      %p67 = scmp.eq.s32.totalorder %s24, 5
      %p68 = por %p66, %p67
      %p70 = scmp.ne.s32.totalorder %s53, %s69
      %p71 = scmp.eq.s32.totalorder %s24, 0
      %p72 = por %p70, %p71
      %s73 = ssub.s32 %s27, %s36
      %s74 = ssub.s32 %s26, %s40
      %s75 = sor.u32 %s73, %s74
      %p76 = scmp.eq.s32.totalorder %s75, 0
      %s78 = sadd.s32 %s77, 1
      %s79 = scalar_select %p76, %s77, %s78
      %p82 = pneg %p76
      %p83 = scmp.eq.s32.totalorder %s18, 5
      %p84 = por %p82, %p83
      %p85 = scmp.ne.s32.totalorder %s77, %s80
      %p86 = scmp.eq.s32.totalorder %s18, 0
      %p87 = por %p85, %p86
      %p88 = scmp.ne.s32.totalorder %s77, %s80
      %p89 = scmp.eq.s32.totalorder %s23, 5
      %p90 = por %p88, %p89
      %p91 = scmp.ne.s32.totalorder %s80, %s81
      %p92 = scmp.eq.s32.totalorder %s23, 0
      %p93 = por %p91, %p92
      %p94 = scmp.ne.s32.totalorder %s80, %s81
      %p95 = scmp.eq.s32.totalorder %s24, 5
      %p96 = por %p94, %p95
      %p98 = scmp.ne.s32.totalorder %s81, %s97
      %p99 = scmp.eq.s32.totalorder %s24, 0
      %p100 = por %p98, %p99
      %s101 = ssub.s32 %s26, %s40
      %p102 = scmp.eq.s32.totalorder %s101, 0
      %s104 = sadd.s32 %s103, 1
      %s105 = scalar_select %p102, %s103, %s104
      %p108 = pneg %p102
      %p109 = scmp.eq.s32.totalorder %s18, 5
      %p110 = por %p108, %p109
      %p111 = scmp.ne.s32.totalorder %s103, %s106
      %p112 = scmp.eq.s32.totalorder %s18, 0
      %p113 = por %p111, %p112
      %p114 = scmp.ne.s32.totalorder %s103, %s106
      %p115 = scmp.eq.s32.totalorder %s23, 5
      %p116 = por %p114, %p115
      %p117 = scmp.ne.s32.totalorder %s106, %s107
      %p118 = scmp.eq.s32.totalorder %s23, 0
      %p119 = por %p117, %p118
      %p120 = scmp.ne.s32.totalorder %s106, %s107
      %p121 = scmp.eq.s32.totalorder %s24, 5
      %p122 = por %p120, %p121
      %p124 = scmp.ne.s32.totalorder %s107, %s123
      %p125 = scmp.eq.s32.totalorder %s24, 0
      %p126 = por %p124, %p125
      %s127 = ssub.s32 %s25, %s44
      %s128 = ssub.s32 %s26, %s40
      %s129 = sor.u32 %s127, %s128
      %p130 = scmp.eq.s32.totalorder %s129, 0
      %s132 = sadd.s32 %s131, 1
      %s133 = scalar_select %p130, %s131, %s132
      %p136 = pneg %p130
      %p137 = scmp.eq.s32.totalorder %s18, 5
      %p138 = por %p136, %p137
      %p139 = scmp.ne.s32.totalorder %s131, %s134
      %p140 = scmp.eq.s32.totalorder %s18, 0
      %p141 = por %p139, %p140
      %p142 = scmp.ne.s32.totalorder %s131, %s134
      %p143 = scmp.eq.s32.totalorder %s23, 5
      %p144 = por %p142, %p143
      %p145 = scmp.ne.s32.totalorder %s134, %s135
      %p146 = scmp.eq.s32.totalorder %s23, 0
      %p147 = por %p145, %p146
      %p148 = scmp.ne.s32.totalorder %s134, %s135
      %p149 = scmp.eq.s32.totalorder %s24, 5
      %p150 = por %p148, %p149
      %p152 = scmp.ne.s32.totalorder %s135, %s151
      %p153 = scmp.eq.s32.totalorder %s24, 0
      %p154 = por %p152, %p153
      %s155 = ssub.s32 %s25, %s44
      %s156 = ssub.s32 %s26, %s40
      %s157 = sor.u32 %s155, %s156
      %p158 = scmp.eq.s32.totalorder %s157, 0
      %s160 = sadd.s32 %s159, 1
      %s161 = scalar_select %p158, %s159, %s160
      %p164 = pneg %p158
      %p165 = scmp.eq.s32.totalorder %s18, 5
      %p166 = por %p164, %p165
      %p167 = scmp.ne.s32.totalorder %s159, %s162
      %p168 = scmp.eq.s32.totalorder %s18, 0
      %p169 = por %p167, %p168
      %p170 = scmp.ne.s32.totalorder %s159, %s162
      %p171 = scmp.eq.s32.totalorder %s23, 5
      %p172 = por %p170, %p171
      %p173 = scmp.ne.s32.totalorder %s162, %s163
      %p174 = scmp.eq.s32.totalorder %s23, 0
      %p175 = por %p173, %p174
      %p176 = scmp.ne.s32.totalorder %s162, %s163
      %p177 = scmp.eq.s32.totalorder %s24, 5
      %p178 = por %p176, %p177
      %p180 = scmp.ne.s32.totalorder %s163, %s179
      %p181 = scmp.eq.s32.totalorder %s24, 0
      %p182 = por %p180, %p181
      %p183 = scmp.le.s32.totalorder 1, %s18
      %p184 = scmp.lt.s32.totalorder %s18, 7
      %p185 = pnand %p183, %p184
      %p186 = pneg %p185
      // Predicated region
      $region9: #{resnet_forward.23} parent=5 // pred_check
        _
      $region10: #{resnet_forward.23} parent=5 // pred_check_branch
        %188 = sbr.rel (%p185) target = $region12
      $region11: #{resnet_forward.23} parent=5 // pred_region
        %s189 = ssub.s32 %s18, 1
        // Predicated region
        $region13: #{resnet_forward.23} parent=11 // pred_check
          %p190 = pneg %p119
        $region14: #{resnet_forward.23} parent=11 // pred_check_branch
          %192 = sbr.rel (%p190) target = $region16
        $region15: #{resnet_forward.23} parent=11 // pred_region
          %s193 = smul.u32 2, %s29
          %s195 = ssub.s32 64, 64
          %196 = vsyncadd [#allocation7], %s195
          %s197 = smul.addr %s193, 32
          %s198 = scalar_lea.hbm %s2, %s197
          %s200 = sshll.u32 [#allocation8], 4
          %s201 = int_to_ptr.vmem [resolvable:$true] %s200
          %203 = dma.hbm_to_vmem [thread:$0]  %s198, 64, %s201, [#allocation7]
        $region16: #{resnet_forward.23} parent=11 // pred_fallthru
          _
        // Predicated region
        $region17: #{resnet_forward.23} parent=11 // pred_check
          %p204 = pneg %p147
        $region18: #{resnet_forward.23} parent=11 // pred_check_branch
          %206 = sbr.rel (%p204) target = $region20
        $region19: #{resnet_forward.23} parent=11 // pred_region
          %s207 = smul.u32 2, %s29
          %s209 = ssub.s32 256, 256
          %210 = vsyncadd [#allocation10], %s209
          %s211 = smul.addr %s28, 2
          %s212 = sadd.s32 %s207, %s211
          %s213 = smul.addr %s212, 128
          %s214 = scalar_lea.hbm %s3, %s213
          %s216 = sshll.u32 [#allocation9], 4
          %s217 = int_to_ptr.vmem [resolvable:$true] %s216
          %219 = dma.hbm_to_vmem [thread:$0]  %s214, 256, %s217, [#allocation10]
        $region20: #{resnet_forward.23} parent=11 // pred_fallthru
          _
      $region12: #{resnet_forward.23} parent=5 // pred_fallthru
        _
      %p220 = scmp.lt.s32.totalorder %s18, 6
      // Predicated region
      $region21: #{resnet_forward.23} parent=5 // pred_check
        %p221 = pneg %p220
      $region22: #{resnet_forward.23} parent=5 // pred_check_branch
        %223 = sbr.rel (%p221) target = $region24
      $region23: #{resnet_forward.23} parent=5 // pred_region
        // Predicated region
        $region25: #{resnet_forward.23} parent=23 // pred_check
          %p224 = pneg %p59
        $region26: #{resnet_forward.23} parent=23 // pred_check_branch
          %226 = sbr.rel (%p224) target = $region28
        $region27: #{resnet_forward.23} parent=23 // pred_region
          %s227 = sand.u32 %s49, 1
          %s228 = scalar_lea.sflag [#allocation4], %s227
          %s229 = sand.u32 %s49, 1
          %s230 = smul.addr %s229, 12
          %s231 = scalar_lea.vmem [#allocation3], %s230
          %s232 = smul.u32 3, %s27
          %s234 = ssub.s32 192, 192
          %235 = vsyncadd %s228, %s234
          %s236 = smul.addr %s25, 18
          %s237 = sadd.s32 %s232, %s236
          %s238 = smul.addr %s237, 64
          %s239 = scalar_lea.hbm %s0, %s238
          %s241 = sshll.u32 %s231, 4
          %s242 = int_to_ptr.vmem [resolvable:$true] %s241
          %244 = dma.hbm_to_vmem [thread:$0]  %s239, 192, %s242, %s228
        $region28: #{resnet_forward.23} parent=23 // pred_fallthru
          _
        // Predicated region
        $region29: #{resnet_forward.23} parent=23 // pred_check
          %p245 = pneg %p87
        $region30: #{resnet_forward.23} parent=23 // pred_check_branch
          %247 = sbr.rel (%p245) target = $region32
        $region31: #{resnet_forward.23} parent=23 // pred_region
          %s248 = sand.u32 %s18, 1
          %s249 = scalar_lea.sflag [#allocation7], %s248
          %s250 = sand.u32 %s77, 1
          %s251 = smul.addr %s250, 384
          %s252 = scalar_lea.vmem [#allocation6], %s251
          %s253 = smul.u32 48, %s27
          %s254 = smul.u32 2, %s26
          %s256 = ssub.s32 6144, 6144
          %257 = vsyncadd %s249, %s256
          %s258 = smul.addr %s253, 2
          %s259 = sadd.s32 %s254, %s258
          %s260 = smul.addr %s259, 64
          %s261 = scalar_lea.hbm %s1, %s260
          %s262 = sshll.u32 %s252, 4
          %s263 = int_to_ptr.vmem [resolvable:$true] %s262
          %268 = dma.hbm_to_vmem [thread:$0]  %s261, 6144, %s263, %s249, 128, 128, 8
        $region32: #{resnet_forward.23} parent=23 // pred_fallthru
          _
      $region24: #{resnet_forward.23} parent=5 // pred_fallthru
        _
      %p269 = scmp.le.s32.totalorder 1, %s18
      %p270 = scmp.lt.s32.totalorder %s18, 7
      %p271 = pnand %p269, %p270
      %p272 = pneg %p271
      // Predicated region
      $region33: #{resnet_forward.23} parent=5 // pred_check
        _
      $region34: #{resnet_forward.23} parent=5 // pred_check_branch
        %274 = sbr.rel (%p271) target = $region36
      $region35: #{resnet_forward.23} parent=5 // pred_region
        %s275 = ssub.s32 %s18, 1
        %s276 = sand.u32 %s52, 1
        %s277 = scalar_lea.sflag [#allocation4], %s276
        %s278 = sand.u32 %s52, 1
        %s279 = smul.addr %s278, 12
        %s280 = scalar_lea.vmem [#allocation3], %s279
        // Predicated region
        $region37: #{resnet_forward.23} parent=35 // pred_check
          %p281 = pneg %p65
        $region38: #{resnet_forward.23} parent=35 // pred_check_branch
          %283 = sbr.rel (%p281) target = $region40
        $region39: #{resnet_forward.23} parent=35 // pred_region
          %284 = dma.done %s277, 192
        $region40: #{resnet_forward.23} parent=35 // pred_fallthru
          _
        %s285 = sand.u32 %s23, 1
        %s286 = scalar_lea.sflag [#allocation7], %s285
        %s287 = sand.u32 %s80, 1
        %s288 = smul.addr %s287, 384
        %s289 = scalar_lea.vmem [#allocation6], %s288
        // Predicated region
        $region41: #{resnet_forward.23} parent=35 // pred_check
          %p290 = pneg %p93
        $region42: #{resnet_forward.23} parent=35 // pred_check_branch
          %292 = sbr.rel (%p290) target = $region44
        $region43: #{resnet_forward.23} parent=35 // pred_region
          %293 = dma.done %s286, 6144
        $region44: #{resnet_forward.23} parent=35 // pred_fallthru
          _
        // Predicated region
        $region45: #{resnet_forward.23} parent=35 // pred_check
          %p294 = pneg %p119
        $region46: #{resnet_forward.23} parent=35 // pred_check_branch
          %296 = sbr.rel (%p294) target = $region48
        $region47: #{resnet_forward.23} parent=35 // pred_region
          %297 = dma.done [#allocation7], 64
        $region48: #{resnet_forward.23} parent=35 // pred_fallthru
          _
        // Predicated region
        $region49: #{resnet_forward.23} parent=35 // pred_check
          %p298 = pneg %p147
        $region50: #{resnet_forward.23} parent=35 // pred_check_branch
          %300 = sbr.rel (%p298) target = $region52
        $region51: #{resnet_forward.23} parent=35 // pred_region
          %301 = dma.done [#allocation10], 256
        $region52: #{resnet_forward.23} parent=35 // pred_fallthru
          _
        %s302 = sand.u32 %s52, 1
        %s303 = scalar_lea.sflag [#allocation4], %s302
        %s304 = sand.u32 %s52, 1
        %s305 = smul.addr %s304, 12
        %s306 = scalar_lea.vmem [#allocation3], %s305
        %p307 = pneg %p65
        %p308 = pneg %p62
        %s309 = sand.u32 %s23, 1
        %s310 = scalar_lea.sflag [#allocation7], %s309
        %s311 = sand.u32 %s80, 1
        %s312 = smul.addr %s311, 384
        %s313 = scalar_lea.vmem [#allocation6], %s312
        %p314 = pneg %p93
        %p315 = pneg %p90
        %p316 = pneg %p119
        %p317 = pneg %p116
        %p318 = pneg %p147
        %p319 = pneg %p144
        %p320 = pneg %p175
        %p321 = pneg %p172
        %s322 = smul.u32 3, %s30
        %s323 = smul.u32 48, %s30
        %s324 = smul.u32 2, %s29
        %s325 = smul.u32 2, %s29
        %s326 = smul.u32 2, %s29
        %s327 = smul.u32 2, %s29
        %p329 = scmp.eq.s32.totalorder %s30, 0
        // Predicated region
        $region53: #{resnet_forward.23} parent=35 // pred_check
          %p330 = pneg %p329
        $region54: #{resnet_forward.23} parent=35 // pred_check_branch
          %332 = sbr.rel (%p330) target = $region56
        $region55: #{resnet_forward.23} parent=35 // pred_region
          %333 = vst [vmem:[#allocation2] sm:$0xff] 0.0
          %334 = vst [vmem:[#allocation2 + $0x8] sm:$0xff] 0.0
        $region56: #{resnet_forward.23} parent=35 // pred_fallthru
          _
        %v335 = vld [vmem:[#allocation2] sm:$0xff]
        %v336 = vld [vmem:[#allocation2 + $0x8] sm:$0xff]
        %v337 = vld [vmem:[%s280] sm:$0xff]
        %v338 = vld [vmem:[%s280 + $0x8] sm:$0xf]
        %v339 = vld [vmem:[%s289] sm:$0xff]
        %v340 = vld [vmem:[%s289 + $0x8] sm:$0xff]
        %v341 = vld [vmem:[%s289 + $0x10] sm:$0xff]
        %v342 = vld [vmem:[%s289 + $0x18] sm:$0xff]
        %v343 = vld [vmem:[%s289 + $0x20] sm:$0xff]
        %v344 = vld [vmem:[%s289 + $0x28] sm:$0xff]
        %v345 = vld [vmem:[%s289 + $0x30] sm:$0xff]
        %v346 = vld [vmem:[%s289 + $0x38] sm:$0xff]
        %v347 = vld [vmem:[%s289 + $0x40] sm:$0xff]
        %v348 = vld [vmem:[%s289 + $0x48] sm:$0xff]
        %v349 = vld [vmem:[%s289 + $0x50] sm:$0xff]
        %v350 = vld [vmem:[%s289 + $0x58] sm:$0xff]
        %v351 = vld [vmem:[%s289 + $0x60] sm:$0xff]
        %v352 = vld [vmem:[%s289 + $0x68] sm:$0xff]
        %v353 = vld [vmem:[%s289 + $0x70] sm:$0xff]
        %v354 = vld [vmem:[%s289 + $0x78] sm:$0xff]
        %v355 = vld [vmem:[%s289 + $0x80] sm:$0xff]
        %v356 = vld [vmem:[%s289 + $0x88] sm:$0xff]
        %v357 = vld [vmem:[%s289 + $0x90] sm:$0xff]
        %v358 = vld [vmem:[%s289 + $0x98] sm:$0xff]
        %v359 = vld [vmem:[%s289 + $0xa0] sm:$0xff]
        %v360 = vld [vmem:[%s289 + $0xa8] sm:$0xff]
        %v361 = vld [vmem:[%s289 + $0xb0] sm:$0xff]
        %v362 = vld [vmem:[%s289 + $0xb8] sm:$0xff]
        %v363 = vld [vmem:[%s289 + $0xc0] sm:$0xff]
        %v364 = vld [vmem:[%s289 + $0xc8] sm:$0xff]
        %v365 = vld [vmem:[%s289 + $0xd0] sm:$0xff]
        %v366 = vld [vmem:[%s289 + $0xd8] sm:$0xff]
        %v367 = vld [vmem:[%s289 + $0xe0] sm:$0xff]
        %v368 = vld [vmem:[%s289 + $0xe8] sm:$0xff]
        %v369 = vld [vmem:[%s289 + $0xf0] sm:$0xff]
        %v370 = vld [vmem:[%s289 + $0xf8] sm:$0xff]
        %v371 = vld [vmem:[%s289 + $0x100] sm:$0xff]
        %v372 = vld [vmem:[%s289 + $0x108] sm:$0xff]
        %v373 = vld [vmem:[%s289 + $0x110] sm:$0xff]
        %v374 = vld [vmem:[%s289 + $0x118] sm:$0xff]
        %v375 = vld [vmem:[%s289 + $0x120] sm:$0xff]
        %v376 = vld [vmem:[%s289 + $0x128] sm:$0xff]
        %v377 = vld [vmem:[%s289 + $0x130] sm:$0xff]
        %v378 = vld [vmem:[%s289 + $0x138] sm:$0xff]
        %v379 = vld [vmem:[%s289 + $0x140] sm:$0xff]
        %v380 = vld [vmem:[%s289 + $0x148] sm:$0xff]
        %v381 = vld [vmem:[%s289 + $0x150] sm:$0xff]
        %v382 = vld [vmem:[%s289 + $0x158] sm:$0xff]
        %v383 = vld [vmem:[%s289 + $0x160] sm:$0xff]
        %v384 = vld [vmem:[%s289 + $0x168] sm:$0xff]
        %v385 = vld [vmem:[%s289 + $0x170] sm:$0xff]
        %v386 = vld [vmem:[%s289 + $0x178] sm:$0xff]
        %v389 = vunpack.c.l.b16 %v337
        %v390 = vunpack.c.h.b16 %v337
        %v391 = vunpack.c.l.b16 %v338
        %v392 = vpack.c.b16 %v389, %v389
        %v393 = vpack.c.b16 %v390, %v390
        %v394 = vpack.c.b16 %v391, %v391
        %v446 = vunpack.c.l.b16 %v339
        %v447 = vunpack.c.h.b16 %v339
        %v448 = vunpack.c.l.b16 %v340
        %v449 = vunpack.c.h.b16 %v340
        %v450 = vunpack.c.l.b16 %v341
        %v451 = vunpack.c.h.b16 %v341
        %v452 = vunpack.c.l.b16 %v342
        %v453 = vunpack.c.h.b16 %v342
        %v454 = vunpack.c.l.b16 %v343
        %v455 = vunpack.c.h.b16 %v343
        %v456 = vunpack.c.l.b16 %v344
        %v457 = vunpack.c.h.b16 %v344
        %v458 = vunpack.c.l.b16 %v345
        %v459 = vunpack.c.h.b16 %v345
        %v460 = vunpack.c.l.b16 %v346
        %v461 = vunpack.c.h.b16 %v346
        %v462 = vunpack.c.l.b16 %v347
        %v463 = vunpack.c.h.b16 %v347
        %v464 = vunpack.c.l.b16 %v348
        %v465 = vunpack.c.h.b16 %v348
        %v466 = vunpack.c.l.b16 %v349
        %v467 = vunpack.c.h.b16 %v349
        %v468 = vunpack.c.l.b16 %v350
        %v469 = vunpack.c.h.b16 %v350
        %v470 = vunpack.c.l.b16 %v351
        %v471 = vunpack.c.h.b16 %v351
        %v472 = vunpack.c.l.b16 %v352
        %v473 = vunpack.c.h.b16 %v352
        %v474 = vunpack.c.l.b16 %v353
        %v475 = vunpack.c.h.b16 %v353
        %v476 = vunpack.c.l.b16 %v354
        %v477 = vunpack.c.h.b16 %v354
        %v478 = vunpack.c.l.b16 %v355
        %v479 = vunpack.c.h.b16 %v355
        %v480 = vunpack.c.l.b16 %v356
        %v481 = vunpack.c.h.b16 %v356
        %v482 = vunpack.c.l.b16 %v357
        %v483 = vunpack.c.h.b16 %v357
        %v484 = vunpack.c.l.b16 %v358
        %v485 = vunpack.c.h.b16 %v358
        %v486 = vunpack.c.l.b16 %v359
        %v487 = vunpack.c.h.b16 %v359
        %v488 = vunpack.c.l.b16 %v360
        %v489 = vunpack.c.h.b16 %v360
        %v490 = vunpack.c.l.b16 %v361
        %v491 = vunpack.c.h.b16 %v361
        %v492 = vunpack.c.l.b16 %v362
        %v493 = vunpack.c.h.b16 %v362
        %v494 = vunpack.c.l.b16 %v363
        %v495 = vunpack.c.h.b16 %v363
        %v496 = vunpack.c.l.b16 %v364
        %v497 = vunpack.c.h.b16 %v364
        %v498 = vunpack.c.l.b16 %v365
        %v499 = vunpack.c.h.b16 %v365
        %v500 = vunpack.c.l.b16 %v366
        %v501 = vunpack.c.h.b16 %v366
        %v502 = vunpack.c.l.b16 %v367
        %v503 = vunpack.c.h.b16 %v367
        %v504 = vunpack.c.l.b16 %v368
        %v505 = vunpack.c.h.b16 %v368
        %v506 = vunpack.c.l.b16 %v369
        %v507 = vunpack.c.h.b16 %v369
        %v508 = vunpack.c.l.b16 %v370
        %v509 = vunpack.c.h.b16 %v370
        %v510 = vunpack.c.l.b16 %v371
        %v511 = vunpack.c.h.b16 %v371
        %v512 = vunpack.c.l.b16 %v372
        %v513 = vunpack.c.h.b16 %v372
        %v514 = vunpack.c.l.b16 %v373
        %v515 = vunpack.c.h.b16 %v373
        %v516 = vunpack.c.l.b16 %v374
        %v517 = vunpack.c.h.b16 %v374
        %v518 = vunpack.c.l.b16 %v375
        %v519 = vunpack.c.h.b16 %v375
        %v520 = vunpack.c.l.b16 %v376
        %v521 = vunpack.c.h.b16 %v376
        %v522 = vunpack.c.l.b16 %v377
        %v523 = vunpack.c.h.b16 %v377
        %v524 = vunpack.c.l.b16 %v378
        %v525 = vunpack.c.h.b16 %v378
        %v526 = vunpack.c.l.b16 %v379
        %v527 = vunpack.c.h.b16 %v379
        %v528 = vunpack.c.l.b16 %v380
        %v529 = vunpack.c.h.b16 %v380
        %v530 = vunpack.c.l.b16 %v381
        %v531 = vunpack.c.h.b16 %v381
        %v532 = vunpack.c.l.b16 %v382
        %v533 = vunpack.c.h.b16 %v382
        %v534 = vunpack.c.l.b16 %v383
        %v535 = vunpack.c.h.b16 %v383
        %v536 = vunpack.c.l.b16 %v384
        %v537 = vunpack.c.h.b16 %v384
        %v538 = vunpack.c.l.b16 %v385
        %v539 = vunpack.c.h.b16 %v385
        %v540 = vunpack.c.l.b16 %v386
        %v541 = vunpack.c.h.b16 %v386
        %v542 = vpack.c.b16 %v448, %v446
        %v543 = vpack.c.b16 %v449, %v447
        %v544 = vpack.c.b16 %v452, %v450
        %v545 = vpack.c.b16 %v453, %v451
        %v546 = vpack.c.b16 %v456, %v454
        %v547 = vpack.c.b16 %v457, %v455
        %v548 = vpack.c.b16 %v460, %v458
        %v549 = vpack.c.b16 %v461, %v459
        %v550 = vpack.c.b16 %v464, %v462
        %v551 = vpack.c.b16 %v465, %v463
        %v552 = vpack.c.b16 %v468, %v466
        %v553 = vpack.c.b16 %v469, %v467
        %v554 = vpack.c.b16 %v472, %v470
        %v555 = vpack.c.b16 %v473, %v471
        %v556 = vpack.c.b16 %v476, %v474
        %v557 = vpack.c.b16 %v477, %v475
        %v558 = vpack.c.b16 %v480, %v478
        %v559 = vpack.c.b16 %v481, %v479
        %v560 = vpack.c.b16 %v484, %v482
        %v561 = vpack.c.b16 %v485, %v483
        %v562 = vpack.c.b16 %v488, %v486
        %v563 = vpack.c.b16 %v489, %v487
        %v564 = vpack.c.b16 %v492, %v490
        %v565 = vpack.c.b16 %v493, %v491
        %v566 = vpack.c.b16 %v496, %v494
        %v567 = vpack.c.b16 %v497, %v495
        %v568 = vpack.c.b16 %v500, %v498
        %v569 = vpack.c.b16 %v501, %v499
        %v570 = vpack.c.b16 %v504, %v502
        %v571 = vpack.c.b16 %v505, %v503
        %v572 = vpack.c.b16 %v508, %v506
        %v573 = vpack.c.b16 %v509, %v507
        %v574 = vpack.c.b16 %v512, %v510
        %v575 = vpack.c.b16 %v513, %v511
        %v576 = vpack.c.b16 %v516, %v514
        %v577 = vpack.c.b16 %v517, %v515
        %v578 = vpack.c.b16 %v520, %v518
        %v579 = vpack.c.b16 %v521, %v519
        %v580 = vpack.c.b16 %v524, %v522
        %v581 = vpack.c.b16 %v525, %v523
        %v582 = vpack.c.b16 %v528, %v526
        %v583 = vpack.c.b16 %v529, %v527
        %v584 = vpack.c.b16 %v532, %v530
        %v585 = vpack.c.b16 %v533, %v531
        %v586 = vpack.c.b16 %v536, %v534
        %v587 = vpack.c.b16 %v537, %v535
        %v588 = vpack.c.b16 %v540, %v538
        %v589 = vpack.c.b16 %v541, %v539
        %638 = vmatprep.subr.bf16.mxu0 %v543
        %639 = vmatpush1.bf16.msra.mxu0 %v542
        %640 = vmatprep.subr.bf16.mxu0 %v545
        %641 = vmatpush1.bf16.msra.mxu0 %v544
        %642 = vmatprep.subr.bf16.mxu0 %v547
        %643 = vmatpush1.bf16.msra.mxu0 %v546
        %644 = vmatprep.subr.bf16.mxu0 %v549
        %645 = vmatpush1.bf16.msra.mxu0 %v548
        %646 = vmatprep.subr.bf16.mxu0 %v551
        %647 = vmatpush1.bf16.msra.mxu0 %v550
        %648 = vmatprep.subr.bf16.mxu0 %v553
        %649 = vmatpush1.bf16.msra.mxu0 %v552
        %650 = vmatprep.subr.bf16.mxu0 %v555
        %651 = vmatpush1.bf16.msra.mxu0 %v554
        %652 = vmatprep.subr.bf16.mxu0 %v557
        %653 = vmatpush1.bf16.msra.mxu0 %v556
        %654 = vmatprep.subr.bf16.mxu0 %v559
        %655 = vmatpush1.bf16.msra.mxu0 %v558
        %656 = vmatprep.subr.bf16.mxu0 %v561
        %657 = vmatpush1.bf16.msra.mxu0 %v560
        %658 = vmatprep.subr.bf16.mxu0 %v563
        %659 = vmatpush1.bf16.msra.mxu0 %v562
        %660 = vmatprep.subr.bf16.mxu0 %v565
        %661 = vmatpush1.bf16.msra.mxu0 %v564
        %662 = vmatprep.subr.bf16.mxu0 %v567
        %663 = vmatpush1.bf16.msra.mxu0 %v566
        %664 = vmatprep.subr.bf16.mxu0 %v569
        %665 = vmatpush1.bf16.msra.mxu0 %v568
        %666 = vmatprep.subr.bf16.mxu0 %v571
        %667 = vmatpush1.bf16.msra.mxu0 %v570
        %668 = vmatprep.subr.bf16.mxu0 %v573
        %669 = vmatpush1.bf16.msra.mxu0 %v572
        %670 = vmatprep.mubr.bf16.mxu0 %v393
        %671 = vmatmul.mubr.bf16.gmra.mrb[0].mxu0 %v392
        %v672 = vpop.f32.mrb[0].mxu0
        %v673 = vadd.f32 0.0, %v672
        %v674 = vpop.f32.mrb[0].mxu0
        %v675 = vadd.f32 0.0, %v674
        %v676 = vpop.f32.mrb[0].mxu0
        %v677 = vpop.f32.mrb[0].mxu0
        %678 = vdwg.mxu0
        %679 = vmatprep.subr.bf16.mxu0 %v575
        %680 = vmatpush1.bf16.msra.mxu0 %v574
        %681 = vmatprep.subr.bf16.mxu0 %v577
        %682 = vmatpush1.bf16.msra.mxu0 %v576
        %683 = vmatprep.subr.bf16.mxu0 %v579
        %684 = vmatpush1.bf16.msra.mxu0 %v578
        %685 = vmatprep.subr.bf16.mxu0 %v581
        %686 = vmatpush1.bf16.msra.mxu0 %v580
        %687 = vmatprep.subr.bf16.mxu0 %v583
        %688 = vmatpush1.bf16.msra.mxu0 %v582
        %689 = vmatprep.subr.bf16.mxu0 %v585
        %690 = vmatpush1.bf16.msra.mxu0 %v584
        %691 = vmatprep.subr.bf16.mxu0 %v587
        %692 = vmatpush1.bf16.msra.mxu0 %v586
        %693 = vmatprep.subr.bf16.mxu0 %v589
        %694 = vmatpush1.bf16.msra.mxu0 %v588
        %695 = vmatprep.subr.bf16.mxu0 0
        %696 = vmatpush1.bf16.msra.mxu0 0
        %697 = vmatprep.subr.bf16.mxu0 0
        %698 = vmatpush1.bf16.msra.mxu0 0
        %699 = vmatprep.subr.bf16.mxu0 0
        %700 = vmatpush1.bf16.msra.mxu0 0
        %701 = vmatprep.subr.bf16.mxu0 0
        %702 = vmatpush1.bf16.msra.mxu0 0
        %703 = vmatprep.subr.bf16.mxu0 0
        %704 = vmatpush1.bf16.msra.mxu0 0
        %705 = vmatprep.subr.bf16.mxu0 0
        %706 = vmatpush1.bf16.msra.mxu0 0
        %707 = vmatprep.subr.bf16.mxu0 0
        %708 = vmatpush1.bf16.msra.mxu0 0
        %709 = vmatprep.subr.bf16.mxu0 0
        %710 = vmatpush1.bf16.msra.mxu0 0
        %711 = vmatprep.mubr.bf16.mxu0 0
        %712 = vmatmul.mubr.bf16.gmra.mrb[0].mxu0 %v394
        %v713 = vpop.f32.mrb[0].mxu0
        %v714 = vadd.f32 %v673, %v713
        %v715 = vpop.f32.mrb[0].mxu0
        %v716 = vadd.f32 %v675, %v715
        %v717 = vpop.f32.mrb[0].mxu0
        %v718 = vpop.f32.mrb[0].mxu0
        %719 = vdwg.mxu0
        %v720 = vadd.f32 %v335, %v714
        %v721 = vadd.f32 %v336, %v716
        %722 = vst [vmem:[#allocation2] sm:$0xff] %v720
        %723 = vst [vmem:[#allocation2 + $0x8] sm:$0xff] %v721
        %p724 = scmp.eq.s32.totalorder %s30, 5
        // Predicated region
        $region57: #{resnet_forward.23} parent=35 // pred_check
          %p725 = pneg %p724
        $region58: #{resnet_forward.23} parent=35 // pred_check_branch
          %727 = sbr.rel (%p725) target = $region60
        $region59: #{resnet_forward.23} parent=35 // pred_region
          %v728 = vld [vmem:[#allocation2] sm:$0xff]
          %v729 = vld [vmem:[#allocation2 + $0x8] sm:$0xff]
          %v730 = vld [vmem:[#allocation8] ss:$2 sm:$0x3]
          %v732 = vlaneseq
          %v733 = vshrl.u32 %v732, 7
          %v734 = vsub.s32 0, %v733
          %v735 = vrot.slane %v730, %v734
          %v736 = vlaneseq
          %v737 = vshrl.u32 %v736, 7
          %v738 = vsub.s32 1, %v737
          %v739 = vrot.slane %v730, %v738
          %v742 = vmul.f32 %v728, %v735
          %v743 = vmul.f32 %v729, %v739
          %s744 = scalar_lea.vmem [#allocation8], 1
          %v745 = vld [vmem:[%s744] ss:$2 sm:$0x3]
          %v747 = vlaneseq
          %v748 = vshrl.u32 %v747, 7
          %v749 = vsub.s32 0, %v748
          %v750 = vrot.slane %v745, %v749
          %v751 = vlaneseq
          %v752 = vshrl.u32 %v751, 7
          %v753 = vsub.s32 1, %v752
          %v754 = vrot.slane %v745, %v753
          %v757 = vadd.f32 %v742, %v750
          %v758 = vadd.f32 %v743, %v754
          %v759 = vld [vmem:[#allocation9] sm:$0xff]
          %v760 = vld [vmem:[#allocation9 + $0x8] sm:$0xff]
          %v761 = vadd.f32 %v757, %v759
          %v762 = vadd.f32 %v758, %v760
          %v763 = vmax.f32 %v761, 0.0
          %v764 = vmax.f32 %v762, 0.0
          %765 = vst [vmem:[#allocation11] sm:$0xff] %v763
          %766 = vst [vmem:[#allocation11 + $0x8] sm:$0xff] %v764
        $region60: #{resnet_forward.23} parent=35 // pred_fallthru
          _
        // Predicated region
        $region61: #{resnet_forward.23} parent=35 // pred_check
          %p767 = pneg %p172
        $region62: #{resnet_forward.23} parent=35 // pred_check_branch
          %769 = sbr.rel (%p767) target = $region64
        $region63: #{resnet_forward.23} parent=35 // pred_region
          %s770 = smul.u32 2, %s29
          %s772 = ssub.s32 256, 256
          %773 = vsyncadd [#allocation5], %s772
          %s774 = smul.addr %s28, 2
          %s775 = sadd.s32 %s770, %s774
          %s776 = smul.addr %s775, 128
          %s777 = scalar_lea.hbm %s4, %s776
          %s779 = sshll.u32 [#allocation11], 4
          %s780 = int_to_ptr.vmem [resolvable:$true] %s779
          %782 = dma.vmem_to_hbm [thread:$0]  %s780, 256, %s777, [#allocation5]
        $region64: #{resnet_forward.23} parent=35 // pred_fallthru
          _
        // Predicated region
        $region65: #{resnet_forward.23} parent=35 // pred_check
          %p783 = pneg %p172
        $region66: #{resnet_forward.23} parent=35 // pred_check_branch
          %785 = sbr.rel (%p783) target = $region68
        $region67: #{resnet_forward.23} parent=35 // pred_region
          %786 = dma.done [#allocation5], 256
        $region68: #{resnet_forward.23} parent=35 // pred_fallthru
          _
      $region36: #{resnet_forward.23} parent=5 // pred_fallthru
        _
      %p787 = scmp.le.s32.totalorder 2, %s18
      // Predicated region
      $region69: #{resnet_forward.23} parent=5 // pred_check
        %p788 = pneg %p787
      $region70: #{resnet_forward.23} parent=5 // pred_check_branch
        %790 = sbr.rel (%p788) target = $region72
      $region71: #{resnet_forward.23} parent=5 // pred_region
        %s791 = ssub.s32 %s18, 2
      $region72: #{resnet_forward.23} parent=5 // pred_fallthru
        _
    $region6: #{resnet_forward.23} parent=1 // loop_footer
      %s22 = sadd.s32 1, %s18
    $region7: #{resnet_forward.23} parent=1 // loop_footer_branch
      %17 = sbr.rel target = $region3
    $region8: #{resnet_forward.23} parent=1 // loop_exit
      _
    %792 = vsyncpa [#allocation4], 1
    %s793 = scalar_lea.sflag [#allocation4], 1
    %794 = vsyncpa %s793, 1
    %795 = vsyncpa [#allocation7], 1
    %s796 = scalar_lea.sflag [#allocation7], 1
    %797 = vsyncpa %s796, 1
    %798 = vsyncpa [#allocation10], 1
    %799 = vsyncpa [#allocation5], 1
    %s800 = scalar_lea.sflag [#allocation5], 1
    %801 = vsyncpa %s800, 1

// kernel: resnet_forward.25
$region0: #{resnet_forward.25}
  #allocation0 [shape = 'u32[]', space=smem, size = 0x4, offset = 0x4, fixed_abs, tag = 'smem constant byte address 0x4 - core index']
  #allocation1 [shape = 'u32[144,128]{1,0:T(1,128)}', space=vmem, size = 0x12000, scoped, tag = 'internal scratch']
  #allocation2 [shape = 'f32[2,256]{1,0:T(2,128)}', space=vmem, size = 0x800, scoped, tag = 'scratch operand']
  %s0 = inlined_call_operand.hbm [shape: bf16[2,2304], index: 0, kind: input, shape index: {}]
  %s1 = inlined_call_operand.hbm [shape: bf16[2304,512], index: 1, kind: input, shape index: {}]
  %s2 = inlined_call_operand.hbm [shape: f32[2,512], index: 2, kind: input, shape index: {}]
  %s3 = inlined_call_operand.hbm [shape: f32[2,512], index: 3, kind: output, shape index: {}]
  %s4 = sld [smem:[#allocation0]]
  $region65: #{resnet_forward.25} parent=0
    _
  %s6 = ssub.s32 1, %s4
  %s7 = scalar_select 0, %s6, %s4
  $region1: #{resnet_forward.25} parent=0
    #allocation3 [shape = 'u8[3072]{0}', space=vmem, size = 0xc00, scoped, tag = 'input window, operand 0']
    #allocation4 [shape = 's32[2]{0}', space=sflag, size = 0x8, scoped, tag = 'scoped memory for resnet_forward.25']
    #allocation5 [shape = 's32[2]{0}', space=sflag, size = 0x8, scoped, tag = 'scoped memory for resnet_forward.25']
    #allocation6 [shape = 'u8[393216]{0}', space=vmem, size = 0x60000, scoped, tag = 'input window, operand 1']
    #allocation7 [shape = 's32[2]{0}', space=sflag, size = 0x8, scoped, tag = 'scoped memory for resnet_forward.25']
    #allocation8 [shape = 'u8[4096]{0}', space=vmem, size = 0x1000, scoped, tag = 'input window, operand 2']
    #allocation9 [shape = 'u8[4096]{0}', space=vmem, size = 0x1000, scoped, tag = 'output window, operand 0']
    %8 = vsyncpa [#allocation4], 0
    %s9 = scalar_lea.sflag [#allocation4], 1
    %10 = vsyncpa %s9, 0
    %11 = vsyncpa [#allocation7], 0
    %s12 = scalar_lea.sflag [#allocation7], 1
    %13 = vsyncpa %s12, 0
    %14 = vsyncpa [#allocation5], 0
    %s15 = scalar_lea.sflag [#allocation5], 1
    %16 = vsyncpa %s15, 0
    loop: start=0, step=1, limit=14
    $region2: #{resnet_forward.25} parent=1 // loop_pre_header
      _
    $region3: #{resnet_forward.25} parent=1 // loop_header
      %s18 = sphi 0, %s22
      %p19 = scmp.ge.s32.totalorder %s18, 14
      %s25 = sphi 0, %s44
      %s26 = sphi 0, %s40
      %s27 = sphi 0, %s36
      %s28 = sphi 0, %s25
      %s29 = sphi 0, %s26
      %s30 = sphi 0, %s27
      %s31 = sphi 0, %s28
      %s32 = sphi 0, %s29
      %s33 = sphi 0, %s30
      %s49 = sphi 0, %s51
      %s52 = sphi 0, %s49
      %s53 = sphi 0, %s52
      %s69 = sphi 0, %s53
      %s77 = sphi 0, %s79
      %s80 = sphi 0, %s77
      %s81 = sphi 0, %s80
      %s97 = sphi 0, %s81
      %s103 = sphi 0, %s105
      %s106 = sphi 0, %s103
      %s107 = sphi 0, %s106
      %s123 = sphi 0, %s107
      %s131 = sphi 0, %s133
      %s134 = sphi 0, %s131
      %s135 = sphi 0, %s134
      %s151 = sphi 0, %s135
    $region4: #{resnet_forward.25} parent=1 // loop_header_branch
      %21 = sbr.rel (%p19) target = $region8
    $region5: #{resnet_forward.25} parent=1 // loop_body
      %s23 = ssub.s32 %s18, 1
      %s24 = ssub.s32 %s18, 2
      %s34 = sadd.s32 1, %s27
      %p35 = scmp.ge.s32.totalorder %s34, 6
      %s36 = scalar_select %p35, 0, %s34
      %s37 = sadd.s32 1, %s26
      %s38 = scalar_select %p35, %s37, %s26
      %p39 = scmp.ge.s32.totalorder %s38, 2
      %s40 = scalar_select %p39, 0, %s38
      %s41 = sadd.s32 1, %s25
      %s42 = scalar_select %p39, %s41, %s25
      %p43 = scmp.ge.s32.totalorder %s42, 1
      %s44 = scalar_select %p43, 0, %s42
      %s45 = ssub.s32 %s25, %s44
      %s46 = ssub.s32 %s27, %s36
      %s47 = sor.u32 %s45, %s46
      %p48 = scmp.eq.s32.totalorder %s47, 0
      %s50 = sadd.s32 %s49, 1
      %s51 = scalar_select %p48, %s49, %s50
      %p54 = pneg %p48
      %p55 = scmp.eq.s32.totalorder %s18, 11
      %p56 = por %p54, %p55
      %p57 = scmp.ne.s32.totalorder %s49, %s52
      %p58 = scmp.eq.s32.totalorder %s18, 0
      %p59 = por %p57, %p58
      %p60 = scmp.ne.s32.totalorder %s49, %s52
      %p61 = scmp.eq.s32.totalorder %s23, 11
      %p62 = por %p60, %p61
      %p63 = scmp.ne.s32.totalorder %s52, %s53
      %p64 = scmp.eq.s32.totalorder %s23, 0
      %p65 = por %p63, %p64
      %p66 = scmp.ne.s32.totalorder %s52, %s53
      %p67 = scmp.eq.s32.totalorder %s24, 11
      %p68 = por %p66, %p67
      %p70 = scmp.ne.s32.totalorder %s53, %s69
      %p71 = scmp.eq.s32.totalorder %s24, 0
      %p72 = por %p70, %p71
      %s73 = ssub.s32 %s27, %s36
      %s74 = ssub.s32 %s26, %s40
      %s75 = sor.u32 %s73, %s74
      %p76 = scmp.eq.s32.totalorder %s75, 0
      %s78 = sadd.s32 %s77, 1
      %s79 = scalar_select %p76, %s77, %s78
      %p82 = pneg %p76
      %p83 = scmp.eq.s32.totalorder %s18, 11
      %p84 = por %p82, %p83
      %p85 = scmp.ne.s32.totalorder %s77, %s80
      %p86 = scmp.eq.s32.totalorder %s18, 0
      %p87 = por %p85, %p86
      %p88 = scmp.ne.s32.totalorder %s77, %s80
      %p89 = scmp.eq.s32.totalorder %s23, 11
      %p90 = por %p88, %p89
      %p91 = scmp.ne.s32.totalorder %s80, %s81
      %p92 = scmp.eq.s32.totalorder %s23, 0
      %p93 = por %p91, %p92
      %p94 = scmp.ne.s32.totalorder %s80, %s81
      %p95 = scmp.eq.s32.totalorder %s24, 11
      %p96 = por %p94, %p95
      %p98 = scmp.ne.s32.totalorder %s81, %s97
      %p99 = scmp.eq.s32.totalorder %s24, 0
      %p100 = por %p98, %p99
      %s101 = ssub.s32 %s26, %s40
      %p102 = scmp.eq.s32.totalorder %s101, 0
      %s104 = sadd.s32 %s103, 1
      %s105 = scalar_select %p102, %s103, %s104
      %p108 = pneg %p102
      %p109 = scmp.eq.s32.totalorder %s18, 11
      %p110 = por %p108, %p109
      %p111 = scmp.ne.s32.totalorder %s103, %s106
      %p112 = scmp.eq.s32.totalorder %s18, 0
      %p113 = por %p111, %p112
      %p114 = scmp.ne.s32.totalorder %s103, %s106
      %p115 = scmp.eq.s32.totalorder %s23, 11
      %p116 = por %p114, %p115
      %p117 = scmp.ne.s32.totalorder %s106, %s107
      %p118 = scmp.eq.s32.totalorder %s23, 0
      %p119 = por %p117, %p118
      %p120 = scmp.ne.s32.totalorder %s106, %s107
      %p121 = scmp.eq.s32.totalorder %s24, 11
      %p122 = por %p120, %p121
      %p124 = scmp.ne.s32.totalorder %s107, %s123
      %p125 = scmp.eq.s32.totalorder %s24, 0
      %p126 = por %p124, %p125
      %s127 = ssub.s32 %s25, %s44
      %s128 = ssub.s32 %s26, %s40
      %s129 = sor.u32 %s127, %s128
      %p130 = scmp.eq.s32.totalorder %s129, 0
      %s132 = sadd.s32 %s131, 1
      %s133 = scalar_select %p130, %s131, %s132
      %p136 = pneg %p130
      %p137 = scmp.eq.s32.totalorder %s18, 11
      %p138 = por %p136, %p137
      %p139 = scmp.ne.s32.totalorder %s131, %s134
      %p140 = scmp.eq.s32.totalorder %s18, 0
      %p141 = por %p139, %p140
      %p142 = scmp.ne.s32.totalorder %s131, %s134
      %p143 = scmp.eq.s32.totalorder %s23, 11
      %p144 = por %p142, %p143
      %p145 = scmp.ne.s32.totalorder %s134, %s135
      %p146 = scmp.eq.s32.totalorder %s23, 0
      %p147 = por %p145, %p146
      %p148 = scmp.ne.s32.totalorder %s134, %s135
      %p149 = scmp.eq.s32.totalorder %s24, 11
      %p150 = por %p148, %p149
      %p152 = scmp.ne.s32.totalorder %s135, %s151
      %p153 = scmp.eq.s32.totalorder %s24, 0
      %p154 = por %p152, %p153
      %p155 = scmp.le.s32.totalorder 1, %s18
      %p156 = scmp.lt.s32.totalorder %s18, 13
      %p157 = pnand %p155, %p156
      %p158 = pneg %p157
      // Predicated region
      $region9: #{resnet_forward.25} parent=5 // pred_check
        _
      $region10: #{resnet_forward.25} parent=5 // pred_check_branch
        %160 = sbr.rel (%p157) target = $region12
      $region11: #{resnet_forward.25} parent=5 // pred_region
        %s161 = ssub.s32 %s18, 1
      $region12: #{resnet_forward.25} parent=5 // pred_fallthru
        _
      %p162 = scmp.lt.s32.totalorder %s18, 12
      // Predicated region
      $region13: #{resnet_forward.25} parent=5 // pred_check
        %p163 = pneg %p162
      $region14: #{resnet_forward.25} parent=5 // pred_check_branch
        %165 = sbr.rel (%p163) target = $region16
      $region15: #{resnet_forward.25} parent=5 // pred_region
        // Predicated region
        $region17: #{resnet_forward.25} parent=15 // pred_check
          %p166 = pneg %p59
        $region18: #{resnet_forward.25} parent=15 // pred_check_branch
          %168 = sbr.rel (%p166) target = $region20
        $region19: #{resnet_forward.25} parent=15 // pred_region
          %s169 = sand.u32 %s49, 1
          %s170 = scalar_lea.sflag [#allocation4], %s169
          %s171 = sand.u32 %s49, 1
          %s172 = smul.addr %s171, 3
          %s173 = scalar_lea.vmem [#allocation3], %s172
          %s174 = smul.u32 3, %s27
          %s176 = ssub.s32 48, 48
          %177 = vsyncadd %s170, %s176
          %s178 = smul.addr %s25, 18
          %s179 = sadd.s32 %s174, %s178
          %s180 = smul.addr %s179, 16
          %s181 = scalar_lea.hbm %s0, %s180
          %s183 = sshll.u32 %s173, 4
          %s184 = int_to_ptr.vmem [resolvable:$true] %s183
          %186 = dma.hbm_to_vmem [thread:$0]  %s181, 48, %s184, %s170
        $region20: #{resnet_forward.25} parent=15 // pred_fallthru
          _
        // Predicated region
        $region21: #{resnet_forward.25} parent=15 // pred_check
          %p187 = pneg %p87
        $region22: #{resnet_forward.25} parent=15 // pred_check_branch
          %189 = sbr.rel (%p187) target = $region24
        $region23: #{resnet_forward.25} parent=15 // pred_region
          %s190 = sand.u32 %s18, 1
          %s191 = scalar_lea.sflag [#allocation7], %s190
          %s192 = sand.u32 %s77, 1
          %s193 = smul.addr %s192, 384
          %s194 = scalar_lea.vmem [#allocation6], %s193
          %s195 = smul.u32 48, %s27
          %s196 = smul.u32 2, %s26
          %s198 = ssub.s32 6144, 6144
          %199 = vsyncadd %s191, %s198
          %s200 = smul.addr %s195, 4
          %s201 = sadd.s32 %s196, %s200
          %s202 = smul.addr %s201, 64
          %s203 = scalar_lea.hbm %s1, %s202
          %s204 = sshll.u32 %s194, 4
          %s205 = int_to_ptr.vmem [resolvable:$true] %s204
          %210 = dma.hbm_to_vmem [thread:$0]  %s203, 6144, %s205, %s191, 256, 128, 8
        $region24: #{resnet_forward.25} parent=15 // pred_fallthru
          _
        // Predicated region
        $region25: #{resnet_forward.25} parent=15 // pred_check
          %p211 = pneg %p113
        $region26: #{resnet_forward.25} parent=15 // pred_check_branch
          %213 = sbr.rel (%p211) target = $region28
        $region27: #{resnet_forward.25} parent=15 // pred_region
          %s214 = sand.u32 %s18, 1
          %s215 = scalar_lea.sflag [#allocation7], %s214
          %s216 = sand.u32 %s103, 1
          %s217 = smul.addr %s216, 4
          %s218 = scalar_lea.vmem [#allocation8], %s217
          %s219 = smul.u32 2, %s26
          %s221 = ssub.s32 64, 64
          %222 = vsyncadd %s215, %s221
          %s223 = smul.addr %s219, 32
          %s224 = scalar_lea.hbm %s2, %s223
          %s226 = sshll.u32 %s218, 4
          %s227 = int_to_ptr.vmem [resolvable:$true] %s226
          %229 = dma.hbm_to_vmem [thread:$0]  %s224, 64, %s227, %s215
        $region28: #{resnet_forward.25} parent=15 // pred_fallthru
          _
      $region16: #{resnet_forward.25} parent=5 // pred_fallthru
        _
      %p230 = scmp.le.s32.totalorder 1, %s18
      %p231 = scmp.lt.s32.totalorder %s18, 13
      %p232 = pnand %p230, %p231
      %p233 = pneg %p232
      // Predicated region
      $region29: #{resnet_forward.25} parent=5 // pred_check
        _
      $region30: #{resnet_forward.25} parent=5 // pred_check_branch
        %235 = sbr.rel (%p232) target = $region32
      $region31: #{resnet_forward.25} parent=5 // pred_region
        %s236 = ssub.s32 %s18, 1
        %s237 = sand.u32 %s52, 1
        %s238 = scalar_lea.sflag [#allocation4], %s237
        %s239 = sand.u32 %s52, 1
        %s240 = smul.addr %s239, 3
        %s241 = scalar_lea.vmem [#allocation3], %s240
        // Predicated region
        $region33: #{resnet_forward.25} parent=31 // pred_check
          %p242 = pneg %p65
        $region34: #{resnet_forward.25} parent=31 // pred_check_branch
          %244 = sbr.rel (%p242) target = $region36
        $region35: #{resnet_forward.25} parent=31 // pred_region
          %245 = dma.done %s238, 48
        $region36: #{resnet_forward.25} parent=31 // pred_fallthru
          _
        %s246 = sand.u32 %s23, 1
        %s247 = scalar_lea.sflag [#allocation7], %s246
        %s248 = sand.u32 %s80, 1
        %s249 = smul.addr %s248, 384
        %s250 = scalar_lea.vmem [#allocation6], %s249
        // Predicated region
        $region37: #{resnet_forward.25} parent=31 // pred_check
          %p251 = pneg %p93
        $region38: #{resnet_forward.25} parent=31 // pred_check_branch
          %253 = sbr.rel (%p251) target = $region40
        $region39: #{resnet_forward.25} parent=31 // pred_region
          %254 = dma.done %s247, 6144
        $region40: #{resnet_forward.25} parent=31 // pred_fallthru
          _
        %s255 = sand.u32 %s23, 1
        %s256 = scalar_lea.sflag [#allocation7], %s255
        %s257 = sand.u32 %s106, 1
        %s258 = smul.addr %s257, 4
        %s259 = scalar_lea.vmem [#allocation8], %s258
        // Predicated region
        $region41: #{resnet_forward.25} parent=31 // pred_check
          %p260 = pneg %p119
        $region42: #{resnet_forward.25} parent=31 // pred_check_branch
          %262 = sbr.rel (%p260) target = $region44
        $region43: #{resnet_forward.25} parent=31 // pred_region
          %263 = dma.done %s256, 64
        $region44: #{resnet_forward.25} parent=31 // pred_fallthru
          _
        %s264 = sand.u32 %s52, 1
        %s265 = scalar_lea.sflag [#allocation4], %s264
        %s266 = sand.u32 %s52, 1
        %s267 = smul.addr %s266, 3
        %s268 = scalar_lea.vmem [#allocation3], %s267
        %p269 = pneg %p65
        %p270 = pneg %p62
        %s271 = sand.u32 %s23, 1
        %s272 = scalar_lea.sflag [#allocation7], %s271
        %s273 = sand.u32 %s80, 1
        %s274 = smul.addr %s273, 384
        %s275 = scalar_lea.vmem [#allocation6], %s274
        %p276 = pneg %p93
        %p277 = pneg %p90
        %s278 = sand.u32 %s23, 1
        %s279 = scalar_lea.sflag [#allocation7], %s278
        %s280 = sand.u32 %s106, 1
        %s281 = smul.addr %s280, 4
        %s282 = scalar_lea.vmem [#allocation8], %s281
        %p283 = pneg %p119
        %p284 = pneg %p116
        %p285 = pneg %p147
        %p286 = pneg %p144
        %s287 = sand.u32 %s134, 1
        %s288 = scalar_lea.sflag [#allocation5], %s287
        %s289 = sand.u32 %s134, 1
        %s290 = smul.addr %s289, 4
        %s291 = scalar_lea.vmem [#allocation9], %s290
        %s292 = smul.u32 3, %s30
        %s293 = smul.u32 48, %s30
        %s294 = smul.u32 2, %s29
        %s295 = smul.u32 2, %s29
        %s296 = smul.u32 2, %s29
        %p298 = scmp.eq.s32.totalorder %s30, 0
        // Predicated region
        $region45: #{resnet_forward.25} parent=31 // pred_check
          %p299 = pneg %p298
        $region46: #{resnet_forward.25} parent=31 // pred_check_branch
          %301 = sbr.rel (%p299) target = $region48
        $region47: #{resnet_forward.25} parent=31 // pred_region
          %302 = vst [vmem:[#allocation2] sm:$0xf] 0.0
        $region48: #{resnet_forward.25} parent=31 // pred_fallthru
          _
        %v303 = vld [vmem:[#allocation2] sm:$0xf]
        %v304 = vld [vmem:[%s241] sm:$0x7]
        %v305 = vld [vmem:[%s250] sm:$0xff]
        %v306 = vld [vmem:[%s250 + $0x8] sm:$0xff]
        %v307 = vld [vmem:[%s250 + $0x10] sm:$0xff]
        %v308 = vld [vmem:[%s250 + $0x18] sm:$0xff]
        %v309 = vld [vmem:[%s250 + $0x20] sm:$0xff]
        %v310 = vld [vmem:[%s250 + $0x28] sm:$0xff]
        %v311 = vld [vmem:[%s250 + $0x30] sm:$0xff]
        %v312 = vld [vmem:[%s250 + $0x38] sm:$0xff]
        %v313 = vld [vmem:[%s250 + $0x40] sm:$0xff]
        %v314 = vld [vmem:[%s250 + $0x48] sm:$0xff]
        %v315 = vld [vmem:[%s250 + $0x50] sm:$0xff]
        %v316 = vld [vmem:[%s250 + $0x58] sm:$0xff]
        %v317 = vld [vmem:[%s250 + $0x60] sm:$0xff]
        %v318 = vld [vmem:[%s250 + $0x68] sm:$0xff]
        %v319 = vld [vmem:[%s250 + $0x70] sm:$0xff]
        %v320 = vld [vmem:[%s250 + $0x78] sm:$0xff]
        %v321 = vld [vmem:[%s250 + $0x80] sm:$0xff]
        %v322 = vld [vmem:[%s250 + $0x88] sm:$0xff]
        %v323 = vld [vmem:[%s250 + $0x90] sm:$0xff]
        %v324 = vld [vmem:[%s250 + $0x98] sm:$0xff]
        %v325 = vld [vmem:[%s250 + $0xa0] sm:$0xff]
        %v326 = vld [vmem:[%s250 + $0xa8] sm:$0xff]
        %v327 = vld [vmem:[%s250 + $0xb0] sm:$0xff]
        %v328 = vld [vmem:[%s250 + $0xb8] sm:$0xff]
        %v329 = vld [vmem:[%s250 + $0xc0] sm:$0xff]
        %v330 = vld [vmem:[%s250 + $0xc8] sm:$0xff]
        %v331 = vld [vmem:[%s250 + $0xd0] sm:$0xff]
        %v332 = vld [vmem:[%s250 + $0xd8] sm:$0xff]
        %v333 = vld [vmem:[%s250 + $0xe0] sm:$0xff]
        %v334 = vld [vmem:[%s250 + $0xe8] sm:$0xff]
        %v335 = vld [vmem:[%s250 + $0xf0] sm:$0xff]
        %v336 = vld [vmem:[%s250 + $0xf8] sm:$0xff]
        %v337 = vld [vmem:[%s250 + $0x100] sm:$0xff]
        %v338 = vld [vmem:[%s250 + $0x108] sm:$0xff]
        %v339 = vld [vmem:[%s250 + $0x110] sm:$0xff]
        %v340 = vld [vmem:[%s250 + $0x118] sm:$0xff]
        %v341 = vld [vmem:[%s250 + $0x120] sm:$0xff]
        %v342 = vld [vmem:[%s250 + $0x128] sm:$0xff]
        %v343 = vld [vmem:[%s250 + $0x130] sm:$0xff]
        %v344 = vld [vmem:[%s250 + $0x138] sm:$0xff]
        %v345 = vld [vmem:[%s250 + $0x140] sm:$0xff]
        %v346 = vld [vmem:[%s250 + $0x148] sm:$0xff]
        %v347 = vld [vmem:[%s250 + $0x150] sm:$0xff]
        %v348 = vld [vmem:[%s250 + $0x158] sm:$0xff]
        %v349 = vld [vmem:[%s250 + $0x160] sm:$0xff]
        %v350 = vld [vmem:[%s250 + $0x168] sm:$0xff]
        %v351 = vld [vmem:[%s250 + $0x170] sm:$0xff]
        %v352 = vld [vmem:[%s250 + $0x178] sm:$0xff]
        %v355 = vunpack.c.l.s4 1966171168
        %v356 = vunpack.c.0.s8 %v355
        %v357 = vlaneseq
        %v358 = vshrl.u32 %v357, 7
        %v359 = vsub.s32 %v356, %v358
        %v360 = vrot.slane %v304, %v359
        %v361 = vcombine.high %v360, %v360
        %v363 = vunpack.c.l.s4 1966171168
        %v364 = vunpack.c.0.s8 %v363
        %v365 = vlaneseq
        %v366 = vshrl.u32 %v365, 7
        %v367 = vsub.s32 %v364, %v366
        %v368 = vrot.slane %v360, %v367
        %v370 = vunpack.c.l.s4 1966171168
        %v371 = vunpack.c.0.s8 %v370
        %v372 = vlaneseq
        %v373 = vshrl.u32 %v372, 7
        %v374 = vsub.s32 %v371, %v373
        %v375 = vrot.slane %v361, %v374
        %v376 = vcombine.high %v368, %v368
        %v428 = vunpack.c.l.b16 %v305
        %v429 = vunpack.c.h.b16 %v305
        %v430 = vunpack.c.l.b16 %v306
        %v431 = vunpack.c.h.b16 %v306
        %v432 = vunpack.c.l.b16 %v307
        %v433 = vunpack.c.h.b16 %v307
        %v434 = vunpack.c.l.b16 %v308
        %v435 = vunpack.c.h.b16 %v308
        %v436 = vunpack.c.l.b16 %v309
        %v437 = vunpack.c.h.b16 %v309
        %v438 = vunpack.c.l.b16 %v310
        %v439 = vunpack.c.h.b16 %v310
        %v440 = vunpack.c.l.b16 %v311
        %v441 = vunpack.c.h.b16 %v311
        %v442 = vunpack.c.l.b16 %v312
        %v443 = vunpack.c.h.b16 %v312
        %v444 = vunpack.c.l.b16 %v313
        %v445 = vunpack.c.h.b16 %v313
        %v446 = vunpack.c.l.b16 %v314
        %v447 = vunpack.c.h.b16 %v314
        %v448 = vunpack.c.l.b16 %v315
        %v449 = vunpack.c.h.b16 %v315
        %v450 = vunpack.c.l.b16 %v316
        %v451 = vunpack.c.h.b16 %v316
        %v452 = vunpack.c.l.b16 %v317
        %v453 = vunpack.c.h.b16 %v317
        %v454 = vunpack.c.l.b16 %v318
        %v455 = vunpack.c.h.b16 %v318
        %v456 = vunpack.c.l.b16 %v319
        %v457 = vunpack.c.h.b16 %v319
        %v458 = vunpack.c.l.b16 %v320
        %v459 = vunpack.c.h.b16 %v320
        %v460 = vunpack.c.l.b16 %v321
        %v461 = vunpack.c.h.b16 %v321
        %v462 = vunpack.c.l.b16 %v322
        %v463 = vunpack.c.h.b16 %v322
        %v464 = vunpack.c.l.b16 %v323
        %v465 = vunpack.c.h.b16 %v323
        %v466 = vunpack.c.l.b16 %v324
        %v467 = vunpack.c.h.b16 %v324
        %v468 = vunpack.c.l.b16 %v325
        %v469 = vunpack.c.h.b16 %v325
        %v470 = vunpack.c.l.b16 %v326
        %v471 = vunpack.c.h.b16 %v326
        %v472 = vunpack.c.l.b16 %v327
        %v473 = vunpack.c.h.b16 %v327
        %v474 = vunpack.c.l.b16 %v328
        %v475 = vunpack.c.h.b16 %v328
        %v476 = vunpack.c.l.b16 %v329
        %v477 = vunpack.c.h.b16 %v329
        %v478 = vunpack.c.l.b16 %v330
        %v479 = vunpack.c.h.b16 %v330
        %v480 = vunpack.c.l.b16 %v331
        %v481 = vunpack.c.h.b16 %v331
        %v482 = vunpack.c.l.b16 %v332
        %v483 = vunpack.c.h.b16 %v332
        %v484 = vunpack.c.l.b16 %v333
        %v485 = vunpack.c.h.b16 %v333
        %v486 = vunpack.c.l.b16 %v334
        %v487 = vunpack.c.h.b16 %v334
        %v488 = vunpack.c.l.b16 %v335
        %v489 = vunpack.c.h.b16 %v335
        %v490 = vunpack.c.l.b16 %v336
        %v491 = vunpack.c.h.b16 %v336
        %v492 = vunpack.c.l.b16 %v337
        %v493 = vunpack.c.h.b16 %v337
        %v494 = vunpack.c.l.b16 %v338
        %v495 = vunpack.c.h.b16 %v338
        %v496 = vunpack.c.l.b16 %v339
        %v497 = vunpack.c.h.b16 %v339
        %v498 = vunpack.c.l.b16 %v340
        %v499 = vunpack.c.h.b16 %v340
        %v500 = vunpack.c.l.b16 %v341
        %v501 = vunpack.c.h.b16 %v341
        %v502 = vunpack.c.l.b16 %v342
        %v503 = vunpack.c.h.b16 %v342
        %v504 = vunpack.c.l.b16 %v343
        %v505 = vunpack.c.h.b16 %v343
        %v506 = vunpack.c.l.b16 %v344
        %v507 = vunpack.c.h.b16 %v344
        %v508 = vunpack.c.l.b16 %v345
        %v509 = vunpack.c.h.b16 %v345
        %v510 = vunpack.c.l.b16 %v346
        %v511 = vunpack.c.h.b16 %v346
        %v512 = vunpack.c.l.b16 %v347
        %v513 = vunpack.c.h.b16 %v347
        %v514 = vunpack.c.l.b16 %v348
        %v515 = vunpack.c.h.b16 %v348
        %v516 = vunpack.c.l.b16 %v349
        %v517 = vunpack.c.h.b16 %v349
        %v518 = vunpack.c.l.b16 %v350
        %v519 = vunpack.c.h.b16 %v350
        %v520 = vunpack.c.l.b16 %v351
        %v521 = vunpack.c.h.b16 %v351
        %v522 = vunpack.c.l.b16 %v352
        %v523 = vunpack.c.h.b16 %v352
        %v524 = vpack.c.b16 %v430, %v428
        %v525 = vpack.c.b16 %v431, %v429
        %v526 = vpack.c.b16 %v434, %v432
        %v527 = vpack.c.b16 %v435, %v433
        %v528 = vpack.c.b16 %v438, %v436
        %v529 = vpack.c.b16 %v439, %v437
        %v530 = vpack.c.b16 %v442, %v440
        %v531 = vpack.c.b16 %v443, %v441
        %v532 = vpack.c.b16 %v446, %v444
        %v533 = vpack.c.b16 %v447, %v445
        %v534 = vpack.c.b16 %v450, %v448
        %v535 = vpack.c.b16 %v451, %v449
        %v536 = vpack.c.b16 %v454, %v452
        %v537 = vpack.c.b16 %v455, %v453
        %v538 = vpack.c.b16 %v458, %v456
        %v539 = vpack.c.b16 %v459, %v457
        %v540 = vpack.c.b16 %v462, %v460
        %v541 = vpack.c.b16 %v463, %v461
        %v542 = vpack.c.b16 %v466, %v464
        %v543 = vpack.c.b16 %v467, %v465
        %v544 = vpack.c.b16 %v470, %v468
        %v545 = vpack.c.b16 %v471, %v469
        %v546 = vpack.c.b16 %v474, %v472
        %v547 = vpack.c.b16 %v475, %v473
        %v548 = vpack.c.b16 %v478, %v476
        %v549 = vpack.c.b16 %v479, %v477
        %v550 = vpack.c.b16 %v482, %v480
        %v551 = vpack.c.b16 %v483, %v481
        %v552 = vpack.c.b16 %v486, %v484
        %v553 = vpack.c.b16 %v487, %v485
        %v554 = vpack.c.b16 %v490, %v488
        %v555 = vpack.c.b16 %v491, %v489
        %v556 = vpack.c.b16 %v494, %v492
        %v557 = vpack.c.b16 %v495, %v493
        %v558 = vpack.c.b16 %v498, %v496
        %v559 = vpack.c.b16 %v499, %v497
        %v560 = vpack.c.b16 %v502, %v500
        %v561 = vpack.c.b16 %v503, %v501
        %v562 = vpack.c.b16 %v506, %v504
        %v563 = vpack.c.b16 %v507, %v505
        %v564 = vpack.c.b16 %v510, %v508
        %v565 = vpack.c.b16 %v511, %v509
        %v566 = vpack.c.b16 %v514, %v512
        %v567 = vpack.c.b16 %v515, %v513
        %v568 = vpack.c.b16 %v518, %v516
        %v569 = vpack.c.b16 %v519, %v517
        %v570 = vpack.c.b16 %v522, %v520
        %v571 = vpack.c.b16 %v523, %v521
        %620 = vmatprep.subr.bf16.mxu0 %v525
        %621 = vmatpush1.bf16.msra.mxu0 %v524
        %622 = vmatprep.subr.bf16.mxu0 %v527
        %623 = vmatpush1.bf16.msra.mxu0 %v526
        %624 = vmatprep.subr.bf16.mxu0 %v529
        %625 = vmatpush1.bf16.msra.mxu0 %v528
        %626 = vmatprep.subr.bf16.mxu0 %v531
        %627 = vmatpush1.bf16.msra.mxu0 %v530
        %628 = vmatprep.subr.bf16.mxu0 %v533
        %629 = vmatpush1.bf16.msra.mxu0 %v532
        %630 = vmatprep.subr.bf16.mxu0 %v535
        %631 = vmatpush1.bf16.msra.mxu0 %v534
        %632 = vmatprep.subr.bf16.mxu0 %v537
        %633 = vmatpush1.bf16.msra.mxu0 %v536
        %634 = vmatprep.subr.bf16.mxu0 %v539
        %635 = vmatpush1.bf16.msra.mxu0 %v538
        %636 = vmatprep.subr.bf16.mxu0 %v541
        %637 = vmatpush1.bf16.msra.mxu0 %v540
        %638 = vmatprep.subr.bf16.mxu0 %v543
        %639 = vmatpush1.bf16.msra.mxu0 %v542
        %640 = vmatprep.subr.bf16.mxu0 %v545
        %641 = vmatpush1.bf16.msra.mxu0 %v544
        %642 = vmatprep.subr.bf16.mxu0 %v547
        %643 = vmatpush1.bf16.msra.mxu0 %v546
        %644 = vmatprep.subr.bf16.mxu0 %v549
        %645 = vmatpush1.bf16.msra.mxu0 %v548
        %646 = vmatprep.subr.bf16.mxu0 %v551
        %647 = vmatpush1.bf16.msra.mxu0 %v550
        %648 = vmatprep.subr.bf16.mxu0 %v553
        %649 = vmatpush1.bf16.msra.mxu0 %v552
        %650 = vmatprep.subr.bf16.mxu0 %v555
        %651 = vmatpush1.bf16.msra.mxu0 %v554
        %652 = vmatprep.mubr.bf16.mxu0 %v375
        %653 = vmatmul.mubr.bf16.gmra.mrb[0].mxu0 %v368
        %v654 = vpop.f32.mrb[0].mxu0
        %v655 = vadd.f32 0.0, %v654
        %v656 = vpop.f32.mrb[0].mxu0
        %v657 = vadd.f32 0.0, %v656
        %v658 = vpop.f32.mrb[0].mxu0
        %v659 = vpop.f32.mrb[0].mxu0
        %660 = vdwg.mxu0
        %661 = vmatprep.subr.bf16.mxu0 %v557
        %662 = vmatpush1.bf16.msra.mxu0 %v556
        %663 = vmatprep.subr.bf16.mxu0 %v559
        %664 = vmatpush1.bf16.msra.mxu0 %v558
        %665 = vmatprep.subr.bf16.mxu0 %v561
        %666 = vmatpush1.bf16.msra.mxu0 %v560
        %667 = vmatprep.subr.bf16.mxu0 %v563
        %668 = vmatpush1.bf16.msra.mxu0 %v562
        %669 = vmatprep.subr.bf16.mxu0 %v565
        %670 = vmatpush1.bf16.msra.mxu0 %v564
        %671 = vmatprep.subr.bf16.mxu0 %v567
        %672 = vmatpush1.bf16.msra.mxu0 %v566
        %673 = vmatprep.subr.bf16.mxu0 %v569
        %674 = vmatpush1.bf16.msra.mxu0 %v568
        %675 = vmatprep.subr.bf16.mxu0 %v571
        %676 = vmatpush1.bf16.msra.mxu0 %v570
        %677 = vmatprep.subr.bf16.mxu0 0
        %678 = vmatpush1.bf16.msra.mxu0 0
        %679 = vmatprep.subr.bf16.mxu0 0
        %680 = vmatpush1.bf16.msra.mxu0 0
        %681 = vmatprep.subr.bf16.mxu0 0
        %682 = vmatpush1.bf16.msra.mxu0 0
        %683 = vmatprep.subr.bf16.mxu0 0
        %684 = vmatpush1.bf16.msra.mxu0 0
        %685 = vmatprep.subr.bf16.mxu0 0
        %686 = vmatpush1.bf16.msra.mxu0 0
        %687 = vmatprep.subr.bf16.mxu0 0
        %688 = vmatpush1.bf16.msra.mxu0 0
        %689 = vmatprep.subr.bf16.mxu0 0
        %690 = vmatpush1.bf16.msra.mxu0 0
        %691 = vmatprep.subr.bf16.mxu0 0
        %692 = vmatpush1.bf16.msra.mxu0 0
        %693 = vmatprep.mubr.bf16.mxu0 0
        %694 = vmatmul.mubr.bf16.gmra.mrb[0].mxu0 %v376
        %v695 = vpop.f32.mrb[0].mxu0
        %v696 = vadd.f32 %v655, %v695
        %v697 = vpop.f32.mrb[0].mxu0
        %v698 = vadd.f32 %v657, %v697
        %v699 = vpop.f32.mrb[0].mxu0
        %v700 = vpop.f32.mrb[0].mxu0
        %701 = vdwg.mxu0
        %v704 = vcombine.low %v696, %v698
        %v706 = vunpack.c.l.s4 1983009808
        %v707 = vunpack.c.0.s8 %v706
        %v708 = vlaneseq
        %v709 = vshrl.u32 %v708, 7
        %v710 = vsub.s32 %v707, %v709
        %v711 = vrot.slane %v704, %v710
        %v713 = vadd.f32 %v303, %v711
        %714 = vst [vmem:[#allocation2] sm:$0xf] %v713
        %p715 = scmp.eq.s32.totalorder %s30, 5
        // Predicated region
        $region49: #{resnet_forward.25} parent=31 // pred_check
          %p716 = pneg %p715
        $region50: #{resnet_forward.25} parent=31 // pred_check_branch
          %718 = sbr.rel (%p716) target = $region52
        $region51: #{resnet_forward.25} parent=31 // pred_region
          %v719 = vld [vmem:[#allocation2] sm:$0xf]
          %v720 = vld [vmem:[%s259] ss:$2 sm:$0x3]
          %v722 = vlaneseq
          %v723 = vshrl.u32 %v722, 7
          %v724 = vsub.s32 0, %v723
          %v725 = vrot.slane %v720, %v724
          %v726 = vlaneseq
          %v727 = vshrl.u32 %v726, 7
          %v728 = vsub.s32 1, %v727
          %v729 = vrot.slane %v720, %v728
          %v730 = vcombine.low %v725, %v729
          %v732 = vunpack.c.l.s4 1983009808
          %v733 = vunpack.c.0.s8 %v732
          %v734 = vlaneseq
          %v735 = vshrl.u32 %v734, 7
          %v736 = vsub.s32 %v733, %v735
          %v737 = vrot.slane %v730, %v736
          %v739 = vmul.f32 %v719, %v737
          %s740 = scalar_lea.vmem %s259, 1 [#allocation8]
          %v741 = vld [vmem:[%s740] ss:$2 sm:$0x3]
          %v743 = vlaneseq
          %v744 = vshrl.u32 %v743, 7
          %v745 = vsub.s32 0, %v744
          %v746 = vrot.slane %v741, %v745
          %v747 = vlaneseq
          %v748 = vshrl.u32 %v747, 7
          %v749 = vsub.s32 1, %v748
          %v750 = vrot.slane %v741, %v749
          %v751 = vcombine.low %v746, %v750
          %v753 = vunpack.c.l.s4 1983009808
          %v754 = vunpack.c.0.s8 %v753
          %v755 = vlaneseq
          %v756 = vshrl.u32 %v755, 7
          %v757 = vsub.s32 %v754, %v756
          %v758 = vrot.slane %v751, %v757
          %v760 = vadd.f32 %v739, %v758
          %v761 = vmax.f32 %v760, 0.0
          %762 = vst [vmem:[%s291] sm:$0xf] %v761
        $region52: #{resnet_forward.25} parent=31 // pred_fallthru
          _
        %s763 = sand.u32 %s134, 1
        %s764 = scalar_lea.sflag [#allocation5], %s763
        %s765 = sand.u32 %s134, 1
        %s766 = smul.addr %s765, 4
        %s767 = scalar_lea.vmem [#allocation9], %s766
        // Predicated region
        $region53: #{resnet_forward.25} parent=31 // pred_check
          %p768 = pneg %p144
        $region54: #{resnet_forward.25} parent=31 // pred_check_branch
          %770 = sbr.rel (%p768) target = $region56
        $region55: #{resnet_forward.25} parent=31 // pred_region
          %s771 = smul.u32 2, %s29
          %s773 = ssub.s32 64, 64
          %774 = vsyncadd %s764, %s773
          %s775 = smul.addr %s28, 4
          %s776 = sadd.s32 %s771, %s775
          %s777 = smul.addr %s776, 32
          %s778 = scalar_lea.hbm %s3, %s777
          %s780 = sshll.u32 %s767, 4
          %s781 = int_to_ptr.vmem [resolvable:$true] %s780
          %783 = dma.vmem_to_hbm [thread:$0]  %s781, 64, %s778, %s764
        $region56: #{resnet_forward.25} parent=31 // pred_fallthru
          _
      $region32: #{resnet_forward.25} parent=5 // pred_fallthru
        _
      %p784 = scmp.le.s32.totalorder 2, %s18
      // Predicated region
      $region57: #{resnet_forward.25} parent=5 // pred_check
        %p785 = pneg %p784
      $region58: #{resnet_forward.25} parent=5 // pred_check_branch
        %787 = sbr.rel (%p785) target = $region60
      $region59: #{resnet_forward.25} parent=5 // pred_region
        %s788 = ssub.s32 %s18, 2
        // Predicated region
        $region61: #{resnet_forward.25} parent=59 // pred_check
          %p789 = pneg %p150
        $region62: #{resnet_forward.25} parent=59 // pred_check_branch
          %791 = sbr.rel (%p789) target = $region64
        $region63: #{resnet_forward.25} parent=59 // pred_region
          %s792 = sand.u32 %s135, 1
          %s793 = scalar_lea.sflag [#allocation5], %s792
          %s794 = sand.u32 %s135, 1
          %s795 = smul.addr %s794, 4
          %s796 = scalar_lea.vmem [#allocation9], %s795
          %797 = dma.done %s793, 64
        $region64: #{resnet_forward.25} parent=59 // pred_fallthru
          _
      $region60: #{resnet_forward.25} parent=5 // pred_fallthru
        _
    $region6: #{resnet_forward.25} parent=1 // loop_footer
      %s22 = sadd.s32 1, %s18
    $region7: #{resnet_forward.25} parent=1 // loop_footer_branch
      %17 = sbr.rel target = $region3
    $region8: #{resnet_forward.25} parent=1 // loop_exit
      _
    %798 = vsyncpa [#allocation4], 1
    %s799 = scalar_lea.sflag [#allocation4], 1
    %800 = vsyncpa %s799, 1
    %801 = vsyncpa [#allocation7], 1
    %s802 = scalar_lea.sflag [#allocation7], 1
    %803 = vsyncpa %s802, 1
    %804 = vsyncpa [#allocation5], 1
    %s805 = scalar_lea.sflag [#allocation5], 1
    %806 = vsyncpa %s805, 1

// kernel: resnet_forward.24
$region0: #{resnet_forward.24}
  #allocation0 [shape = 'u32[]', space=smem, size = 0x4, offset = 0x4, fixed_abs, tag = 'smem constant byte address 0x4 - core index']
  #allocation1 [shape = 'u32[144,128]{1,0:T(1,128)}', space=vmem, size = 0x12000, scoped, tag = 'internal scratch']
  #allocation2 [shape = 'f32[2,256]{1,0:T(2,128)}', space=vmem, size = 0x800, scoped, tag = 'scratch operand']
  %s0 = inlined_call_operand.hbm [shape: bf16[2,256], index: 0, kind: input, shape index: {}]
  %s1 = inlined_call_operand.hbm [shape: bf16[256,512], index: 1, kind: input, shape index: {}]
  %s2 = inlined_call_operand.hbm [shape: f32[2,512], index: 2, kind: input, shape index: {}]
  %s3 = inlined_call_operand.hbm [shape: f32[2,512], index: 3, kind: output, shape index: {}]
  %s4 = sld [smem:[#allocation0]]
  $region65: #{resnet_forward.24} parent=0
    _
  %s6 = ssub.s32 1, %s4
  %s7 = scalar_select 0, %s6, %s4
  $region1: #{resnet_forward.24} parent=0
    #allocation3 [shape = 'u8[1024]{0}', space=vmem, size = 0x400, scoped, tag = 'input window, operand 0, single buffered']
    #allocation4 [shape = 's32[2]{0}', space=sflag, size = 0x8, scoped, tag = 'scoped memory for resnet_forward.24']
    #allocation5 [shape = 's32[2]{0}', space=sflag, size = 0x8, scoped, tag = 'scoped memory for resnet_forward.24']
    #allocation6 [shape = 'u8[262144]{0}', space=vmem, size = 0x40000, scoped, tag = 'input window, operand 1']
    #allocation7 [shape = 's32[2]{0}', space=sflag, size = 0x8, scoped, tag = 'scoped memory for resnet_forward.24']
    #allocation8 [shape = 'u8[4096]{0}', space=vmem, size = 0x1000, scoped, tag = 'input window, operand 2']
    #allocation9 [shape = 'u8[4096]{0}', space=vmem, size = 0x1000, scoped, tag = 'output window, operand 0']
    %8 = vsyncpa [#allocation4], 0
    %9 = vsyncpa [#allocation7], 0
    %s10 = scalar_lea.sflag [#allocation7], 1
    %11 = vsyncpa %s10, 0
    %12 = vsyncpa [#allocation5], 0
    %s13 = scalar_lea.sflag [#allocation5], 1
    %14 = vsyncpa %s13, 0
    loop: start=0, step=1, limit=4
    $region2: #{resnet_forward.24} parent=1 // loop_pre_header
      _
    $region3: #{resnet_forward.24} parent=1 // loop_header
      %s16 = sphi 0, %s20
      %p17 = scmp.ge.s32.totalorder %s16, 4
      %s23 = sphi 0, %s42
      %s24 = sphi 0, %s38
      %s25 = sphi 0, %s34
      %s26 = sphi 0, %s23
      %s27 = sphi 0, %s24
      %s28 = sphi 0, %s25
      %s29 = sphi 0, %s26
      %s30 = sphi 0, %s27
      %s31 = sphi 0, %s28
      %s47 = sphi 0, %s49
      %s50 = sphi 0, %s47
      %s51 = sphi 0, %s50
      %s67 = sphi 0, %s51
      %s75 = sphi 0, %s77
      %s78 = sphi 0, %s75
      %s79 = sphi 0, %s78
      %s95 = sphi 0, %s79
      %s101 = sphi 0, %s103
      %s104 = sphi 0, %s101
      %s105 = sphi 0, %s104
      %s121 = sphi 0, %s105
      %s129 = sphi 0, %s131
      %s132 = sphi 0, %s129
      %s133 = sphi 0, %s132
      %s149 = sphi 0, %s133
    $region4: #{resnet_forward.24} parent=1 // loop_header_branch
      %19 = sbr.rel (%p17) target = $region8
    $region5: #{resnet_forward.24} parent=1 // loop_body
      %s21 = ssub.s32 %s16, 1
      %s22 = ssub.s32 %s16, 2
      %s32 = sadd.s32 1, %s25
      %p33 = scmp.ge.s32.totalorder %s32, 1
      %s34 = scalar_select %p33, 0, %s32
      %s35 = sadd.s32 1, %s24
      %s36 = scalar_select %p33, %s35, %s24
      %p37 = scmp.ge.s32.totalorder %s36, 2
      %s38 = scalar_select %p37, 0, %s36
      %s39 = sadd.s32 1, %s23
      %s40 = scalar_select %p37, %s39, %s23
      %p41 = scmp.ge.s32.totalorder %s40, 1
      %s42 = scalar_select %p41, 0, %s40
      %s43 = ssub.s32 %s23, %s42
      %s44 = ssub.s32 %s25, %s34
      %s45 = sor.u32 %s43, %s44
      %p46 = scmp.eq.s32.totalorder %s45, 0
      %s48 = sadd.s32 %s47, 1
      %s49 = scalar_select %p46, %s47, %s48
      %p52 = pneg %p46
      %p53 = scmp.eq.s32.totalorder %s16, 1
      %p54 = por %p52, %p53
      %p55 = scmp.ne.s32.totalorder %s47, %s50
      %p56 = scmp.eq.s32.totalorder %s16, 0
      %p57 = por %p55, %p56
      %p58 = scmp.ne.s32.totalorder %s47, %s50
      %p59 = scmp.eq.s32.totalorder %s21, 1
      %p60 = por %p58, %p59
      %p61 = scmp.ne.s32.totalorder %s50, %s51
      %p62 = scmp.eq.s32.totalorder %s21, 0
      %p63 = por %p61, %p62
      %p64 = scmp.ne.s32.totalorder %s50, %s51
      %p65 = scmp.eq.s32.totalorder %s22, 1
      %p66 = por %p64, %p65
      %p68 = scmp.ne.s32.totalorder %s51, %s67
      %p69 = scmp.eq.s32.totalorder %s22, 0
      %p70 = por %p68, %p69
      %s71 = ssub.s32 %s25, %s34
      %s72 = ssub.s32 %s24, %s38
      %s73 = sor.u32 %s71, %s72
      %p74 = scmp.eq.s32.totalorder %s73, 0
      %s76 = sadd.s32 %s75, 1
      %s77 = scalar_select %p74, %s75, %s76
      %p80 = pneg %p74
      %p81 = scmp.eq.s32.totalorder %s16, 1
      %p82 = por %p80, %p81
      %p83 = scmp.ne.s32.totalorder %s75, %s78
      %p84 = scmp.eq.s32.totalorder %s16, 0
      %p85 = por %p83, %p84
      %p86 = scmp.ne.s32.totalorder %s75, %s78
      %p87 = scmp.eq.s32.totalorder %s21, 1
      %p88 = por %p86, %p87
      %p89 = scmp.ne.s32.totalorder %s78, %s79
      %p90 = scmp.eq.s32.totalorder %s21, 0
      %p91 = por %p89, %p90
      %p92 = scmp.ne.s32.totalorder %s78, %s79
      %p93 = scmp.eq.s32.totalorder %s22, 1
      %p94 = por %p92, %p93
      %p96 = scmp.ne.s32.totalorder %s79, %s95
      %p97 = scmp.eq.s32.totalorder %s22, 0
      %p98 = por %p96, %p97
      %s99 = ssub.s32 %s24, %s38
      %p100 = scmp.eq.s32.totalorder %s99, 0
      %s102 = sadd.s32 %s101, 1
      %s103 = scalar_select %p100, %s101, %s102
      %p106 = pneg %p100
      %p107 = scmp.eq.s32.totalorder %s16, 1
      %p108 = por %p106, %p107
      %p109 = scmp.ne.s32.totalorder %s101, %s104
      %p110 = scmp.eq.s32.totalorder %s16, 0
      %p111 = por %p109, %p110
      %p112 = scmp.ne.s32.totalorder %s101, %s104
      %p113 = scmp.eq.s32.totalorder %s21, 1
      %p114 = por %p112, %p113
      %p115 = scmp.ne.s32.totalorder %s104, %s105
      %p116 = scmp.eq.s32.totalorder %s21, 0
      %p117 = por %p115, %p116
      %p118 = scmp.ne.s32.totalorder %s104, %s105
      %p119 = scmp.eq.s32.totalorder %s22, 1
      %p120 = por %p118, %p119
      %p122 = scmp.ne.s32.totalorder %s105, %s121
      %p123 = scmp.eq.s32.totalorder %s22, 0
      %p124 = por %p122, %p123
      %s125 = ssub.s32 %s23, %s42
      %s126 = ssub.s32 %s24, %s38
      %s127 = sor.u32 %s125, %s126
      %p128 = scmp.eq.s32.totalorder %s127, 0
      %s130 = sadd.s32 %s129, 1
      %s131 = scalar_select %p128, %s129, %s130
      %p134 = pneg %p128
      %p135 = scmp.eq.s32.totalorder %s16, 1
      %p136 = por %p134, %p135
      %p137 = scmp.ne.s32.totalorder %s129, %s132
      %p138 = scmp.eq.s32.totalorder %s16, 0
      %p139 = por %p137, %p138
      %p140 = scmp.ne.s32.totalorder %s129, %s132
      %p141 = scmp.eq.s32.totalorder %s21, 1
      %p142 = por %p140, %p141
      %p143 = scmp.ne.s32.totalorder %s132, %s133
      %p144 = scmp.eq.s32.totalorder %s21, 0
      %p145 = por %p143, %p144
      %p146 = scmp.ne.s32.totalorder %s132, %s133
      %p147 = scmp.eq.s32.totalorder %s22, 1
      %p148 = por %p146, %p147
      %p150 = scmp.ne.s32.totalorder %s133, %s149
      %p151 = scmp.eq.s32.totalorder %s22, 0
      %p152 = por %p150, %p151
      %p153 = scmp.le.s32.totalorder 1, %s16
      %p154 = scmp.lt.s32.totalorder %s16, 3
      %p155 = pnand %p153, %p154
      %p156 = pneg %p155
      // Predicated region
      $region9: #{resnet_forward.24} parent=5 // pred_check
        _
      $region10: #{resnet_forward.24} parent=5 // pred_check_branch
        %158 = sbr.rel (%p155) target = $region12
      $region11: #{resnet_forward.24} parent=5 // pred_region
        %s159 = ssub.s32 %s16, 1
        // Predicated region
        $region13: #{resnet_forward.24} parent=11 // pred_check
          %p160 = pneg %p63
        $region14: #{resnet_forward.24} parent=11 // pred_check_branch
          %162 = sbr.rel (%p160) target = $region16
        $region15: #{resnet_forward.24} parent=11 // pred_region
          %s163 = smul.u32 2, %s28
          %s165 = ssub.s32 32, 32
          %166 = vsyncadd [#allocation4], %s165
          %s167 = smul.addr %s26, 2
          %s168 = sadd.s32 %s163, %s167
          %s169 = smul.addr %s168, 16
          %s170 = scalar_lea.hbm %s0, %s169
          %s172 = sshll.u32 [#allocation3], 4
          %s173 = int_to_ptr.vmem [resolvable:$true] %s172
          %175 = dma.hbm_to_vmem [thread:$0]  %s170, 32, %s173, [#allocation4]
        $region16: #{resnet_forward.24} parent=11 // pred_fallthru
          _
      $region12: #{resnet_forward.24} parent=5 // pred_fallthru
        _
      %p176 = scmp.lt.s32.totalorder %s16, 2
      // Predicated region
      $region17: #{resnet_forward.24} parent=5 // pred_check
        %p177 = pneg %p176
      $region18: #{resnet_forward.24} parent=5 // pred_check_branch
        %179 = sbr.rel (%p177) target = $region20
      $region19: #{resnet_forward.24} parent=5 // pred_region
        // Predicated region
        $region21: #{resnet_forward.24} parent=19 // pred_check
          %p180 = pneg %p85
        $region22: #{resnet_forward.24} parent=19 // pred_check_branch
          %182 = sbr.rel (%p180) target = $region24
        $region23: #{resnet_forward.24} parent=19 // pred_region
          %s183 = sand.u32 %s16, 1
          %s184 = scalar_lea.sflag [#allocation7], %s183
          %s185 = sand.u32 %s75, 1
          %s186 = smul.addr %s185, 256
          %s187 = scalar_lea.vmem [#allocation6], %s186
          %s188 = smul.u32 32, %s25
          %s189 = smul.u32 2, %s24
          %s191 = ssub.s32 4096, 4096
          %192 = vsyncadd %s184, %s191
          %s193 = smul.addr %s188, 4
          %s194 = sadd.s32 %s189, %s193
          %s195 = smul.addr %s194, 64
          %s196 = scalar_lea.hbm %s1, %s195
          %s197 = sshll.u32 %s187, 4
          %s198 = int_to_ptr.vmem [resolvable:$true] %s197
          %203 = dma.hbm_to_vmem [thread:$0]  %s196, 4096, %s198, %s184, 256, 128, 8
        $region24: #{resnet_forward.24} parent=19 // pred_fallthru
          _
        // Predicated region
        $region25: #{resnet_forward.24} parent=19 // pred_check
          %p204 = pneg %p111
        $region26: #{resnet_forward.24} parent=19 // pred_check_branch
          %206 = sbr.rel (%p204) target = $region28
        $region27: #{resnet_forward.24} parent=19 // pred_region
          %s207 = sand.u32 %s16, 1
          %s208 = scalar_lea.sflag [#allocation7], %s207
          %s209 = sand.u32 %s101, 1
          %s210 = smul.addr %s209, 4
          %s211 = scalar_lea.vmem [#allocation8], %s210
          %s212 = smul.u32 2, %s24
          %s214 = ssub.s32 64, 64
          %215 = vsyncadd %s208, %s214
          %s216 = smul.addr %s212, 32
          %s217 = scalar_lea.hbm %s2, %s216
          %s219 = sshll.u32 %s211, 4
          %s220 = int_to_ptr.vmem [resolvable:$true] %s219
          %222 = dma.hbm_to_vmem [thread:$0]  %s217, 64, %s220, %s208
        $region28: #{resnet_forward.24} parent=19 // pred_fallthru
          _
      $region20: #{resnet_forward.24} parent=5 // pred_fallthru
        _
      %p223 = scmp.le.s32.totalorder 1, %s16
      %p224 = scmp.lt.s32.totalorder %s16, 3
      %p225 = pnand %p223, %p224
      %p226 = pneg %p225
      // Predicated region
      $region29: #{resnet_forward.24} parent=5 // pred_check
        _
      $region30: #{resnet_forward.24} parent=5 // pred_check_branch
        %228 = sbr.rel (%p225) target = $region32
      $region31: #{resnet_forward.24} parent=5 // pred_region
        %s229 = ssub.s32 %s16, 1
        // Predicated region
        $region33: #{resnet_forward.24} parent=31 // pred_check
          %p230 = pneg %p63
        $region34: #{resnet_forward.24} parent=31 // pred_check_branch
          %232 = sbr.rel (%p230) target = $region36
        $region35: #{resnet_forward.24} parent=31 // pred_region
          %233 = dma.done [#allocation4], 32
        $region36: #{resnet_forward.24} parent=31 // pred_fallthru
          _
        %s234 = sand.u32 %s21, 1
        %s235 = scalar_lea.sflag [#allocation7], %s234
        %s236 = sand.u32 %s78, 1
        %s237 = smul.addr %s236, 256
        %s238 = scalar_lea.vmem [#allocation6], %s237
        // Predicated region
        $region37: #{resnet_forward.24} parent=31 // pred_check
          %p239 = pneg %p91
        $region38: #{resnet_forward.24} parent=31 // pred_check_branch
          %241 = sbr.rel (%p239) target = $region40
        $region39: #{resnet_forward.24} parent=31 // pred_region
          %242 = dma.done %s235, 4096
        $region40: #{resnet_forward.24} parent=31 // pred_fallthru
          _
        %s243 = sand.u32 %s21, 1
        %s244 = scalar_lea.sflag [#allocation7], %s243
        %s245 = sand.u32 %s104, 1
        %s246 = smul.addr %s245, 4
        %s247 = scalar_lea.vmem [#allocation8], %s246
        // Predicated region
        $region41: #{resnet_forward.24} parent=31 // pred_check
          %p248 = pneg %p117
        $region42: #{resnet_forward.24} parent=31 // pred_check_branch
          %250 = sbr.rel (%p248) target = $region44
        $region43: #{resnet_forward.24} parent=31 // pred_region
          %251 = dma.done %s244, 64
        $region44: #{resnet_forward.24} parent=31 // pred_fallthru
          _
        %p252 = pneg %p63
        %p253 = pneg %p60
        %s254 = sand.u32 %s21, 1
        %s255 = scalar_lea.sflag [#allocation7], %s254
        %s256 = sand.u32 %s78, 1
        %s257 = smul.addr %s256, 256
        %s258 = scalar_lea.vmem [#allocation6], %s257
        %p259 = pneg %p91
        %p260 = pneg %p88
        %s261 = sand.u32 %s21, 1
        %s262 = scalar_lea.sflag [#allocation7], %s261
        %s263 = sand.u32 %s104, 1
        %s264 = smul.addr %s263, 4
        %s265 = scalar_lea.vmem [#allocation8], %s264
        %p266 = pneg %p117
        %p267 = pneg %p114
        %p268 = pneg %p145
        %p269 = pneg %p142
        %s270 = sand.u32 %s132, 1
        %s271 = scalar_lea.sflag [#allocation5], %s270
        %s272 = sand.u32 %s132, 1
        %s273 = smul.addr %s272, 4
        %s274 = scalar_lea.vmem [#allocation9], %s273
        %s275 = smul.u32 2, %s28
        %s276 = smul.u32 32, %s28
        %s277 = smul.u32 2, %s27
        %s278 = smul.u32 2, %s27
        %s279 = smul.u32 2, %s27
        %p280 = scmp.eq.s32.totalorder %s28, 0
        // Predicated region
        $region45: #{resnet_forward.24} parent=31 // pred_check
          %p281 = pneg %p280
        $region46: #{resnet_forward.24} parent=31 // pred_check_branch
          %283 = sbr.rel (%p281) target = $region48
        $region47: #{resnet_forward.24} parent=31 // pred_region
          %284 = vst [vmem:[#allocation2] sm:$0xf] 0.0
        $region48: #{resnet_forward.24} parent=31 // pred_fallthru
          _
        %v285 = vld [vmem:[#allocation2] sm:$0xf]
        %v286 = vld [vmem:[#allocation3] sm:$0x3]
        %v287 = vld [vmem:[%s238] sm:$0xff]
        %v288 = vld [vmem:[%s238 + $0x8] sm:$0xff]
        %v289 = vld [vmem:[%s238 + $0x10] sm:$0xff]
        %v290 = vld [vmem:[%s238 + $0x18] sm:$0xff]
        %v291 = vld [vmem:[%s238 + $0x20] sm:$0xff]
        %v292 = vld [vmem:[%s238 + $0x28] sm:$0xff]
        %v293 = vld [vmem:[%s238 + $0x30] sm:$0xff]
        %v294 = vld [vmem:[%s238 + $0x38] sm:$0xff]
        %v295 = vld [vmem:[%s238 + $0x40] sm:$0xff]
        %v296 = vld [vmem:[%s238 + $0x48] sm:$0xff]
        %v297 = vld [vmem:[%s238 + $0x50] sm:$0xff]
        %v298 = vld [vmem:[%s238 + $0x58] sm:$0xff]
        %v299 = vld [vmem:[%s238 + $0x60] sm:$0xff]
        %v300 = vld [vmem:[%s238 + $0x68] sm:$0xff]
        %v301 = vld [vmem:[%s238 + $0x70] sm:$0xff]
        %v302 = vld [vmem:[%s238 + $0x78] sm:$0xff]
        %v303 = vld [vmem:[%s238 + $0x80] sm:$0xff]
        %v304 = vld [vmem:[%s238 + $0x88] sm:$0xff]
        %v305 = vld [vmem:[%s238 + $0x90] sm:$0xff]
        %v306 = vld [vmem:[%s238 + $0x98] sm:$0xff]
        %v307 = vld [vmem:[%s238 + $0xa0] sm:$0xff]
        %v308 = vld [vmem:[%s238 + $0xa8] sm:$0xff]
        %v309 = vld [vmem:[%s238 + $0xb0] sm:$0xff]
        %v310 = vld [vmem:[%s238 + $0xb8] sm:$0xff]
        %v311 = vld [vmem:[%s238 + $0xc0] sm:$0xff]
        %v312 = vld [vmem:[%s238 + $0xc8] sm:$0xff]
        %v313 = vld [vmem:[%s238 + $0xd0] sm:$0xff]
        %v314 = vld [vmem:[%s238 + $0xd8] sm:$0xff]
        %v315 = vld [vmem:[%s238 + $0xe0] sm:$0xff]
        %v316 = vld [vmem:[%s238 + $0xe8] sm:$0xff]
        %v317 = vld [vmem:[%s238 + $0xf0] sm:$0xff]
        %v318 = vld [vmem:[%s238 + $0xf8] sm:$0xff]
        %v321 = vunpack.c.l.s4 1966171168
        %v322 = vunpack.c.0.s8 %v321
        %v323 = vlaneseq
        %v324 = vshrl.u32 %v323, 7
        %v325 = vsub.s32 %v322, %v324
        %v326 = vrot.slane %v286, %v325
        %v327 = vcombine.high %v326, %v326
        %v329 = vunpack.c.l.s4 1966171168
        %v330 = vunpack.c.0.s8 %v329
        %v331 = vlaneseq
        %v332 = vshrl.u32 %v331, 7
        %v333 = vsub.s32 %v330, %v332
        %v334 = vrot.slane %v326, %v333
        %v336 = vunpack.c.l.s4 1966171168
        %v337 = vunpack.c.0.s8 %v336
        %v338 = vlaneseq
        %v339 = vshrl.u32 %v338, 7
        %v340 = vsub.s32 %v337, %v339
        %v341 = vrot.slane %v327, %v340
        %v376 = vunpack.c.l.b16 %v287
        %v377 = vunpack.c.h.b16 %v287
        %v378 = vunpack.c.l.b16 %v288
        %v379 = vunpack.c.h.b16 %v288
        %v380 = vunpack.c.l.b16 %v289
        %v381 = vunpack.c.h.b16 %v289
        %v382 = vunpack.c.l.b16 %v290
        %v383 = vunpack.c.h.b16 %v290
        %v384 = vunpack.c.l.b16 %v291
        %v385 = vunpack.c.h.b16 %v291
        %v386 = vunpack.c.l.b16 %v292
        %v387 = vunpack.c.h.b16 %v292
        %v388 = vunpack.c.l.b16 %v293
        %v389 = vunpack.c.h.b16 %v293
        %v390 = vunpack.c.l.b16 %v294
        %v391 = vunpack.c.h.b16 %v294
        %v392 = vunpack.c.l.b16 %v295
        %v393 = vunpack.c.h.b16 %v295
        %v394 = vunpack.c.l.b16 %v296
        %v395 = vunpack.c.h.b16 %v296
        %v396 = vunpack.c.l.b16 %v297
        %v397 = vunpack.c.h.b16 %v297
        %v398 = vunpack.c.l.b16 %v298
        %v399 = vunpack.c.h.b16 %v298
        %v400 = vunpack.c.l.b16 %v299
        %v401 = vunpack.c.h.b16 %v299
        %v402 = vunpack.c.l.b16 %v300
        %v403 = vunpack.c.h.b16 %v300
        %v404 = vunpack.c.l.b16 %v301
        %v405 = vunpack.c.h.b16 %v301
        %v406 = vunpack.c.l.b16 %v302
        %v407 = vunpack.c.h.b16 %v302
        %v408 = vunpack.c.l.b16 %v303
        %v409 = vunpack.c.h.b16 %v303
        %v410 = vunpack.c.l.b16 %v304
        %v411 = vunpack.c.h.b16 %v304
        %v412 = vunpack.c.l.b16 %v305
        %v413 = vunpack.c.h.b16 %v305
        %v414 = vunpack.c.l.b16 %v306
        %v415 = vunpack.c.h.b16 %v306
        %v416 = vunpack.c.l.b16 %v307
        %v417 = vunpack.c.h.b16 %v307
        %v418 = vunpack.c.l.b16 %v308
        %v419 = vunpack.c.h.b16 %v308
        %v420 = vunpack.c.l.b16 %v309
        %v421 = vunpack.c.h.b16 %v309
        %v422 = vunpack.c.l.b16 %v310
        %v423 = vunpack.c.h.b16 %v310
        %v424 = vunpack.c.l.b16 %v311
        %v425 = vunpack.c.h.b16 %v311
        %v426 = vunpack.c.l.b16 %v312
        %v427 = vunpack.c.h.b16 %v312
        %v428 = vunpack.c.l.b16 %v313
        %v429 = vunpack.c.h.b16 %v313
        %v430 = vunpack.c.l.b16 %v314
        %v431 = vunpack.c.h.b16 %v314
        %v432 = vunpack.c.l.b16 %v315
        %v433 = vunpack.c.h.b16 %v315
        %v434 = vunpack.c.l.b16 %v316
        %v435 = vunpack.c.h.b16 %v316
        %v436 = vunpack.c.l.b16 %v317
        %v437 = vunpack.c.h.b16 %v317
        %v438 = vunpack.c.l.b16 %v318
        %v439 = vunpack.c.h.b16 %v318
        %v440 = vpack.c.b16 %v378, %v376
        %v441 = vpack.c.b16 %v379, %v377
        %v442 = vpack.c.b16 %v382, %v380
        %v443 = vpack.c.b16 %v383, %v381
        %v444 = vpack.c.b16 %v386, %v384
        %v445 = vpack.c.b16 %v387, %v385
        %v446 = vpack.c.b16 %v390, %v388
        %v447 = vpack.c.b16 %v391, %v389
        %v448 = vpack.c.b16 %v394, %v392
        %v449 = vpack.c.b16 %v395, %v393
        %v450 = vpack.c.b16 %v398, %v396
        %v451 = vpack.c.b16 %v399, %v397
        %v452 = vpack.c.b16 %v402, %v400
        %v453 = vpack.c.b16 %v403, %v401
        %v454 = vpack.c.b16 %v406, %v404
        %v455 = vpack.c.b16 %v407, %v405
        %v456 = vpack.c.b16 %v410, %v408
        %v457 = vpack.c.b16 %v411, %v409
        %v458 = vpack.c.b16 %v414, %v412
        %v459 = vpack.c.b16 %v415, %v413
        %v460 = vpack.c.b16 %v418, %v416
        %v461 = vpack.c.b16 %v419, %v417
        %v462 = vpack.c.b16 %v422, %v420
        %v463 = vpack.c.b16 %v423, %v421
        %v464 = vpack.c.b16 %v426, %v424
        %v465 = vpack.c.b16 %v427, %v425
        %v466 = vpack.c.b16 %v430, %v428
        %v467 = vpack.c.b16 %v431, %v429
        %v468 = vpack.c.b16 %v434, %v432
        %v469 = vpack.c.b16 %v435, %v433
        %v470 = vpack.c.b16 %v438, %v436
        %v471 = vpack.c.b16 %v439, %v437
        %504 = vmatprep.subr.bf16.mxu0 %v441
        %505 = vmatpush1.bf16.msra.mxu0 %v440
        %506 = vmatprep.subr.bf16.mxu0 %v443
        %507 = vmatpush1.bf16.msra.mxu0 %v442
        %508 = vmatprep.subr.bf16.mxu0 %v445
        %509 = vmatpush1.bf16.msra.mxu0 %v444
        %510 = vmatprep.subr.bf16.mxu0 %v447
        %511 = vmatpush1.bf16.msra.mxu0 %v446
        %512 = vmatprep.subr.bf16.mxu0 %v449
        %513 = vmatpush1.bf16.msra.mxu0 %v448
        %514 = vmatprep.subr.bf16.mxu0 %v451
        %515 = vmatpush1.bf16.msra.mxu0 %v450
        %516 = vmatprep.subr.bf16.mxu0 %v453
        %517 = vmatpush1.bf16.msra.mxu0 %v452
        %518 = vmatprep.subr.bf16.mxu0 %v455
        %519 = vmatpush1.bf16.msra.mxu0 %v454
        %520 = vmatprep.subr.bf16.mxu0 %v457
        %521 = vmatpush1.bf16.msra.mxu0 %v456
        %522 = vmatprep.subr.bf16.mxu0 %v459
        %523 = vmatpush1.bf16.msra.mxu0 %v458
        %524 = vmatprep.subr.bf16.mxu0 %v461
        %525 = vmatpush1.bf16.msra.mxu0 %v460
        %526 = vmatprep.subr.bf16.mxu0 %v463
        %527 = vmatpush1.bf16.msra.mxu0 %v462
        %528 = vmatprep.subr.bf16.mxu0 %v465
        %529 = vmatpush1.bf16.msra.mxu0 %v464
        %530 = vmatprep.subr.bf16.mxu0 %v467
        %531 = vmatpush1.bf16.msra.mxu0 %v466
        %532 = vmatprep.subr.bf16.mxu0 %v469
        %533 = vmatpush1.bf16.msra.mxu0 %v468
        %534 = vmatprep.subr.bf16.mxu0 %v471
        %535 = vmatpush1.bf16.msra.mxu0 %v470
        %536 = vmatprep.mubr.bf16.mxu0 %v341
        %537 = vmatmul.mubr.bf16.gmra.mrb[0].mxu0 %v334
        %v538 = vpop.f32.mrb[0].mxu0
        %v539 = vadd.f32 0.0, %v538
        %v540 = vpop.f32.mrb[0].mxu0
        %v541 = vadd.f32 0.0, %v540
        %v542 = vpop.f32.mrb[0].mxu0
        %v543 = vpop.f32.mrb[0].mxu0
        %544 = vdwg.mxu0
        %v547 = vcombine.low %v539, %v541
        %v549 = vunpack.c.l.s4 1983009808
        %v550 = vunpack.c.0.s8 %v549
        %v551 = vlaneseq
        %v552 = vshrl.u32 %v551, 7
        %v553 = vsub.s32 %v550, %v552
        %v554 = vrot.slane %v547, %v553
        %v556 = vadd.f32 %v285, %v554
        %557 = vst [vmem:[#allocation2] sm:$0xf] %v556
        // Predicated region
        $region49: #{resnet_forward.24} parent=31 // pred_check
          %p558 = pneg %p280
        $region50: #{resnet_forward.24} parent=31 // pred_check_branch
          %560 = sbr.rel (%p558) target = $region52
        $region51: #{resnet_forward.24} parent=31 // pred_region
          %v561 = vld [vmem:[#allocation2] sm:$0xf]
          %v562 = vld [vmem:[%s247] ss:$2 sm:$0x3]
          %v564 = vlaneseq
          %v565 = vshrl.u32 %v564, 7
          %v566 = vsub.s32 0, %v565
          %v567 = vrot.slane %v562, %v566
          %v568 = vlaneseq
          %v569 = vshrl.u32 %v568, 7
          %v570 = vsub.s32 1, %v569
          %v571 = vrot.slane %v562, %v570
          %v572 = vcombine.low %v567, %v571
          %v574 = vunpack.c.l.s4 1983009808
          %v575 = vunpack.c.0.s8 %v574
          %v576 = vlaneseq
          %v577 = vshrl.u32 %v576, 7
          %v578 = vsub.s32 %v575, %v577
          %v579 = vrot.slane %v572, %v578
          %v581 = vmul.f32 %v561, %v579
          %s582 = scalar_lea.vmem %s247, 1 [#allocation8]
          %v583 = vld [vmem:[%s582] ss:$2 sm:$0x3]
          %v585 = vlaneseq
          %v586 = vshrl.u32 %v585, 7
          %v587 = vsub.s32 0, %v586
          %v588 = vrot.slane %v583, %v587
          %v589 = vlaneseq
          %v590 = vshrl.u32 %v589, 7
          %v591 = vsub.s32 1, %v590
          %v592 = vrot.slane %v583, %v591
          %v593 = vcombine.low %v588, %v592
          %v595 = vunpack.c.l.s4 1983009808
          %v596 = vunpack.c.0.s8 %v595
          %v597 = vlaneseq
          %v598 = vshrl.u32 %v597, 7
          %v599 = vsub.s32 %v596, %v598
          %v600 = vrot.slane %v593, %v599
          %v602 = vadd.f32 %v581, %v600
          %603 = vst [vmem:[%s274] sm:$0xf] %v602
        $region52: #{resnet_forward.24} parent=31 // pred_fallthru
          _
        %s604 = sand.u32 %s132, 1
        %s605 = scalar_lea.sflag [#allocation5], %s604
        %s606 = sand.u32 %s132, 1
        %s607 = smul.addr %s606, 4
        %s608 = scalar_lea.vmem [#allocation9], %s607
        // Predicated region
        $region53: #{resnet_forward.24} parent=31 // pred_check
          %p609 = pneg %p142
        $region54: #{resnet_forward.24} parent=31 // pred_check_branch
          %611 = sbr.rel (%p609) target = $region56
        $region55: #{resnet_forward.24} parent=31 // pred_region
          %s612 = smul.u32 2, %s27
          %s614 = ssub.s32 64, 64
          %615 = vsyncadd %s605, %s614
          %s616 = smul.addr %s26, 4
          %s617 = sadd.s32 %s612, %s616
          %s618 = smul.addr %s617, 32
          %s619 = scalar_lea.hbm %s3, %s618
          %s621 = sshll.u32 %s608, 4
          %s622 = int_to_ptr.vmem [resolvable:$true] %s621
          %624 = dma.vmem_to_hbm [thread:$0]  %s622, 64, %s619, %s605
        $region56: #{resnet_forward.24} parent=31 // pred_fallthru
          _
      $region32: #{resnet_forward.24} parent=5 // pred_fallthru
        _
      %p625 = scmp.le.s32.totalorder 2, %s16
      // Predicated region
      $region57: #{resnet_forward.24} parent=5 // pred_check
        %p626 = pneg %p625
      $region58: #{resnet_forward.24} parent=5 // pred_check_branch
        %628 = sbr.rel (%p626) target = $region60
      $region59: #{resnet_forward.24} parent=5 // pred_region
        %s629 = ssub.s32 %s16, 2
        // Predicated region
        $region61: #{resnet_forward.24} parent=59 // pred_check
          %p630 = pneg %p148
        $region62: #{resnet_forward.24} parent=59 // pred_check_branch
          %632 = sbr.rel (%p630) target = $region64
        $region63: #{resnet_forward.24} parent=59 // pred_region
          %s633 = sand.u32 %s133, 1
          %s634 = scalar_lea.sflag [#allocation5], %s633
          %s635 = sand.u32 %s133, 1
          %s636 = smul.addr %s635, 4
          %s637 = scalar_lea.vmem [#allocation9], %s636
          %638 = dma.done %s634, 64
        $region64: #{resnet_forward.24} parent=59 // pred_fallthru
          _
      $region60: #{resnet_forward.24} parent=5 // pred_fallthru
        _
    $region6: #{resnet_forward.24} parent=1 // loop_footer
      %s20 = sadd.s32 1, %s16
    $region7: #{resnet_forward.24} parent=1 // loop_footer_branch
      %15 = sbr.rel target = $region3
    $region8: #{resnet_forward.24} parent=1 // loop_exit
      _
    %639 = vsyncpa [#allocation4], 1
    %s640 = scalar_lea.sflag [#allocation4], 1
    %641 = vsyncpa %s640, 1
    %642 = vsyncpa [#allocation7], 1
    %s643 = scalar_lea.sflag [#allocation7], 1
    %644 = vsyncpa %s643, 1
    %645 = vsyncpa [#allocation5], 1
    %s646 = scalar_lea.sflag [#allocation5], 1
    %647 = vsyncpa %s646, 1

// kernel: resnet_forward.26
$region0: #{resnet_forward.26}
  #allocation0 [shape = 'u32[]', space=smem, size = 0x4, offset = 0x4, fixed_abs, tag = 'smem constant byte address 0x4 - core index']
  #allocation1 [shape = 'u32[144,128]{1,0:T(1,128)}', space=vmem, size = 0x12000, scoped, tag = 'internal scratch']
  #allocation2 [shape = 'f32[2,256]{1,0:T(2,128)}', space=vmem, size = 0x800, scoped, tag = 'scratch operand']
  %s0 = inlined_call_operand.hbm [shape: bf16[2,4608], index: 0, kind: input, shape index: {}]
  %s1 = inlined_call_operand.hbm [shape: bf16[4608,512], index: 1, kind: input, shape index: {}]
  %s2 = inlined_call_operand.hbm [shape: f32[2,512], index: 2, kind: input, shape index: {}]
  %s3 = inlined_call_operand.hbm [shape: f32[2,512], index: 3, kind: input, shape index: {}]
  %s4 = inlined_call_operand.hbm [shape: f32[2,512], index: 4, kind: output, shape index: {}]
  %s5 = sld [smem:[#allocation0]]
  $region73: #{resnet_forward.26} parent=0
    _
  %s7 = ssub.s32 1, %s5
  %s8 = scalar_select 0, %s7, %s5
  $region1: #{resnet_forward.26} parent=0
    #allocation3 [shape = 'u8[4096]{0}', space=vmem, size = 0x1000, scoped, tag = 'input window, operand 0']
    #allocation4 [shape = 's32[2]{0}', space=sflag, size = 0x8, scoped, tag = 'scoped memory for resnet_forward.26']
    #allocation5 [shape = 's32[2]{0}', space=sflag, size = 0x8, scoped, tag = 'scoped memory for resnet_forward.26']
    #allocation6 [shape = 'u8[524288]{0}', space=vmem, size = 0x80000, scoped, tag = 'input window, operand 1']
    #allocation7 [shape = 's32[2]{0}', space=sflag, size = 0x8, scoped, tag = 'scoped memory for resnet_forward.26']
    #allocation8 [shape = 'u8[4096]{0}', space=vmem, size = 0x1000, scoped, tag = 'input window, operand 2']
    #allocation9 [shape = 'u8[4096]{0}', space=vmem, size = 0x1000, scoped, tag = 'input window, operand 3']
    #allocation10 [shape = 's32[2]{0}', space=sflag, size = 0x8, scoped, tag = 'scoped memory for resnet_forward.26']
    #allocation11 [shape = 'u8[4096]{0}', space=vmem, size = 0x1000, scoped, tag = 'output window, operand 0']
    %9 = vsyncpa [#allocation4], 0
    %s10 = scalar_lea.sflag [#allocation4], 1
    %11 = vsyncpa %s10, 0
    %12 = vsyncpa [#allocation7], 0
    %s13 = scalar_lea.sflag [#allocation7], 1
    %14 = vsyncpa %s13, 0
    %15 = vsyncpa [#allocation10], 0
    %s16 = scalar_lea.sflag [#allocation10], 1
    %17 = vsyncpa %s16, 0
    %18 = vsyncpa [#allocation5], 0
    %s19 = scalar_lea.sflag [#allocation5], 1
    %20 = vsyncpa %s19, 0
    loop: start=0, step=1, limit=20
    $region2: #{resnet_forward.26} parent=1 // loop_pre_header
      _
    $region3: #{resnet_forward.26} parent=1 // loop_header
      %s22 = sphi 0, %s26
      %p23 = scmp.ge.s32.totalorder %s22, 20
      %s29 = sphi 0, %s48
      %s30 = sphi 0, %s44
      %s31 = sphi 0, %s40
      %s32 = sphi 0, %s29
      %s33 = sphi 0, %s30
      %s34 = sphi 0, %s31
      %s35 = sphi 0, %s32
      %s36 = sphi 0, %s33
      %s37 = sphi 0, %s34
      %s53 = sphi 0, %s55
      %s56 = sphi 0, %s53
      %s57 = sphi 0, %s56
      %s73 = sphi 0, %s57
      %s81 = sphi 0, %s83
      %s84 = sphi 0, %s81
      %s85 = sphi 0, %s84
      %s101 = sphi 0, %s85
      %s107 = sphi 0, %s109
      %s110 = sphi 0, %s107
      %s111 = sphi 0, %s110
      %s127 = sphi 0, %s111
      %s135 = sphi 0, %s137
      %s138 = sphi 0, %s135
      %s139 = sphi 0, %s138
      %s155 = sphi 0, %s139
      %s163 = sphi 0, %s165
      %s166 = sphi 0, %s163
      %s167 = sphi 0, %s166
      %s183 = sphi 0, %s167
    $region4: #{resnet_forward.26} parent=1 // loop_header_branch
      %25 = sbr.rel (%p23) target = $region8
    $region5: #{resnet_forward.26} parent=1 // loop_body
      %s27 = ssub.s32 %s22, 1
      %s28 = ssub.s32 %s22, 2
      %s38 = sadd.s32 1, %s31
      %p39 = scmp.ge.s32.totalorder %s38, 9
      %s40 = scalar_select %p39, 0, %s38
      %s41 = sadd.s32 1, %s30
      %s42 = scalar_select %p39, %s41, %s30
      %p43 = scmp.ge.s32.totalorder %s42, 2
      %s44 = scalar_select %p43, 0, %s42
      %s45 = sadd.s32 1, %s29
      %s46 = scalar_select %p43, %s45, %s29
      %p47 = scmp.ge.s32.totalorder %s46, 1
      %s48 = scalar_select %p47, 0, %s46
      %s49 = ssub.s32 %s29, %s48
      %s50 = ssub.s32 %s31, %s40
      %s51 = sor.u32 %s49, %s50
      %p52 = scmp.eq.s32.totalorder %s51, 0
      %s54 = sadd.s32 %s53, 1
      %s55 = scalar_select %p52, %s53, %s54
      %p58 = pneg %p52
      %p59 = scmp.eq.s32.totalorder %s22, 17
      %p60 = por %p58, %p59
      %p61 = scmp.ne.s32.totalorder %s53, %s56
      %p62 = scmp.eq.s32.totalorder %s22, 0
      %p63 = por %p61, %p62
      %p64 = scmp.ne.s32.totalorder %s53, %s56
      %p65 = scmp.eq.s32.totalorder %s27, 17
      %p66 = por %p64, %p65
      %p67 = scmp.ne.s32.totalorder %s56, %s57
      %p68 = scmp.eq.s32.totalorder %s27, 0
      %p69 = por %p67, %p68
      %p70 = scmp.ne.s32.totalorder %s56, %s57
      %p71 = scmp.eq.s32.totalorder %s28, 17
      %p72 = por %p70, %p71
      %p74 = scmp.ne.s32.totalorder %s57, %s73
      %p75 = scmp.eq.s32.totalorder %s28, 0
      %p76 = por %p74, %p75
      %s77 = ssub.s32 %s31, %s40
      %s78 = ssub.s32 %s30, %s44
      %s79 = sor.u32 %s77, %s78
      %p80 = scmp.eq.s32.totalorder %s79, 0
      %s82 = sadd.s32 %s81, 1
      %s83 = scalar_select %p80, %s81, %s82
      %p86 = pneg %p80
      %p87 = scmp.eq.s32.totalorder %s22, 17
      %p88 = por %p86, %p87
      %p89 = scmp.ne.s32.totalorder %s81, %s84
      %p90 = scmp.eq.s32.totalorder %s22, 0
      %p91 = por %p89, %p90
      %p92 = scmp.ne.s32.totalorder %s81, %s84
      %p93 = scmp.eq.s32.totalorder %s27, 17
      %p94 = por %p92, %p93
      %p95 = scmp.ne.s32.totalorder %s84, %s85
      %p96 = scmp.eq.s32.totalorder %s27, 0
      %p97 = por %p95, %p96
      %p98 = scmp.ne.s32.totalorder %s84, %s85
      %p99 = scmp.eq.s32.totalorder %s28, 17
      %p100 = por %p98, %p99
      %p102 = scmp.ne.s32.totalorder %s85, %s101
      %p103 = scmp.eq.s32.totalorder %s28, 0
      %p104 = por %p102, %p103
      %s105 = ssub.s32 %s30, %s44
      %p106 = scmp.eq.s32.totalorder %s105, 0
      %s108 = sadd.s32 %s107, 1
      %s109 = scalar_select %p106, %s107, %s108
      %p112 = pneg %p106
      %p113 = scmp.eq.s32.totalorder %s22, 17
      %p114 = por %p112, %p113
      %p115 = scmp.ne.s32.totalorder %s107, %s110
      %p116 = scmp.eq.s32.totalorder %s22, 0
      %p117 = por %p115, %p116
      %p118 = scmp.ne.s32.totalorder %s107, %s110
      %p119 = scmp.eq.s32.totalorder %s27, 17
      %p120 = por %p118, %p119
      %p121 = scmp.ne.s32.totalorder %s110, %s111
      %p122 = scmp.eq.s32.totalorder %s27, 0
      %p123 = por %p121, %p122
      %p124 = scmp.ne.s32.totalorder %s110, %s111
      %p125 = scmp.eq.s32.totalorder %s28, 17
      %p126 = por %p124, %p125
      %p128 = scmp.ne.s32.totalorder %s111, %s127
      %p129 = scmp.eq.s32.totalorder %s28, 0
      %p130 = por %p128, %p129
      %s131 = ssub.s32 %s29, %s48
      %s132 = ssub.s32 %s30, %s44
      %s133 = sor.u32 %s131, %s132
      %p134 = scmp.eq.s32.totalorder %s133, 0
      %s136 = sadd.s32 %s135, 1
      %s137 = scalar_select %p134, %s135, %s136
      %p140 = pneg %p134
      %p141 = scmp.eq.s32.totalorder %s22, 17
      %p142 = por %p140, %p141
      %p143 = scmp.ne.s32.totalorder %s135, %s138
      %p144 = scmp.eq.s32.totalorder %s22, 0
      %p145 = por %p143, %p144
      %p146 = scmp.ne.s32.totalorder %s135, %s138
      %p147 = scmp.eq.s32.totalorder %s27, 17
      %p148 = por %p146, %p147
      %p149 = scmp.ne.s32.totalorder %s138, %s139
      %p150 = scmp.eq.s32.totalorder %s27, 0
      %p151 = por %p149, %p150
      %p152 = scmp.ne.s32.totalorder %s138, %s139
      %p153 = scmp.eq.s32.totalorder %s28, 17
      %p154 = por %p152, %p153
      %p156 = scmp.ne.s32.totalorder %s139, %s155
      %p157 = scmp.eq.s32.totalorder %s28, 0
      %p158 = por %p156, %p157
      %s159 = ssub.s32 %s29, %s48
      %s160 = ssub.s32 %s30, %s44
      %s161 = sor.u32 %s159, %s160
      %p162 = scmp.eq.s32.totalorder %s161, 0
      %s164 = sadd.s32 %s163, 1
      %s165 = scalar_select %p162, %s163, %s164
      %p168 = pneg %p162
      %p169 = scmp.eq.s32.totalorder %s22, 17
      %p170 = por %p168, %p169
      %p171 = scmp.ne.s32.totalorder %s163, %s166
      %p172 = scmp.eq.s32.totalorder %s22, 0
      %p173 = por %p171, %p172
      %p174 = scmp.ne.s32.totalorder %s163, %s166
      %p175 = scmp.eq.s32.totalorder %s27, 17
      %p176 = por %p174, %p175
      %p177 = scmp.ne.s32.totalorder %s166, %s167
      %p178 = scmp.eq.s32.totalorder %s27, 0
      %p179 = por %p177, %p178
      %p180 = scmp.ne.s32.totalorder %s166, %s167
      %p181 = scmp.eq.s32.totalorder %s28, 17
      %p182 = por %p180, %p181
      %p184 = scmp.ne.s32.totalorder %s167, %s183
      %p185 = scmp.eq.s32.totalorder %s28, 0
      %p186 = por %p184, %p185
      %p187 = scmp.le.s32.totalorder 1, %s22
      %p188 = scmp.lt.s32.totalorder %s22, 19
      %p189 = pnand %p187, %p188
      %p190 = pneg %p189
      // Predicated region
      $region9: #{resnet_forward.26} parent=5 // pred_check
        _
      $region10: #{resnet_forward.26} parent=5 // pred_check_branch
        %192 = sbr.rel (%p189) target = $region12
      $region11: #{resnet_forward.26} parent=5 // pred_region
        %s193 = ssub.s32 %s22, 1
      $region12: #{resnet_forward.26} parent=5 // pred_fallthru
        _
      %p194 = scmp.lt.s32.totalorder %s22, 18
      // Predicated region
      $region13: #{resnet_forward.26} parent=5 // pred_check
        %p195 = pneg %p194
      $region14: #{resnet_forward.26} parent=5 // pred_check_branch
        %197 = sbr.rel (%p195) target = $region16
      $region15: #{resnet_forward.26} parent=5 // pred_region
        // Predicated region
        $region17: #{resnet_forward.26} parent=15 // pred_check
          %p198 = pneg %p63
        $region18: #{resnet_forward.26} parent=15 // pred_check_branch
          %200 = sbr.rel (%p198) target = $region20
        $region19: #{resnet_forward.26} parent=15 // pred_region
          %s201 = sand.u32 %s53, 1
          %s202 = scalar_lea.sflag [#allocation4], %s201
          %s203 = sand.u32 %s53, 1
          %s204 = smul.addr %s203, 4
          %s205 = scalar_lea.vmem [#allocation3], %s204
          %s206 = smul.u32 4, %s31
          %s208 = ssub.s32 64, 64
          %209 = vsyncadd %s202, %s208
          %s210 = smul.addr %s29, 36
          %s211 = sadd.s32 %s206, %s210
          %s212 = smul.addr %s211, 16
          %s213 = scalar_lea.hbm %s0, %s212
          %s215 = sshll.u32 %s205, 4
          %s216 = int_to_ptr.vmem [resolvable:$true] %s215
          %218 = dma.hbm_to_vmem [thread:$0]  %s213, 64, %s216, %s202
        $region20: #{resnet_forward.26} parent=15 // pred_fallthru
          _
        // Predicated region
        $region21: #{resnet_forward.26} parent=15 // pred_check
          %p219 = pneg %p91
        $region22: #{resnet_forward.26} parent=15 // pred_check_branch
          %221 = sbr.rel (%p219) target = $region24
        $region23: #{resnet_forward.26} parent=15 // pred_region
          %s222 = sand.u32 %s22, 1
          %s223 = scalar_lea.sflag [#allocation7], %s222
          %s224 = sand.u32 %s81, 1
          %s225 = smul.addr %s224, 512
          %s226 = scalar_lea.vmem [#allocation6], %s225
          %s227 = smul.u32 64, %s31
          %s228 = smul.u32 2, %s30
          %s230 = ssub.s32 8192, 8192
          %231 = vsyncadd %s223, %s230
          %s232 = smul.addr %s227, 4
          %s233 = sadd.s32 %s228, %s232
          %s234 = smul.addr %s233, 64
          %s235 = scalar_lea.hbm %s1, %s234
          %s236 = sshll.u32 %s226, 4
          %s237 = int_to_ptr.vmem [resolvable:$true] %s236
          %242 = dma.hbm_to_vmem [thread:$0]  %s235, 8192, %s237, %s223, 256, 128, 8
        $region24: #{resnet_forward.26} parent=15 // pred_fallthru
          _
        // Predicated region
        $region25: #{resnet_forward.26} parent=15 // pred_check
          %p243 = pneg %p117
        $region26: #{resnet_forward.26} parent=15 // pred_check_branch
          %245 = sbr.rel (%p243) target = $region28
        $region27: #{resnet_forward.26} parent=15 // pred_region
          %s246 = sand.u32 %s22, 1
          %s247 = scalar_lea.sflag [#allocation7], %s246
          %s248 = sand.u32 %s107, 1
          %s249 = smul.addr %s248, 4
          %s250 = scalar_lea.vmem [#allocation8], %s249
          %s251 = smul.u32 2, %s30
          %s253 = ssub.s32 64, 64
          %254 = vsyncadd %s247, %s253
          %s255 = smul.addr %s251, 32
          %s256 = scalar_lea.hbm %s2, %s255
          %s258 = sshll.u32 %s250, 4
          %s259 = int_to_ptr.vmem [resolvable:$true] %s258
          %261 = dma.hbm_to_vmem [thread:$0]  %s256, 64, %s259, %s247
        $region28: #{resnet_forward.26} parent=15 // pred_fallthru
          _
        // Predicated region
        $region29: #{resnet_forward.26} parent=15 // pred_check
          %p262 = pneg %p145
        $region30: #{resnet_forward.26} parent=15 // pred_check_branch
          %264 = sbr.rel (%p262) target = $region32
        $region31: #{resnet_forward.26} parent=15 // pred_region
          %s265 = sand.u32 %s135, 1
          %s266 = scalar_lea.sflag [#allocation10], %s265
          %s267 = sand.u32 %s135, 1
          %s268 = smul.addr %s267, 4
          %s269 = scalar_lea.vmem [#allocation9], %s268
          %s270 = smul.u32 2, %s30
          %s272 = ssub.s32 64, 64
          %273 = vsyncadd %s266, %s272
          %s274 = smul.addr %s29, 4
          %s275 = sadd.s32 %s270, %s274
          %s276 = smul.addr %s275, 32
          %s277 = scalar_lea.hbm %s3, %s276
          %s279 = sshll.u32 %s269, 4
          %s280 = int_to_ptr.vmem [resolvable:$true] %s279
          %282 = dma.hbm_to_vmem [thread:$0]  %s277, 64, %s280, %s266
        $region32: #{resnet_forward.26} parent=15 // pred_fallthru
          _
      $region16: #{resnet_forward.26} parent=5 // pred_fallthru
        _
      %p283 = scmp.le.s32.totalorder 1, %s22
      %p284 = scmp.lt.s32.totalorder %s22, 19
      %p285 = pnand %p283, %p284
      %p286 = pneg %p285
      // Predicated region
      $region33: #{resnet_forward.26} parent=5 // pred_check
        _
      $region34: #{resnet_forward.26} parent=5 // pred_check_branch
        %288 = sbr.rel (%p285) target = $region36
      $region35: #{resnet_forward.26} parent=5 // pred_region
        %s289 = ssub.s32 %s22, 1
        %s290 = sand.u32 %s56, 1
        %s291 = scalar_lea.sflag [#allocation4], %s290
        %s292 = sand.u32 %s56, 1
        %s293 = smul.addr %s292, 4
        %s294 = scalar_lea.vmem [#allocation3], %s293
        // Predicated region
        $region37: #{resnet_forward.26} parent=35 // pred_check
          %p295 = pneg %p69
        $region38: #{resnet_forward.26} parent=35 // pred_check_branch
          %297 = sbr.rel (%p295) target = $region40
        $region39: #{resnet_forward.26} parent=35 // pred_region
          %298 = dma.done %s291, 64
        $region40: #{resnet_forward.26} parent=35 // pred_fallthru
          _
        %s299 = sand.u32 %s27, 1
        %s300 = scalar_lea.sflag [#allocation7], %s299
        %s301 = sand.u32 %s84, 1
        %s302 = smul.addr %s301, 512
        %s303 = scalar_lea.vmem [#allocation6], %s302
        // Predicated region
        $region41: #{resnet_forward.26} parent=35 // pred_check
          %p304 = pneg %p97
        $region42: #{resnet_forward.26} parent=35 // pred_check_branch
          %306 = sbr.rel (%p304) target = $region44
        $region43: #{resnet_forward.26} parent=35 // pred_region
          %307 = dma.done %s300, 8192
        $region44: #{resnet_forward.26} parent=35 // pred_fallthru
          _
        %s308 = sand.u32 %s27, 1
        %s309 = scalar_lea.sflag [#allocation7], %s308
        %s310 = sand.u32 %s110, 1
        %s311 = smul.addr %s310, 4
        %s312 = scalar_lea.vmem [#allocation8], %s311
        // Predicated region
        $region45: #{resnet_forward.26} parent=35 // pred_check
          %p313 = pneg %p123
        $region46: #{resnet_forward.26} parent=35 // pred_check_branch
          %315 = sbr.rel (%p313) target = $region48
        $region47: #{resnet_forward.26} parent=35 // pred_region
          %316 = dma.done %s309, 64
        $region48: #{resnet_forward.26} parent=35 // pred_fallthru
          _
        %s317 = sand.u32 %s138, 1
        %s318 = scalar_lea.sflag [#allocation10], %s317
        %s319 = sand.u32 %s138, 1
        %s320 = smul.addr %s319, 4
        %s321 = scalar_lea.vmem [#allocation9], %s320
        // Predicated region
        $region49: #{resnet_forward.26} parent=35 // pred_check
          %p322 = pneg %p151
        $region50: #{resnet_forward.26} parent=35 // pred_check_branch
          %324 = sbr.rel (%p322) target = $region52
        $region51: #{resnet_forward.26} parent=35 // pred_region
          %325 = dma.done %s318, 64
        $region52: #{resnet_forward.26} parent=35 // pred_fallthru
          _
        %s326 = sand.u32 %s56, 1
        %s327 = scalar_lea.sflag [#allocation4], %s326
        %s328 = sand.u32 %s56, 1
        %s329 = smul.addr %s328, 4
        %s330 = scalar_lea.vmem [#allocation3], %s329
        %p331 = pneg %p69
        %p332 = pneg %p66
        %s333 = sand.u32 %s27, 1
        %s334 = scalar_lea.sflag [#allocation7], %s333
        %s335 = sand.u32 %s84, 1
        %s336 = smul.addr %s335, 512
        %s337 = scalar_lea.vmem [#allocation6], %s336
        %p338 = pneg %p97
        %p339 = pneg %p94
        %s340 = sand.u32 %s27, 1
        %s341 = scalar_lea.sflag [#allocation7], %s340
        %s342 = sand.u32 %s110, 1
        %s343 = smul.addr %s342, 4
        %s344 = scalar_lea.vmem [#allocation8], %s343
        %p345 = pneg %p123
        %p346 = pneg %p120
        %s347 = sand.u32 %s138, 1
        %s348 = scalar_lea.sflag [#allocation10], %s347
        %s349 = sand.u32 %s138, 1
        %s350 = smul.addr %s349, 4
        %s351 = scalar_lea.vmem [#allocation9], %s350
        %p352 = pneg %p151
        %p353 = pneg %p148
        %p354 = pneg %p179
        %p355 = pneg %p176
        %s356 = sand.u32 %s166, 1
        %s357 = scalar_lea.sflag [#allocation5], %s356
        %s358 = sand.u32 %s166, 1
        %s359 = smul.addr %s358, 4
        %s360 = scalar_lea.vmem [#allocation11], %s359
        %s361 = smul.u32 4, %s34
        %s362 = smul.u32 64, %s34
        %s363 = smul.u32 2, %s33
        %s364 = smul.u32 2, %s33
        %s365 = smul.u32 2, %s33
        %s366 = smul.u32 2, %s33
        %p367 = scmp.eq.s32.totalorder %s34, 0
        // Predicated region
        $region53: #{resnet_forward.26} parent=35 // pred_check
          %p368 = pneg %p367
        $region54: #{resnet_forward.26} parent=35 // pred_check_branch
          %370 = sbr.rel (%p368) target = $region56
        $region55: #{resnet_forward.26} parent=35 // pred_region
          %371 = vst [vmem:[#allocation2] sm:$0xf] 0.0
        $region56: #{resnet_forward.26} parent=35 // pred_fallthru
          _
        %v372 = vld [vmem:[#allocation2] sm:$0xf]
        %v373 = vld [vmem:[%s294] sm:$0xf]
        %v374 = vld [vmem:[%s303] sm:$0xff]
        %v375 = vld [vmem:[%s303 + $0x8] sm:$0xff]
        %v376 = vld [vmem:[%s303 + $0x10] sm:$0xff]
        %v377 = vld [vmem:[%s303 + $0x18] sm:$0xff]
        %v378 = vld [vmem:[%s303 + $0x20] sm:$0xff]
        %v379 = vld [vmem:[%s303 + $0x28] sm:$0xff]
        %v380 = vld [vmem:[%s303 + $0x30] sm:$0xff]
        %v381 = vld [vmem:[%s303 + $0x38] sm:$0xff]
        %v382 = vld [vmem:[%s303 + $0x40] sm:$0xff]
        %v383 = vld [vmem:[%s303 + $0x48] sm:$0xff]
        %v384 = vld [vmem:[%s303 + $0x50] sm:$0xff]
        %v385 = vld [vmem:[%s303 + $0x58] sm:$0xff]
        %v386 = vld [vmem:[%s303 + $0x60] sm:$0xff]
        %v387 = vld [vmem:[%s303 + $0x68] sm:$0xff]
        %v388 = vld [vmem:[%s303 + $0x70] sm:$0xff]
        %v389 = vld [vmem:[%s303 + $0x78] sm:$0xff]
        %v390 = vld [vmem:[%s303 + $0x80] sm:$0xff]
        %v391 = vld [vmem:[%s303 + $0x88] sm:$0xff]
        %v392 = vld [vmem:[%s303 + $0x90] sm:$0xff]
        %v393 = vld [vmem:[%s303 + $0x98] sm:$0xff]
        %v394 = vld [vmem:[%s303 + $0xa0] sm:$0xff]
        %v395 = vld [vmem:[%s303 + $0xa8] sm:$0xff]
        %v396 = vld [vmem:[%s303 + $0xb0] sm:$0xff]
        %v397 = vld [vmem:[%s303 + $0xb8] sm:$0xff]
        %v398 = vld [vmem:[%s303 + $0xc0] sm:$0xff]
        %v399 = vld [vmem:[%s303 + $0xc8] sm:$0xff]
        %v400 = vld [vmem:[%s303 + $0xd0] sm:$0xff]
        %v401 = vld [vmem:[%s303 + $0xd8] sm:$0xff]
        %v402 = vld [vmem:[%s303 + $0xe0] sm:$0xff]
        %v403 = vld [vmem:[%s303 + $0xe8] sm:$0xff]
        %v404 = vld [vmem:[%s303 + $0xf0] sm:$0xff]
        %v405 = vld [vmem:[%s303 + $0xf8] sm:$0xff]
        %v406 = vld [vmem:[%s303 + $0x100] sm:$0xff]
        %v407 = vld [vmem:[%s303 + $0x108] sm:$0xff]
        %v408 = vld [vmem:[%s303 + $0x110] sm:$0xff]
        %v409 = vld [vmem:[%s303 + $0x118] sm:$0xff]
        %v410 = vld [vmem:[%s303 + $0x120] sm:$0xff]
        %v411 = vld [vmem:[%s303 + $0x128] sm:$0xff]
        %v412 = vld [vmem:[%s303 + $0x130] sm:$0xff]
        %v413 = vld [vmem:[%s303 + $0x138] sm:$0xff]
        %v414 = vld [vmem:[%s303 + $0x140] sm:$0xff]
        %v415 = vld [vmem:[%s303 + $0x148] sm:$0xff]
        %v416 = vld [vmem:[%s303 + $0x150] sm:$0xff]
        %v417 = vld [vmem:[%s303 + $0x158] sm:$0xff]
        %v418 = vld [vmem:[%s303 + $0x160] sm:$0xff]
        %v419 = vld [vmem:[%s303 + $0x168] sm:$0xff]
        %v420 = vld [vmem:[%s303 + $0x170] sm:$0xff]
        %v421 = vld [vmem:[%s303 + $0x178] sm:$0xff]
        %v422 = vld [vmem:[%s303 + $0x180] sm:$0xff]
        %v423 = vld [vmem:[%s303 + $0x188] sm:$0xff]
        %v424 = vld [vmem:[%s303 + $0x190] sm:$0xff]
        %v425 = vld [vmem:[%s303 + $0x198] sm:$0xff]
        %v426 = vld [vmem:[%s303 + $0x1a0] sm:$0xff]
        %v427 = vld [vmem:[%s303 + $0x1a8] sm:$0xff]
        %v428 = vld [vmem:[%s303 + $0x1b0] sm:$0xff]
        %v429 = vld [vmem:[%s303 + $0x1b8] sm:$0xff]
        %v430 = vld [vmem:[%s303 + $0x1c0] sm:$0xff]
        %v431 = vld [vmem:[%s303 + $0x1c8] sm:$0xff]
        %v432 = vld [vmem:[%s303 + $0x1d0] sm:$0xff]
        %v433 = vld [vmem:[%s303 + $0x1d8] sm:$0xff]
        %v434 = vld [vmem:[%s303 + $0x1e0] sm:$0xff]
        %v435 = vld [vmem:[%s303 + $0x1e8] sm:$0xff]
        %v436 = vld [vmem:[%s303 + $0x1f0] sm:$0xff]
        %v437 = vld [vmem:[%s303 + $0x1f8] sm:$0xff]
        %v440 = vunpack.c.l.s4 1966171168
        %v441 = vunpack.c.0.s8 %v440
        %v442 = vlaneseq
        %v443 = vshrl.u32 %v442, 7
        %v444 = vsub.s32 %v441, %v443
        %v445 = vrot.slane %v373, %v444
        %v446 = vcombine.high %v445, %v445
        %v448 = vunpack.c.l.s4 1966171168
        %v449 = vunpack.c.0.s8 %v448
        %v450 = vlaneseq
        %v451 = vshrl.u32 %v450, 7
        %v452 = vsub.s32 %v449, %v451
        %v453 = vrot.slane %v445, %v452
        %v455 = vunpack.c.l.s4 1966171168
        %v456 = vunpack.c.0.s8 %v455
        %v457 = vlaneseq
        %v458 = vshrl.u32 %v457, 7
        %v459 = vsub.s32 %v456, %v458
        %v460 = vrot.slane %v446, %v459
        %v461 = vcombine.high %v453, %v453
        %v462 = vcombine.high %v460, %v460
        %v531 = vunpack.c.l.b16 %v374
        %v532 = vunpack.c.h.b16 %v374
        %v533 = vunpack.c.l.b16 %v375
        %v534 = vunpack.c.h.b16 %v375
        %v535 = vunpack.c.l.b16 %v376
        %v536 = vunpack.c.h.b16 %v376
        %v537 = vunpack.c.l.b16 %v377
        %v538 = vunpack.c.h.b16 %v377
        %v539 = vunpack.c.l.b16 %v378
        %v540 = vunpack.c.h.b16 %v378
        %v541 = vunpack.c.l.b16 %v379
        %v542 = vunpack.c.h.b16 %v379
        %v543 = vunpack.c.l.b16 %v380
        %v544 = vunpack.c.h.b16 %v380
        %v545 = vunpack.c.l.b16 %v381
        %v546 = vunpack.c.h.b16 %v381
        %v547 = vunpack.c.l.b16 %v382
        %v548 = vunpack.c.h.b16 %v382
        %v549 = vunpack.c.l.b16 %v383
        %v550 = vunpack.c.h.b16 %v383
        %v551 = vunpack.c.l.b16 %v384
        %v552 = vunpack.c.h.b16 %v384
        %v553 = vunpack.c.l.b16 %v385
        %v554 = vunpack.c.h.b16 %v385
        %v555 = vunpack.c.l.b16 %v386
        %v556 = vunpack.c.h.b16 %v386
        %v557 = vunpack.c.l.b16 %v387
        %v558 = vunpack.c.h.b16 %v387
        %v559 = vunpack.c.l.b16 %v388
        %v560 = vunpack.c.h.b16 %v388
        %v561 = vunpack.c.l.b16 %v389
        %v562 = vunpack.c.h.b16 %v389
        %v563 = vunpack.c.l.b16 %v390
        %v564 = vunpack.c.h.b16 %v390
        %v565 = vunpack.c.l.b16 %v391
        %v566 = vunpack.c.h.b16 %v391
        %v567 = vunpack.c.l.b16 %v392
        %v568 = vunpack.c.h.b16 %v392
        %v569 = vunpack.c.l.b16 %v393
        %v570 = vunpack.c.h.b16 %v393
        %v571 = vunpack.c.l.b16 %v394
        %v572 = vunpack.c.h.b16 %v394
        %v573 = vunpack.c.l.b16 %v395
        %v574 = vunpack.c.h.b16 %v395
        %v575 = vunpack.c.l.b16 %v396
        %v576 = vunpack.c.h.b16 %v396
        %v577 = vunpack.c.l.b16 %v397
        %v578 = vunpack.c.h.b16 %v397
        %v579 = vunpack.c.l.b16 %v398
        %v580 = vunpack.c.h.b16 %v398
        %v581 = vunpack.c.l.b16 %v399
        %v582 = vunpack.c.h.b16 %v399
        %v583 = vunpack.c.l.b16 %v400
        %v584 = vunpack.c.h.b16 %v400
        %v585 = vunpack.c.l.b16 %v401
        %v586 = vunpack.c.h.b16 %v401
        %v587 = vunpack.c.l.b16 %v402
        %v588 = vunpack.c.h.b16 %v402
        %v589 = vunpack.c.l.b16 %v403
        %v590 = vunpack.c.h.b16 %v403
        %v591 = vunpack.c.l.b16 %v404
        %v592 = vunpack.c.h.b16 %v404
        %v593 = vunpack.c.l.b16 %v405
        %v594 = vunpack.c.h.b16 %v405
        %v595 = vunpack.c.l.b16 %v406
        %v596 = vunpack.c.h.b16 %v406
        %v597 = vunpack.c.l.b16 %v407
        %v598 = vunpack.c.h.b16 %v407
        %v599 = vunpack.c.l.b16 %v408
        %v600 = vunpack.c.h.b16 %v408
        %v601 = vunpack.c.l.b16 %v409
        %v602 = vunpack.c.h.b16 %v409
        %v603 = vunpack.c.l.b16 %v410
        %v604 = vunpack.c.h.b16 %v410
        %v605 = vunpack.c.l.b16 %v411
        %v606 = vunpack.c.h.b16 %v411
        %v607 = vunpack.c.l.b16 %v412
        %v608 = vunpack.c.h.b16 %v412
        %v609 = vunpack.c.l.b16 %v413
        %v610 = vunpack.c.h.b16 %v413
        %v611 = vunpack.c.l.b16 %v414
        %v612 = vunpack.c.h.b16 %v414
        %v613 = vunpack.c.l.b16 %v415
        %v614 = vunpack.c.h.b16 %v415
        %v615 = vunpack.c.l.b16 %v416
        %v616 = vunpack.c.h.b16 %v416
        %v617 = vunpack.c.l.b16 %v417
        %v618 = vunpack.c.h.b16 %v417
        %v619 = vunpack.c.l.b16 %v418
        %v620 = vunpack.c.h.b16 %v418
        %v621 = vunpack.c.l.b16 %v419
        %v622 = vunpack.c.h.b16 %v419
        %v623 = vunpack.c.l.b16 %v420
        %v624 = vunpack.c.h.b16 %v420
        %v625 = vunpack.c.l.b16 %v421
        %v626 = vunpack.c.h.b16 %v421
        %v627 = vunpack.c.l.b16 %v422
        %v628 = vunpack.c.h.b16 %v422
        %v629 = vunpack.c.l.b16 %v423
        %v630 = vunpack.c.h.b16 %v423
        %v631 = vunpack.c.l.b16 %v424
        %v632 = vunpack.c.h.b16 %v424
        %v633 = vunpack.c.l.b16 %v425
        %v634 = vunpack.c.h.b16 %v425
        %v635 = vunpack.c.l.b16 %v426
        %v636 = vunpack.c.h.b16 %v426
        %v637 = vunpack.c.l.b16 %v427
        %v638 = vunpack.c.h.b16 %v427
        %v639 = vunpack.c.l.b16 %v428
        %v640 = vunpack.c.h.b16 %v428
        %v641 = vunpack.c.l.b16 %v429
        %v642 = vunpack.c.h.b16 %v429
        %v643 = vunpack.c.l.b16 %v430
        %v644 = vunpack.c.h.b16 %v430
        %v645 = vunpack.c.l.b16 %v431
        %v646 = vunpack.c.h.b16 %v431
        %v647 = vunpack.c.l.b16 %v432
        %v648 = vunpack.c.h.b16 %v432
        %v649 = vunpack.c.l.b16 %v433
        %v650 = vunpack.c.h.b16 %v433
        %v651 = vunpack.c.l.b16 %v434
        %v652 = vunpack.c.h.b16 %v434
        %v653 = vunpack.c.l.b16 %v435
        %v654 = vunpack.c.h.b16 %v435
        %v655 = vunpack.c.l.b16 %v436
        %v656 = vunpack.c.h.b16 %v436
        %v657 = vunpack.c.l.b16 %v437
        %v658 = vunpack.c.h.b16 %v437
        %v659 = vpack.c.b16 %v533, %v531
        %v660 = vpack.c.b16 %v534, %v532
        %v661 = vpack.c.b16 %v537, %v535
        %v662 = vpack.c.b16 %v538, %v536
        %v663 = vpack.c.b16 %v541, %v539
        %v664 = vpack.c.b16 %v542, %v540
        %v665 = vpack.c.b16 %v545, %v543
        %v666 = vpack.c.b16 %v546, %v544
        %v667 = vpack.c.b16 %v549, %v547
        %v668 = vpack.c.b16 %v550, %v548
        %v669 = vpack.c.b16 %v553, %v551
        %v670 = vpack.c.b16 %v554, %v552
        %v671 = vpack.c.b16 %v557, %v555
        %v672 = vpack.c.b16 %v558, %v556
        %v673 = vpack.c.b16 %v561, %v559
        %v674 = vpack.c.b16 %v562, %v560
        %v675 = vpack.c.b16 %v565, %v563
        %v676 = vpack.c.b16 %v566, %v564
        %v677 = vpack.c.b16 %v569, %v567
        %v678 = vpack.c.b16 %v570, %v568
        %v679 = vpack.c.b16 %v573, %v571
        %v680 = vpack.c.b16 %v574, %v572
        %v681 = vpack.c.b16 %v577, %v575
        %v682 = vpack.c.b16 %v578, %v576
        %v683 = vpack.c.b16 %v581, %v579
        %v684 = vpack.c.b16 %v582, %v580
        %v685 = vpack.c.b16 %v585, %v583
        %v686 = vpack.c.b16 %v586, %v584
        %v687 = vpack.c.b16 %v589, %v587
        %v688 = vpack.c.b16 %v590, %v588
        %v689 = vpack.c.b16 %v593, %v591
        %v690 = vpack.c.b16 %v594, %v592
        %v691 = vpack.c.b16 %v597, %v595
        %v692 = vpack.c.b16 %v598, %v596
        %v693 = vpack.c.b16 %v601, %v599
        %v694 = vpack.c.b16 %v602, %v600
        %v695 = vpack.c.b16 %v605, %v603
        %v696 = vpack.c.b16 %v606, %v604
        %v697 = vpack.c.b16 %v609, %v607
        %v698 = vpack.c.b16 %v610, %v608
        %v699 = vpack.c.b16 %v613, %v611
        %v700 = vpack.c.b16 %v614, %v612
        %v701 = vpack.c.b16 %v617, %v615
        %v702 = vpack.c.b16 %v618, %v616
        %v703 = vpack.c.b16 %v621, %v619
        %v704 = vpack.c.b16 %v622, %v620
        %v705 = vpack.c.b16 %v625, %v623
        %v706 = vpack.c.b16 %v626, %v624
        %v707 = vpack.c.b16 %v629, %v627
        %v708 = vpack.c.b16 %v630, %v628
        %v709 = vpack.c.b16 %v633, %v631
        %v710 = vpack.c.b16 %v634, %v632
        %v711 = vpack.c.b16 %v637, %v635
        %v712 = vpack.c.b16 %v638, %v636
        %v713 = vpack.c.b16 %v641, %v639
        %v714 = vpack.c.b16 %v642, %v640
        %v715 = vpack.c.b16 %v645, %v643
        %v716 = vpack.c.b16 %v646, %v644
        %v717 = vpack.c.b16 %v649, %v647
        %v718 = vpack.c.b16 %v650, %v648
        %v719 = vpack.c.b16 %v653, %v651
        %v720 = vpack.c.b16 %v654, %v652
        %v721 = vpack.c.b16 %v657, %v655
        %v722 = vpack.c.b16 %v658, %v656
        %787 = vmatprep.subr.bf16.mxu0 %v660
        %788 = vmatpush1.bf16.msra.mxu0 %v659
        %789 = vmatprep.subr.bf16.mxu0 %v662
        %790 = vmatpush1.bf16.msra.mxu0 %v661
        %791 = vmatprep.subr.bf16.mxu0 %v664
        %792 = vmatpush1.bf16.msra.mxu0 %v663
        %793 = vmatprep.subr.bf16.mxu0 %v666
        %794 = vmatpush1.bf16.msra.mxu0 %v665
        %795 = vmatprep.subr.bf16.mxu0 %v668
        %796 = vmatpush1.bf16.msra.mxu0 %v667
        %797 = vmatprep.subr.bf16.mxu0 %v670
        %798 = vmatpush1.bf16.msra.mxu0 %v669
        %799 = vmatprep.subr.bf16.mxu0 %v672
        %800 = vmatpush1.bf16.msra.mxu0 %v671
        %801 = vmatprep.subr.bf16.mxu0 %v674
        %802 = vmatpush1.bf16.msra.mxu0 %v673
        %803 = vmatprep.subr.bf16.mxu0 %v676
        %804 = vmatpush1.bf16.msra.mxu0 %v675
        %805 = vmatprep.subr.bf16.mxu0 %v678
        %806 = vmatpush1.bf16.msra.mxu0 %v677
        %807 = vmatprep.subr.bf16.mxu0 %v680
        %808 = vmatpush1.bf16.msra.mxu0 %v679
        %809 = vmatprep.subr.bf16.mxu0 %v682
        %810 = vmatpush1.bf16.msra.mxu0 %v681
        %811 = vmatprep.subr.bf16.mxu0 %v684
        %812 = vmatpush1.bf16.msra.mxu0 %v683
        %813 = vmatprep.subr.bf16.mxu0 %v686
        %814 = vmatpush1.bf16.msra.mxu0 %v685
        %815 = vmatprep.subr.bf16.mxu0 %v688
        %816 = vmatpush1.bf16.msra.mxu0 %v687
        %817 = vmatprep.subr.bf16.mxu0 %v690
        %818 = vmatpush1.bf16.msra.mxu0 %v689
        %819 = vmatprep.mubr.bf16.mxu0 %v460
        %820 = vmatmul.mubr.bf16.gmra.mrb[0].mxu0 %v453
        %v821 = vpop.f32.mrb[0].mxu0
        %v822 = vadd.f32 0.0, %v821
        %v823 = vpop.f32.mrb[0].mxu0
        %v824 = vadd.f32 0.0, %v823
        %v825 = vpop.f32.mrb[0].mxu0
        %v826 = vpop.f32.mrb[0].mxu0
        %827 = vdwg.mxu0
        %828 = vmatprep.subr.bf16.mxu0 %v692
        %829 = vmatpush1.bf16.msra.mxu0 %v691
        %830 = vmatprep.subr.bf16.mxu0 %v694
        %831 = vmatpush1.bf16.msra.mxu0 %v693
        %832 = vmatprep.subr.bf16.mxu0 %v696
        %833 = vmatpush1.bf16.msra.mxu0 %v695
        %834 = vmatprep.subr.bf16.mxu0 %v698
        %835 = vmatpush1.bf16.msra.mxu0 %v697
        %836 = vmatprep.subr.bf16.mxu0 %v700
        %837 = vmatpush1.bf16.msra.mxu0 %v699
        %838 = vmatprep.subr.bf16.mxu0 %v702
        %839 = vmatpush1.bf16.msra.mxu0 %v701
        %840 = vmatprep.subr.bf16.mxu0 %v704
        %841 = vmatpush1.bf16.msra.mxu0 %v703
        %842 = vmatprep.subr.bf16.mxu0 %v706
        %843 = vmatpush1.bf16.msra.mxu0 %v705
        %844 = vmatprep.subr.bf16.mxu0 %v708
        %845 = vmatpush1.bf16.msra.mxu0 %v707
        %846 = vmatprep.subr.bf16.mxu0 %v710
        %847 = vmatpush1.bf16.msra.mxu0 %v709
        %848 = vmatprep.subr.bf16.mxu0 %v712
        %849 = vmatpush1.bf16.msra.mxu0 %v711
        %850 = vmatprep.subr.bf16.mxu0 %v714
        %851 = vmatpush1.bf16.msra.mxu0 %v713
        %852 = vmatprep.subr.bf16.mxu0 %v716
        %853 = vmatpush1.bf16.msra.mxu0 %v715
        %854 = vmatprep.subr.bf16.mxu0 %v718
        %855 = vmatpush1.bf16.msra.mxu0 %v717
        %856 = vmatprep.subr.bf16.mxu0 %v720
        %857 = vmatpush1.bf16.msra.mxu0 %v719
        %858 = vmatprep.subr.bf16.mxu0 %v722
        %859 = vmatpush1.bf16.msra.mxu0 %v721
        %860 = vmatprep.mubr.bf16.mxu0 %v462
        %861 = vmatmul.mubr.bf16.gmra.mrb[0].mxu0 %v461
        %v862 = vpop.f32.mrb[0].mxu0
        %v863 = vadd.f32 %v822, %v862
        %v864 = vpop.f32.mrb[0].mxu0
        %v865 = vadd.f32 %v824, %v864
        %v866 = vpop.f32.mrb[0].mxu0
        %v867 = vpop.f32.mrb[0].mxu0
        %868 = vdwg.mxu0
        %v871 = vcombine.low %v863, %v865
        %v873 = vunpack.c.l.s4 1983009808
        %v874 = vunpack.c.0.s8 %v873
        %v875 = vlaneseq
        %v876 = vshrl.u32 %v875, 7
        %v877 = vsub.s32 %v874, %v876
        %v878 = vrot.slane %v871, %v877
        %v880 = vadd.f32 %v372, %v878
        %881 = vst [vmem:[#allocation2] sm:$0xf] %v880
        %p882 = scmp.eq.s32.totalorder %s34, 8
        // Predicated region
        $region57: #{resnet_forward.26} parent=35 // pred_check
          %p883 = pneg %p882
        $region58: #{resnet_forward.26} parent=35 // pred_check_branch
          %885 = sbr.rel (%p883) target = $region60
        $region59: #{resnet_forward.26} parent=35 // pred_region
          %v886 = vld [vmem:[#allocation2] sm:$0xf]
          %v887 = vld [vmem:[%s312] ss:$2 sm:$0x3]
          %v889 = vlaneseq
          %v890 = vshrl.u32 %v889, 7
          %v891 = vsub.s32 0, %v890
          %v892 = vrot.slane %v887, %v891
          %v893 = vlaneseq
          %v894 = vshrl.u32 %v893, 7
          %v895 = vsub.s32 1, %v894
          %v896 = vrot.slane %v887, %v895
          %v897 = vcombine.low %v892, %v896
          %v899 = vunpack.c.l.s4 1983009808
          %v900 = vunpack.c.0.s8 %v899
          %v901 = vlaneseq
          %v902 = vshrl.u32 %v901, 7
          %v903 = vsub.s32 %v900, %v902
          %v904 = vrot.slane %v897, %v903
          %v906 = vmul.f32 %v886, %v904
          %s907 = scalar_lea.vmem %s312, 1 [#allocation8]
          %v908 = vld [vmem:[%s907] ss:$2 sm:$0x3]
          %v910 = vlaneseq
          %v911 = vshrl.u32 %v910, 7
          %v912 = vsub.s32 0, %v911
          %v913 = vrot.slane %v908, %v912
          %v914 = vlaneseq
          %v915 = vshrl.u32 %v914, 7
          %v916 = vsub.s32 1, %v915
          %v917 = vrot.slane %v908, %v916
          %v918 = vcombine.low %v913, %v917
          %v920 = vunpack.c.l.s4 1983009808
          %v921 = vunpack.c.0.s8 %v920
          %v922 = vlaneseq
          %v923 = vshrl.u32 %v922, 7
          %v924 = vsub.s32 %v921, %v923
          %v925 = vrot.slane %v918, %v924
          %v927 = vadd.f32 %v906, %v925
          %v928 = vld [vmem:[%s321] sm:$0xf]
          %v929 = vadd.f32 %v927, %v928
          %v930 = vmax.f32 %v929, 0.0
          %931 = vst [vmem:[%s360] sm:$0xf] %v930
        $region60: #{resnet_forward.26} parent=35 // pred_fallthru
          _
        %s932 = sand.u32 %s166, 1
        %s933 = scalar_lea.sflag [#allocation5], %s932
        %s934 = sand.u32 %s166, 1
        %s935 = smul.addr %s934, 4
        %s936 = scalar_lea.vmem [#allocation11], %s935
        // Predicated region
        $region61: #{resnet_forward.26} parent=35 // pred_check
          %p937 = pneg %p176
        $region62: #{resnet_forward.26} parent=35 // pred_check_branch
          %939 = sbr.rel (%p937) target = $region64
        $region63: #{resnet_forward.26} parent=35 // pred_region
          %s940 = smul.u32 2, %s33
          %s942 = ssub.s32 64, 64
          %943 = vsyncadd %s933, %s942
          %s944 = smul.addr %s32, 4
          %s945 = sadd.s32 %s940, %s944
          %s946 = smul.addr %s945, 32
          %s947 = scalar_lea.hbm %s4, %s946
          %s949 = sshll.u32 %s936, 4
          %s950 = int_to_ptr.vmem [resolvable:$true] %s949
          %952 = dma.vmem_to_hbm [thread:$0]  %s950, 64, %s947, %s933
        $region64: #{resnet_forward.26} parent=35 // pred_fallthru
          _
      $region36: #{resnet_forward.26} parent=5 // pred_fallthru
        _
      %p953 = scmp.le.s32.totalorder 2, %s22
      // Predicated region
      $region65: #{resnet_forward.26} parent=5 // pred_check
        %p954 = pneg %p953
      $region66: #{resnet_forward.26} parent=5 // pred_check_branch
        %956 = sbr.rel (%p954) target = $region68
      $region67: #{resnet_forward.26} parent=5 // pred_region
        %s957 = ssub.s32 %s22, 2
        // Predicated region
        $region69: #{resnet_forward.26} parent=67 // pred_check
          %p958 = pneg %p182
        $region70: #{resnet_forward.26} parent=67 // pred_check_branch
          %960 = sbr.rel (%p958) target = $region72
        $region71: #{resnet_forward.26} parent=67 // pred_region
          %s961 = sand.u32 %s167, 1
          %s962 = scalar_lea.sflag [#allocation5], %s961
          %s963 = sand.u32 %s167, 1
          %s964 = smul.addr %s963, 4
          %s965 = scalar_lea.vmem [#allocation11], %s964
          %966 = dma.done %s962, 64
        $region72: #{resnet_forward.26} parent=67 // pred_fallthru
          _
      $region68: #{resnet_forward.26} parent=5 // pred_fallthru
        _
    $region6: #{resnet_forward.26} parent=1 // loop_footer
      %s26 = sadd.s32 1, %s22
    $region7: #{resnet_forward.26} parent=1 // loop_footer_branch
      %21 = sbr.rel target = $region3
    $region8: #{resnet_forward.26} parent=1 // loop_exit
      _
    %967 = vsyncpa [#allocation4], 1
    %s968 = scalar_lea.sflag [#allocation4], 1
    %969 = vsyncpa %s968, 1
    %970 = vsyncpa [#allocation7], 1
    %s971 = scalar_lea.sflag [#allocation7], 1
    %972 = vsyncpa %s971, 1
    %973 = vsyncpa [#allocation10], 1
    %s974 = scalar_lea.sflag [#allocation10], 1
    %975 = vsyncpa %s974, 1
    %976 = vsyncpa [#allocation5], 1
    %s977 = scalar_lea.sflag [#allocation5], 1
    %978 = vsyncpa %s977, 1

// kernel: resnet_forward.27
$region0: #{resnet_forward.27}
  #allocation0 [shape = 'u32[]', space=smem, size = 0x4, offset = 0x4, fixed_abs, tag = 'smem constant byte address 0x4 - core index']
  #allocation1 [shape = 'u32[144,128]{1,0:T(1,128)}', space=vmem, size = 0x12000, scoped, tag = 'internal scratch']
  %s0 = inlined_call_operand.vmem [shape: f32[2,1,512], index: 0, kind: input, shape index: {}]
  %s1 = inlined_call_operand.vmem [shape: f32[512,10], index: 1, kind: input, shape index: {}]
  %s2 = inlined_call_operand.hbm [shape: f32[1,10], index: 2, kind: input, shape index: {}]
  %s3 = inlined_call_operand.hbm [shape: f32[2,10], index: 3, kind: output, shape index: {}]
  %s4 = sld [smem:[#allocation0]]
  $region26: #{resnet_forward.27} parent=0
    _
  %s6 = ssub.s32 1, %s4
  %s7 = scalar_select 0, %s6, %s4
  $region1: #{resnet_forward.27} parent=0
    #allocation2 [shape = 'u8[512]{0}', space=vmem, size = 0x400, scoped, tag = 'input window, operand 2, single buffered']
    #allocation3 [shape = 's32[1]{0}', space=sflag, size = 0x4, scoped, tag = 'scoped memory for resnet_forward.27']
    #allocation4 [shape = 's32[1]{0}', space=sflag, size = 0x4, scoped, tag = 'scoped memory for resnet_forward.27']
    #allocation5 [shape = 'u8[1024]{0}', space=vmem, size = 0x400, scoped, tag = 'output window, operand 0, single buffered']
    %8 = vsyncpa [#allocation3], 0
    %9 = vsyncpa [#allocation4], 0
    // Predicated region
    $region2: #{resnet_forward.27} parent=1 // pred_check
      _
    $region3: #{resnet_forward.27} parent=1 // pred_check_branch
      %11 = sbr.rel (0) target = $region5
    $region4: #{resnet_forward.27} parent=1 // pred_region
      _
    $region5: #{resnet_forward.27} parent=1 // pred_fallthru
      _
    // Predicated region
    $region6: #{resnet_forward.27} parent=1 // pred_check
      _
    $region7: #{resnet_forward.27} parent=1 // pred_check_branch
      %13 = sbr.rel (0) target = $region9
    $region8: #{resnet_forward.27} parent=1 // pred_region
      _
    $region9: #{resnet_forward.27} parent=1 // pred_fallthru
      _
    // Predicated region
    $region10: #{resnet_forward.27} parent=1 // pred_check
      _
    $region11: #{resnet_forward.27} parent=1 // pred_check_branch
      %15 = sbr.rel (0) target = $region13
    $region12: #{resnet_forward.27} parent=1 // pred_region
      %s17 = ssub.s32 16, 16
      %18 = vsyncadd [#allocation3], %s17
      %s20 = sshll.u32 [#allocation2], 4
      %s21 = int_to_ptr.vmem [resolvable:$true] %s20
      %23 = dma.hbm_to_vmem [thread:$0]  %s2, 16, %s21, [#allocation3]
    $region13: #{resnet_forward.27} parent=1 // pred_fallthru
      _
    // Predicated region
    $region14: #{resnet_forward.27} parent=1 // pred_check
      _
    $region15: #{resnet_forward.27} parent=1 // pred_check_branch
      %25 = sbr.rel (0) target = $region17
    $region16: #{resnet_forward.27} parent=1 // pred_region
      %26 = dma.done [#allocation3], 16
    $region17: #{resnet_forward.27} parent=1 // pred_fallthru
      _
    %v27 = vld [vmem:[%s0] sm:$0xf]
    %v28 = vld [vmem:[%s0 + $0x4] sm:$0xf]
    %v29 = vadd.f32 %v27, 0.0
    %v30 = vadd.f32 %v28, 0.0
    %v31 = vld [vmem:[%s1] sm:$0xff]
    %v32 = vld [vmem:[%s1 + $0x8] sm:$0xff]
    %v33 = vld [vmem:[%s1 + $0x10] sm:$0xff]
    %v34 = vld [vmem:[%s1 + $0x18] sm:$0xff]
    %v35 = vld [vmem:[%s1 + $0x20] sm:$0xff]
    %v36 = vld [vmem:[%s1 + $0x28] sm:$0xff]
    %v37 = vld [vmem:[%s1 + $0x30] sm:$0xff]
    %v38 = vld [vmem:[%s1 + $0x38] sm:$0xff]
    %v39 = vld [vmem:[%s1 + $0x40] sm:$0xff]
    %v40 = vld [vmem:[%s1 + $0x48] sm:$0xff]
    %v41 = vld [vmem:[%s1 + $0x50] sm:$0xff]
    %v42 = vld [vmem:[%s1 + $0x58] sm:$0xff]
    %v43 = vld [vmem:[%s1 + $0x60] sm:$0xff]
    %v44 = vld [vmem:[%s1 + $0x68] sm:$0xff]
    %v45 = vld [vmem:[%s1 + $0x70] sm:$0xff]
    %v46 = vld [vmem:[%s1 + $0x78] sm:$0xff]
    %v47 = vld [vmem:[%s1 + $0x80] sm:$0xff]
    %v48 = vld [vmem:[%s1 + $0x88] sm:$0xff]
    %v49 = vld [vmem:[%s1 + $0x90] sm:$0xff]
    %v50 = vld [vmem:[%s1 + $0x98] sm:$0xff]
    %v51 = vld [vmem:[%s1 + $0xa0] sm:$0xff]
    %v52 = vld [vmem:[%s1 + $0xa8] sm:$0xff]
    %v53 = vld [vmem:[%s1 + $0xb0] sm:$0xff]
    %v54 = vld [vmem:[%s1 + $0xb8] sm:$0xff]
    %v55 = vld [vmem:[%s1 + $0xc0] sm:$0xff]
    %v56 = vld [vmem:[%s1 + $0xc8] sm:$0xff]
    %v57 = vld [vmem:[%s1 + $0xd0] sm:$0xff]
    %v58 = vld [vmem:[%s1 + $0xd8] sm:$0xff]
    %v59 = vld [vmem:[%s1 + $0xe0] sm:$0xff]
    %v60 = vld [vmem:[%s1 + $0xe8] sm:$0xff]
    %v61 = vld [vmem:[%s1 + $0xf0] sm:$0xff]
    %v62 = vld [vmem:[%s1 + $0xf8] sm:$0xff]
    %v63 = vld [vmem:[%s1 + $0x100] sm:$0xff]
    %v64 = vld [vmem:[%s1 + $0x108] sm:$0xff]
    %v65 = vld [vmem:[%s1 + $0x110] sm:$0xff]
    %v66 = vld [vmem:[%s1 + $0x118] sm:$0xff]
    %v67 = vld [vmem:[%s1 + $0x120] sm:$0xff]
    %v68 = vld [vmem:[%s1 + $0x128] sm:$0xff]
    %v69 = vld [vmem:[%s1 + $0x130] sm:$0xff]
    %v70 = vld [vmem:[%s1 + $0x138] sm:$0xff]
    %v71 = vld [vmem:[%s1 + $0x140] sm:$0xff]
    %v72 = vld [vmem:[%s1 + $0x148] sm:$0xff]
    %v73 = vld [vmem:[%s1 + $0x150] sm:$0xff]
    %v74 = vld [vmem:[%s1 + $0x158] sm:$0xff]
    %v75 = vld [vmem:[%s1 + $0x160] sm:$0xff]
    %v76 = vld [vmem:[%s1 + $0x168] sm:$0xff]
    %v77 = vld [vmem:[%s1 + $0x170] sm:$0xff]
    %v78 = vld [vmem:[%s1 + $0x178] sm:$0xff]
    %v79 = vld [vmem:[%s1 + $0x180] sm:$0xff]
    %v80 = vld [vmem:[%s1 + $0x188] sm:$0xff]
    %v81 = vld [vmem:[%s1 + $0x190] sm:$0xff]
    %v82 = vld [vmem:[%s1 + $0x198] sm:$0xff]
    %v83 = vld [vmem:[%s1 + $0x1a0] sm:$0xff]
    %v84 = vld [vmem:[%s1 + $0x1a8] sm:$0xff]
    %v85 = vld [vmem:[%s1 + $0x1b0] sm:$0xff]
    %v86 = vld [vmem:[%s1 + $0x1b8] sm:$0xff]
    %v87 = vld [vmem:[%s1 + $0x1c0] sm:$0xff]
    %v88 = vld [vmem:[%s1 + $0x1c8] sm:$0xff]
    %v89 = vld [vmem:[%s1 + $0x1d0] sm:$0xff]
    %v90 = vld [vmem:[%s1 + $0x1d8] sm:$0xff]
    %v91 = vld [vmem:[%s1 + $0x1e0] sm:$0xff]
    %v92 = vld [vmem:[%s1 + $0x1e8] sm:$0xff]
    %v93 = vld [vmem:[%s1 + $0x1f0] sm:$0xff]
    %v94 = vld [vmem:[%s1 + $0x1f8] sm:$0xff]
    %v95 = vld [vmem:[#allocation2] sm:$0x1]
    %v97 = vlaneseq
    %v98 = vshrl.u32 %v97, 7
    %v99 = vsub.s32 0, %v98
    %v100 = vrot.slane %v95, %v99
    %v104 = vcombine.low %v29, %v30
    %v106 = vunpack.c.l.s4 1966171168
    %v107 = vunpack.c.0.s8 %v106
    %v108 = vlaneseq
    %v109 = vshrl.u32 %v108, 7
    %v110 = vsub.s32 %v107, %v109
    %v111 = vrot.slane %v104, %v110
    %v112 = vcombine.high %v111, %v111
    %v114 = vunpack.c.l.s4 1966171168
    %v115 = vunpack.c.0.s8 %v114
    %v116 = vlaneseq
    %v117 = vshrl.u32 %v116, 7
    %v118 = vsub.s32 %v115, %v117
    %v119 = vrot.slane %v111, %v118
    %v121 = vunpack.c.l.s4 1966171168
    %v122 = vunpack.c.0.s8 %v121
    %v123 = vlaneseq
    %v124 = vshrl.u32 %v123, 7
    %v125 = vsub.s32 %v122, %v124
    %v126 = vrot.slane %v112, %v125
    %v127 = vcombine.high %v119, %v119
    %v128 = vcombine.high %v126, %v126
    %133 = vmatprep.subr.mxu0 0.0
    %134 = vmatpush1.msra.mxu0 %v31
    %135 = vmatprep.subr.mxu0 0.0
    %136 = vmatpush1.msra.mxu0 %v32
    %137 = vmatprep.subr.mxu0 0.0
    %138 = vmatpush1.msra.mxu0 %v33
    %139 = vmatprep.subr.mxu0 0.0
    %140 = vmatpush1.msra.mxu0 %v34
    %141 = vmatprep.subr.mxu0 0.0
    %142 = vmatpush1.msra.mxu0 %v35
    %143 = vmatprep.subr.mxu0 0.0
    %144 = vmatpush1.msra.mxu0 %v36
    %145 = vmatprep.subr.mxu0 0.0
    %146 = vmatpush1.msra.mxu0 %v37
    %147 = vmatprep.subr.mxu0 0.0
    %148 = vmatpush1.msra.mxu0 %v38
    %149 = vmatprep.subr.mxu0 0.0
    %150 = vmatpush1.msra.mxu0 %v39
    %151 = vmatprep.subr.mxu0 0.0
    %152 = vmatpush1.msra.mxu0 %v40
    %153 = vmatprep.subr.mxu0 0.0
    %154 = vmatpush1.msra.mxu0 %v41
    %155 = vmatprep.subr.mxu0 0.0
    %156 = vmatpush1.msra.mxu0 %v42
    %157 = vmatprep.subr.mxu0 0.0
    %158 = vmatpush1.msra.mxu0 %v43
    %159 = vmatprep.subr.mxu0 0.0
    %160 = vmatpush1.msra.mxu0 %v44
    %161 = vmatprep.subr.mxu0 0.0
    %162 = vmatpush1.msra.mxu0 %v45
    %163 = vmatprep.subr.mxu0 0.0
    %164 = vmatpush1.msra.mxu0 %v46
    %165 = vmatprep.subr.mxu0 0.0
    %166 = vmatpush1.msra.mxu0 %v47
    %167 = vmatprep.subr.mxu0 0.0
    %168 = vmatpush1.msra.mxu0 %v48
    %169 = vmatprep.subr.mxu0 0.0
    %170 = vmatpush1.msra.mxu0 %v49
    %171 = vmatprep.subr.mxu0 0.0
    %172 = vmatpush1.msra.mxu0 %v50
    %173 = vmatprep.subr.mxu0 0.0
    %174 = vmatpush1.msra.mxu0 %v51
    %175 = vmatprep.subr.mxu0 0.0
    %176 = vmatpush1.msra.mxu0 %v52
    %177 = vmatprep.subr.mxu0 0.0
    %178 = vmatpush1.msra.mxu0 %v53
    %179 = vmatprep.subr.mxu0 0.0
    %180 = vmatpush1.msra.mxu0 %v54
    %181 = vmatprep.subr.mxu0 0.0
    %182 = vmatpush1.msra.mxu0 %v55
    %183 = vmatprep.subr.mxu0 0.0
    %184 = vmatpush1.msra.mxu0 %v56
    %185 = vmatprep.subr.mxu0 0.0
    %186 = vmatpush1.msra.mxu0 %v57
    %187 = vmatprep.subr.mxu0 0.0
    %188 = vmatpush1.msra.mxu0 %v58
    %189 = vmatprep.subr.mxu0 0.0
    %190 = vmatpush1.msra.mxu0 %v59
    %191 = vmatprep.subr.mxu0 0.0
    %192 = vmatpush1.msra.mxu0 %v60
    %193 = vmatprep.subr.mxu0 0.0
    %194 = vmatpush1.msra.mxu0 %v61
    %195 = vmatprep.subr.mxu0 0.0
    %196 = vmatpush1.msra.mxu0 %v62
    %197 = vmatprep.mubr.f32.mxu0 %v126
    %198 = vmatmul.mubr.f32.gmra.mrb[0].mxu0 %v119
    %v199 = vpop.f32.mrb[0].mxu0
    %v200 = vadd.f32 %v100, %v199
    %v201 = vpop.f32.mrb[0].mxu0
    %202 = vdwg.mxu0
    %203 = vmatprep.subr.mxu0 0.0
    %204 = vmatpush1.msra.mxu0 %v63
    %205 = vmatprep.subr.mxu0 0.0
    %206 = vmatpush1.msra.mxu0 %v64
    %207 = vmatprep.subr.mxu0 0.0
    %208 = vmatpush1.msra.mxu0 %v65
    %209 = vmatprep.subr.mxu0 0.0
    %210 = vmatpush1.msra.mxu0 %v66
    %211 = vmatprep.subr.mxu0 0.0
    %212 = vmatpush1.msra.mxu0 %v67
    %213 = vmatprep.subr.mxu0 0.0
    %214 = vmatpush1.msra.mxu0 %v68
    %215 = vmatprep.subr.mxu0 0.0
    %216 = vmatpush1.msra.mxu0 %v69
    %217 = vmatprep.subr.mxu0 0.0
    %218 = vmatpush1.msra.mxu0 %v70
    %219 = vmatprep.subr.mxu0 0.0
    %220 = vmatpush1.msra.mxu0 %v71
    %221 = vmatprep.subr.mxu0 0.0
    %222 = vmatpush1.msra.mxu0 %v72
    %223 = vmatprep.subr.mxu0 0.0
    %224 = vmatpush1.msra.mxu0 %v73
    %225 = vmatprep.subr.mxu0 0.0
    %226 = vmatpush1.msra.mxu0 %v74
    %227 = vmatprep.subr.mxu0 0.0
    %228 = vmatpush1.msra.mxu0 %v75
    %229 = vmatprep.subr.mxu0 0.0
    %230 = vmatpush1.msra.mxu0 %v76
    %231 = vmatprep.subr.mxu0 0.0
    %232 = vmatpush1.msra.mxu0 %v77
    %233 = vmatprep.subr.mxu0 0.0
    %234 = vmatpush1.msra.mxu0 %v78
    %235 = vmatprep.subr.mxu0 0.0
    %236 = vmatpush1.msra.mxu0 %v79
    %237 = vmatprep.subr.mxu0 0.0
    %238 = vmatpush1.msra.mxu0 %v80
    %239 = vmatprep.subr.mxu0 0.0
    %240 = vmatpush1.msra.mxu0 %v81
    %241 = vmatprep.subr.mxu0 0.0
    %242 = vmatpush1.msra.mxu0 %v82
    %243 = vmatprep.subr.mxu0 0.0
    %244 = vmatpush1.msra.mxu0 %v83
    %245 = vmatprep.subr.mxu0 0.0
    %246 = vmatpush1.msra.mxu0 %v84
    %247 = vmatprep.subr.mxu0 0.0
    %248 = vmatpush1.msra.mxu0 %v85
    %249 = vmatprep.subr.mxu0 0.0
    %250 = vmatpush1.msra.mxu0 %v86
    %251 = vmatprep.subr.mxu0 0.0
    %252 = vmatpush1.msra.mxu0 %v87
    %253 = vmatprep.subr.mxu0 0.0
    %254 = vmatpush1.msra.mxu0 %v88
    %255 = vmatprep.subr.mxu0 0.0
    %256 = vmatpush1.msra.mxu0 %v89
    %257 = vmatprep.subr.mxu0 0.0
    %258 = vmatpush1.msra.mxu0 %v90
    %259 = vmatprep.subr.mxu0 0.0
    %260 = vmatpush1.msra.mxu0 %v91
    %261 = vmatprep.subr.mxu0 0.0
    %262 = vmatpush1.msra.mxu0 %v92
    %263 = vmatprep.subr.mxu0 0.0
    %264 = vmatpush1.msra.mxu0 %v93
    %265 = vmatprep.subr.mxu0 0.0
    %266 = vmatpush1.msra.mxu0 %v94
    %267 = vmatprep.mubr.f32.mxu0 %v128
    %268 = vmatmul.mubr.f32.gmra.mrb[0].mxu0 %v127
    %v269 = vpop.f32.mrb[0].mxu0
    %v270 = vadd.f32 %v200, %v269
    %v271 = vpop.f32.mrb[0].mxu0
    %272 = vdwg.mxu0
    %vm273 = vcmask 74752
    %274 = vst.msk [vmem:[#allocation5] sm:$0x3] %vm273, %v270
    // Predicated region
    $region18: #{resnet_forward.27} parent=1 // pred_check
      _
    $region19: #{resnet_forward.27} parent=1 // pred_check_branch
      %276 = sbr.rel (0) target = $region21
    $region20: #{resnet_forward.27} parent=1 // pred_region
      %s278 = ssub.s32 32, 32
      %279 = vsyncadd [#allocation4], %s278
      %s281 = sshll.u32 [#allocation5], 4
      %s282 = int_to_ptr.vmem [resolvable:$true] %s281
      %284 = dma.vmem_to_hbm [thread:$0]  %s282, 32, %s3, [#allocation4]
    $region21: #{resnet_forward.27} parent=1 // pred_fallthru
      _
    // Predicated region
    $region22: #{resnet_forward.27} parent=1 // pred_check
      _
    $region23: #{resnet_forward.27} parent=1 // pred_check_branch
      %286 = sbr.rel (0) target = $region25
    $region24: #{resnet_forward.27} parent=1 // pred_region
      %287 = dma.done [#allocation4], 32
    $region25: #{resnet_forward.27} parent=1 // pred_fallthru
      _
    %288 = vsyncpa [#allocation3], 1
    %289 = vsyncpa [#allocation4], 1

</llo_original>
